<compile_context>
chip_gen: v5e
topology: v5e:2x2
jax: 0.10.0
libtpu: 0.0.40
codegen_flags: <defaults>
</compile_context>

<pallas_src>
import functools

import jax
import jax.numpy as jnp
import numpy as np
from jax.experimental import pallas as pl
from jax.experimental.pallas import tpu as pltpu

C_IN = 3    # conv1 in
C1 = 16     # conv1 out
C2 = 8      # conv2 out
C3 = 16     # conv3 out (adjusted, see TODO above)
C4 = 10     # conv4 out


def _round_up(x, m):
    return ((x + m - 1) // m) * m


def _pick_row_tile(H, W, max_tile_pixels=16384, min_tiles=4):
    """Largest row tile TH with H % TH == 0, lane-dense output (TH*W % 128 == 0),
    TH*W <= max_tile_pixels, preferring >= min_tiles tiles (pipeline depth +
    2-TC sharding).  Falls back to the whole image (always a legal block)."""
    ok = [d for d in range(1, H + 1)
          if H % d == 0 and (d * W) % 128 == 0 and d * W <= max_tile_pixels]
    if not ok:
        return H
    pref = [d for d in ok if H // d >= min_tiles]
    return max(pref) if pref else max(ok)


def _fused_forward_kernel(x_cur_ref, x_prev_ref, x_next_ref, colmask_ref,
                          w1_ref, b1_ref, w2_ref, b2_ref, w3_ref, b3_ref,
                          w4_ref, b4_ref, out_ref, v7_scr,
                          *, TH, W, n_row_tiles):
    TP = TH * W
    PAD = _round_up(W + 1, 128)      # zero pad so every tap slice stays in bounds
    i = pl.program_id(1)

    # ---- halo rows: last row of the tile above, first row of the tile below.
    x_top = x_prev_ref[0, :, pl.ds((TH - 1) * W, W)]            # (C_IN, W)
    x_bot = x_next_ref[0, :, pl.ds(0, W)]                       # (C_IN, W)
    # One lane-dense operand for the whole 1x1 chain: main tile + 2 halo rows.
    x_ext = jnp.concatenate([x_cur_ref[0], x_top, x_bot], axis=1)   # (C_IN, TP+2W)

    # ---- three 1x1 convs = channel-mixing matmuls (channels on sublanes,
    #      pixels on lanes); f32 MXU accumulate, sigmoids on the EUP.
    v2 = jax.nn.sigmoid(
        jnp.dot(w1_ref[...], x_ext, preferred_element_type=jnp.float32) + b1_ref[...])
    v4 = jax.nn.sigmoid(
        jnp.dot(w2_ref[...], v2, preferred_element_type=jnp.float32) + b2_ref[...])
    v6 = jax.nn.sigmoid(
        jnp.dot(w3_ref[...], v4, preferred_element_type=jnp.float32) + b3_ref[...])
    v7 = v2 + v6                                                # (C3, TP + 2W)

    v7_main = v7[:, :TP]
    # conv4 uses zero padding: rows outside the image contribute 0.
    gate_top = (i > 0).astype(jnp.float32)
    gate_bot = (i < n_row_tiles - 1).astype(jnp.float32)
    v7_top = v7[:, TP:TP + W] * gate_top                        # (C3, W)
    v7_bot = v7[:, TP + W:] * gate_bot                          # (C3, W)

    # ---- column-edge masks (compile-time constants, passed in once / resident).
    not_lastc = colmask_ref[0:1, :]     # 0 where col == W-1 (sources of dx = -1 taps)
    not_firstc = colmask_ref[1:2, :]    # 0 where col == 0   (sources of dx = +1 taps)

    # ---- write v7 (+ halo rows, zero side pads) into VMEM scratch in three
    #      variants.  Every 3x3 tap then becomes a plain shifted slice load
    #      with NO per-tap masks, rolls, or div/mod.
    zpad = jnp.zeros((C3, PAD - W), jnp.float32)
    variants = ((0, None), (1, not_lastc), (2, not_firstc))
    for k, m in variants:
        vm = v7_main if m is None else v7_main * m
        vt = v7_top if m is None else v7_top * m[:, :W]
        vb = v7_bot if m is None else v7_bot * m[:, :W]
        v7_scr[k, :, 0:PAD] = jnp.concatenate([zpad, vt], axis=1)        # [zeros | top row]
        v7_scr[k, :, PAD:PAD + TP] = vm                                  # main tile (aligned)
        v7_scr[k, :, PAD + TP:PAD + TP + PAD] = jnp.concatenate([vb, zpad], axis=1)

    # ---- conv4 (3x3, pad=1): one (C4, 48) @ (48, TP) matmul per kernel row,
    #      accumulated in f32; the (144, TP) im2col is never materialized.
    acc = jnp.zeros((C4, TP), jnp.float32)
    for g, dy in enumerate((-1, 0, 1)):
        base = PAD + dy * W
        tap_l = v7_scr[1, :, pl.ds(base - 1, TP)]                        # dx = -1
        tap_c = v7_main if dy == 0 else v7_scr[0, :, pl.ds(base, TP)]    # dx =  0
        tap_r = v7_scr[2, :, pl.ds(base + 1, TP)]                        # dx = +1
        tap = jnp.concatenate([tap_l, tap_c, tap_r], axis=0)             # (3*C3, TP)
        acc = acc + jnp.dot(w4_ref[g], tap, preferred_element_type=jnp.float32)

    out_ref[0] = jax.nn.sigmoid(acc + b4_ref[...])                       # (C4, TP)


def _build_forward(N, H, W, TH, resident_weights):
    T = H // TH
    TP = TH * W
    P = H * W
    PAD = _round_up(W + 1, 128)

    def const_spec(shape):
        imap = lambda n, i, _z=(0,) * len(shape): _z
        if resident_weights:
            # Constant operands: single-buffered / resident (review item).
            return pl.BlockSpec(shape, imap, pipeline_mode=pl.Buffered(1))
        return pl.BlockSpec(shape, imap)

    kernel = functools.partial(_fused_forward_kernel, TH=TH, W=W, n_row_tiles=T)
    return pl.pallas_call(
        kernel,
        out_shape=jax.ShapeDtypeStruct((N, C4, P), jnp.float32),
        grid=(N, T),
        in_specs=[
            pl.BlockSpec((1, C_IN, TP), lambda n, i: (n, 0, i)),
            pl.BlockSpec((1, C_IN, TP),
                         lambda n, i: (n, 0, jnp.maximum(i - 1, 0))),
            pl.BlockSpec((1, C_IN, TP),
                         lambda n, i: (n, 0, jnp.minimum(i + 1, T - 1))),
            const_spec((2, TP)),               # column-edge masks
            const_spec((C1, C_IN)), const_spec((C1, 1)),
            const_spec((C2, C1)), const_spec((C2, 1)),
            const_spec((C3, C2)), const_spec((C3, 1)),
            const_spec((3, C4, 3 * C3)), const_spec((C4, 1)),
        ],
        out_specs=pl.BlockSpec((1, C4, TP), lambda n, i: (n, 0, i)),
        scratch_shapes=[pltpu.VMEM((3, C3, PAD + TP + PAD), jnp.float32)],
        compiler_params=pltpu.CompilerParams(
            dimension_semantics=("parallel", "parallel"),
            vmem_limit_bytes=48 * 1024 * 1024),
    )


def model_forward(x_nchw, params, row_tile=None):
    N, cin, H, W = x_nchw.shape
    assert cin == C_IN
    TH = _pick_row_tile(H, W) if row_tile is None else row_tile
    assert H % TH == 0
    TP = TH * W
    P = H * W
    x_flat = x_nchw.reshape(N, C_IN, P)      # free reshape, NCHW is row-major contiguous
    w1, b1, w2, b2, w3, b3, w4_g, b4 = params

    # Column-edge masks for the 3x3 taps (compile-time constants for a given
    # W / tile; passed in once instead of per-tap iota // %).
    col = np.arange(TP, dtype=np.int64) % W
    col_masks = jnp.asarray(
        np.stack([(col != W - 1), (col != 0)]).astype(np.float32))       # (2, TP)

    args = (x_flat, x_flat, x_flat, col_masks, w1, b1, w2, b2, w3, b3, w4_g, b4)
    try:
        out_flat = _build_forward(N, H, W, TH, resident_weights=True)(*args)
    except Exception:
        # Fallback if this Pallas version rejects pl.Buffered(1) on inputs.
        out_flat = _build_forward(N, H, W, TH, resident_weights=False)(*args)
    return out_flat.reshape(N, C4, H, W)


def _reference(x_nchw, params):
    """Pure-JAX reference (NCHW), full f32 precision."""
    w1, b1, w2, b2, w3, b3, w4_oihw, b4 = params
    hp = jax.lax.Precision.HIGHEST

    def conv1x1(t, w, b):
        return jnp.einsum('oc,nchw->nohw', w, t, precision=hp) + b.reshape(1, -1, 1, 1)

    v2 = jax.nn.sigmoid(conv1x1(x_nchw, w1, b1))
    v4 = jax.nn.sigmoid(conv1x1(v2, w2, b2))
    v6 = jax.nn.sigmoid(conv1x1(v4, w3, b3))
    v7 = v2 + v6
    v8 = jax.lax.conv_general_dilated(
        v7, w4_oihw, (1, 1), ((1, 1), (1, 1)),
        dimension_numbers=('NCHW', 'OIHW', 'NCHW'),
        precision=hp) + b4.reshape(1, -1, 1, 1)
    return jax.nn.sigmoid(v8)


if __name__ == "__main__":
    key = jax.random.PRNGKey(0)
    ks = jax.random.split(key, 9)
    # Module spec uses (1, 3, 64, 64); batch 2 also exercises the batch grid axis.
    N, H, W = 2, 64, 64

    x = jax.random.normal(ks[0], (N, C_IN, H, W), jnp.float32)

    def uinit(k, shape, fan_in):
        bound = 1.0 / (fan_in ** 0.5)
        return jax.random.uniform(k, shape, jnp.float32, -bound, bound)

    w1 = uinit(ks[1], (C1, C_IN), C_IN)
    b1 = uinit(ks[2], (C1, 1), C_IN)
    w2 = uinit(ks[3], (C2, C1), C1)
    b2 = uinit(ks[4], (C2, 1), C1)
    w3 = uinit(ks[5], (C3, C2), C2)
    b3 = uinit(ks[6], (C3, 1), C2)
    w4_oihw = uinit(ks[7], (C4, C3, 3, 3), 9 * C3)
    b4 = uinit(ks[8], (C4, 1), 9 * C3)

    # conv4 weight grouped by kernel row: w4_g[kh, o, kw*C3 + c] == w4_oihw[o, c, kh, kw]
    w4_g = jnp.transpose(w4_oihw, (2, 0, 3, 1)).reshape(3, C4, 3 * C3)

    params_kernel = (w1, b1, w2, b2, w3, b3, w4_g, b4)
    params_ref = (w1, b1, w2, b2, w3, b3, w4_oihw, b4)

    out = jax.block_until_ready(model_forward(x, params_kernel))
    assert out.shape == (N, C4, H, W), out.shape

    ref = jax.block_until_ready(_reference(x, params_ref))
    # Tight f32 tolerance (typical agreement ~1e-6); small headroom only for
    # MXU pass-decomposition / EUP transcendental differences, so any layout,
    # halo or mask bug (>= 1e-2) cannot hide.
    if not jnp.allclose(out, ref, atol=2e-5, rtol=2e-5):
        raise AssertionError("Pallas kernel output does not match JAX reference")

    print("KERNEL_OK")
</pallas_src>

<mosaic_0001>
module attributes {stable_mosaic.version = 11 : i64} {
  func.func @_fused_forward_kernel(%arg0: i32, %arg1: i32, %arg2: memref<1x3x1024xf32, #tpu.memory_space<vmem>>, %arg3: memref<1x3x1024xf32, #tpu.memory_space<vmem>>, %arg4: memref<1x3x1024xf32, #tpu.memory_space<vmem>>, %arg5: memref<2x1024xf32, #tpu.memory_space<vmem>>, %arg6: memref<16x3xf32, #tpu.memory_space<vmem>>, %arg7: memref<16x1xf32, #tpu.memory_space<vmem>>, %arg8: memref<8x16xf32, #tpu.memory_space<vmem>>, %arg9: memref<8x1xf32, #tpu.memory_space<vmem>>, %arg10: memref<16x8xf32, #tpu.memory_space<vmem>>, %arg11: memref<16x1xf32, #tpu.memory_space<vmem>>, %arg12: memref<3x10x48xf32, #tpu.memory_space<vmem>>, %arg13: memref<10x1xf32, #tpu.memory_space<vmem>>, %arg14: memref<1x10x1024xf32, #tpu.memory_space<vmem>>, %arg15: memref<3x16x1280xf32, #tpu.memory_space<vmem>>) attributes {dimension_semantics = [#tpu.dimension_semantics<parallel>, #tpu.dimension_semantics<parallel>], iteration_bounds = array<i64: 2, 4>, scalar_prefetch = 0 : i64, scratch_operands = 1 : i64, tpu.core_type = #tpu.core_type<tc>, window_params = [{transform_indices = @transform_0, window_bounds = array<i64: 1, 3, 1024>}, {transform_indices = @transform_1, window_bounds = array<i64: 1, 3, 1024>}, {transform_indices = @transform_2, window_bounds = array<i64: 1, 3, 1024>}, {pipeline_mode = #tpu.pipeline_mode<synchronous>, transform_indices = @transform_3, window_bounds = array<i64: 2, 1024>}, {pipeline_mode = #tpu.pipeline_mode<synchronous>, transform_indices = @transform_4, window_bounds = array<i64: 16, 3>}, {pipeline_mode = #tpu.pipeline_mode<synchronous>, transform_indices = @transform_5, window_bounds = array<i64: 16, 1>}, {pipeline_mode = #tpu.pipeline_mode<synchronous>, transform_indices = @transform_6, window_bounds = array<i64: 8, 16>}, {pipeline_mode = #tpu.pipeline_mode<synchronous>, transform_indices = @transform_7, window_bounds = array<i64: 8, 1>}, {pipeline_mode = #tpu.pipeline_mode<synchronous>, transform_indices = @transform_8, window_bounds = array<i64: 16, 8>}, {pipeline_mode = #tpu.pipeline_mode<synchronous>, transform_indices = @transform_9, window_bounds = array<i64: 16, 1>}, {pipeline_mode = #tpu.pipeline_mode<synchronous>, transform_indices = @transform_10, window_bounds = array<i64: 3, 10, 48>}, {pipeline_mode = #tpu.pipeline_mode<synchronous>, transform_indices = @transform_11, window_bounds = array<i64: 10, 1>}, {transform_indices = @transform_12, window_bounds = array<i64: 1, 10, 1024>}]} {
    %c0 = arith.constant 0 : index
    %c0_0 = arith.constant 0 : index
    %c960 = arith.constant 960 : index
    %0 = vector.load %arg3[%c0, %c0_0, %c960] : memref<1x3x1024xf32, #tpu.memory_space<vmem>>, vector<1x3x64xf32>
    %1 = vector.shape_cast %0 : vector<1x3x64xf32> to vector<3x64xf32>
    %c0_1 = arith.constant 0 : index
    %c0_2 = arith.constant 0 : index
    %c0_3 = arith.constant 0 : index
    %2 = vector.load %arg4[%c0_1, %c0_2, %c0_3] : memref<1x3x1024xf32, #tpu.memory_space<vmem>>, vector<1x3x64xf32>
    %3 = vector.shape_cast %2 : vector<1x3x64xf32> to vector<3x64xf32>
    %c0_4 = arith.constant 0 : index
    %c0_5 = arith.constant 0 : index
    %c0_6 = arith.constant 0 : index
    %4 = vector.load %arg2[%c0_4, %c0_5, %c0_6] : memref<1x3x1024xf32, #tpu.memory_space<vmem>>, vector<1x3x1024xf32>
    %5 = vector.shape_cast %4 : vector<1x3x1024xf32> to vector<3x1024xf32>
    %6 = tpu.concatenate %5, %1, %3 in 1 : vector<3x1024xf32>, vector<3x64xf32>, vector<3x64xf32> -> vector<3x1152xf32>
    %c0_7 = arith.constant 0 : index
    %c0_8 = arith.constant 0 : index
    %7 = vector.load %arg6[%c0_7, %c0_8] : memref<16x3xf32, #tpu.memory_space<vmem>>, vector<16x3xf32>
    %cst = arith.constant dense<0.000000e+00> : vector<16x1152xf32>
    %8 = tpu.matmul %7, %6, %cst {dimension_numbers = #tpu.dot_dimension_numbers<[1], [0], [0], [1], [0, 0, 1, 1], [], []>} : vector<16x3xf32>, vector<3x1152xf32>, vector<16x1152xf32> -> vector<16x1152xf32>
    %c0_9 = arith.constant 0 : index
    %c0_10 = arith.constant 0 : index
    %9 = vector.load %arg7[%c0_9, %c0_10] : memref<16x1xf32, #tpu.memory_space<vmem>>, vector<16x1xf32>
    %10 = vector.broadcast %9 : vector<16x1xf32> to vector<16x1152xf32>
    %11 = arith.addf %8, %10 : vector<16x1152xf32>
    %12 = arith.negf %11 : vector<16x1152xf32>
    %13 = math.exp %12 : vector<16x1152xf32>
    %cst_11 = arith.constant 1.000000e+00 : f32
    %14 = vector.broadcast %cst_11 : f32 to vector<16x1152xf32>
    %15 = arith.addf %14, %13 : vector<16x1152xf32>
    %16 = arith.divf %14, %15 : vector<16x1152xf32>
    %c0_12 = arith.constant 0 : index
    %c0_13 = arith.constant 0 : index
    %17 = vector.load %arg8[%c0_12, %c0_13] : memref<8x16xf32, #tpu.memory_space<vmem>>, vector<8x16xf32>
    %cst_14 = arith.constant dense<0.000000e+00> : vector<8x1152xf32>
    %18 = tpu.matmul %17, %16, %cst_14 {dimension_numbers = #tpu.dot_dimension_numbers<[1], [0], [0], [1], [0, 0, 1, 1], [], []>} : vector<8x16xf32>, vector<16x1152xf32>, vector<8x1152xf32> -> vector<8x1152xf32>
    %c0_15 = arith.constant 0 : index
    %c0_16 = arith.constant 0 : index
    %19 = vector.load %arg9[%c0_15, %c0_16] : memref<8x1xf32, #tpu.memory_space<vmem>>, vector<8x1xf32>
    %20 = vector.broadcast %19 : vector<8x1xf32> to vector<8x1152xf32>
    %21 = arith.addf %18, %20 : vector<8x1152xf32>
    %22 = arith.negf %21 : vector<8x1152xf32>
    %23 = math.exp %22 : vector<8x1152xf32>
    %cst_17 = arith.constant 1.000000e+00 : f32
    %24 = vector.broadcast %cst_17 : f32 to vector<8x1152xf32>
    %25 = arith.addf %24, %23 : vector<8x1152xf32>
    %26 = arith.divf %24, %25 : vector<8x1152xf32>
    %c0_18 = arith.constant 0 : index
    %c0_19 = arith.constant 0 : index
    %27 = vector.load %arg10[%c0_18, %c0_19] : memref<16x8xf32, #tpu.memory_space<vmem>>, vector<16x8xf32>
    %cst_20 = arith.constant dense<0.000000e+00> : vector<16x1152xf32>
    %28 = tpu.matmul %27, %26, %cst_20 {dimension_numbers = #tpu.dot_dimension_numbers<[1], [0], [0], [1], [0, 0, 1, 1], [], []>} : vector<16x8xf32>, vector<8x1152xf32>, vector<16x1152xf32> -> vector<16x1152xf32>
    %c0_21 = arith.constant 0 : index
    %c0_22 = arith.constant 0 : index
    %29 = vector.load %arg11[%c0_21, %c0_22] : memref<16x1xf32, #tpu.memory_space<vmem>>, vector<16x1xf32>
    %30 = vector.broadcast %29 : vector<16x1xf32> to vector<16x1152xf32>
    %31 = arith.addf %28, %30 : vector<16x1152xf32>
    %32 = arith.negf %31 : vector<16x1152xf32>
    %33 = math.exp %32 : vector<16x1152xf32>
    %cst_23 = arith.constant 1.000000e+00 : f32
    %34 = vector.broadcast %cst_23 : f32 to vector<16x1152xf32>
    %35 = arith.addf %34, %33 : vector<16x1152xf32>
    %36 = arith.divf %34, %35 : vector<16x1152xf32>
    %37 = arith.addf %16, %36 : vector<16x1152xf32>
    %38 = vector.extract_strided_slice %37 {offsets = [0, 0], sizes = [16, 1024], strides = [1, 1]} : vector<16x1152xf32> to vector<16x1024xf32>
    %c0_i32 = arith.constant 0 : i32
    %39 = arith.cmpi sgt, %arg1, %c0_i32 : i32
    %40 = arith.extui %39 : i1 to i32
    %41 = arith.sitofp %40 : i32 to f32
    %c3_i32 = arith.constant 3 : i32
    %42 = arith.cmpi slt, %arg1, %c3_i32 : i32
    %43 = arith.extui %42 : i1 to i32
    %44 = arith.sitofp %43 : i32 to f32
    %45 = vector.extract_strided_slice %37 {offsets = [0, 1024], sizes = [16, 64], strides = [1, 1]} : vector<16x1152xf32> to vector<16x64xf32>
    %46 = vector.broadcast %41 : f32 to vector<16x64xf32>
    %47 = arith.mulf %45, %46 : vector<16x64xf32>
    %48 = vector.extract_strided_slice %37 {offsets = [0, 1088], sizes = [16, 64], strides = [1, 1]} : vector<16x1152xf32> to vector<16x64xf32>
    %49 = vector.broadcast %44 : f32 to vector<16x64xf32>
    %50 = arith.mulf %48, %49 : vector<16x64xf32>
    %c0_24 = arith.constant 0 : index
    %c0_25 = arith.constant 0 : index
    %51 = vector.load %arg5[%c0_24, %c0_25] : memref<2x1024xf32, #tpu.memory_space<vmem>>, vector<1x1024xf32>
    %c1 = arith.constant 1 : index
    %c0_26 = arith.constant 0 : index
    %52 = vector.load %arg5[%c1, %c0_26] : memref<2x1024xf32, #tpu.memory_space<vmem>>, vector<1x1024xf32>
    %cst_27 = arith.constant 0.000000e+00 : f32
    %53 = vector.broadcast %cst_27 : f32 to vector<16x64xf32>
    %54 = tpu.concatenate %53, %47 in 1 : vector<16x64xf32>, vector<16x64xf32> -> vector<16x128xf32>
    %c0_28 = arith.constant 0 : index
    %c0_29 = arith.constant 0 : index
    %c0_30 = arith.constant 0 : index
    %55 = vector.load %arg15[%c0_28, %c0_29, %c0_30] : memref<3x16x1280xf32, #tpu.memory_space<vmem>>, vector<1x16x128xf32>
    %56 = vector.shape_cast %55 : vector<1x16x128xf32> to vector<16x128xf32>
    %57 = vector.shape_cast %54 : vector<16x128xf32> to vector<1x16x128xf32>
    tpu.vector_store %arg15[%c0_28, %c0_29, %c0_30], %57 {strides = array<i32>} : memref<3x16x1280xf32, #tpu.memory_space<vmem>>, vector<1x16x128xf32>,
    %c0_31 = arith.constant 0 : index
    %c0_32 = arith.constant 0 : index
    %c128 = arith.constant 128 : index
    %58 = vector.load %arg15[%c0_31, %c0_32, %c128] : memref<3x16x1280xf32, #tpu.memory_space<vmem>>, vector<1x16x1024xf32>
    %59 = vector.shape_cast %58 : vector<1x16x1024xf32> to vector<16x1024xf32>
    %60 = vector.shape_cast %38 : vector<16x1024xf32> to vector<1x16x1024xf32>
    tpu.vector_store %arg15[%c0_31, %c0_32, %c128], %60 {strides = array<i32>} : memref<3x16x1280xf32, #tpu.memory_space<vmem>>, vector<1x16x1024xf32>,
    %61 = tpu.concatenate %50, %53 in 1 : vector<16x64xf32>, vector<16x64xf32> -> vector<16x128xf32>
    %c0_33 = arith.constant 0 : index
    %c0_34 = arith.constant 0 : index
    %c1152 = arith.constant 1152 : index
    %62 = vector.load %arg15[%c0_33, %c0_34, %c1152] : memref<3x16x1280xf32, #tpu.memory_space<vmem>>, vector<1x16x128xf32>
    %63 = vector.shape_cast %62 : vector<1x16x128xf32> to vector<16x128xf32>
    %64 = vector.shape_cast %61 : vector<16x128xf32> to vector<1x16x128xf32>
    tpu.vector_store %arg15[%c0_33, %c0_34, %c1152], %64 {strides = array<i32>} : memref<3x16x1280xf32, #tpu.memory_space<vmem>>, vector<1x16x128xf32>,
    %65 = vector.broadcast %51 : vector<1x1024xf32> to vector<16x1024xf32>
    %66 = arith.mulf %38, %65 : vector<16x1024xf32>
    %67 = vector.extract_strided_slice %51 {offsets = [0, 0], sizes = [1, 64], strides = [1, 1]} : vector<1x1024xf32> to vector<1x64xf32>
    %68 = vector.broadcast %67 : vector<1x64xf32> to vector<16x64xf32>
    %69 = arith.mulf %47, %68 : vector<16x64xf32>
    %70 = vector.extract_strided_slice %51 {offsets = [0, 0], sizes = [1, 64], strides = [1, 1]} : vector<1x1024xf32> to vector<1x64xf32>
    %71 = vector.broadcast %70 : vector<1x64xf32> to vector<16x64xf32>
    %72 = arith.mulf %50, %71 : vector<16x64xf32>
    %73 = tpu.concatenate %53, %69 in 1 : vector<16x64xf32>, vector<16x64xf32> -> vector<16x128xf32>
    %c1_35 = arith.constant 1 : index
    %c0_36 = arith.constant 0 : index
    %c0_37 = arith.constant 0 : index
    %74 = vector.load %arg15[%c1_35, %c0_36, %c0_37] : memref<3x16x1280xf32, #tpu.memory_space<vmem>>, vector<1x16x128xf32>
    %75 = vector.shape_cast %74 : vector<1x16x128xf32> to vector<16x128xf32>
    %76 = vector.shape_cast %73 : vector<16x128xf32> to vector<1x16x128xf32>
    tpu.vector_store %arg15[%c1_35, %c0_36, %c0_37], %76 {strides = array<i32>} : memref<3x16x1280xf32, #tpu.memory_space<vmem>>, vector<1x16x128xf32>,
    %c1_38 = arith.constant 1 : index
    %c0_39 = arith.constant 0 : index
    %c128_40 = arith.constant 128 : index
    %77 = vector.load %arg15[%c1_38, %c0_39, %c128_40] : memref<3x16x1280xf32, #tpu.memory_space<vmem>>, vector<1x16x1024xf32>
    %78 = vector.shape_cast %77 : vector<1x16x1024xf32> to vector<16x1024xf32>
    %79 = vector.shape_cast %66 : vector<16x1024xf32> to vector<1x16x1024xf32>
    tpu.vector_store %arg15[%c1_38, %c0_39, %c128_40], %79 {strides = array<i32>} : memref<3x16x1280xf32, #tpu.memory_space<vmem>>, vector<1x16x1024xf32>,
    %80 = tpu.concatenate %72, %53 in 1 : vector<16x64xf32>, vector<16x64xf32> -> vector<16x128xf32>
    %c1_41 = arith.constant 1 : index
    %c0_42 = arith.constant 0 : index
    %c1152_43 = arith.constant 1152 : index
    %81 = vector.load %arg15[%c1_41, %c0_42, %c1152_43] : memref<3x16x1280xf32, #tpu.memory_space<vmem>>, vector<1x16x128xf32>
    %82 = vector.shape_cast %81 : vector<1x16x128xf32> to vector<16x128xf32>
    %83 = vector.shape_cast %80 : vector<16x128xf32> to vector<1x16x128xf32>
    tpu.vector_store %arg15[%c1_41, %c0_42, %c1152_43], %83 {strides = array<i32>} : memref<3x16x1280xf32, #tpu.memory_space<vmem>>, vector<1x16x128xf32>,
    %84 = vector.broadcast %52 : vector<1x1024xf32> to vector<16x1024xf32>
    %85 = arith.mulf %38, %84 : vector<16x1024xf32>
    %86 = vector.extract_strided_slice %52 {offsets = [0, 0], sizes = [1, 64], strides = [1, 1]} : vector<1x1024xf32> to vector<1x64xf32>
    %87 = vector.broadcast %86 : vector<1x64xf32> to vector<16x64xf32>
    %88 = arith.mulf %47, %87 : vector<16x64xf32>
    %89 = vector.extract_strided_slice %52 {offsets = [0, 0], sizes = [1, 64], strides = [1, 1]} : vector<1x1024xf32> to vector<1x64xf32>
    %90 = vector.broadcast %89 : vector<1x64xf32> to vector<16x64xf32>
    %91 = arith.mulf %50, %90 : vector<16x64xf32>
    %92 = tpu.concatenate %53, %88 in 1 : vector<16x64xf32>, vector<16x64xf32> -> vector<16x128xf32>
    %c2 = arith.constant 2 : index
    %c0_44 = arith.constant 0 : index
    %c0_45 = arith.constant 0 : index
    %93 = vector.load %arg15[%c2, %c0_44, %c0_45] : memref<3x16x1280xf32, #tpu.memory_space<vmem>>, vector<1x16x128xf32>
    %94 = vector.shape_cast %93 : vector<1x16x128xf32> to vector<16x128xf32>
    %95 = vector.shape_cast %92 : vector<16x128xf32> to vector<1x16x128xf32>
    tpu.vector_store %arg15[%c2, %c0_44, %c0_45], %95 {strides = array<i32>} : memref<3x16x1280xf32, #tpu.memory_space<vmem>>, vector<1x16x128xf32>,
    %c2_46 = arith.constant 2 : index
    %c0_47 = arith.constant 0 : index
    %c128_48 = arith.constant 128 : index
    %96 = vector.load %arg15[%c2_46, %c0_47, %c128_48] : memref<3x16x1280xf32, #tpu.memory_space<vmem>>, vector<1x16x1024xf32>
    %97 = vector.shape_cast %96 : vector<1x16x1024xf32> to vector<16x1024xf32>
    %98 = vector.shape_cast %85 : vector<16x1024xf32> to vector<1x16x1024xf32>
    tpu.vector_store %arg15[%c2_46, %c0_47, %c128_48], %98 {strides = array<i32>} : memref<3x16x1280xf32, #tpu.memory_space<vmem>>, vector<1x16x1024xf32>,
    %99 = tpu.concatenate %91, %53 in 1 : vector<16x64xf32>, vector<16x64xf32> -> vector<16x128xf32>
    %c2_49 = arith.constant 2 : index
    %c0_50 = arith.constant 0 : index
    %c1152_51 = arith.constant 1152 : index
    %100 = vector.load %arg15[%c2_49, %c0_50, %c1152_51] : memref<3x16x1280xf32, #tpu.memory_space<vmem>>, vector<1x16x128xf32>
    %101 = vector.shape_cast %100 : vector<1x16x128xf32> to vector<16x128xf32>
    %102 = vector.shape_cast %99 : vector<16x128xf32> to vector<1x16x128xf32>
    tpu.vector_store %arg15[%c2_49, %c0_50, %c1152_51], %102 {strides = array<i32>} : memref<3x16x1280xf32, #tpu.memory_space<vmem>>, vector<1x16x128xf32>,
    %cst_52 = arith.constant 0.000000e+00 : f32
    %103 = vector.broadcast %cst_52 : f32 to vector<10x1024xf32>
    %c1_53 = arith.constant 1 : index
    %c0_54 = arith.constant 0 : index
    %c63 = arith.constant 63 : index
    %104 = vector.load %arg15[%c1_53, %c0_54, %c63] : memref<3x16x1280xf32, #tpu.memory_space<vmem>>, vector<1x16x1024xf32>
    %105 = vector.shape_cast %104 : vector<1x16x1024xf32> to vector<16x1024xf32>
    %c0_55 = arith.constant 0 : index
    %c0_56 = arith.constant 0 : index
    %c64 = arith.constant 64 : index
    %106 = vector.load %arg15[%c0_55, %c0_56, %c64] : memref<3x16x1280xf32, #tpu.memory_space<vmem>>, vector<1x16x1024xf32>
    %107 = vector.shape_cast %106 : vector<1x16x1024xf32> to vector<16x1024xf32>
    %c2_57 = arith.constant 2 : index
    %c0_58 = arith.constant 0 : index
    %c65 = arith.constant 65 : index
    %108 = vector.load %arg15[%c2_57, %c0_58, %c65] : memref<3x16x1280xf32, #tpu.memory_space<vmem>>, vector<1x16x1024xf32>
    %109 = vector.shape_cast %108 : vector<1x16x1024xf32> to vector<16x1024xf32>
    %110 = tpu.concatenate %105, %107, %109 in 0 : vector<16x1024xf32>, vector<16x1024xf32>, vector<16x1024xf32> -> vector<48x1024xf32>
    %c0_59 = arith.constant 0 : index
    %c0_60 = arith.constant 0 : index
    %c0_61 = arith.constant 0 : index
    %111 = vector.load %arg12[%c0_59, %c0_60, %c0_61] : memref<3x10x48xf32, #tpu.memory_space<vmem>>, vector<1x10x48xf32>
    %112 = vector.shape_cast %111 : vector<1x10x48xf32> to vector<10x48xf32>
    %cst_62 = arith.constant dense<0.000000e+00> : vector<10x1024xf32>
    %113 = tpu.matmul %112, %110, %cst_62 {dimension_numbers = #tpu.dot_dimension_numbers<[1], [0], [0], [1], [0, 0, 1, 1], [], []>} : vector<10x48xf32>, vector<48x1024xf32>, vector<10x1024xf32> -> vector<10x1024xf32>
    %114 = arith.addf %103, %113 : vector<10x1024xf32>
    %c1_63 = arith.constant 1 : index
    %c0_64 = arith.constant 0 : index
    %c127 = arith.constant 127 : index
    %115 = vector.load %arg15[%c1_63, %c0_64, %c127] : memref<3x16x1280xf32, #tpu.memory_space<vmem>>, vector<1x16x1024xf32>
    %116 = vector.shape_cast %115 : vector<1x16x1024xf32> to vector<16x1024xf32>
    %c2_65 = arith.constant 2 : index
    %c0_66 = arith.constant 0 : index
    %c129 = arith.constant 129 : index
    %117 = vector.load %arg15[%c2_65, %c0_66, %c129] : memref<3x16x1280xf32, #tpu.memory_space<vmem>>, vector<1x16x1024xf32>
    %118 = vector.shape_cast %117 : vector<1x16x1024xf32> to vector<16x1024xf32>
    %119 = tpu.concatenate %116, %38, %118 in 0 : vector<16x1024xf32>, vector<16x1024xf32>, vector<16x1024xf32> -> vector<48x1024xf32>
    %c1_67 = arith.constant 1 : index
    %c0_68 = arith.constant 0 : index
    %c0_69 = arith.constant 0 : index
    %120 = vector.load %arg12[%c1_67, %c0_68, %c0_69] : memref<3x10x48xf32, #tpu.memory_space<vmem>>, vector<1x10x48xf32>
    %121 = vector.shape_cast %120 : vector<1x10x48xf32> to vector<10x48xf32>
    %cst_70 = arith.constant dense<0.000000e+00> : vector<10x1024xf32>
    %122 = tpu.matmul %121, %119, %cst_70 {dimension_numbers = #tpu.dot_dimension_numbers<[1], [0], [0], [1], [0, 0, 1, 1], [], []>} : vector<10x48xf32>, vector<48x1024xf32>, vector<10x1024xf32> -> vector<10x1024xf32>
    %123 = arith.addf %114, %122 : vector<10x1024xf32>
    %c1_71 = arith.constant 1 : index
    %c0_72 = arith.constant 0 : index
    %c191 = arith.constant 191 : index
    %124 = vector.load %arg15[%c1_71, %c0_72, %c191] : memref<3x16x1280xf32, #tpu.memory_space<vmem>>, vector<1x16x1024xf32>
    %125 = vector.shape_cast %124 : vector<1x16x1024xf32> to vector<16x1024xf32>
    %c0_73 = arith.constant 0 : index
    %c0_74 = arith.constant 0 : index
    %c192 = arith.constant 192 : index
    %126 = vector.load %arg15[%c0_73, %c0_74, %c192] : memref<3x16x1280xf32, #tpu.memory_space<vmem>>, vector<1x16x1024xf32>
    %127 = vector.shape_cast %126 : vector<1x16x1024xf32> to vector<16x1024xf32>
    %c2_75 = arith.constant 2 : index
    %c0_76 = arith.constant 0 : index
    %c193 = arith.constant 193 : index
    %128 = vector.load %arg15[%c2_75, %c0_76, %c193] : memref<3x16x1280xf32, #tpu.memory_space<vmem>>, vector<1x16x1024xf32>
    %129 = vector.shape_cast %128 : vector<1x16x1024xf32> to vector<16x1024xf32>
    %130 = tpu.concatenate %125, %127, %129 in 0 : vector<16x1024xf32>, vector<16x1024xf32>, vector<16x1024xf32> -> vector<48x1024xf32>
    %c2_77 = arith.constant 2 : index
    %c0_78 = arith.constant 0 : index
    %c0_79 = arith.constant 0 : index
    %131 = vector.load %arg12[%c2_77, %c0_78, %c0_79] : memref<3x10x48xf32, #tpu.memory_space<vmem>>, vector<1x10x48xf32>
    %132 = vector.shape_cast %131 : vector<1x10x48xf32> to vector<10x48xf32>
    %cst_80 = arith.constant dense<0.000000e+00> : vector<10x1024xf32>
    %133 = tpu.matmul %132, %130, %cst_80 {dimension_numbers = #tpu.dot_dimension_numbers<[1], [0], [0], [1], [0, 0, 1, 1], [], []>} : vector<10x48xf32>, vector<48x1024xf32>, vector<10x1024xf32> -> vector<10x1024xf32>
    %134 = arith.addf %123, %133 : vector<10x1024xf32>
    %c0_81 = arith.constant 0 : index
    %c0_82 = arith.constant 0 : index
    %135 = vector.load %arg13[%c0_81, %c0_82] : memref<10x1xf32, #tpu.memory_space<vmem>>, vector<10x1xf32>
    %136 = vector.broadcast %135 : vector<10x1xf32> to vector<10x1024xf32>
    %137 = arith.addf %134, %136 : vector<10x1024xf32>
    %138 = arith.negf %137 : vector<10x1024xf32>
    %139 = math.exp %138 : vector<10x1024xf32>
    %cst_83 = arith.constant 1.000000e+00 : f32
    %140 = vector.broadcast %cst_83 : f32 to vector<10x1024xf32>
    %141 = arith.addf %140, %139 : vector<10x1024xf32>
    %142 = arith.divf %140, %141 : vector<10x1024xf32>
    %c0_84 = arith.constant 0 : index
    %c0_85 = arith.constant 0 : index
    %c0_86 = arith.constant 0 : index
    %143 = vector.load %arg14[%c0_84, %c0_85, %c0_86] : memref<1x10x1024xf32, #tpu.memory_space<vmem>>, vector<1x10x1024xf32>
    %144 = vector.shape_cast %143 : vector<1x10x1024xf32> to vector<10x1024xf32>
    %145 = vector.shape_cast %142 : vector<10x1024xf32> to vector<1x10x1024xf32>
    tpu.vector_store %arg14[%c0_84, %c0_85, %c0_86], %145 {strides = array<i32>} : memref<1x10x1024xf32, #tpu.memory_space<vmem>>, vector<1x10x1024xf32>,
    return
  }
  func.func @transform_0(%arg0: i32, %arg1: i32) -> (i32, i32, i32) {
    %c0_i32 = arith.constant 0 : i32
    %c0_i32_0 = arith.constant 0 : i32
    return %arg0, %c0_i32, %arg1 : i32, i32, i32
  }
  func.func @transform_1(%arg0: i32, %arg1: i32) -> (i32, i32, i32) {
    %c1_i32 = arith.constant 1 : i32
    %0 = arith.subi %arg1, %c1_i32 : i32
    %c0_i32 = arith.constant 0 : i32
    %1 = arith.maxsi %0, %c0_i32 : i32
    %c0_i32_0 = arith.constant 0 : i32
    %c0_i32_1 = arith.constant 0 : i32
    return %arg0, %c0_i32_0, %1 : i32, i32, i32
  }
  func.func @transform_2(%arg0: i32, %arg1: i32) -> (i32, i32, i32) {
    %c1_i32 = arith.constant 1 : i32
    %0 = arith.addi %arg1, %c1_i32 : i32
    %c3_i32 = arith.constant 3 : i32
    %1 = arith.minsi %0, %c3_i32 : i32
    %c0_i32 = arith.constant 0 : i32
    %c0_i32_0 = arith.constant 0 : i32
    return %arg0, %c0_i32, %1 : i32, i32, i32
  }
  func.func @transform_3(%arg0: i32, %arg1: i32) -> (i32, i32) {
    %c0_i32 = arith.constant 0 : i32
    %c0_i32_0 = arith.constant 0 : i32
    %c0_i32_1 = arith.constant 0 : i32
    return %c0_i32, %c0_i32_0 : i32, i32
  }
  func.func @transform_4(%arg0: i32, %arg1: i32) -> (i32, i32) {
    %c0_i32 = arith.constant 0 : i32
    %c0_i32_0 = arith.constant 0 : i32
    %c0_i32_1 = arith.constant 0 : i32
    return %c0_i32, %c0_i32_0 : i32, i32
  }
  func.func @transform_5(%arg0: i32, %arg1: i32) -> (i32, i32) {
    %c0_i32 = arith.constant 0 : i32
    %c0_i32_0 = arith.constant 0 : i32
    %c0_i32_1 = arith.constant 0 : i32
    return %c0_i32, %c0_i32_0 : i32, i32
  }
  func.func @transform_6(%arg0: i32, %arg1: i32) -> (i32, i32) {
    %c0_i32 = arith.constant 0 : i32
    %c0_i32_0 = arith.constant 0 : i32
    %c0_i32_1 = arith.constant 0 : i32
    return %c0_i32, %c0_i32_0 : i32, i32
  }
  func.func @transform_7(%arg0: i32, %arg1: i32) -> (i32, i32) {
    %c0_i32 = arith.constant 0 : i32
    %c0_i32_0 = arith.constant 0 : i32
    %c0_i32_1 = arith.constant 0 : i32
    return %c0_i32, %c0_i32_0 : i32, i32
  }
  func.func @transform_8(%arg0: i32, %arg1: i32) -> (i32, i32) {
    %c0_i32 = arith.constant 0 : i32
    %c0_i32_0 = arith.constant 0 : i32
    %c0_i32_1 = arith.constant 0 : i32
    return %c0_i32, %c0_i32_0 : i32, i32
  }
  func.func @transform_9(%arg0: i32, %arg1: i32) -> (i32, i32) {
    %c0_i32 = arith.constant 0 : i32
    %c0_i32_0 = arith.constant 0 : i32
    %c0_i32_1 = arith.constant 0 : i32
    return %c0_i32, %c0_i32_0 : i32, i32
  }
  func.func @transform_10(%arg0: i32, %arg1: i32) -> (i32, i32, i32) {
    %c0_i32 = arith.constant 0 : i32
    %c0_i32_0 = arith.constant 0 : i32
    %c0_i32_1 = arith.constant 0 : i32
    %c0_i32_2 = arith.constant 0 : i32
    return %c0_i32, %c0_i32_0, %c0_i32_1 : i32, i32, i32
  }
  func.func @transform_11(%arg0: i32, %arg1: i32) -> (i32, i32) {
    %c0_i32 = arith.constant 0 : i32
    %c0_i32_0 = arith.constant 0 : i32
    %c0_i32_1 = arith.constant 0 : i32
    return %c0_i32, %c0_i32_0 : i32, i32
  }
  func.func @transform_12(%arg0: i32, %arg1: i32) -> (i32, i32, i32) {
    %c0_i32 = arith.constant 0 : i32
    %c0_i32_0 = arith.constant 0 : i32
    return %arg0, %c0_i32, %arg1 : i32, i32, i32
  }
}

module attributes {stable_mosaic.version = 11 : i64} {
  func.func @_fused_forward_kernel(%arg0: i32, %arg1: i32, %arg2: memref<1x3x1024xf32, #tpu.memory_space<vmem>>, %arg3: memref<1x3x1024xf32, #tpu.memory_space<vmem>>, %arg4: memref<1x3x1024xf32, #tpu.memory_space<vmem>>, %arg5: memref<2x1024xf32, #tpu.memory_space<vmem>>, %arg6: memref<16x3xf32, #tpu.memory_space<vmem>>, %arg7: memref<16x1xf32, #tpu.memory_space<vmem>>, %arg8: memref<8x16xf32, #tpu.memory_space<vmem>>, %arg9: memref<8x1xf32, #tpu.memory_space<vmem>>, %arg10: memref<16x8xf32, #tpu.memory_space<vmem>>, %arg11: memref<16x1xf32, #tpu.memory_space<vmem>>, %arg12: memref<3x10x48xf32, #tpu.memory_space<vmem>>, %arg13: memref<10x1xf32, #tpu.memory_space<vmem>>, %arg14: memref<1x10x1024xf32, #tpu.memory_space<vmem>>, %arg15: memref<3x16x1280xf32, #tpu.memory_space<vmem>>) attributes {dimension_semantics = [#tpu.dimension_semantics<parallel>, #tpu.dimension_semantics<parallel>], iteration_bounds = array<i64: 2, 4>, scalar_prefetch = 0 : i64, scratch_operands = 1 : i64, tpu.core_type = #tpu.core_type<tc>, window_params = [{transform_indices = @transform_0, window_bounds = array<i64: 1, 3, 1024>}, {transform_indices = @transform_1, window_bounds = array<i64: 1, 3, 1024>}, {transform_indices = @transform_2, window_bounds = array<i64: 1, 3, 1024>}, {pipeline_mode = #tpu.pipeline_mode<synchronous>, transform_indices = @transform_3, window_bounds = array<i64: 2, 1024>}, {pipeline_mode = #tpu.pipeline_mode<synchronous>, transform_indices = @transform_4, window_bounds = array<i64: 16, 3>}, {pipeline_mode = #tpu.pipeline_mode<synchronous>, transform_indices = @transform_5, window_bounds = array<i64: 16, 1>}, {pipeline_mode = #tpu.pipeline_mode<synchronous>, transform_indices = @transform_6, window_bounds = array<i64: 8, 16>}, {pipeline_mode = #tpu.pipeline_mode<synchronous>, transform_indices = @transform_7, window_bounds = array<i64: 8, 1>}, {pipeline_mode = #tpu.pipeline_mode<synchronous>, transform_indices = @transform_8, window_bounds = array<i64: 16, 8>}, {pipeline_mode = #tpu.pipeline_mode<synchronous>, transform_indices = @transform_9, window_bounds = array<i64: 16, 1>}, {pipeline_mode = #tpu.pipeline_mode<synchronous>, transform_indices = @transform_10, window_bounds = array<i64: 3, 10, 48>}, {pipeline_mode = #tpu.pipeline_mode<synchronous>, transform_indices = @transform_11, window_bounds = array<i64: 10, 1>}, {transform_indices = @transform_12, window_bounds = array<i64: 1, 10, 1024>}]} {
    %c0 = arith.constant 0 : index
    %c0_0 = arith.constant 0 : index
    %c960 = arith.constant 960 : index
    %0 = vector.load %arg3[%c0, %c0_0, %c960] : memref<1x3x1024xf32, #tpu.memory_space<vmem>>, vector<1x3x64xf32>
    %1 = vector.shape_cast %0 : vector<1x3x64xf32> to vector<3x64xf32>
    %c0_1 = arith.constant 0 : index
    %c0_2 = arith.constant 0 : index
    %c0_3 = arith.constant 0 : index
    %2 = vector.load %arg4[%c0_1, %c0_2, %c0_3] : memref<1x3x1024xf32, #tpu.memory_space<vmem>>, vector<1x3x64xf32>
    %3 = vector.shape_cast %2 : vector<1x3x64xf32> to vector<3x64xf32>
    %c0_4 = arith.constant 0 : index
    %c0_5 = arith.constant 0 : index
    %c0_6 = arith.constant 0 : index
    %4 = vector.load %arg2[%c0_4, %c0_5, %c0_6] : memref<1x3x1024xf32, #tpu.memory_space<vmem>>, vector<1x3x1024xf32>
    %5 = vector.shape_cast %4 : vector<1x3x1024xf32> to vector<3x1024xf32>
    %6 = tpu.concatenate %5, %1, %3 in 1 : vector<3x1024xf32>, vector<3x64xf32>, vector<3x64xf32> -> vector<3x1152xf32>
    %c0_7 = arith.constant 0 : index
    %c0_8 = arith.constant 0 : index
    %7 = vector.load %arg6[%c0_7, %c0_8] : memref<16x3xf32, #tpu.memory_space<vmem>>, vector<16x3xf32>
    %cst = arith.constant dense<0.000000e+00> : vector<16x1152xf32>
    %8 = tpu.matmul %7, %6, %cst {dimension_numbers = #tpu.dot_dimension_numbers<[1], [0], [0], [1], [0, 0, 1, 1], [], []>} : vector<16x3xf32>, vector<3x1152xf32>, vector<16x1152xf32> -> vector<16x1152xf32>
    %c0_9 = arith.constant 0 : index
    %c0_10 = arith.constant 0 : index
    %9 = vector.load %arg7[%c0_9, %c0_10] : memref<16x1xf32, #tpu.memory_space<vmem>>, vector<16x1xf32>
    %10 = vector.broadcast %9 : vector<16x1xf32> to vector<16x1152xf32>
    %11 = arith.addf %8, %10 : vector<16x1152xf32>
    %12 = arith.negf %11 : vector<16x1152xf32>
    %13 = math.exp %12 : vector<16x1152xf32>
    %cst_11 = arith.constant 1.000000e+00 : f32
    %14 = vector.broadcast %cst_11 : f32 to vector<16x1152xf32>
    %15 = arith.addf %14, %13 : vector<16x1152xf32>
    %16 = arith.divf %14, %15 : vector<16x1152xf32>
    %c0_12 = arith.constant 0 : index
    %c0_13 = arith.constant 0 : index
    %17 = vector.load %arg8[%c0_12, %c0_13] : memref<8x16xf32, #tpu.memory_space<vmem>>, vector<8x16xf32>
    %cst_14 = arith.constant dense<0.000000e+00> : vector<8x1152xf32>
    %18 = tpu.matmul %17, %16, %cst_14 {dimension_numbers = #tpu.dot_dimension_numbers<[1], [0], [0], [1], [0, 0, 1, 1], [], []>} : vector<8x16xf32>, vector<16x1152xf32>, vector<8x1152xf32> -> vector<8x1152xf32>
    %c0_15 = arith.constant 0 : index
    %c0_16 = arith.constant 0 : index
    %19 = vector.load %arg9[%c0_15, %c0_16] : memref<8x1xf32, #tpu.memory_space<vmem>>, vector<8x1xf32>
    %20 = vector.broadcast %19 : vector<8x1xf32> to vector<8x1152xf32>
    %21 = arith.addf %18, %20 : vector<8x1152xf32>
    %22 = arith.negf %21 : vector<8x1152xf32>
    %23 = math.exp %22 : vector<8x1152xf32>
    %cst_17 = arith.constant 1.000000e+00 : f32
    %24 = vector.broadcast %cst_17 : f32 to vector<8x1152xf32>
    %25 = arith.addf %24, %23 : vector<8x1152xf32>
    %26 = arith.divf %24, %25 : vector<8x1152xf32>
    %c0_18 = arith.constant 0 : index
    %c0_19 = arith.constant 0 : index
    %27 = vector.load %arg10[%c0_18, %c0_19] : memref<16x8xf32, #tpu.memory_space<vmem>>, vector<16x8xf32>
    %cst_20 = arith.constant dense<0.000000e+00> : vector<16x1152xf32>
    %28 = tpu.matmul %27, %26, %cst_20 {dimension_numbers = #tpu.dot_dimension_numbers<[1], [0], [0], [1], [0, 0, 1, 1], [], []>} : vector<16x8xf32>, vector<8x1152xf32>, vector<16x1152xf32> -> vector<16x1152xf32>
    %c0_21 = arith.constant 0 : index
    %c0_22 = arith.constant 0 : index
    %29 = vector.load %arg11[%c0_21, %c0_22] : memref<16x1xf32, #tpu.memory_space<vmem>>, vector<16x1xf32>
    %30 = vector.broadcast %29 : vector<16x1xf32> to vector<16x1152xf32>
    %31 = arith.addf %28, %30 : vector<16x1152xf32>
    %32 = arith.negf %31 : vector<16x1152xf32>
    %33 = math.exp %32 : vector<16x1152xf32>
    %cst_23 = arith.constant 1.000000e+00 : f32
    %34 = vector.broadcast %cst_23 : f32 to vector<16x1152xf32>
    %35 = arith.addf %34, %33 : vector<16x1152xf32>
    %36 = arith.divf %34, %35 : vector<16x1152xf32>
    %37 = arith.addf %16, %36 : vector<16x1152xf32>
    %38 = vector.extract_strided_slice %37 {offsets = [0, 0], sizes = [16, 1024], strides = [1, 1]} : vector<16x1152xf32> to vector<16x1024xf32>
    %c0_i32 = arith.constant 0 : i32
    %39 = arith.cmpi sgt, %arg1, %c0_i32 : i32
    %40 = arith.extui %39 : i1 to i32
    %41 = arith.sitofp %40 : i32 to f32
    %c3_i32 = arith.constant 3 : i32
    %42 = arith.cmpi slt, %arg1, %c3_i32 : i32
    %43 = arith.extui %42 : i1 to i32
    %44 = arith.sitofp %43 : i32 to f32
    %45 = vector.extract_strided_slice %37 {offsets = [0, 1024], sizes = [16, 64], strides = [1, 1]} : vector<16x1152xf32> to vector<16x64xf32>
    %46 = vector.broadcast %41 : f32 to vector<16x64xf32>
    %47 = arith.mulf %45, %46 : vector<16x64xf32>
    %48 = vector.extract_strided_slice %37 {offsets = [0, 1088], sizes = [16, 64], strides = [1, 1]} : vector<16x1152xf32> to vector<16x64xf32>
    %49 = vector.broadcast %44 : f32 to vector<16x64xf32>
    %50 = arith.mulf %48, %49 : vector<16x64xf32>
    %c0_24 = arith.constant 0 : index
    %c0_25 = arith.constant 0 : index
    %51 = vector.load %arg5[%c0_24, %c0_25] : memref<2x1024xf32, #tpu.memory_space<vmem>>, vector<1x1024xf32>
    %c1 = arith.constant 1 : index
    %c0_26 = arith.constant 0 : index
    %52 = vector.load %arg5[%c1, %c0_26] : memref<2x1024xf32, #tpu.memory_space<vmem>>, vector<1x1024xf32>
    %cst_27 = arith.constant 0.000000e+00 : f32
    %53 = vector.broadcast %cst_27 : f32 to vector<16x64xf32>
    %54 = tpu.concatenate %53, %47 in 1 : vector<16x64xf32>, vector<16x64xf32> -> vector<16x128xf32>
    %c0_28 = arith.constant 0 : index
    %c0_29 = arith.constant 0 : index
    %c0_30 = arith.constant 0 : index
    %55 = vector.load %arg15[%c0_28, %c0_29, %c0_30] : memref<3x16x1280xf32, #tpu.memory_space<vmem>>, vector<1x16x128xf32>
    %56 = vector.shape_cast %55 : vector<1x16x128xf32> to vector<16x128xf32>
    %57 = vector.shape_cast %54 : vector<16x128xf32> to vector<1x16x128xf32>
    tpu.vector_store %arg15[%c0_28, %c0_29, %c0_30], %57 {strides = array<i32>} : memref<3x16x1280xf32, #tpu.memory_space<vmem>>, vector<1x16x128xf32>,
    %c0_31 = arith.constant 0 : index
    %c0_32 = arith.constant 0 : index
    %c128 = arith.constant 128 : index
    %58 = vector.load %arg15[%c0_31, %c0_32, %c128] : memref<3x16x1280xf32, #tpu.memory_space<vmem>>, vector<1x16x1024xf32>
    %59 = vector.shape_cast %58 : vector<1x16x1024xf32> to vector<16x1024xf32>
    %60 = vector.shape_cast %38 : vector<16x1024xf32> to vector<1x16x1024xf32>
    tpu.vector_store %arg15[%c0_31, %c0_32, %c128], %60 {strides = array<i32>} : memref<3x16x1280xf32, #tpu.memory_space<vmem>>, vector<1x16x1024xf32>,
    %61 = tpu.concatenate %50, %53 in 1 : vector<16x64xf32>, vector<16x64xf32> -> vector<16x128xf32>
    %c0_33 = arith.constant 0 : index
    %c0_34 = arith.constant 0 : index
    %c1152 = arith.constant 1152 : index
    %62 = vector.load %arg15[%c0_33, %c0_34, %c1152] : memref<3x16x1280xf32, #tpu.memory_space<vmem>>, vector<1x16x128xf32>
    %63 = vector.shape_cast %62 : vector<1x16x128xf32> to vector<16x128xf32>
    %64 = vector.shape_cast %61 : vector<16x128xf32> to vector<1x16x128xf32>
    tpu.vector_store %arg15[%c0_33, %c0_34, %c1152], %64 {strides = array<i32>} : memref<3x16x1280xf32, #tpu.memory_space<vmem>>, vector<1x16x128xf32>,
    %65 = vector.broadcast %51 : vector<1x1024xf32> to vector<16x1024xf32>
    %66 = arith.mulf %38, %65 : vector<16x1024xf32>
    %67 = vector.extract_strided_slice %51 {offsets = [0, 0], sizes = [1, 64], strides = [1, 1]} : vector<1x1024xf32> to vector<1x64xf32>
    %68 = vector.broadcast %67 : vector<1x64xf32> to vector<16x64xf32>
    %69 = arith.mulf %47, %68 : vector<16x64xf32>
    %70 = vector.extract_strided_slice %51 {offsets = [0, 0], sizes = [1, 64], strides = [1, 1]} : vector<1x1024xf32> to vector<1x64xf32>
    %71 = vector.broadcast %70 : vector<1x64xf32> to vector<16x64xf32>
    %72 = arith.mulf %50, %71 : vector<16x64xf32>
    %73 = tpu.concatenate %53, %69 in 1 : vector<16x64xf32>, vector<16x64xf32> -> vector<16x128xf32>
    %c1_35 = arith.constant 1 : index
    %c0_36 = arith.constant 0 : index
    %c0_37 = arith.constant 0 : index
    %74 = vector.load %arg15[%c1_35, %c0_36, %c0_37] : memref<3x16x1280xf32, #tpu.memory_space<vmem>>, vector<1x16x128xf32>
    %75 = vector.shape_cast %74 : vector<1x16x128xf32> to vector<16x128xf32>
    %76 = vector.shape_cast %73 : vector<16x128xf32> to vector<1x16x128xf32>
    tpu.vector_store %arg15[%c1_35, %c0_36, %c0_37], %76 {strides = array<i32>} : memref<3x16x1280xf32, #tpu.memory_space<vmem>>, vector<1x16x128xf32>,
    %c1_38 = arith.constant 1 : index
    %c0_39 = arith.constant 0 : index
    %c128_40 = arith.constant 128 : index
    %77 = vector.load %arg15[%c1_38, %c0_39, %c128_40] : memref<3x16x1280xf32, #tpu.memory_space<vmem>>, vector<1x16x1024xf32>
    %78 = vector.shape_cast %77 : vector<1x16x1024xf32> to vector<16x1024xf32>
    %79 = vector.shape_cast %66 : vector<16x1024xf32> to vector<1x16x1024xf32>
    tpu.vector_store %arg15[%c1_38, %c0_39, %c128_40], %79 {strides = array<i32>} : memref<3x16x1280xf32, #tpu.memory_space<vmem>>, vector<1x16x1024xf32>,
    %80 = tpu.concatenate %72, %53 in 1 : vector<16x64xf32>, vector<16x64xf32> -> vector<16x128xf32>
    %c1_41 = arith.constant 1 : index
    %c0_42 = arith.constant 0 : index
    %c1152_43 = arith.constant 1152 : index
    %81 = vector.load %arg15[%c1_41, %c0_42, %c1152_43] : memref<3x16x1280xf32, #tpu.memory_space<vmem>>, vector<1x16x128xf32>
    %82 = vector.shape_cast %81 : vector<1x16x128xf32> to vector<16x128xf32>
    %83 = vector.shape_cast %80 : vector<16x128xf32> to vector<1x16x128xf32>
    tpu.vector_store %arg15[%c1_41, %c0_42, %c1152_43], %83 {strides = array<i32>} : memref<3x16x1280xf32, #tpu.memory_space<vmem>>, vector<1x16x128xf32>,
    %84 = vector.broadcast %52 : vector<1x1024xf32> to vector<16x1024xf32>
    %85 = arith.mulf %38, %84 : vector<16x1024xf32>
    %86 = vector.extract_strided_slice %52 {offsets = [0, 0], sizes = [1, 64], strides = [1, 1]} : vector<1x1024xf32> to vector<1x64xf32>
    %87 = vector.broadcast %86 : vector<1x64xf32> to vector<16x64xf32>
    %88 = arith.mulf %47, %87 : vector<16x64xf32>
    %89 = vector.extract_strided_slice %52 {offsets = [0, 0], sizes = [1, 64], strides = [1, 1]} : vector<1x1024xf32> to vector<1x64xf32>
    %90 = vector.broadcast %89 : vector<1x64xf32> to vector<16x64xf32>
    %91 = arith.mulf %50, %90 : vector<16x64xf32>
    %92 = tpu.concatenate %53, %88 in 1 : vector<16x64xf32>, vector<16x64xf32> -> vector<16x128xf32>
    %c2 = arith.constant 2 : index
    %c0_44 = arith.constant 0 : index
    %c0_45 = arith.constant 0 : index
    %93 = vector.load %arg15[%c2, %c0_44, %c0_45] : memref<3x16x1280xf32, #tpu.memory_space<vmem>>, vector<1x16x128xf32>
    %94 = vector.shape_cast %93 : vector<1x16x128xf32> to vector<16x128xf32>
    %95 = vector.shape_cast %92 : vector<16x128xf32> to vector<1x16x128xf32>
    tpu.vector_store %arg15[%c2, %c0_44, %c0_45], %95 {strides = array<i32>} : memref<3x16x1280xf32, #tpu.memory_space<vmem>>, vector<1x16x128xf32>,
    %c2_46 = arith.constant 2 : index
    %c0_47 = arith.constant 0 : index
    %c128_48 = arith.constant 128 : index
    %96 = vector.load %arg15[%c2_46, %c0_47, %c128_48] : memref<3x16x1280xf32, #tpu.memory_space<vmem>>, vector<1x16x1024xf32>
    %97 = vector.shape_cast %96 : vector<1x16x1024xf32> to vector<16x1024xf32>
    %98 = vector.shape_cast %85 : vector<16x1024xf32> to vector<1x16x1024xf32>
    tpu.vector_store %arg15[%c2_46, %c0_47, %c128_48], %98 {strides = array<i32>} : memref<3x16x1280xf32, #tpu.memory_space<vmem>>, vector<1x16x1024xf32>,
    %99 = tpu.concatenate %91, %53 in 1 : vector<16x64xf32>, vector<16x64xf32> -> vector<16x128xf32>
    %c2_49 = arith.constant 2 : index
    %c0_50 = arith.constant 0 : index
    %c1152_51 = arith.constant 1152 : index
    %100 = vector.load %arg15[%c2_49, %c0_50, %c1152_51] : memref<3x16x1280xf32, #tpu.memory_space<vmem>>, vector<1x16x128xf32>
    %101 = vector.shape_cast %100 : vector<1x16x128xf32> to vector<16x128xf32>
    %102 = vector.shape_cast %99 : vector<16x128xf32> to vector<1x16x128xf32>
    tpu.vector_store %arg15[%c2_49, %c0_50, %c1152_51], %102 {strides = array<i32>} : memref<3x16x1280xf32, #tpu.memory_space<vmem>>, vector<1x16x128xf32>,
    %cst_52 = arith.constant 0.000000e+00 : f32
    %103 = vector.broadcast %cst_52 : f32 to vector<10x1024xf32>
    %c1_53 = arith.constant 1 : index
    %c0_54 = arith.constant 0 : index
    %c63 = arith.constant 63 : index
    %104 = vector.load %arg15[%c1_53, %c0_54, %c63] : memref<3x16x1280xf32, #tpu.memory_space<vmem>>, vector<1x16x1024xf32>
    %105 = vector.shape_cast %104 : vector<1x16x1024xf32> to vector<16x1024xf32>
    %c0_55 = arith.constant 0 : index
    %c0_56 = arith.constant 0 : index
    %c64 = arith.constant 64 : index
    %106 = vector.load %arg15[%c0_55, %c0_56, %c64] : memref<3x16x1280xf32, #tpu.memory_space<vmem>>, vector<1x16x1024xf32>
    %107 = vector.shape_cast %106 : vector<1x16x1024xf32> to vector<16x1024xf32>
    %c2_57 = arith.constant 2 : index
    %c0_58 = arith.constant 0 : index
    %c65 = arith.constant 65 : index
    %108 = vector.load %arg15[%c2_57, %c0_58, %c65] : memref<3x16x1280xf32, #tpu.memory_space<vmem>>, vector<1x16x1024xf32>
    %109 = vector.shape_cast %108 : vector<1x16x1024xf32> to vector<16x1024xf32>
    %110 = tpu.concatenate %105, %107, %109 in 0 : vector<16x1024xf32>, vector<16x1024xf32>, vector<16x1024xf32> -> vector<48x1024xf32>
    %c0_59 = arith.constant 0 : index
    %c0_60 = arith.constant 0 : index
    %c0_61 = arith.constant 0 : index
    %111 = vector.load %arg12[%c0_59, %c0_60, %c0_61] : memref<3x10x48xf32, #tpu.memory_space<vmem>>, vector<1x10x48xf32>
    %112 = vector.shape_cast %111 : vector<1x10x48xf32> to vector<10x48xf32>
    %cst_62 = arith.constant dense<0.000000e+00> : vector<10x1024xf32>
    %113 = tpu.matmul %112, %110, %cst_62 {dimension_numbers = #tpu.dot_dimension_numbers<[1], [0], [0], [1], [0, 0, 1, 1], [], []>} : vector<10x48xf32>, vector<48x1024xf32>, vector<10x1024xf32> -> vector<10x1024xf32>
    %114 = arith.addf %103, %113 : vector<10x1024xf32>
    %c1_63 = arith.constant 1 : index
    %c0_64 = arith.constant 0 : index
    %c127 = arith.constant 127 : index
    %115 = vector.load %arg15[%c1_63, %c0_64, %c127] : memref<3x16x1280xf32, #tpu.memory_space<vmem>>, vector<1x16x1024xf32>
    %116 = vector.shape_cast %115 : vector<1x16x1024xf32> to vector<16x1024xf32>
    %c2_65 = arith.constant 2 : index
    %c0_66 = arith.constant 0 : index
    %c129 = arith.constant 129 : index
    %117 = vector.load %arg15[%c2_65, %c0_66, %c129] : memref<3x16x1280xf32, #tpu.memory_space<vmem>>, vector<1x16x1024xf32>
    %118 = vector.shape_cast %117 : vector<1x16x1024xf32> to vector<16x1024xf32>
    %119 = tpu.concatenate %116, %38, %118 in 0 : vector<16x1024xf32>, vector<16x1024xf32>, vector<16x1024xf32> -> vector<48x1024xf32>
    %c1_67 = arith.constant 1 : index
    %c0_68 = arith.constant 0 : index
    %c0_69 = arith.constant 0 : index
    %120 = vector.load %arg12[%c1_67, %c0_68, %c0_69] : memref<3x10x48xf32, #tpu.memory_space<vmem>>, vector<1x10x48xf32>
    %121 = vector.shape_cast %120 : vector<1x10x48xf32> to vector<10x48xf32>
    %cst_70 = arith.constant dense<0.000000e+00> : vector<10x1024xf32>
    %122 = tpu.matmul %121, %119, %cst_70 {dimension_numbers = #tpu.dot_dimension_numbers<[1], [0], [0], [1], [0, 0, 1, 1], [], []>} : vector<10x48xf32>, vector<48x1024xf32>, vector<10x1024xf32> -> vector<10x1024xf32>
    %123 = arith.addf %114, %122 : vector<10x1024xf32>
    %c1_71 = arith.constant 1 : index
    %c0_72 = arith.constant 0 : index
    %c191 = arith.constant 191 : index
    %124 = vector.load %arg15[%c1_71, %c0_72, %c191] : memref<3x16x1280xf32, #tpu.memory_space<vmem>>, vector<1x16x1024xf32>
    %125 = vector.shape_cast %124 : vector<1x16x1024xf32> to vector<16x1024xf32>
    %c0_73 = arith.constant 0 : index
    %c0_74 = arith.constant 0 : index
    %c192 = arith.constant 192 : index
    %126 = vector.load %arg15[%c0_73, %c0_74, %c192] : memref<3x16x1280xf32, #tpu.memory_space<vmem>>, vector<1x16x1024xf32>
    %127 = vector.shape_cast %126 : vector<1x16x1024xf32> to vector<16x1024xf32>
    %c2_75 = arith.constant 2 : index
    %c0_76 = arith.constant 0 : index
    %c193 = arith.constant 193 : index
    %128 = vector.load %arg15[%c2_75, %c0_76, %c193] : memref<3x16x1280xf32, #tpu.memory_space<vmem>>, vector<1x16x1024xf32>
    %129 = vector.shape_cast %128 : vector<1x16x1024xf32> to vector<16x1024xf32>
    %130 = tpu.concatenate %125, %127, %129 in 0 : vector<16x1024xf32>, vector<16x1024xf32>, vector<16x1024xf32> -> vector<48x1024xf32>
    %c2_77 = arith.constant 2 : index
    %c0_78 = arith.constant 0 : index
    %c0_79 = arith.constant 0 : index
    %131 = vector.load %arg12[%c2_77, %c0_78, %c0_79] : memref<3x10x48xf32, #tpu.memory_space<vmem>>, vector<1x10x48xf32>
    %132 = vector.shape_cast %131 : vector<1x10x48xf32> to vector<10x48xf32>
    %cst_80 = arith.constant dense<0.000000e+00> : vector<10x1024xf32>
    %133 = tpu.matmul %132, %130, %cst_80 {dimension_numbers = #tpu.dot_dimension_numbers<[1], [0], [0], [1], [0, 0, 1, 1], [], []>} : vector<10x48xf32>, vector<48x1024xf32>, vector<10x1024xf32> -> vector<10x1024xf32>
    %134 = arith.addf %123, %133 : vector<10x1024xf32>
    %c0_81 = arith.constant 0 : index
    %c0_82 = arith.constant 0 : index
    %135 = vector.load %arg13[%c0_81, %c0_82] : memref<10x1xf32, #tpu.memory_space<vmem>>, vector<10x1xf32>
    %136 = vector.broadcast %135 : vector<10x1xf32> to vector<10x1024xf32>
    %137 = arith.addf %134, %136 : vector<10x1024xf32>
    %138 = arith.negf %137 : vector<10x1024xf32>
    %139 = math.exp %138 : vector<10x1024xf32>
    %cst_83 = arith.constant 1.000000e+00 : f32
    %140 = vector.broadcast %cst_83 : f32 to vector<10x1024xf32>
    %141 = arith.addf %140, %139 : vector<10x1024xf32>
    %142 = arith.divf %140, %141 : vector<10x1024xf32>
    %c0_84 = arith.constant 0 : index
    %c0_85 = arith.constant 0 : index
    %c0_86 = arith.constant 0 : index
    %143 = vector.load %arg14[%c0_84, %c0_85, %c0_86] : memref<1x10x1024xf32, #tpu.memory_space<vmem>>, vector<1x10x1024xf32>
    %144 = vector.shape_cast %143 : vector<1x10x1024xf32> to vector<10x1024xf32>
    %145 = vector.shape_cast %142 : vector<10x1024xf32> to vector<1x10x1024xf32>
    tpu.vector_store %arg14[%c0_84, %c0_85, %c0_86], %145 {strides = array<i32>} : memref<1x10x1024xf32, #tpu.memory_space<vmem>>, vector<1x10x1024xf32>,
    return
  }
  func.func @transform_0(%arg0: i32, %arg1: i32) -> (i32, i32, i32) {
    %c0_i32 = arith.constant 0 : i32
    %c0_i32_0 = arith.constant 0 : i32
    return %arg0, %c0_i32, %arg1 : i32, i32, i32
  }
  func.func @transform_1(%arg0: i32, %arg1: i32) -> (i32, i32, i32) {
    %c1_i32 = arith.constant 1 : i32
    %0 = arith.subi %arg1, %c1_i32 : i32
    %c0_i32 = arith.constant 0 : i32
    %1 = arith.maxsi %0, %c0_i32 : i32
    %c0_i32_0 = arith.constant 0 : i32
    %c0_i32_1 = arith.constant 0 : i32
    return %arg0, %c0_i32_0, %1 : i32, i32, i32
  }
  func.func @transform_2(%arg0: i32, %arg1: i32) -> (i32, i32, i32) {
    %c1_i32 = arith.constant 1 : i32
    %0 = arith.addi %arg1, %c1_i32 : i32
    %c3_i32 = arith.constant 3 : i32
    %1 = arith.minsi %0, %c3_i32 : i32
    %c0_i32 = arith.constant 0 : i32
    %c0_i32_0 = arith.constant 0 : i32
    return %arg0, %c0_i32, %1 : i32, i32, i32
  }
  func.func @transform_3(%arg0: i32, %arg1: i32) -> (i32, i32) {
    %c0_i32 = arith.constant 0 : i32
    %c0_i32_0 = arith.constant 0 : i32
    %c0_i32_1 = arith.constant 0 : i32
    return %c0_i32, %c0_i32_0 : i32, i32
  }
  func.func @transform_4(%arg0: i32, %arg1: i32) -> (i32, i32) {
    %c0_i32 = arith.constant 0 : i32
    %c0_i32_0 = arith.constant 0 : i32
    %c0_i32_1 = arith.constant 0 : i32
    return %c0_i32, %c0_i32_0 : i32, i32
  }
  func.func @transform_5(%arg0: i32, %arg1: i32) -> (i32, i32) {
    %c0_i32 = arith.constant 0 : i32
    %c0_i32_0 = arith.constant 0 : i32
    %c0_i32_1 = arith.constant 0 : i32
    return %c0_i32, %c0_i32_0 : i32, i32
  }
  func.func @transform_6(%arg0: i32, %arg1: i32) -> (i32, i32) {
    %c0_i32 = arith.constant 0 : i32
    %c0_i32_0 = arith.constant 0 : i32
    %c0_i32_1 = arith.constant 0 : i32
    return %c0_i32, %c0_i32_0 : i32, i32
  }
  func.func @transform_7(%arg0: i32, %arg1: i32) -> (i32, i32) {
    %c0_i32 = arith.constant 0 : i32
    %c0_i32_0 = arith.constant 0 : i32
    %c0_i32_1 = arith.constant 0 : i32
    return %c0_i32, %c0_i32_0 : i32, i32
  }
  func.func @transform_8(%arg0: i32, %arg1: i32) -> (i32, i32) {
    %c0_i32 = arith.constant 0 : i32
    %c0_i32_0 = arith.constant 0 : i32
    %c0_i32_1 = arith.constant 0 : i32
    return %c0_i32, %c0_i32_0 : i32, i32
  }
  func.func @transform_9(%arg0: i32, %arg1: i32) -> (i32, i32) {
    %c0_i32 = arith.constant 0 : i32
    %c0_i32_0 = arith.constant 0 : i32
    %c0_i32_1 = arith.constant 0 : i32
    return %c0_i32, %c0_i32_0 : i32, i32
  }
  func.func @transform_10(%arg0: i32, %arg1: i32) -> (i32, i32, i32) {
    %c0_i32 = arith.constant 0 : i32
    %c0_i32_0 = arith.constant 0 : i32
    %c0_i32_1 = arith.constant 0 : i32
    %c0_i32_2 = arith.constant 0 : i32
    return %c0_i32, %c0_i32_0, %c0_i32_1 : i32, i32, i32
  }
  func.func @transform_11(%arg0: i32, %arg1: i32) -> (i32, i32) {
    %c0_i32 = arith.constant 0 : i32
    %c0_i32_0 = arith.constant 0 : i32
    %c0_i32_1 = arith.constant 0 : i32
    return %c0_i32, %c0_i32_0 : i32, i32
  }
  func.func @transform_12(%arg0: i32, %arg1: i32) -> (i32, i32, i32) {
    %c0_i32 = arith.constant 0 : i32
    %c0_i32_0 = arith.constant 0 : i32
    return %arg0, %c0_i32, %arg1 : i32, i32, i32
  }
}

</mosaic_0001>

<llo_original>
// kernel: tpu_custom_call.1
$region0: #{tpu_custom_call.1}
  #allocation0 [shape = 'u32[]', space=smem, size = 0x4, offset = 0x4, fixed_abs, tag = 'smem constant byte address 0x4 - core index']
  #allocation1 [shape = 'u32[72,128]{1,0:T(1,128)}', space=vmem, size = 0x9000, scoped, tag = 'internal scratch']
  #allocation2 [shape = 'f32[3,16,1280]{2,1,0:T(8,128)}', space=vmem, size = 0x3c000, scoped, tag = 'scratch operand']
  %s0 = inlined_call_operand.vmem [shape: f32[2,3,4096], index: 0, kind: input, shape index: {}]
  %s1 = inlined_call_operand.vmem [shape: f32[2,3,4096], index: 1, kind: input, shape index: {}]
  %s2 = inlined_call_operand.vmem [shape: f32[2,3,4096], index: 2, kind: input, shape index: {}]
  %s3 = inlined_call_operand.vmem [shape: f32[2,1024], index: 3, kind: input, shape index: {}]
  %s4 = inlined_call_operand.vmem [shape: f32[16,3], index: 4, kind: input, shape index: {}]
  %s5 = inlined_call_operand.vmem [shape: f32[16,1], index: 5, kind: input, shape index: {}]
  %s6 = inlined_call_operand.vmem [shape: f32[8,16], index: 6, kind: input, shape index: {}]
  %s7 = inlined_call_operand.vmem [shape: f32[8,1], index: 7, kind: input, shape index: {}]
  %s8 = inlined_call_operand.vmem [shape: f32[16,8], index: 8, kind: input, shape index: {}]
  %s9 = inlined_call_operand.vmem [shape: f32[16,1], index: 9, kind: input, shape index: {}]
  %s10 = inlined_call_operand.vmem [shape: f32[3,10,48], index: 10, kind: input, shape index: {}]
  %s11 = inlined_call_operand.vmem [shape: f32[10,1], index: 11, kind: input, shape index: {}]
  %s12 = inlined_call_operand.vmem [shape: f32[2,10,4096], index: 12, kind: output, shape index: {}]
  %s13 = sld [smem:[#allocation0]]
  $region100: #{tpu_custom_call.1} parent=0
    _
  %s15 = ssub.s32 1, %s13
  %s16 = scalar_select 0, %s15, %s13
  $region1: #{tpu_custom_call.1} parent=0
    #allocation3 [shape = 'u8[131072]{0}', space=vmem, size = 0x20000, scoped, tag = 'output window, operand 0']
    loop: start=0, step=1, limit=10
    $region2: #{tpu_custom_call.1} parent=1 // loop_pre_header
      _
    $region3: #{tpu_custom_call.1} parent=1 // loop_header
      %s18 = sphi 0, %s22
      %p19 = scmp.ge.s32.totalorder %s18, 10
      %s25 = sphi 0, %s37
      %s26 = sphi 0, %s33
      %s27 = sphi 0, %s25
      %s28 = sphi 0, %s26
      %s29 = sphi 0, %s27
      %s30 = sphi 0, %s28
      %s42 = sphi 0, %s44
      %s45 = sphi 0, %s42
      %s46 = sphi 0, %s45
      %s62 = sphi 0, %s46
      %s76 = sphi 0, %s78
      %s79 = sphi 0, %s76
      %s80 = sphi 0, %s79
      %s96 = sphi 0, %s80
      %s110 = sphi 0, %s112
      %s113 = sphi 0, %s110
      %s114 = sphi 0, %s113
      %s130 = sphi 0, %s114
      %s134 = sphi 0, %s134
      %s136 = sphi 0, %s134
      %s137 = sphi 0, %s136
      %s151 = sphi 0, %s137
      %s155 = sphi 0, %s155
      %s157 = sphi 0, %s155
      %s158 = sphi 0, %s157
      %s172 = sphi 0, %s158
      %s176 = sphi 0, %s176
      %s178 = sphi 0, %s176
      %s179 = sphi 0, %s178
      %s193 = sphi 0, %s179
      %s197 = sphi 0, %s197
      %s199 = sphi 0, %s197
      %s200 = sphi 0, %s199
      %s214 = sphi 0, %s200
      %s218 = sphi 0, %s218
      %s220 = sphi 0, %s218
      %s221 = sphi 0, %s220
      %s235 = sphi 0, %s221
      %s239 = sphi 0, %s239
      %s241 = sphi 0, %s239
      %s242 = sphi 0, %s241
      %s256 = sphi 0, %s242
      %s260 = sphi 0, %s260
      %s262 = sphi 0, %s260
      %s263 = sphi 0, %s262
      %s277 = sphi 0, %s263
      %s281 = sphi 0, %s281
      %s283 = sphi 0, %s281
      %s284 = sphi 0, %s283
      %s298 = sphi 0, %s284
      %s302 = sphi 0, %s302
      %s304 = sphi 0, %s302
      %s305 = sphi 0, %s304
      %s319 = sphi 0, %s305
      %s327 = sphi 0, %s329
      %s330 = sphi 0, %s327
      %s331 = sphi 0, %s330
      %s347 = sphi 0, %s331
    $region4: #{tpu_custom_call.1} parent=1 // loop_header_branch
      %21 = sbr.rel (%p19) target = $region8
    $region5: #{tpu_custom_call.1} parent=1 // loop_body
      %s23 = ssub.s32 %s18, 1
      %s24 = ssub.s32 %s18, 2
      %s31 = sadd.s32 1, %s26
      %p32 = scmp.ge.s32.totalorder %s31, 4
      %s33 = scalar_select %p32, 0, %s31
      %s34 = sadd.s32 1, %s25
      %s35 = scalar_select %p32, %s34, %s25
      %p36 = scmp.ge.s32.totalorder %s35, 2
      %s37 = scalar_select %p36, 0, %s35
      %s38 = ssub.s32 %s25, %s37
      %s39 = ssub.s32 %s26, %s33
      %s40 = sor.u32 %s38, %s39
      %p41 = scmp.eq.s32.totalorder %s40, 0
      %s43 = sadd.s32 %s42, 1
      %s44 = scalar_select %p41, %s42, %s43
      %p47 = pneg %p41
      %p48 = scmp.eq.s32.totalorder %s18, 7
      %p49 = por %p47, %p48
      %p50 = scmp.ne.s32.totalorder %s42, %s45
      %p51 = scmp.eq.s32.totalorder %s18, 0
      %p52 = por %p50, %p51
      %p53 = scmp.ne.s32.totalorder %s42, %s45
      %p54 = scmp.eq.s32.totalorder %s23, 7
      %p55 = por %p53, %p54
      %p56 = scmp.ne.s32.totalorder %s45, %s46
      %p57 = scmp.eq.s32.totalorder %s23, 0
      %p58 = por %p56, %p57
      %p59 = scmp.ne.s32.totalorder %s45, %s46
      %p60 = scmp.eq.s32.totalorder %s24, 7
      %p61 = por %p59, %p60
      %p63 = scmp.ne.s32.totalorder %s46, %s62
      %p64 = scmp.eq.s32.totalorder %s24, 0
      %p65 = por %p63, %p64
      %s66 = ssub.s32 %s26, 1
      %p67 = scmp.gt.s32.totalorder %s66, 0
      %s68 = scalar_select %p67, %s66, 0
      %s69 = ssub.s32 %s33, 1
      %p70 = scmp.gt.s32.totalorder %s69, 0
      %s71 = scalar_select %p70, %s69, 0
      %s72 = ssub.s32 %s25, %s37
      %s73 = ssub.s32 %s68, %s71
      %s74 = sor.u32 %s72, %s73
      %p75 = scmp.eq.s32.totalorder %s74, 0
      %s77 = sadd.s32 %s76, 1
      %s78 = scalar_select %p75, %s76, %s77
      %p81 = pneg %p75
      %p82 = scmp.eq.s32.totalorder %s18, 7
      %p83 = por %p81, %p82
      %p84 = scmp.ne.s32.totalorder %s76, %s79
      %p85 = scmp.eq.s32.totalorder %s18, 0
      %p86 = por %p84, %p85
      %p87 = scmp.ne.s32.totalorder %s76, %s79
      %p88 = scmp.eq.s32.totalorder %s23, 7
      %p89 = por %p87, %p88
      %p90 = scmp.ne.s32.totalorder %s79, %s80
      %p91 = scmp.eq.s32.totalorder %s23, 0
      %p92 = por %p90, %p91
      %p93 = scmp.ne.s32.totalorder %s79, %s80
      %p94 = scmp.eq.s32.totalorder %s24, 7
      %p95 = por %p93, %p94
      %p97 = scmp.ne.s32.totalorder %s80, %s96
      %p98 = scmp.eq.s32.totalorder %s24, 0
      %p99 = por %p97, %p98
      %s100 = sadd.s32 %s26, 1
      %p101 = scmp.lt.s32.totalorder %s100, 3
      %s102 = scalar_select %p101, %s100, 3
      %s103 = sadd.s32 %s33, 1
      %p104 = scmp.lt.s32.totalorder %s103, 3
      %s105 = scalar_select %p104, %s103, 3
      %s106 = ssub.s32 %s25, %s37
      %s107 = ssub.s32 %s102, %s105
      %s108 = sor.u32 %s106, %s107
      %p109 = scmp.eq.s32.totalorder %s108, 0
      %s111 = sadd.s32 %s110, 1
      %s112 = scalar_select %p109, %s110, %s111
      %p115 = pneg %p109
      %p116 = scmp.eq.s32.totalorder %s18, 7
      %p117 = por %p115, %p116
      %p118 = scmp.ne.s32.totalorder %s110, %s113
      %p119 = scmp.eq.s32.totalorder %s18, 0
      %p120 = por %p118, %p119
      %p121 = scmp.ne.s32.totalorder %s110, %s113
      %p122 = scmp.eq.s32.totalorder %s23, 7
      %p123 = por %p121, %p122
      %p124 = scmp.ne.s32.totalorder %s113, %s114
      %p125 = scmp.eq.s32.totalorder %s23, 0
      %p126 = por %p124, %p125
      %p127 = scmp.ne.s32.totalorder %s113, %s114
      %p128 = scmp.eq.s32.totalorder %s24, 7
      %p129 = por %p127, %p128
      %p131 = scmp.ne.s32.totalorder %s114, %s130
      %p132 = scmp.eq.s32.totalorder %s24, 0
      %p133 = por %p131, %p132
      %s135 = sadd.s32 %s134, 1
      %p138 = scmp.eq.s32.totalorder %s18, 7
      %p139 = scmp.ne.s32.totalorder %s134, %s136
      %p140 = scmp.eq.s32.totalorder %s18, 0
      %p141 = por %p139, %p140
      %p142 = scmp.ne.s32.totalorder %s134, %s136
      %p143 = scmp.eq.s32.totalorder %s23, 7
      %p144 = por %p142, %p143
      %p145 = scmp.ne.s32.totalorder %s136, %s137
      %p146 = scmp.eq.s32.totalorder %s23, 0
      %p147 = por %p145, %p146
      %p148 = scmp.ne.s32.totalorder %s136, %s137
      %p149 = scmp.eq.s32.totalorder %s24, 7
      %p150 = por %p148, %p149
      %p152 = scmp.ne.s32.totalorder %s137, %s151
      %p153 = scmp.eq.s32.totalorder %s24, 0
      %p154 = por %p152, %p153
      %s156 = sadd.s32 %s155, 1
      %p159 = scmp.eq.s32.totalorder %s18, 7
      %p160 = scmp.ne.s32.totalorder %s155, %s157
      %p161 = scmp.eq.s32.totalorder %s18, 0
      %p162 = por %p160, %p161
      %p163 = scmp.ne.s32.totalorder %s155, %s157
      %p164 = scmp.eq.s32.totalorder %s23, 7
      %p165 = por %p163, %p164
      %p166 = scmp.ne.s32.totalorder %s157, %s158
      %p167 = scmp.eq.s32.totalorder %s23, 0
      %p168 = por %p166, %p167
      %p169 = scmp.ne.s32.totalorder %s157, %s158
      %p170 = scmp.eq.s32.totalorder %s24, 7
      %p171 = por %p169, %p170
      %p173 = scmp.ne.s32.totalorder %s158, %s172
      %p174 = scmp.eq.s32.totalorder %s24, 0
      %p175 = por %p173, %p174
      %s177 = sadd.s32 %s176, 1
      %p180 = scmp.eq.s32.totalorder %s18, 7
      %p181 = scmp.ne.s32.totalorder %s176, %s178
      %p182 = scmp.eq.s32.totalorder %s18, 0
      %p183 = por %p181, %p182
      %p184 = scmp.ne.s32.totalorder %s176, %s178
      %p185 = scmp.eq.s32.totalorder %s23, 7
      %p186 = por %p184, %p185
      %p187 = scmp.ne.s32.totalorder %s178, %s179
      %p188 = scmp.eq.s32.totalorder %s23, 0
      %p189 = por %p187, %p188
      %p190 = scmp.ne.s32.totalorder %s178, %s179
      %p191 = scmp.eq.s32.totalorder %s24, 7
      %p192 = por %p190, %p191
      %p194 = scmp.ne.s32.totalorder %s179, %s193
      %p195 = scmp.eq.s32.totalorder %s24, 0
      %p196 = por %p194, %p195
      %s198 = sadd.s32 %s197, 1
      %p201 = scmp.eq.s32.totalorder %s18, 7
      %p202 = scmp.ne.s32.totalorder %s197, %s199
      %p203 = scmp.eq.s32.totalorder %s18, 0
      %p204 = por %p202, %p203
      %p205 = scmp.ne.s32.totalorder %s197, %s199
      %p206 = scmp.eq.s32.totalorder %s23, 7
      %p207 = por %p205, %p206
      %p208 = scmp.ne.s32.totalorder %s199, %s200
      %p209 = scmp.eq.s32.totalorder %s23, 0
      %p210 = por %p208, %p209
      %p211 = scmp.ne.s32.totalorder %s199, %s200
      %p212 = scmp.eq.s32.totalorder %s24, 7
      %p213 = por %p211, %p212
      %p215 = scmp.ne.s32.totalorder %s200, %s214
      %p216 = scmp.eq.s32.totalorder %s24, 0
      %p217 = por %p215, %p216
      %s219 = sadd.s32 %s218, 1
      %p222 = scmp.eq.s32.totalorder %s18, 7
      %p223 = scmp.ne.s32.totalorder %s218, %s220
      %p224 = scmp.eq.s32.totalorder %s18, 0
      %p225 = por %p223, %p224
      %p226 = scmp.ne.s32.totalorder %s218, %s220
      %p227 = scmp.eq.s32.totalorder %s23, 7
      %p228 = por %p226, %p227
      %p229 = scmp.ne.s32.totalorder %s220, %s221
      %p230 = scmp.eq.s32.totalorder %s23, 0
      %p231 = por %p229, %p230
      %p232 = scmp.ne.s32.totalorder %s220, %s221
      %p233 = scmp.eq.s32.totalorder %s24, 7
      %p234 = por %p232, %p233
      %p236 = scmp.ne.s32.totalorder %s221, %s235
      %p237 = scmp.eq.s32.totalorder %s24, 0
      %p238 = por %p236, %p237
      %s240 = sadd.s32 %s239, 1
      %p243 = scmp.eq.s32.totalorder %s18, 7
      %p244 = scmp.ne.s32.totalorder %s239, %s241
      %p245 = scmp.eq.s32.totalorder %s18, 0
      %p246 = por %p244, %p245
      %p247 = scmp.ne.s32.totalorder %s239, %s241
      %p248 = scmp.eq.s32.totalorder %s23, 7
      %p249 = por %p247, %p248
      %p250 = scmp.ne.s32.totalorder %s241, %s242
      %p251 = scmp.eq.s32.totalorder %s23, 0
      %p252 = por %p250, %p251
      %p253 = scmp.ne.s32.totalorder %s241, %s242
      %p254 = scmp.eq.s32.totalorder %s24, 7
      %p255 = por %p253, %p254
      %p257 = scmp.ne.s32.totalorder %s242, %s256
      %p258 = scmp.eq.s32.totalorder %s24, 0
      %p259 = por %p257, %p258
      %s261 = sadd.s32 %s260, 1
      %p264 = scmp.eq.s32.totalorder %s18, 7
      %p265 = scmp.ne.s32.totalorder %s260, %s262
      %p266 = scmp.eq.s32.totalorder %s18, 0
      %p267 = por %p265, %p266
      %p268 = scmp.ne.s32.totalorder %s260, %s262
      %p269 = scmp.eq.s32.totalorder %s23, 7
      %p270 = por %p268, %p269
      %p271 = scmp.ne.s32.totalorder %s262, %s263
      %p272 = scmp.eq.s32.totalorder %s23, 0
      %p273 = por %p271, %p272
      %p274 = scmp.ne.s32.totalorder %s262, %s263
      %p275 = scmp.eq.s32.totalorder %s24, 7
      %p276 = por %p274, %p275
      %p278 = scmp.ne.s32.totalorder %s263, %s277
      %p279 = scmp.eq.s32.totalorder %s24, 0
      %p280 = por %p278, %p279
      %s282 = sadd.s32 %s281, 1
      %p285 = scmp.eq.s32.totalorder %s18, 7
      %p286 = scmp.ne.s32.totalorder %s281, %s283
      %p287 = scmp.eq.s32.totalorder %s18, 0
      %p288 = por %p286, %p287
      %p289 = scmp.ne.s32.totalorder %s281, %s283
      %p290 = scmp.eq.s32.totalorder %s23, 7
      %p291 = por %p289, %p290
      %p292 = scmp.ne.s32.totalorder %s283, %s284
      %p293 = scmp.eq.s32.totalorder %s23, 0
      %p294 = por %p292, %p293
      %p295 = scmp.ne.s32.totalorder %s283, %s284
      %p296 = scmp.eq.s32.totalorder %s24, 7
      %p297 = por %p295, %p296
      %p299 = scmp.ne.s32.totalorder %s284, %s298
      %p300 = scmp.eq.s32.totalorder %s24, 0
      %p301 = por %p299, %p300
      %s303 = sadd.s32 %s302, 1
      %p306 = scmp.eq.s32.totalorder %s18, 7
      %p307 = scmp.ne.s32.totalorder %s302, %s304
      %p308 = scmp.eq.s32.totalorder %s18, 0
      %p309 = por %p307, %p308
      %p310 = scmp.ne.s32.totalorder %s302, %s304
      %p311 = scmp.eq.s32.totalorder %s23, 7
      %p312 = por %p310, %p311
      %p313 = scmp.ne.s32.totalorder %s304, %s305
      %p314 = scmp.eq.s32.totalorder %s23, 0
      %p315 = por %p313, %p314
      %p316 = scmp.ne.s32.totalorder %s304, %s305
      %p317 = scmp.eq.s32.totalorder %s24, 7
      %p318 = por %p316, %p317
      %p320 = scmp.ne.s32.totalorder %s305, %s319
      %p321 = scmp.eq.s32.totalorder %s24, 0
      %p322 = por %p320, %p321
      %s323 = ssub.s32 %s25, %s37
      %s324 = ssub.s32 %s26, %s33
      %s325 = sor.u32 %s323, %s324
      %p326 = scmp.eq.s32.totalorder %s325, 0
      %s328 = sadd.s32 %s327, 1
      %s329 = scalar_select %p326, %s327, %s328
      %p332 = pneg %p326
      %p333 = scmp.eq.s32.totalorder %s18, 7
      %p334 = por %p332, %p333
      %p335 = scmp.ne.s32.totalorder %s327, %s330
      %p336 = scmp.eq.s32.totalorder %s18, 0
      %p337 = por %p335, %p336
      %p338 = scmp.ne.s32.totalorder %s327, %s330
      %p339 = scmp.eq.s32.totalorder %s23, 7
      %p340 = por %p338, %p339
      %p341 = scmp.ne.s32.totalorder %s330, %s331
      %p342 = scmp.eq.s32.totalorder %s23, 0
      %p343 = por %p341, %p342
      %p344 = scmp.ne.s32.totalorder %s330, %s331
      %p345 = scmp.eq.s32.totalorder %s24, 7
      %p346 = por %p344, %p345
      %p348 = scmp.ne.s32.totalorder %s331, %s347
      %p349 = scmp.eq.s32.totalorder %s24, 0
      %p350 = por %p348, %p349
      %p351 = scmp.le.s32.totalorder 1, %s18
      %p352 = scmp.lt.s32.totalorder %s18, 9
      %p353 = pnand %p351, %p352
      %p354 = pneg %p353
      // Predicated region
      $region9: #{tpu_custom_call.1} parent=5 // pred_check
        _
      $region10: #{tpu_custom_call.1} parent=5 // pred_check_branch
        %356 = sbr.rel (%p353) target = $region12
      $region11: #{tpu_custom_call.1} parent=5 // pred_region
        %s357 = ssub.s32 %s18, 1
        // Predicated region
        $region13: #{tpu_custom_call.1} parent=11 // pred_check
          %p358 = pneg %p147
        $region14: #{tpu_custom_call.1} parent=11 // pred_check_branch
          %360 = sbr.rel (%p358) target = $region16
        $region15: #{tpu_custom_call.1} parent=11 // pred_region
          _
        $region16: #{tpu_custom_call.1} parent=11 // pred_fallthru
          _
        // Predicated region
        $region17: #{tpu_custom_call.1} parent=11 // pred_check
          %p361 = pneg %p168
        $region18: #{tpu_custom_call.1} parent=11 // pred_check_branch
          %363 = sbr.rel (%p361) target = $region20
        $region19: #{tpu_custom_call.1} parent=11 // pred_region
          _
        $region20: #{tpu_custom_call.1} parent=11 // pred_fallthru
          _
        // Predicated region
        $region21: #{tpu_custom_call.1} parent=11 // pred_check
          %p364 = pneg %p189
        $region22: #{tpu_custom_call.1} parent=11 // pred_check_branch
          %366 = sbr.rel (%p364) target = $region24
        $region23: #{tpu_custom_call.1} parent=11 // pred_region
          _
        $region24: #{tpu_custom_call.1} parent=11 // pred_fallthru
          _
        // Predicated region
        $region25: #{tpu_custom_call.1} parent=11 // pred_check
          %p367 = pneg %p210
        $region26: #{tpu_custom_call.1} parent=11 // pred_check_branch
          %369 = sbr.rel (%p367) target = $region28
        $region27: #{tpu_custom_call.1} parent=11 // pred_region
          _
        $region28: #{tpu_custom_call.1} parent=11 // pred_fallthru
          _
        // Predicated region
        $region29: #{tpu_custom_call.1} parent=11 // pred_check
          %p370 = pneg %p231
        $region30: #{tpu_custom_call.1} parent=11 // pred_check_branch
          %372 = sbr.rel (%p370) target = $region32
        $region31: #{tpu_custom_call.1} parent=11 // pred_region
          _
        $region32: #{tpu_custom_call.1} parent=11 // pred_fallthru
          _
        // Predicated region
        $region33: #{tpu_custom_call.1} parent=11 // pred_check
          %p373 = pneg %p252
        $region34: #{tpu_custom_call.1} parent=11 // pred_check_branch
          %375 = sbr.rel (%p373) target = $region36
        $region35: #{tpu_custom_call.1} parent=11 // pred_region
          _
        $region36: #{tpu_custom_call.1} parent=11 // pred_fallthru
          _
        // Predicated region
        $region37: #{tpu_custom_call.1} parent=11 // pred_check
          %p376 = pneg %p273
        $region38: #{tpu_custom_call.1} parent=11 // pred_check_branch
          %378 = sbr.rel (%p376) target = $region40
        $region39: #{tpu_custom_call.1} parent=11 // pred_region
          _
        $region40: #{tpu_custom_call.1} parent=11 // pred_fallthru
          _
        // Predicated region
        $region41: #{tpu_custom_call.1} parent=11 // pred_check
          %p379 = pneg %p294
        $region42: #{tpu_custom_call.1} parent=11 // pred_check_branch
          %381 = sbr.rel (%p379) target = $region44
        $region43: #{tpu_custom_call.1} parent=11 // pred_region
          _
        $region44: #{tpu_custom_call.1} parent=11 // pred_fallthru
          _
        // Predicated region
        $region45: #{tpu_custom_call.1} parent=11 // pred_check
          %p382 = pneg %p315
        $region46: #{tpu_custom_call.1} parent=11 // pred_check_branch
          %384 = sbr.rel (%p382) target = $region48
        $region47: #{tpu_custom_call.1} parent=11 // pred_region
          _
        $region48: #{tpu_custom_call.1} parent=11 // pred_fallthru
          _
      $region12: #{tpu_custom_call.1} parent=5 // pred_fallthru
        _
      %p385 = scmp.lt.s32.totalorder %s18, 8
      // Predicated region
      $region49: #{tpu_custom_call.1} parent=5 // pred_check
        %p386 = pneg %p385
      $region50: #{tpu_custom_call.1} parent=5 // pred_check_branch
        %388 = sbr.rel (%p386) target = $region52
      $region51: #{tpu_custom_call.1} parent=5 // pred_region
        // Predicated region
        $region53: #{tpu_custom_call.1} parent=51 // pred_check
          %p389 = pneg %p52
        $region54: #{tpu_custom_call.1} parent=51 // pred_check_branch
          %391 = sbr.rel (%p389) target = $region56
        $region55: #{tpu_custom_call.1} parent=51 // pred_region
          %s392 = smul.u32 8, %s26
          %p393 = scmp.lt.s32.totalorder %s25, 1
          %s394 = scalar_select %p393, %s25, 1
          %p395 = scmp.lt.s32.totalorder %s392, 31
          %s396 = scalar_select %p395, %s392, 31
          %s397 = smul.addr %s394, 32
          %s398 = sadd.s32 %s396, %s397
          %s399 = smul.addr %s398, 4
          %s400 = scalar_lea.vmem %s0, %s399
          %s401 = smul.u32 8, %s26
        $region56: #{tpu_custom_call.1} parent=51 // pred_fallthru
          _
        // Predicated region
        $region57: #{tpu_custom_call.1} parent=51 // pred_check
          %p402 = pneg %p86
        $region58: #{tpu_custom_call.1} parent=51 // pred_check_branch
          %404 = sbr.rel (%p402) target = $region60
        $region59: #{tpu_custom_call.1} parent=51 // pred_region
          %s405 = ssub.s32 %s26, 1
          %p406 = scmp.gt.s32.totalorder %s405, 0
          %s407 = scalar_select %p406, %s405, 0
          %s408 = smul.u32 8, %s407
          %p409 = scmp.lt.s32.totalorder %s25, 1
          %s410 = scalar_select %p409, %s25, 1
          %p411 = scmp.lt.s32.totalorder %s408, 31
          %s412 = scalar_select %p411, %s408, 31
          %s413 = smul.addr %s410, 32
          %s414 = sadd.s32 %s412, %s413
          %s415 = smul.addr %s414, 4
          %s416 = scalar_lea.vmem %s1, %s415
          %s417 = ssub.s32 %s26, 1
          %p418 = scmp.gt.s32.totalorder %s417, 0
          %s419 = scalar_select %p418, %s417, 0
          %s420 = smul.u32 8, %s419
        $region60: #{tpu_custom_call.1} parent=51 // pred_fallthru
          _
        // Predicated region
        $region61: #{tpu_custom_call.1} parent=51 // pred_check
          %p421 = pneg %p120
        $region62: #{tpu_custom_call.1} parent=51 // pred_check_branch
          %423 = sbr.rel (%p421) target = $region64
        $region63: #{tpu_custom_call.1} parent=51 // pred_region
          %s424 = sadd.s32 %s26, 1
          %p425 = scmp.lt.s32.totalorder %s424, 3
          %s426 = scalar_select %p425, %s424, 3
          %s427 = smul.u32 8, %s426
          %p428 = scmp.lt.s32.totalorder %s25, 1
          %s429 = scalar_select %p428, %s25, 1
          %p430 = scmp.lt.s32.totalorder %s427, 31
          %s431 = scalar_select %p430, %s427, 31
          %s432 = smul.addr %s429, 32
          %s433 = sadd.s32 %s431, %s432
          %s434 = smul.addr %s433, 4
          %s435 = scalar_lea.vmem %s2, %s434
          %s436 = sadd.s32 %s26, 1
          %p437 = scmp.lt.s32.totalorder %s436, 3
          %s438 = scalar_select %p437, %s436, 3
          %s439 = smul.u32 8, %s438
        $region64: #{tpu_custom_call.1} parent=51 // pred_fallthru
          _
      $region52: #{tpu_custom_call.1} parent=5 // pred_fallthru
        _
      %p440 = scmp.le.s32.totalorder 1, %s18
      %p441 = scmp.lt.s32.totalorder %s18, 9
      %p442 = pnand %p440, %p441
      %p443 = pneg %p442
      // Predicated region
      $region65: #{tpu_custom_call.1} parent=5 // pred_check
        _
      $region66: #{tpu_custom_call.1} parent=5 // pred_check_branch
        %445 = sbr.rel (%p442) target = $region68
      $region67: #{tpu_custom_call.1} parent=5 // pred_region
        %s446 = ssub.s32 %s18, 1
        %s447 = smul.u32 8, %s28
        %p448 = scmp.lt.s32.totalorder %s27, 1
        %s449 = scalar_select %p448, %s27, 1
        %p450 = scmp.lt.s32.totalorder %s447, 31
        %s451 = scalar_select %p450, %s447, 31
        %s452 = smul.addr %s449, 32
        %s453 = sadd.s32 %s451, %s452
        %s454 = smul.addr %s453, 4
        %s455 = scalar_lea.vmem %s0, %s454
        %p456 = pneg %p58
        %p457 = pneg %p55
        %s458 = ssub.s32 %s28, 1
        %p459 = scmp.gt.s32.totalorder %s458, 0
        %s460 = scalar_select %p459, %s458, 0
        %s461 = smul.u32 8, %s460
        %p462 = scmp.lt.s32.totalorder %s27, 1
        %s463 = scalar_select %p462, %s27, 1
        %p464 = scmp.lt.s32.totalorder %s461, 31
        %s465 = scalar_select %p464, %s461, 31
        %s466 = smul.addr %s463, 32
        %s467 = sadd.s32 %s465, %s466
        %s468 = smul.addr %s467, 4
        %s469 = scalar_lea.vmem %s1, %s468
        %p470 = pneg %p92
        %p471 = pneg %p89
        %s472 = sadd.s32 %s28, 1
        %p473 = scmp.lt.s32.totalorder %s472, 3
        %s474 = scalar_select %p473, %s472, 3
        %s475 = smul.u32 8, %s474
        %p476 = scmp.lt.s32.totalorder %s27, 1
        %s477 = scalar_select %p476, %s27, 1
        %p478 = scmp.lt.s32.totalorder %s475, 31
        %s479 = scalar_select %p478, %s475, 31
        %s480 = smul.addr %s477, 32
        %s481 = sadd.s32 %s479, %s480
        %s482 = smul.addr %s481, 4
        %s483 = scalar_lea.vmem %s2, %s482
        %p484 = pneg %p126
        %p485 = pneg %p123
        %p486 = pneg %p147
        %p487 = pneg %p144
        %p488 = pneg %p168
        %p489 = pneg %p165
        %p490 = pneg %p189
        %p491 = pneg %p186
        %p492 = pneg %p210
        %p493 = pneg %p207
        %p494 = pneg %p231
        %p495 = pneg %p228
        %p496 = pneg %p252
        %p497 = pneg %p249
        %p498 = pneg %p273
        %p499 = pneg %p270
        %p500 = pneg %p294
        %p501 = pneg %p291
        %p502 = pneg %p315
        %p503 = pneg %p312
        %p504 = pneg %p343
        %p505 = pneg %p340
        %s506 = sand.u32 %s330, 1
        %s507 = sand.u32 %s330, 1
        %s508 = smul.addr %s507, 128
        %s509 = scalar_lea.vmem [#allocation3], %s508
        %s510 = smul.u32 8, %s28
        %p511 = scmp.lt.s32.totalorder %s27, 1
        %s512 = scalar_select %p511, %s27, 1
        %p513 = scmp.lt.s32.totalorder %s510, 31
        %s514 = scalar_select %p513, %s510, 31
        %s515 = smul.addr %s512, 32
        %s516 = sadd.s32 %s514, %s515
        %s517 = smul.addr %s516, 4
        %s518 = scalar_lea.vmem %s0, %s517
        %s519 = smul.u32 8, %s28
        %s520 = ssub.s32 %s28, 1
        %p521 = scmp.gt.s32.totalorder %s520, 0
        %s522 = scalar_select %p521, %s520, 0
        %s523 = smul.u32 8, %s522
        %p524 = scmp.lt.s32.totalorder %s27, 1
        %s525 = scalar_select %p524, %s27, 1
        %p526 = scmp.lt.s32.totalorder %s523, 31
        %s527 = scalar_select %p526, %s523, 31
        %s528 = smul.addr %s525, 32
        %s529 = sadd.s32 %s527, %s528
        %s530 = smul.addr %s529, 4
        %s531 = scalar_lea.vmem %s1, %s530
        %s532 = ssub.s32 %s28, 1
        %p533 = scmp.gt.s32.totalorder %s532, 0
        %s534 = scalar_select %p533, %s532, 0
        %s535 = smul.u32 8, %s534
        %s536 = sadd.s32 %s28, 1
        %p537 = scmp.lt.s32.totalorder %s536, 3
        %s538 = scalar_select %p537, %s536, 3
        %s539 = smul.u32 8, %s538
        %p540 = scmp.lt.s32.totalorder %s27, 1
        %s541 = scalar_select %p540, %s27, 1
        %p542 = scmp.lt.s32.totalorder %s539, 31
        %s543 = scalar_select %p542, %s539, 31
        %s544 = smul.addr %s541, 32
        %s545 = sadd.s32 %s543, %s544
        %s546 = smul.addr %s545, 4
        %s547 = scalar_lea.vmem %s2, %s546
        %s548 = sadd.s32 %s28, 1
        %p549 = scmp.lt.s32.totalorder %s548, 3
        %s550 = scalar_select %p549, %s548, 3
        %s551 = smul.u32 8, %s550
        %s552 = smul.u32 8, %s28
        %v553 = vld [vmem:[%s531 + $0x1c] sm:$0x7]
        %v554 = vld [vmem:[%s547] sm:$0x7]
        %v555 = vld [vmem:[%s518] sm:$0x77]
        %v556 = vld [vmem:[%s518 + $0x8] sm:$0x77]
        %v557 = vld [vmem:[%s518 + $0x10] sm:$0x77]
        %v558 = vld [vmem:[%s518 + $0x18] sm:$0x77]
        %563 = vst [vmem:[#allocation1] ss:$2 sm:$0xff] %v555
        %s564 = scalar_lea.vmem [#allocation1], 16
        %565 = vst [vmem:[%s564] ss:$2 sm:$0xff] %v556
        %s566 = scalar_lea.vmem [#allocation1], 32
        %567 = vst [vmem:[%s566] ss:$2 sm:$0xff] %v557
        %s568 = scalar_lea.vmem [#allocation1], 48
        %569 = vst [vmem:[%s568] ss:$2 sm:$0xff] %v558
        %v570 = vld.sshfl [vmem:[#allocation1] sm:$0xff pattern:$0x75316420]
        %v571 = vld.sshfl [vmem:[#allocation1 + $0x8] sm:$0xff pattern:$0x75316420]
        %v572 = vld.sshfl [vmem:[#allocation1 + $0x10] sm:$0xff pattern:$0x75316420]
        %v573 = vld.sshfl [vmem:[#allocation1 + $0x18] sm:$0xff pattern:$0x75316420]
        %v574 = vld.sshfl [vmem:[#allocation1 + $0x20] sm:$0xff pattern:$0x75316420]
        %v575 = vld.sshfl [vmem:[#allocation1 + $0x28] sm:$0xff pattern:$0x75316420]
        %v576 = vld.sshfl [vmem:[#allocation1 + $0x30] sm:$0xff pattern:$0x75316420]
        %v577 = vld.sshfl [vmem:[#allocation1 + $0x38] sm:$0xff pattern:$0x75316420]
        %579 = vst [vmem:[#allocation1] ss:$2 sm:$0xff] %v553
        %v580 = vld.sshfl [vmem:[#allocation1] sm:$0xff pattern:$0x75316420]
        %581 = vrot.lane.b32.xlu0 %v580, 64
        %v582 = vpop.permute.xlu0 %581
        %585 = vst [vmem:[#allocation1] ss:$2 sm:$0xff] %v554
        %v586 = vld.sshfl [vmem:[#allocation1] sm:$0xff pattern:$0x75316420]
        %587 = vrot.lane.b32.xlu0 %v586, 64
        %v588 = vpop.permute.xlu0 %587
        %vm590 = vcmask 523264
        %v591 = vsel %vm590, %v582, %v588
        %v592 = vld [vmem:[%s4] sm:$0xff]
        %v593 = vld [vmem:[%s4 + $0x8] sm:$0xff]
        %v594 = vld [vmem:[%s5] sm:$0xff]
        %v595 = vld [vmem:[%s5 + $0x8] sm:$0xff]
        %597 = vset.pattern.permute.xlu0 0
        %598 = vperm.xlu0 %597, %v594
        %v599 = vpop.permute.xlu0 %598
        %602 = vset.pattern.permute.xlu0 0
        %603 = vperm.xlu0 %602, %v595
        %v604 = vpop.permute.xlu0 %603
        %vm606 = vcmask 23552
        %v608 = vsel %vm606, %v592, 0
        %v611 = vsel %vm606, %v593, 0
        %vm613 = vcmask 1042432
        %v614 = vsel %vm613, %v570, 0
        %v616 = vsel %vm613, %v571, 0
        %v618 = vsel %vm613, %v572, 0
        %v620 = vsel %vm613, %v573, 0
        %v622 = vsel %vm613, %v574, 0
        %v624 = vsel %vm613, %v575, 0
        %v626 = vsel %vm613, %v576, 0
        %v628 = vsel %vm613, %v577, 0
        %v631 = vsel %vm613, %v591, 0
        %633 = vmatpush.msra.mxu0 0.0
        %634 = vmatpush.msra.mxu0 0.0
        %635 = vmatpush.msra.mxu0 0.0
        %636 = vmatpush.msra.mxu0 0.0
        %637 = vmatpush.msra.mxu0 0.0
        %638 = vmatpush.msra.mxu0 0.0
        %639 = vmatpush.msra.mxu0 0.0
        %640 = vmatpush.msra.mxu0 0.0
        %641 = vmatpush.msra.mxu0 0.0
        %642 = vmatpush.msra.mxu0 0.0
        %643 = vmatpush.msra.mxu0 0.0
        %644 = vmatpush.msra.mxu0 0.0
        %645 = vmatpush.msra.mxu0 0.0
        %646 = vmatpush.msra.mxu0 0.0
        %647 = vmatpush.msra.mxu0 0.0
        %648 = vmatpush.msra.mxu0 %v614
        %649 = vmatmul.f32.gmra.mxu0 %v608
        %v650 = vpop.f32.mrf.mxu0
        %v651 = vadd.f32 %v599, %v650
        %652 = vmatmul.f32.gmra.mxu0 %v611
        %v653 = vpop.f32.mrf.mxu0
        %v654 = vadd.f32 %v604, %v653
        %655 = vdwg.mxu0
        %656 = vmatpush.msra.mxu0 0.0
        %657 = vmatpush.msra.mxu0 0.0
        %658 = vmatpush.msra.mxu0 0.0
        %659 = vmatpush.msra.mxu0 0.0
        %660 = vmatpush.msra.mxu0 0.0
        %661 = vmatpush.msra.mxu0 0.0
        %662 = vmatpush.msra.mxu0 0.0
        %663 = vmatpush.msra.mxu0 0.0
        %664 = vmatpush.msra.mxu0 0.0
        %665 = vmatpush.msra.mxu0 0.0
        %666 = vmatpush.msra.mxu0 0.0
        %667 = vmatpush.msra.mxu0 0.0
        %668 = vmatpush.msra.mxu0 0.0
        %669 = vmatpush.msra.mxu0 0.0
        %670 = vmatpush.msra.mxu0 0.0
        %671 = vmatpush.msra.mxu0 %v616
        %672 = vmatmul.f32.gmra.mxu0 %v608
        %v673 = vpop.f32.mrf.mxu0
        %v674 = vadd.f32 %v599, %v673
        %675 = vmatmul.f32.gmra.mxu0 %v611
        %v676 = vpop.f32.mrf.mxu0
        %v677 = vadd.f32 %v604, %v676
        %678 = vdwg.mxu0
        %679 = vmatpush.msra.mxu0 0.0
        %680 = vmatpush.msra.mxu0 0.0
        %681 = vmatpush.msra.mxu0 0.0
        %682 = vmatpush.msra.mxu0 0.0
        %683 = vmatpush.msra.mxu0 0.0
        %684 = vmatpush.msra.mxu0 0.0
        %685 = vmatpush.msra.mxu0 0.0
        %686 = vmatpush.msra.mxu0 0.0
        %687 = vmatpush.msra.mxu0 0.0
        %688 = vmatpush.msra.mxu0 0.0
        %689 = vmatpush.msra.mxu0 0.0
        %690 = vmatpush.msra.mxu0 0.0
        %691 = vmatpush.msra.mxu0 0.0
        %692 = vmatpush.msra.mxu0 0.0
        %693 = vmatpush.msra.mxu0 0.0
        %694 = vmatpush.msra.mxu0 %v618
        %695 = vmatmul.f32.gmra.mxu0 %v608
        %v696 = vpop.f32.mrf.mxu0
        %v697 = vadd.f32 %v599, %v696
        %698 = vmatmul.f32.gmra.mxu0 %v611
        %v699 = vpop.f32.mrf.mxu0
        %v700 = vadd.f32 %v604, %v699
        %701 = vdwg.mxu0
        %702 = vmatpush.msra.mxu0 0.0
        %703 = vmatpush.msra.mxu0 0.0
        %704 = vmatpush.msra.mxu0 0.0
        %705 = vmatpush.msra.mxu0 0.0
        %706 = vmatpush.msra.mxu0 0.0
        %707 = vmatpush.msra.mxu0 0.0
        %708 = vmatpush.msra.mxu0 0.0
        %709 = vmatpush.msra.mxu0 0.0
        %710 = vmatpush.msra.mxu0 0.0
        %711 = vmatpush.msra.mxu0 0.0
        %712 = vmatpush.msra.mxu0 0.0
        %713 = vmatpush.msra.mxu0 0.0
        %714 = vmatpush.msra.mxu0 0.0
        %715 = vmatpush.msra.mxu0 0.0
        %716 = vmatpush.msra.mxu0 0.0
        %717 = vmatpush.msra.mxu0 %v620
        %718 = vmatmul.f32.gmra.mxu0 %v608
        %v719 = vpop.f32.mrf.mxu0
        %v720 = vadd.f32 %v599, %v719
        %721 = vmatmul.f32.gmra.mxu0 %v611
        %v722 = vpop.f32.mrf.mxu0
        %v723 = vadd.f32 %v604, %v722
        %724 = vdwg.mxu0
        %725 = vmatpush.msra.mxu0 0.0
        %726 = vmatpush.msra.mxu0 0.0
        %727 = vmatpush.msra.mxu0 0.0
        %728 = vmatpush.msra.mxu0 0.0
        %729 = vmatpush.msra.mxu0 0.0
        %730 = vmatpush.msra.mxu0 0.0
        %731 = vmatpush.msra.mxu0 0.0
        %732 = vmatpush.msra.mxu0 0.0
        %733 = vmatpush.msra.mxu0 0.0
        %734 = vmatpush.msra.mxu0 0.0
        %735 = vmatpush.msra.mxu0 0.0
        %736 = vmatpush.msra.mxu0 0.0
        %737 = vmatpush.msra.mxu0 0.0
        %738 = vmatpush.msra.mxu0 0.0
        %739 = vmatpush.msra.mxu0 0.0
        %740 = vmatpush.msra.mxu0 %v622
        %741 = vmatmul.f32.gmra.mxu0 %v608
        %v742 = vpop.f32.mrf.mxu0
        %v743 = vadd.f32 %v599, %v742
        %744 = vmatmul.f32.gmra.mxu0 %v611
        %v745 = vpop.f32.mrf.mxu0
        %v746 = vadd.f32 %v604, %v745
        %747 = vdwg.mxu0
        %748 = vmatpush.msra.mxu0 0.0
        %749 = vmatpush.msra.mxu0 0.0
        %750 = vmatpush.msra.mxu0 0.0
        %751 = vmatpush.msra.mxu0 0.0
        %752 = vmatpush.msra.mxu0 0.0
        %753 = vmatpush.msra.mxu0 0.0
        %754 = vmatpush.msra.mxu0 0.0
        %755 = vmatpush.msra.mxu0 0.0
        %756 = vmatpush.msra.mxu0 0.0
        %757 = vmatpush.msra.mxu0 0.0
        %758 = vmatpush.msra.mxu0 0.0
        %759 = vmatpush.msra.mxu0 0.0
        %760 = vmatpush.msra.mxu0 0.0
        %761 = vmatpush.msra.mxu0 0.0
        %762 = vmatpush.msra.mxu0 0.0
        %763 = vmatpush.msra.mxu0 %v624
        %764 = vmatmul.f32.gmra.mxu0 %v608
        %v765 = vpop.f32.mrf.mxu0
        %v766 = vadd.f32 %v599, %v765
        %767 = vmatmul.f32.gmra.mxu0 %v611
        %v768 = vpop.f32.mrf.mxu0
        %v769 = vadd.f32 %v604, %v768
        %770 = vdwg.mxu0
        %771 = vmatpush.msra.mxu0 0.0
        %772 = vmatpush.msra.mxu0 0.0
        %773 = vmatpush.msra.mxu0 0.0
        %774 = vmatpush.msra.mxu0 0.0
        %775 = vmatpush.msra.mxu0 0.0
        %776 = vmatpush.msra.mxu0 0.0
        %777 = vmatpush.msra.mxu0 0.0
        %778 = vmatpush.msra.mxu0 0.0
        %779 = vmatpush.msra.mxu0 0.0
        %780 = vmatpush.msra.mxu0 0.0
        %781 = vmatpush.msra.mxu0 0.0
        %782 = vmatpush.msra.mxu0 0.0
        %783 = vmatpush.msra.mxu0 0.0
        %784 = vmatpush.msra.mxu0 0.0
        %785 = vmatpush.msra.mxu0 0.0
        %786 = vmatpush.msra.mxu0 %v626
        %787 = vmatmul.f32.gmra.mxu0 %v608
        %v788 = vpop.f32.mrf.mxu0
        %v789 = vadd.f32 %v599, %v788
        %790 = vmatmul.f32.gmra.mxu0 %v611
        %v791 = vpop.f32.mrf.mxu0
        %v792 = vadd.f32 %v604, %v791
        %793 = vdwg.mxu0
        %794 = vmatpush.msra.mxu0 0.0
        %795 = vmatpush.msra.mxu0 0.0
        %796 = vmatpush.msra.mxu0 0.0
        %797 = vmatpush.msra.mxu0 0.0
        %798 = vmatpush.msra.mxu0 0.0
        %799 = vmatpush.msra.mxu0 0.0
        %800 = vmatpush.msra.mxu0 0.0
        %801 = vmatpush.msra.mxu0 0.0
        %802 = vmatpush.msra.mxu0 0.0
        %803 = vmatpush.msra.mxu0 0.0
        %804 = vmatpush.msra.mxu0 0.0
        %805 = vmatpush.msra.mxu0 0.0
        %806 = vmatpush.msra.mxu0 0.0
        %807 = vmatpush.msra.mxu0 0.0
        %808 = vmatpush.msra.mxu0 0.0
        %809 = vmatpush.msra.mxu0 %v628
        %810 = vmatmul.f32.gmra.mxu0 %v608
        %v811 = vpop.f32.mrf.mxu0
        %v812 = vadd.f32 %v599, %v811
        %813 = vmatmul.f32.gmra.mxu0 %v611
        %v814 = vpop.f32.mrf.mxu0
        %v815 = vadd.f32 %v604, %v814
        %816 = vdwg.mxu0
        %817 = vmatpush.msra.mxu0 0.0
        %818 = vmatpush.msra.mxu0 0.0
        %819 = vmatpush.msra.mxu0 0.0
        %820 = vmatpush.msra.mxu0 0.0
        %821 = vmatpush.msra.mxu0 0.0
        %822 = vmatpush.msra.mxu0 0.0
        %823 = vmatpush.msra.mxu0 0.0
        %824 = vmatpush.msra.mxu0 0.0
        %825 = vmatpush.msra.mxu0 0.0
        %826 = vmatpush.msra.mxu0 0.0
        %827 = vmatpush.msra.mxu0 0.0
        %828 = vmatpush.msra.mxu0 0.0
        %829 = vmatpush.msra.mxu0 0.0
        %830 = vmatpush.msra.mxu0 0.0
        %831 = vmatpush.msra.mxu0 0.0
        %832 = vmatpush.msra.mxu0 %v631
        %833 = vmatmul.f32.gmra.mxu0 %v608
        %v834 = vpop.f32.mrf.mxu0
        %v835 = vadd.f32 %v599, %v834
        %836 = vmatmul.f32.gmra.mxu0 %v611
        %v837 = vpop.f32.mrf.mxu0
        %v838 = vadd.f32 %v604, %v837
        %839 = vdwg.mxu0
        %v840 = vxor.u32 %v651, 2147483648
        %v841 = vxor.u32 %v674, 2147483648
        %v842 = vxor.u32 %v697, 2147483648
        %v843 = vxor.u32 %v720, 2147483648
        %v844 = vxor.u32 %v743, 2147483648
        %v845 = vxor.u32 %v766, 2147483648
        %v846 = vxor.u32 %v789, 2147483648
        %v847 = vxor.u32 %v812, 2147483648
        %v848 = vxor.u32 %v835, 2147483648
        %v849 = vxor.u32 %v654, 2147483648
        %v850 = vxor.u32 %v677, 2147483648
        %v851 = vxor.u32 %v700, 2147483648
        %v852 = vxor.u32 %v723, 2147483648
        %v853 = vxor.u32 %v746, 2147483648
        %v854 = vxor.u32 %v769, 2147483648
        %v855 = vxor.u32 %v792, 2147483648
        %v856 = vxor.u32 %v815, 2147483648
        %v857 = vxor.u32 %v838, 2147483648
        %v858 = vmul.f32 %v840, 1.442695
        %v859 = vpow.pop %v858
        %v860 = vmul.f32 %v841, 1.442695
        %v861 = vpow.pop %v860
        %v862 = vmul.f32 %v842, 1.442695
        %v863 = vpow.pop %v862
        %v864 = vmul.f32 %v843, 1.442695
        %v865 = vpow.pop %v864
        %v866 = vmul.f32 %v844, 1.442695
        %v867 = vpow.pop %v866
        %v868 = vmul.f32 %v845, 1.442695
        %v869 = vpow.pop %v868
        %v870 = vmul.f32 %v846, 1.442695
        %v871 = vpow.pop %v870
        %v872 = vmul.f32 %v847, 1.442695
        %v873 = vpow.pop %v872
        %v874 = vmul.f32 %v848, 1.442695
        %v875 = vpow.pop %v874
        %v876 = vmul.f32 %v849, 1.442695
        %v877 = vpow.pop %v876
        %v878 = vmul.f32 %v850, 1.442695
        %v879 = vpow.pop %v878
        %v880 = vmul.f32 %v851, 1.442695
        %v881 = vpow.pop %v880
        %v882 = vmul.f32 %v852, 1.442695
        %v883 = vpow.pop %v882
        %v884 = vmul.f32 %v853, 1.442695
        %v885 = vpow.pop %v884
        %v886 = vmul.f32 %v854, 1.442695
        %v887 = vpow.pop %v886
        %v888 = vmul.f32 %v855, 1.442695
        %v889 = vpow.pop %v888
        %v890 = vmul.f32 %v856, 1.442695
        %v891 = vpow.pop %v890
        %v892 = vmul.f32 %v857, 1.442695
        %v893 = vpow.pop %v892
        %v894 = vadd.f32 %v859, 1.0
        %v895 = vadd.f32 %v861, 1.0
        %v896 = vadd.f32 %v863, 1.0
        %v897 = vadd.f32 %v865, 1.0
        %v898 = vadd.f32 %v867, 1.0
        %v899 = vadd.f32 %v869, 1.0
        %v900 = vadd.f32 %v871, 1.0
        %v901 = vadd.f32 %v873, 1.0
        %v902 = vadd.f32 %v875, 1.0
        %v903 = vadd.f32 %v877, 1.0
        %v904 = vadd.f32 %v879, 1.0
        %v905 = vadd.f32 %v881, 1.0
        %v906 = vadd.f32 %v883, 1.0
        %v907 = vadd.f32 %v885, 1.0
        %v908 = vadd.f32 %v887, 1.0
        %v909 = vadd.f32 %v889, 1.0
        %v910 = vadd.f32 %v891, 1.0
        %v911 = vadd.f32 %v893, 1.0
        %v912 = vrcp.pop %v894
        %v913 = vmul.f32 %v894, %v912
        %v914 = vsub.f32 1.0, %v913
        %v915 = vmul.f32 %v912, %v914
        %v916 = vadd.f32 %v912, %v915
        %vm917 = vweird.f32 %v894
        %vm918 = vweird.f32 %v912
        %vm919 = vmor %vm917, %vm918
        %v920 = vsel %vm919, %v912, %v916
        %v921 = vand.u32 2147483647, %v894
        %vm922 = vcmp.eq.f32.partialorder %v921, 8.507059e+37
        %v923 = vand.u32 %v894, 2147483648
        %v924 = vor.u32 1.1754944e-38, %v923
        %v925 = vsel %vm922, %v924, %v920
        %v926 = vmul.f32 1.0, %v925
        %v927 = vrcp.pop %v895
        %v928 = vmul.f32 %v895, %v927
        %v929 = vsub.f32 1.0, %v928
        %v930 = vmul.f32 %v927, %v929
        %v931 = vadd.f32 %v927, %v930
        %vm932 = vweird.f32 %v895
        %vm933 = vweird.f32 %v927
        %vm934 = vmor %vm932, %vm933
        %v935 = vsel %vm934, %v927, %v931
        %v936 = vand.u32 2147483647, %v895
        %vm937 = vcmp.eq.f32.partialorder %v936, 8.507059e+37
        %v938 = vand.u32 %v895, 2147483648
        %v939 = vor.u32 1.1754944e-38, %v938
        %v940 = vsel %vm937, %v939, %v935
        %v941 = vmul.f32 1.0, %v940
        %v942 = vrcp.pop %v896
        %v943 = vmul.f32 %v896, %v942
        %v944 = vsub.f32 1.0, %v943
        %v945 = vmul.f32 %v942, %v944
        %v946 = vadd.f32 %v942, %v945
        %vm947 = vweird.f32 %v896
        %vm948 = vweird.f32 %v942
        %vm949 = vmor %vm947, %vm948
        %v950 = vsel %vm949, %v942, %v946
        %v951 = vand.u32 2147483647, %v896
        %vm952 = vcmp.eq.f32.partialorder %v951, 8.507059e+37
        %v953 = vand.u32 %v896, 2147483648
        %v954 = vor.u32 1.1754944e-38, %v953
        %v955 = vsel %vm952, %v954, %v950
        %v956 = vmul.f32 1.0, %v955
        %v957 = vrcp.pop %v897
        %v958 = vmul.f32 %v897, %v957
        %v959 = vsub.f32 1.0, %v958
        %v960 = vmul.f32 %v957, %v959
        %v961 = vadd.f32 %v957, %v960
        %vm962 = vweird.f32 %v897
        %vm963 = vweird.f32 %v957
        %vm964 = vmor %vm962, %vm963
        %v965 = vsel %vm964, %v957, %v961
        %v966 = vand.u32 2147483647, %v897
        %vm967 = vcmp.eq.f32.partialorder %v966, 8.507059e+37
        %v968 = vand.u32 %v897, 2147483648
        %v969 = vor.u32 1.1754944e-38, %v968
        %v970 = vsel %vm967, %v969, %v965
        %v971 = vmul.f32 1.0, %v970
        %v972 = vrcp.pop %v898
        %v973 = vmul.f32 %v898, %v972
        %v974 = vsub.f32 1.0, %v973
        %v975 = vmul.f32 %v972, %v974
        %v976 = vadd.f32 %v972, %v975
        %vm977 = vweird.f32 %v898
        %vm978 = vweird.f32 %v972
        %vm979 = vmor %vm977, %vm978
        %v980 = vsel %vm979, %v972, %v976
        %v981 = vand.u32 2147483647, %v898
        %vm982 = vcmp.eq.f32.partialorder %v981, 8.507059e+37
        %v983 = vand.u32 %v898, 2147483648
        %v984 = vor.u32 1.1754944e-38, %v983
        %v985 = vsel %vm982, %v984, %v980
        %v986 = vmul.f32 1.0, %v985
        %v987 = vrcp.pop %v899
        %v988 = vmul.f32 %v899, %v987
        %v989 = vsub.f32 1.0, %v988
        %v990 = vmul.f32 %v987, %v989
        %v991 = vadd.f32 %v987, %v990
        %vm992 = vweird.f32 %v899
        %vm993 = vweird.f32 %v987
        %vm994 = vmor %vm992, %vm993
        %v995 = vsel %vm994, %v987, %v991
        %v996 = vand.u32 2147483647, %v899
        %vm997 = vcmp.eq.f32.partialorder %v996, 8.507059e+37
        %v998 = vand.u32 %v899, 2147483648
        %v999 = vor.u32 1.1754944e-38, %v998
        %v1000 = vsel %vm997, %v999, %v995
        %v1001 = vmul.f32 1.0, %v1000
        %v1002 = vrcp.pop %v900
        %v1003 = vmul.f32 %v900, %v1002
        %v1004 = vsub.f32 1.0, %v1003
        %v1005 = vmul.f32 %v1002, %v1004
        %v1006 = vadd.f32 %v1002, %v1005
        %vm1007 = vweird.f32 %v900
        %vm1008 = vweird.f32 %v1002
        %vm1009 = vmor %vm1007, %vm1008
        %v1010 = vsel %vm1009, %v1002, %v1006
        %v1011 = vand.u32 2147483647, %v900
        %vm1012 = vcmp.eq.f32.partialorder %v1011, 8.507059e+37
        %v1013 = vand.u32 %v900, 2147483648
        %v1014 = vor.u32 1.1754944e-38, %v1013
        %v1015 = vsel %vm1012, %v1014, %v1010
        %v1016 = vmul.f32 1.0, %v1015
        %v1017 = vrcp.pop %v901
        %v1018 = vmul.f32 %v901, %v1017
        %v1019 = vsub.f32 1.0, %v1018
        %v1020 = vmul.f32 %v1017, %v1019
        %v1021 = vadd.f32 %v1017, %v1020
        %vm1022 = vweird.f32 %v901
        %vm1023 = vweird.f32 %v1017
        %vm1024 = vmor %vm1022, %vm1023
        %v1025 = vsel %vm1024, %v1017, %v1021
        %v1026 = vand.u32 2147483647, %v901
        %vm1027 = vcmp.eq.f32.partialorder %v1026, 8.507059e+37
        %v1028 = vand.u32 %v901, 2147483648
        %v1029 = vor.u32 1.1754944e-38, %v1028
        %v1030 = vsel %vm1027, %v1029, %v1025
        %v1031 = vmul.f32 1.0, %v1030
        %v1032 = vrcp.pop %v902
        %v1033 = vmul.f32 %v902, %v1032
        %v1034 = vsub.f32 1.0, %v1033
        %v1035 = vmul.f32 %v1032, %v1034
        %v1036 = vadd.f32 %v1032, %v1035
        %vm1037 = vweird.f32 %v902
        %vm1038 = vweird.f32 %v1032
        %vm1039 = vmor %vm1037, %vm1038
        %v1040 = vsel %vm1039, %v1032, %v1036
        %v1041 = vand.u32 2147483647, %v902
        %vm1042 = vcmp.eq.f32.partialorder %v1041, 8.507059e+37
        %v1043 = vand.u32 %v902, 2147483648
        %v1044 = vor.u32 1.1754944e-38, %v1043
        %v1045 = vsel %vm1042, %v1044, %v1040
        %v1046 = vmul.f32 1.0, %v1045
        %v1047 = vrcp.pop %v903
        %v1048 = vmul.f32 %v903, %v1047
        %v1049 = vsub.f32 1.0, %v1048
        %v1050 = vmul.f32 %v1047, %v1049
        %v1051 = vadd.f32 %v1047, %v1050
        %vm1052 = vweird.f32 %v903
        %vm1053 = vweird.f32 %v1047
        %vm1054 = vmor %vm1052, %vm1053
        %v1055 = vsel %vm1054, %v1047, %v1051
        %v1056 = vand.u32 2147483647, %v903
        %vm1057 = vcmp.eq.f32.partialorder %v1056, 8.507059e+37
        %v1058 = vand.u32 %v903, 2147483648
        %v1059 = vor.u32 1.1754944e-38, %v1058
        %v1060 = vsel %vm1057, %v1059, %v1055
        %v1061 = vmul.f32 1.0, %v1060
        %v1062 = vrcp.pop %v904
        %v1063 = vmul.f32 %v904, %v1062
        %v1064 = vsub.f32 1.0, %v1063
        %v1065 = vmul.f32 %v1062, %v1064
        %v1066 = vadd.f32 %v1062, %v1065
        %vm1067 = vweird.f32 %v904
        %vm1068 = vweird.f32 %v1062
        %vm1069 = vmor %vm1067, %vm1068
        %v1070 = vsel %vm1069, %v1062, %v1066
        %v1071 = vand.u32 2147483647, %v904
        %vm1072 = vcmp.eq.f32.partialorder %v1071, 8.507059e+37
        %v1073 = vand.u32 %v904, 2147483648
        %v1074 = vor.u32 1.1754944e-38, %v1073
        %v1075 = vsel %vm1072, %v1074, %v1070
        %v1076 = vmul.f32 1.0, %v1075
        %v1077 = vrcp.pop %v905
        %v1078 = vmul.f32 %v905, %v1077
        %v1079 = vsub.f32 1.0, %v1078
        %v1080 = vmul.f32 %v1077, %v1079
        %v1081 = vadd.f32 %v1077, %v1080
        %vm1082 = vweird.f32 %v905
        %vm1083 = vweird.f32 %v1077
        %vm1084 = vmor %vm1082, %vm1083
        %v1085 = vsel %vm1084, %v1077, %v1081
        %v1086 = vand.u32 2147483647, %v905
        %vm1087 = vcmp.eq.f32.partialorder %v1086, 8.507059e+37
        %v1088 = vand.u32 %v905, 2147483648
        %v1089 = vor.u32 1.1754944e-38, %v1088
        %v1090 = vsel %vm1087, %v1089, %v1085
        %v1091 = vmul.f32 1.0, %v1090
        %v1092 = vrcp.pop %v906
        %v1093 = vmul.f32 %v906, %v1092
        %v1094 = vsub.f32 1.0, %v1093
        %v1095 = vmul.f32 %v1092, %v1094
        %v1096 = vadd.f32 %v1092, %v1095
        %vm1097 = vweird.f32 %v906
        %vm1098 = vweird.f32 %v1092
        %vm1099 = vmor %vm1097, %vm1098
        %v1100 = vsel %vm1099, %v1092, %v1096
        %v1101 = vand.u32 2147483647, %v906
        %vm1102 = vcmp.eq.f32.partialorder %v1101, 8.507059e+37
        %v1103 = vand.u32 %v906, 2147483648
        %v1104 = vor.u32 1.1754944e-38, %v1103
        %v1105 = vsel %vm1102, %v1104, %v1100
        %v1106 = vmul.f32 1.0, %v1105
        %v1107 = vrcp.pop %v907
        %v1108 = vmul.f32 %v907, %v1107
        %v1109 = vsub.f32 1.0, %v1108
        %v1110 = vmul.f32 %v1107, %v1109
        %v1111 = vadd.f32 %v1107, %v1110
        %vm1112 = vweird.f32 %v907
        %vm1113 = vweird.f32 %v1107
        %vm1114 = vmor %vm1112, %vm1113
        %v1115 = vsel %vm1114, %v1107, %v1111
        %v1116 = vand.u32 2147483647, %v907
        %vm1117 = vcmp.eq.f32.partialorder %v1116, 8.507059e+37
        %v1118 = vand.u32 %v907, 2147483648
        %v1119 = vor.u32 1.1754944e-38, %v1118
        %v1120 = vsel %vm1117, %v1119, %v1115
        %v1121 = vmul.f32 1.0, %v1120
        %v1122 = vrcp.pop %v908
        %v1123 = vmul.f32 %v908, %v1122
        %v1124 = vsub.f32 1.0, %v1123
        %v1125 = vmul.f32 %v1122, %v1124
        %v1126 = vadd.f32 %v1122, %v1125
        %vm1127 = vweird.f32 %v908
        %vm1128 = vweird.f32 %v1122
        %vm1129 = vmor %vm1127, %vm1128
        %v1130 = vsel %vm1129, %v1122, %v1126
        %v1131 = vand.u32 2147483647, %v908
        %vm1132 = vcmp.eq.f32.partialorder %v1131, 8.507059e+37
        %v1133 = vand.u32 %v908, 2147483648
        %v1134 = vor.u32 1.1754944e-38, %v1133
        %v1135 = vsel %vm1132, %v1134, %v1130
        %v1136 = vmul.f32 1.0, %v1135
        %v1137 = vrcp.pop %v909
        %v1138 = vmul.f32 %v909, %v1137
        %v1139 = vsub.f32 1.0, %v1138
        %v1140 = vmul.f32 %v1137, %v1139
        %v1141 = vadd.f32 %v1137, %v1140
        %vm1142 = vweird.f32 %v909
        %vm1143 = vweird.f32 %v1137
        %vm1144 = vmor %vm1142, %vm1143
        %v1145 = vsel %vm1144, %v1137, %v1141
        %v1146 = vand.u32 2147483647, %v909
        %vm1147 = vcmp.eq.f32.partialorder %v1146, 8.507059e+37
        %v1148 = vand.u32 %v909, 2147483648
        %v1149 = vor.u32 1.1754944e-38, %v1148
        %v1150 = vsel %vm1147, %v1149, %v1145
        %v1151 = vmul.f32 1.0, %v1150
        %v1152 = vrcp.pop %v910
        %v1153 = vmul.f32 %v910, %v1152
        %v1154 = vsub.f32 1.0, %v1153
        %v1155 = vmul.f32 %v1152, %v1154
        %v1156 = vadd.f32 %v1152, %v1155
        %vm1157 = vweird.f32 %v910
        %vm1158 = vweird.f32 %v1152
        %vm1159 = vmor %vm1157, %vm1158
        %v1160 = vsel %vm1159, %v1152, %v1156
        %v1161 = vand.u32 2147483647, %v910
        %vm1162 = vcmp.eq.f32.partialorder %v1161, 8.507059e+37
        %v1163 = vand.u32 %v910, 2147483648
        %v1164 = vor.u32 1.1754944e-38, %v1163
        %v1165 = vsel %vm1162, %v1164, %v1160
        %v1166 = vmul.f32 1.0, %v1165
        %v1167 = vrcp.pop %v911
        %v1168 = vmul.f32 %v911, %v1167
        %v1169 = vsub.f32 1.0, %v1168
        %v1170 = vmul.f32 %v1167, %v1169
        %v1171 = vadd.f32 %v1167, %v1170
        %vm1172 = vweird.f32 %v911
        %vm1173 = vweird.f32 %v1167
        %vm1174 = vmor %vm1172, %vm1173
        %v1175 = vsel %vm1174, %v1167, %v1171
        %v1176 = vand.u32 2147483647, %v911
        %vm1177 = vcmp.eq.f32.partialorder %v1176, 8.507059e+37
        %v1178 = vand.u32 %v911, 2147483648
        %v1179 = vor.u32 1.1754944e-38, %v1178
        %v1180 = vsel %vm1177, %v1179, %v1175
        %v1181 = vmul.f32 1.0, %v1180
        %v1182 = vld [vmem:[%s6] sm:$0xff]
        %v1183 = vld [vmem:[%s7] sm:$0xff]
        %1185 = vset.pattern.permute.xlu0 0
        %1186 = vperm.xlu0 %1185, %v1183
        %v1187 = vpop.permute.xlu0 %1186
        %vm1189 = vcmask 130048
        %v1191 = vsel %vm1189, %v1182, 0
        %1193 = vmatpush.msra.mxu0 0.0
        %1194 = vmatpush.msra.mxu0 0.0
        %1195 = vmatpush.msra.mxu0 0.0
        %1196 = vmatpush.msra.mxu0 0.0
        %1197 = vmatpush.msra.mxu0 0.0
        %1198 = vmatpush.msra.mxu0 0.0
        %1199 = vmatpush.msra.mxu0 0.0
        %1200 = vmatpush.msra.mxu0 0.0
        %1201 = vmatpush.msra.mxu0 0.0
        %1202 = vmatpush.msra.mxu0 0.0
        %1203 = vmatpush.msra.mxu0 0.0
        %1204 = vmatpush.msra.mxu0 0.0
        %1205 = vmatpush.msra.mxu0 0.0
        %1206 = vmatpush.msra.mxu0 0.0
        %1207 = vmatpush.msra.mxu0 %v1061
        %1208 = vmatpush.msra.mxu0 %v926
        %1209 = vmatmul.f32.gmra.mxu0 %v1191
        %v1210 = vpop.f32.mrf.mxu0
        %v1211 = vadd.f32 %v1187, %v1210
        %1212 = vdwg.mxu0
        %1213 = vmatpush.msra.mxu0 0.0
        %1214 = vmatpush.msra.mxu0 0.0
        %1215 = vmatpush.msra.mxu0 0.0
        %1216 = vmatpush.msra.mxu0 0.0
        %1217 = vmatpush.msra.mxu0 0.0
        %1218 = vmatpush.msra.mxu0 0.0
        %1219 = vmatpush.msra.mxu0 0.0
        %1220 = vmatpush.msra.mxu0 0.0
        %1221 = vmatpush.msra.mxu0 0.0
        %1222 = vmatpush.msra.mxu0 0.0
        %1223 = vmatpush.msra.mxu0 0.0
        %1224 = vmatpush.msra.mxu0 0.0
        %1225 = vmatpush.msra.mxu0 0.0
        %1226 = vmatpush.msra.mxu0 0.0
        %1227 = vmatpush.msra.mxu0 %v1076
        %1228 = vmatpush.msra.mxu0 %v941
        %1229 = vmatmul.f32.gmra.mxu0 %v1191
        %v1230 = vpop.f32.mrf.mxu0
        %v1231 = vadd.f32 %v1187, %v1230
        %1232 = vdwg.mxu0
        %1233 = vmatpush.msra.mxu0 0.0
        %1234 = vmatpush.msra.mxu0 0.0
        %1235 = vmatpush.msra.mxu0 0.0
        %1236 = vmatpush.msra.mxu0 0.0
        %1237 = vmatpush.msra.mxu0 0.0
        %1238 = vmatpush.msra.mxu0 0.0
        %1239 = vmatpush.msra.mxu0 0.0
        %1240 = vmatpush.msra.mxu0 0.0
        %1241 = vmatpush.msra.mxu0 0.0
        %1242 = vmatpush.msra.mxu0 0.0
        %1243 = vmatpush.msra.mxu0 0.0
        %1244 = vmatpush.msra.mxu0 0.0
        %1245 = vmatpush.msra.mxu0 0.0
        %1246 = vmatpush.msra.mxu0 0.0
        %1247 = vmatpush.msra.mxu0 %v1091
        %1248 = vmatpush.msra.mxu0 %v956
        %1249 = vmatmul.f32.gmra.mxu0 %v1191
        %v1250 = vpop.f32.mrf.mxu0
        %v1251 = vadd.f32 %v1187, %v1250
        %1252 = vdwg.mxu0
        %1253 = vmatpush.msra.mxu0 0.0
        %1254 = vmatpush.msra.mxu0 0.0
        %1255 = vmatpush.msra.mxu0 0.0
        %1256 = vmatpush.msra.mxu0 0.0
        %1257 = vmatpush.msra.mxu0 0.0
        %1258 = vmatpush.msra.mxu0 0.0
        %1259 = vmatpush.msra.mxu0 0.0
        %1260 = vmatpush.msra.mxu0 0.0
        %1261 = vmatpush.msra.mxu0 0.0
        %1262 = vmatpush.msra.mxu0 0.0
        %1263 = vmatpush.msra.mxu0 0.0
        %1264 = vmatpush.msra.mxu0 0.0
        %1265 = vmatpush.msra.mxu0 0.0
        %1266 = vmatpush.msra.mxu0 0.0
        %1267 = vmatpush.msra.mxu0 %v1106
        %1268 = vmatpush.msra.mxu0 %v971
        %1269 = vmatmul.f32.gmra.mxu0 %v1191
        %v1270 = vpop.f32.mrf.mxu0
        %v1271 = vadd.f32 %v1187, %v1270
        %1272 = vdwg.mxu0
        %1273 = vmatpush.msra.mxu0 0.0
        %1274 = vmatpush.msra.mxu0 0.0
        %1275 = vmatpush.msra.mxu0 0.0
        %1276 = vmatpush.msra.mxu0 0.0
        %1277 = vmatpush.msra.mxu0 0.0
        %1278 = vmatpush.msra.mxu0 0.0
        %1279 = vmatpush.msra.mxu0 0.0
        %1280 = vmatpush.msra.mxu0 0.0
        %1281 = vmatpush.msra.mxu0 0.0
        %1282 = vmatpush.msra.mxu0 0.0
        %1283 = vmatpush.msra.mxu0 0.0
        %1284 = vmatpush.msra.mxu0 0.0
        %1285 = vmatpush.msra.mxu0 0.0
        %1286 = vmatpush.msra.mxu0 0.0
        %1287 = vmatpush.msra.mxu0 %v1121
        %1288 = vmatpush.msra.mxu0 %v986
        %1289 = vmatmul.f32.gmra.mxu0 %v1191
        %v1290 = vpop.f32.mrf.mxu0
        %v1291 = vadd.f32 %v1187, %v1290
        %1292 = vdwg.mxu0
        %1293 = vmatpush.msra.mxu0 0.0
        %1294 = vmatpush.msra.mxu0 0.0
        %1295 = vmatpush.msra.mxu0 0.0
        %1296 = vmatpush.msra.mxu0 0.0
        %1297 = vmatpush.msra.mxu0 0.0
        %1298 = vmatpush.msra.mxu0 0.0
        %1299 = vmatpush.msra.mxu0 0.0
        %1300 = vmatpush.msra.mxu0 0.0
        %1301 = vmatpush.msra.mxu0 0.0
        %1302 = vmatpush.msra.mxu0 0.0
        %1303 = vmatpush.msra.mxu0 0.0
        %1304 = vmatpush.msra.mxu0 0.0
        %1305 = vmatpush.msra.mxu0 0.0
        %1306 = vmatpush.msra.mxu0 0.0
        %1307 = vmatpush.msra.mxu0 %v1136
        %1308 = vmatpush.msra.mxu0 %v1001
        %1309 = vmatmul.f32.gmra.mxu0 %v1191
        %v1310 = vpop.f32.mrf.mxu0
        %v1311 = vadd.f32 %v1187, %v1310
        %1312 = vdwg.mxu0
        %1313 = vmatpush.msra.mxu0 0.0
        %1314 = vmatpush.msra.mxu0 0.0
        %1315 = vmatpush.msra.mxu0 0.0
        %1316 = vmatpush.msra.mxu0 0.0
        %1317 = vmatpush.msra.mxu0 0.0
        %1318 = vmatpush.msra.mxu0 0.0
        %1319 = vmatpush.msra.mxu0 0.0
        %1320 = vmatpush.msra.mxu0 0.0
        %1321 = vmatpush.msra.mxu0 0.0
        %1322 = vmatpush.msra.mxu0 0.0
        %1323 = vmatpush.msra.mxu0 0.0
        %1324 = vmatpush.msra.mxu0 0.0
        %1325 = vmatpush.msra.mxu0 0.0
        %1326 = vmatpush.msra.mxu0 0.0
        %1327 = vmatpush.msra.mxu0 %v1151
        %1328 = vmatpush.msra.mxu0 %v1016
        %1329 = vmatmul.f32.gmra.mxu0 %v1191
        %v1330 = vpop.f32.mrf.mxu0
        %v1331 = vadd.f32 %v1187, %v1330
        %1332 = vdwg.mxu0
        %1333 = vmatpush.msra.mxu0 0.0
        %1334 = vmatpush.msra.mxu0 0.0
        %1335 = vmatpush.msra.mxu0 0.0
        %1336 = vmatpush.msra.mxu0 0.0
        %1337 = vmatpush.msra.mxu0 0.0
        %1338 = vmatpush.msra.mxu0 0.0
        %1339 = vmatpush.msra.mxu0 0.0
        %1340 = vmatpush.msra.mxu0 0.0
        %1341 = vmatpush.msra.mxu0 0.0
        %1342 = vmatpush.msra.mxu0 0.0
        %1343 = vmatpush.msra.mxu0 0.0
        %1344 = vmatpush.msra.mxu0 0.0
        %1345 = vmatpush.msra.mxu0 0.0
        %1346 = vmatpush.msra.mxu0 0.0
        %1347 = vmatpush.msra.mxu0 %v1166
        %1348 = vmatpush.msra.mxu0 %v1031
        %1349 = vmatmul.f32.gmra.mxu0 %v1191
        %v1350 = vpop.f32.mrf.mxu0
        %v1351 = vadd.f32 %v1187, %v1350
        %1352 = vdwg.mxu0
        %1353 = vmatpush.msra.mxu0 0.0
        %1354 = vmatpush.msra.mxu0 0.0
        %1355 = vmatpush.msra.mxu0 0.0
        %1356 = vmatpush.msra.mxu0 0.0
        %1357 = vmatpush.msra.mxu0 0.0
        %1358 = vmatpush.msra.mxu0 0.0
        %1359 = vmatpush.msra.mxu0 0.0
        %1360 = vmatpush.msra.mxu0 0.0
        %1361 = vmatpush.msra.mxu0 0.0
        %1362 = vmatpush.msra.mxu0 0.0
        %1363 = vmatpush.msra.mxu0 0.0
        %1364 = vmatpush.msra.mxu0 0.0
        %1365 = vmatpush.msra.mxu0 0.0
        %1366 = vmatpush.msra.mxu0 0.0
        %1367 = vmatpush.msra.mxu0 %v1181
        %1368 = vmatpush.msra.mxu0 %v1046
        %1369 = vmatmul.f32.gmra.mxu0 %v1191
        %v1370 = vpop.f32.mrf.mxu0
        %v1371 = vadd.f32 %v1187, %v1370
        %1372 = vdwg.mxu0
        %v1373 = vxor.u32 %v1211, 2147483648
        %v1374 = vxor.u32 %v1231, 2147483648
        %v1375 = vxor.u32 %v1251, 2147483648
        %v1376 = vxor.u32 %v1271, 2147483648
        %v1377 = vxor.u32 %v1291, 2147483648
        %v1378 = vxor.u32 %v1311, 2147483648
        %v1379 = vxor.u32 %v1331, 2147483648
        %v1380 = vxor.u32 %v1351, 2147483648
        %v1381 = vxor.u32 %v1371, 2147483648
        %v1382 = vmul.f32 %v1373, 1.442695
        %v1383 = vpow.pop %v1382
        %v1384 = vmul.f32 %v1374, 1.442695
        %v1385 = vpow.pop %v1384
        %v1386 = vmul.f32 %v1375, 1.442695
        %v1387 = vpow.pop %v1386
        %v1388 = vmul.f32 %v1376, 1.442695
        %v1389 = vpow.pop %v1388
        %v1390 = vmul.f32 %v1377, 1.442695
        %v1391 = vpow.pop %v1390
        %v1392 = vmul.f32 %v1378, 1.442695
        %v1393 = vpow.pop %v1392
        %v1394 = vmul.f32 %v1379, 1.442695
        %v1395 = vpow.pop %v1394
        %v1396 = vmul.f32 %v1380, 1.442695
        %v1397 = vpow.pop %v1396
        %v1398 = vmul.f32 %v1381, 1.442695
        %v1399 = vpow.pop %v1398
        %v1400 = vadd.f32 %v1383, 1.0
        %v1401 = vadd.f32 %v1385, 1.0
        %v1402 = vadd.f32 %v1387, 1.0
        %v1403 = vadd.f32 %v1389, 1.0
        %v1404 = vadd.f32 %v1391, 1.0
        %v1405 = vadd.f32 %v1393, 1.0
        %v1406 = vadd.f32 %v1395, 1.0
        %v1407 = vadd.f32 %v1397, 1.0
        %v1408 = vadd.f32 %v1399, 1.0
        %v1409 = vrcp.pop %v1400
        %v1410 = vmul.f32 %v1400, %v1409
        %v1411 = vsub.f32 1.0, %v1410
        %v1412 = vmul.f32 %v1409, %v1411
        %v1413 = vadd.f32 %v1409, %v1412
        %vm1414 = vweird.f32 %v1400
        %vm1415 = vweird.f32 %v1409
        %vm1416 = vmor %vm1414, %vm1415
        %v1417 = vsel %vm1416, %v1409, %v1413
        %v1418 = vand.u32 2147483647, %v1400
        %vm1419 = vcmp.eq.f32.partialorder %v1418, 8.507059e+37
        %v1420 = vand.u32 %v1400, 2147483648
        %v1421 = vor.u32 1.1754944e-38, %v1420
        %v1422 = vsel %vm1419, %v1421, %v1417
        %v1423 = vmul.f32 1.0, %v1422
        %v1424 = vrcp.pop %v1401
        %v1425 = vmul.f32 %v1401, %v1424
        %v1426 = vsub.f32 1.0, %v1425
        %v1427 = vmul.f32 %v1424, %v1426
        %v1428 = vadd.f32 %v1424, %v1427
        %vm1429 = vweird.f32 %v1401
        %vm1430 = vweird.f32 %v1424
        %vm1431 = vmor %vm1429, %vm1430
        %v1432 = vsel %vm1431, %v1424, %v1428
        %v1433 = vand.u32 2147483647, %v1401
        %vm1434 = vcmp.eq.f32.partialorder %v1433, 8.507059e+37
        %v1435 = vand.u32 %v1401, 2147483648
        %v1436 = vor.u32 1.1754944e-38, %v1435
        %v1437 = vsel %vm1434, %v1436, %v1432
        %v1438 = vmul.f32 1.0, %v1437
        %v1439 = vrcp.pop %v1402
        %v1440 = vmul.f32 %v1402, %v1439
        %v1441 = vsub.f32 1.0, %v1440
        %v1442 = vmul.f32 %v1439, %v1441
        %v1443 = vadd.f32 %v1439, %v1442
        %vm1444 = vweird.f32 %v1402
        %vm1445 = vweird.f32 %v1439
        %vm1446 = vmor %vm1444, %vm1445
        %v1447 = vsel %vm1446, %v1439, %v1443
        %v1448 = vand.u32 2147483647, %v1402
        %vm1449 = vcmp.eq.f32.partialorder %v1448, 8.507059e+37
        %v1450 = vand.u32 %v1402, 2147483648
        %v1451 = vor.u32 1.1754944e-38, %v1450
        %v1452 = vsel %vm1449, %v1451, %v1447
        %v1453 = vmul.f32 1.0, %v1452
        %v1454 = vrcp.pop %v1403
        %v1455 = vmul.f32 %v1403, %v1454
        %v1456 = vsub.f32 1.0, %v1455
        %v1457 = vmul.f32 %v1454, %v1456
        %v1458 = vadd.f32 %v1454, %v1457
        %vm1459 = vweird.f32 %v1403
        %vm1460 = vweird.f32 %v1454
        %vm1461 = vmor %vm1459, %vm1460
        %v1462 = vsel %vm1461, %v1454, %v1458
        %v1463 = vand.u32 2147483647, %v1403
        %vm1464 = vcmp.eq.f32.partialorder %v1463, 8.507059e+37
        %v1465 = vand.u32 %v1403, 2147483648
        %v1466 = vor.u32 1.1754944e-38, %v1465
        %v1467 = vsel %vm1464, %v1466, %v1462
        %v1468 = vmul.f32 1.0, %v1467
        %v1469 = vrcp.pop %v1404
        %v1470 = vmul.f32 %v1404, %v1469
        %v1471 = vsub.f32 1.0, %v1470
        %v1472 = vmul.f32 %v1469, %v1471
        %v1473 = vadd.f32 %v1469, %v1472
        %vm1474 = vweird.f32 %v1404
        %vm1475 = vweird.f32 %v1469
        %vm1476 = vmor %vm1474, %vm1475
        %v1477 = vsel %vm1476, %v1469, %v1473
        %v1478 = vand.u32 2147483647, %v1404
        %vm1479 = vcmp.eq.f32.partialorder %v1478, 8.507059e+37
        %v1480 = vand.u32 %v1404, 2147483648
        %v1481 = vor.u32 1.1754944e-38, %v1480
        %v1482 = vsel %vm1479, %v1481, %v1477
        %v1483 = vmul.f32 1.0, %v1482
        %v1484 = vrcp.pop %v1405
        %v1485 = vmul.f32 %v1405, %v1484
        %v1486 = vsub.f32 1.0, %v1485
        %v1487 = vmul.f32 %v1484, %v1486
        %v1488 = vadd.f32 %v1484, %v1487
        %vm1489 = vweird.f32 %v1405
        %vm1490 = vweird.f32 %v1484
        %vm1491 = vmor %vm1489, %vm1490
        %v1492 = vsel %vm1491, %v1484, %v1488
        %v1493 = vand.u32 2147483647, %v1405
        %vm1494 = vcmp.eq.f32.partialorder %v1493, 8.507059e+37
        %v1495 = vand.u32 %v1405, 2147483648
        %v1496 = vor.u32 1.1754944e-38, %v1495
        %v1497 = vsel %vm1494, %v1496, %v1492
        %v1498 = vmul.f32 1.0, %v1497
        %v1499 = vrcp.pop %v1406
        %v1500 = vmul.f32 %v1406, %v1499
        %v1501 = vsub.f32 1.0, %v1500
        %v1502 = vmul.f32 %v1499, %v1501
        %v1503 = vadd.f32 %v1499, %v1502
        %vm1504 = vweird.f32 %v1406
        %vm1505 = vweird.f32 %v1499
        %vm1506 = vmor %vm1504, %vm1505
        %v1507 = vsel %vm1506, %v1499, %v1503
        %v1508 = vand.u32 2147483647, %v1406
        %vm1509 = vcmp.eq.f32.partialorder %v1508, 8.507059e+37
        %v1510 = vand.u32 %v1406, 2147483648
        %v1511 = vor.u32 1.1754944e-38, %v1510
        %v1512 = vsel %vm1509, %v1511, %v1507
        %v1513 = vmul.f32 1.0, %v1512
        %v1514 = vrcp.pop %v1407
        %v1515 = vmul.f32 %v1407, %v1514
        %v1516 = vsub.f32 1.0, %v1515
        %v1517 = vmul.f32 %v1514, %v1516
        %v1518 = vadd.f32 %v1514, %v1517
        %vm1519 = vweird.f32 %v1407
        %vm1520 = vweird.f32 %v1514
        %vm1521 = vmor %vm1519, %vm1520
        %v1522 = vsel %vm1521, %v1514, %v1518
        %v1523 = vand.u32 2147483647, %v1407
        %vm1524 = vcmp.eq.f32.partialorder %v1523, 8.507059e+37
        %v1525 = vand.u32 %v1407, 2147483648
        %v1526 = vor.u32 1.1754944e-38, %v1525
        %v1527 = vsel %vm1524, %v1526, %v1522
        %v1528 = vmul.f32 1.0, %v1527
        %v1529 = vrcp.pop %v1408
        %v1530 = vmul.f32 %v1408, %v1529
        %v1531 = vsub.f32 1.0, %v1530
        %v1532 = vmul.f32 %v1529, %v1531
        %v1533 = vadd.f32 %v1529, %v1532
        %vm1534 = vweird.f32 %v1408
        %vm1535 = vweird.f32 %v1529
        %vm1536 = vmor %vm1534, %vm1535
        %v1537 = vsel %vm1536, %v1529, %v1533
        %v1538 = vand.u32 2147483647, %v1408
        %vm1539 = vcmp.eq.f32.partialorder %v1538, 8.507059e+37
        %v1540 = vand.u32 %v1408, 2147483648
        %v1541 = vor.u32 1.1754944e-38, %v1540
        %v1542 = vsel %vm1539, %v1541, %v1537
        %v1543 = vmul.f32 1.0, %v1542
        %v1544 = vld [vmem:[%s8] sm:$0xff]
        %v1545 = vld [vmem:[%s8 + $0x8] sm:$0xff]
        %v1546 = vld [vmem:[%s9] sm:$0xff]
        %v1547 = vld [vmem:[%s9 + $0x8] sm:$0xff]
        %1549 = vset.pattern.permute.xlu0 0
        %1550 = vperm.xlu0 %1549, %v1546
        %v1551 = vpop.permute.xlu0 %1550
        %1554 = vset.pattern.permute.xlu0 0
        %1555 = vperm.xlu0 %1554, %v1547
        %v1556 = vpop.permute.xlu0 %1555
        %vm1558 = vcmask 64512
        %v1560 = vsel %vm1558, %v1544, 0
        %v1563 = vsel %vm1558, %v1545, 0
        %1565 = vmatpush.msra.mxu0 0.0
        %1566 = vmatpush.msra.mxu0 0.0
        %1567 = vmatpush.msra.mxu0 0.0
        %1568 = vmatpush.msra.mxu0 0.0
        %1569 = vmatpush.msra.mxu0 0.0
        %1570 = vmatpush.msra.mxu0 0.0
        %1571 = vmatpush.msra.mxu0 0.0
        %1572 = vmatpush.msra.mxu0 0.0
        %1573 = vmatpush.msra.mxu0 0.0
        %1574 = vmatpush.msra.mxu0 0.0
        %1575 = vmatpush.msra.mxu0 0.0
        %1576 = vmatpush.msra.mxu0 0.0
        %1577 = vmatpush.msra.mxu0 0.0
        %1578 = vmatpush.msra.mxu0 0.0
        %1579 = vmatpush.msra.mxu0 0.0
        %1580 = vmatpush.msra.mxu0 %v1423
        %1581 = vmatmul.f32.gmra.mxu0 %v1560
        %v1582 = vpop.f32.mrf.mxu0
        %v1583 = vadd.f32 %v1551, %v1582
        %1584 = vmatmul.f32.gmra.mxu0 %v1563
        %v1585 = vpop.f32.mrf.mxu0
        %v1586 = vadd.f32 %v1556, %v1585
        %1587 = vdwg.mxu0
        %1588 = vmatpush.msra.mxu0 0.0
        %1589 = vmatpush.msra.mxu0 0.0
        %1590 = vmatpush.msra.mxu0 0.0
        %1591 = vmatpush.msra.mxu0 0.0
        %1592 = vmatpush.msra.mxu0 0.0
        %1593 = vmatpush.msra.mxu0 0.0
        %1594 = vmatpush.msra.mxu0 0.0
        %1595 = vmatpush.msra.mxu0 0.0
        %1596 = vmatpush.msra.mxu0 0.0
        %1597 = vmatpush.msra.mxu0 0.0
        %1598 = vmatpush.msra.mxu0 0.0
        %1599 = vmatpush.msra.mxu0 0.0
        %1600 = vmatpush.msra.mxu0 0.0
        %1601 = vmatpush.msra.mxu0 0.0
        %1602 = vmatpush.msra.mxu0 0.0
        %1603 = vmatpush.msra.mxu0 %v1438
        %1604 = vmatmul.f32.gmra.mxu0 %v1560
        %v1605 = vpop.f32.mrf.mxu0
        %v1606 = vadd.f32 %v1551, %v1605
        %1607 = vmatmul.f32.gmra.mxu0 %v1563
        %v1608 = vpop.f32.mrf.mxu0
        %v1609 = vadd.f32 %v1556, %v1608
        %1610 = vdwg.mxu0
        %1611 = vmatpush.msra.mxu0 0.0
        %1612 = vmatpush.msra.mxu0 0.0
        %1613 = vmatpush.msra.mxu0 0.0
        %1614 = vmatpush.msra.mxu0 0.0
        %1615 = vmatpush.msra.mxu0 0.0
        %1616 = vmatpush.msra.mxu0 0.0
        %1617 = vmatpush.msra.mxu0 0.0
        %1618 = vmatpush.msra.mxu0 0.0
        %1619 = vmatpush.msra.mxu0 0.0
        %1620 = vmatpush.msra.mxu0 0.0
        %1621 = vmatpush.msra.mxu0 0.0
        %1622 = vmatpush.msra.mxu0 0.0
        %1623 = vmatpush.msra.mxu0 0.0
        %1624 = vmatpush.msra.mxu0 0.0
        %1625 = vmatpush.msra.mxu0 0.0
        %1626 = vmatpush.msra.mxu0 %v1453
        %1627 = vmatmul.f32.gmra.mxu0 %v1560
        %v1628 = vpop.f32.mrf.mxu0
        %v1629 = vadd.f32 %v1551, %v1628
        %1630 = vmatmul.f32.gmra.mxu0 %v1563
        %v1631 = vpop.f32.mrf.mxu0
        %v1632 = vadd.f32 %v1556, %v1631
        %1633 = vdwg.mxu0
        %1634 = vmatpush.msra.mxu0 0.0
        %1635 = vmatpush.msra.mxu0 0.0
        %1636 = vmatpush.msra.mxu0 0.0
        %1637 = vmatpush.msra.mxu0 0.0
        %1638 = vmatpush.msra.mxu0 0.0
        %1639 = vmatpush.msra.mxu0 0.0
        %1640 = vmatpush.msra.mxu0 0.0
        %1641 = vmatpush.msra.mxu0 0.0
        %1642 = vmatpush.msra.mxu0 0.0
        %1643 = vmatpush.msra.mxu0 0.0
        %1644 = vmatpush.msra.mxu0 0.0
        %1645 = vmatpush.msra.mxu0 0.0
        %1646 = vmatpush.msra.mxu0 0.0
        %1647 = vmatpush.msra.mxu0 0.0
        %1648 = vmatpush.msra.mxu0 0.0
        %1649 = vmatpush.msra.mxu0 %v1468
        %1650 = vmatmul.f32.gmra.mxu0 %v1560
        %v1651 = vpop.f32.mrf.mxu0
        %v1652 = vadd.f32 %v1551, %v1651
        %1653 = vmatmul.f32.gmra.mxu0 %v1563
        %v1654 = vpop.f32.mrf.mxu0
        %v1655 = vadd.f32 %v1556, %v1654
        %1656 = vdwg.mxu0
        %1657 = vmatpush.msra.mxu0 0.0
        %1658 = vmatpush.msra.mxu0 0.0
        %1659 = vmatpush.msra.mxu0 0.0
        %1660 = vmatpush.msra.mxu0 0.0
        %1661 = vmatpush.msra.mxu0 0.0
        %1662 = vmatpush.msra.mxu0 0.0
        %1663 = vmatpush.msra.mxu0 0.0
        %1664 = vmatpush.msra.mxu0 0.0
        %1665 = vmatpush.msra.mxu0 0.0
        %1666 = vmatpush.msra.mxu0 0.0
        %1667 = vmatpush.msra.mxu0 0.0
        %1668 = vmatpush.msra.mxu0 0.0
        %1669 = vmatpush.msra.mxu0 0.0
        %1670 = vmatpush.msra.mxu0 0.0
        %1671 = vmatpush.msra.mxu0 0.0
        %1672 = vmatpush.msra.mxu0 %v1483
        %1673 = vmatmul.f32.gmra.mxu0 %v1560
        %v1674 = vpop.f32.mrf.mxu0
        %v1675 = vadd.f32 %v1551, %v1674
        %1676 = vmatmul.f32.gmra.mxu0 %v1563
        %v1677 = vpop.f32.mrf.mxu0
        %v1678 = vadd.f32 %v1556, %v1677
        %1679 = vdwg.mxu0
        %1680 = vmatpush.msra.mxu0 0.0
        %1681 = vmatpush.msra.mxu0 0.0
        %1682 = vmatpush.msra.mxu0 0.0
        %1683 = vmatpush.msra.mxu0 0.0
        %1684 = vmatpush.msra.mxu0 0.0
        %1685 = vmatpush.msra.mxu0 0.0
        %1686 = vmatpush.msra.mxu0 0.0
        %1687 = vmatpush.msra.mxu0 0.0
        %1688 = vmatpush.msra.mxu0 0.0
        %1689 = vmatpush.msra.mxu0 0.0
        %1690 = vmatpush.msra.mxu0 0.0
        %1691 = vmatpush.msra.mxu0 0.0
        %1692 = vmatpush.msra.mxu0 0.0
        %1693 = vmatpush.msra.mxu0 0.0
        %1694 = vmatpush.msra.mxu0 0.0
        %1695 = vmatpush.msra.mxu0 %v1498
        %1696 = vmatmul.f32.gmra.mxu0 %v1560
        %v1697 = vpop.f32.mrf.mxu0
        %v1698 = vadd.f32 %v1551, %v1697
        %1699 = vmatmul.f32.gmra.mxu0 %v1563
        %v1700 = vpop.f32.mrf.mxu0
        %v1701 = vadd.f32 %v1556, %v1700
        %1702 = vdwg.mxu0
        %1703 = vmatpush.msra.mxu0 0.0
        %1704 = vmatpush.msra.mxu0 0.0
        %1705 = vmatpush.msra.mxu0 0.0
        %1706 = vmatpush.msra.mxu0 0.0
        %1707 = vmatpush.msra.mxu0 0.0
        %1708 = vmatpush.msra.mxu0 0.0
        %1709 = vmatpush.msra.mxu0 0.0
        %1710 = vmatpush.msra.mxu0 0.0
        %1711 = vmatpush.msra.mxu0 0.0
        %1712 = vmatpush.msra.mxu0 0.0
        %1713 = vmatpush.msra.mxu0 0.0
        %1714 = vmatpush.msra.mxu0 0.0
        %1715 = vmatpush.msra.mxu0 0.0
        %1716 = vmatpush.msra.mxu0 0.0
        %1717 = vmatpush.msra.mxu0 0.0
        %1718 = vmatpush.msra.mxu0 %v1513
        %1719 = vmatmul.f32.gmra.mxu0 %v1560
        %v1720 = vpop.f32.mrf.mxu0
        %v1721 = vadd.f32 %v1551, %v1720
        %1722 = vmatmul.f32.gmra.mxu0 %v1563
        %v1723 = vpop.f32.mrf.mxu0
        %v1724 = vadd.f32 %v1556, %v1723
        %1725 = vdwg.mxu0
        %1726 = vmatpush.msra.mxu0 0.0
        %1727 = vmatpush.msra.mxu0 0.0
        %1728 = vmatpush.msra.mxu0 0.0
        %1729 = vmatpush.msra.mxu0 0.0
        %1730 = vmatpush.msra.mxu0 0.0
        %1731 = vmatpush.msra.mxu0 0.0
        %1732 = vmatpush.msra.mxu0 0.0
        %1733 = vmatpush.msra.mxu0 0.0
        %1734 = vmatpush.msra.mxu0 0.0
        %1735 = vmatpush.msra.mxu0 0.0
        %1736 = vmatpush.msra.mxu0 0.0
        %1737 = vmatpush.msra.mxu0 0.0
        %1738 = vmatpush.msra.mxu0 0.0
        %1739 = vmatpush.msra.mxu0 0.0
        %1740 = vmatpush.msra.mxu0 0.0
        %1741 = vmatpush.msra.mxu0 %v1528
        %1742 = vmatmul.f32.gmra.mxu0 %v1560
        %v1743 = vpop.f32.mrf.mxu0
        %v1744 = vadd.f32 %v1551, %v1743
        %1745 = vmatmul.f32.gmra.mxu0 %v1563
        %v1746 = vpop.f32.mrf.mxu0
        %v1747 = vadd.f32 %v1556, %v1746
        %1748 = vdwg.mxu0
        %1749 = vmatpush.msra.mxu0 0.0
        %1750 = vmatpush.msra.mxu0 0.0
        %1751 = vmatpush.msra.mxu0 0.0
        %1752 = vmatpush.msra.mxu0 0.0
        %1753 = vmatpush.msra.mxu0 0.0
        %1754 = vmatpush.msra.mxu0 0.0
        %1755 = vmatpush.msra.mxu0 0.0
        %1756 = vmatpush.msra.mxu0 0.0
        %1757 = vmatpush.msra.mxu0 0.0
        %1758 = vmatpush.msra.mxu0 0.0
        %1759 = vmatpush.msra.mxu0 0.0
        %1760 = vmatpush.msra.mxu0 0.0
        %1761 = vmatpush.msra.mxu0 0.0
        %1762 = vmatpush.msra.mxu0 0.0
        %1763 = vmatpush.msra.mxu0 0.0
        %1764 = vmatpush.msra.mxu0 %v1543
        %1765 = vmatmul.f32.gmra.mxu0 %v1560
        %v1766 = vpop.f32.mrf.mxu0
        %v1767 = vadd.f32 %v1551, %v1766
        %1768 = vmatmul.f32.gmra.mxu0 %v1563
        %v1769 = vpop.f32.mrf.mxu0
        %v1770 = vadd.f32 %v1556, %v1769
        %1771 = vdwg.mxu0
        %v1772 = vxor.u32 %v1583, 2147483648
        %v1773 = vxor.u32 %v1606, 2147483648
        %v1774 = vxor.u32 %v1629, 2147483648
        %v1775 = vxor.u32 %v1652, 2147483648
        %v1776 = vxor.u32 %v1675, 2147483648
        %v1777 = vxor.u32 %v1698, 2147483648
        %v1778 = vxor.u32 %v1721, 2147483648
        %v1779 = vxor.u32 %v1744, 2147483648
        %v1780 = vxor.u32 %v1767, 2147483648
        %v1781 = vxor.u32 %v1586, 2147483648
        %v1782 = vxor.u32 %v1609, 2147483648
        %v1783 = vxor.u32 %v1632, 2147483648
        %v1784 = vxor.u32 %v1655, 2147483648
        %v1785 = vxor.u32 %v1678, 2147483648
        %v1786 = vxor.u32 %v1701, 2147483648
        %v1787 = vxor.u32 %v1724, 2147483648
        %v1788 = vxor.u32 %v1747, 2147483648
        %v1789 = vxor.u32 %v1770, 2147483648
        %v1790 = vmul.f32 %v1772, 1.442695
        %v1791 = vpow.pop %v1790
        %v1792 = vmul.f32 %v1773, 1.442695
        %v1793 = vpow.pop %v1792
        %v1794 = vmul.f32 %v1774, 1.442695
        %v1795 = vpow.pop %v1794
        %v1796 = vmul.f32 %v1775, 1.442695
        %v1797 = vpow.pop %v1796
        %v1798 = vmul.f32 %v1776, 1.442695
        %v1799 = vpow.pop %v1798
        %v1800 = vmul.f32 %v1777, 1.442695
        %v1801 = vpow.pop %v1800
        %v1802 = vmul.f32 %v1778, 1.442695
        %v1803 = vpow.pop %v1802
        %v1804 = vmul.f32 %v1779, 1.442695
        %v1805 = vpow.pop %v1804
        %v1806 = vmul.f32 %v1780, 1.442695
        %v1807 = vpow.pop %v1806
        %v1808 = vmul.f32 %v1781, 1.442695
        %v1809 = vpow.pop %v1808
        %v1810 = vmul.f32 %v1782, 1.442695
        %v1811 = vpow.pop %v1810
        %v1812 = vmul.f32 %v1783, 1.442695
        %v1813 = vpow.pop %v1812
        %v1814 = vmul.f32 %v1784, 1.442695
        %v1815 = vpow.pop %v1814
        %v1816 = vmul.f32 %v1785, 1.442695
        %v1817 = vpow.pop %v1816
        %v1818 = vmul.f32 %v1786, 1.442695
        %v1819 = vpow.pop %v1818
        %v1820 = vmul.f32 %v1787, 1.442695
        %v1821 = vpow.pop %v1820
        %v1822 = vmul.f32 %v1788, 1.442695
        %v1823 = vpow.pop %v1822
        %v1824 = vmul.f32 %v1789, 1.442695
        %v1825 = vpow.pop %v1824
        %v1826 = vadd.f32 %v1791, 1.0
        %v1827 = vadd.f32 %v1793, 1.0
        %v1828 = vadd.f32 %v1795, 1.0
        %v1829 = vadd.f32 %v1797, 1.0
        %v1830 = vadd.f32 %v1799, 1.0
        %v1831 = vadd.f32 %v1801, 1.0
        %v1832 = vadd.f32 %v1803, 1.0
        %v1833 = vadd.f32 %v1805, 1.0
        %v1834 = vadd.f32 %v1807, 1.0
        %v1835 = vadd.f32 %v1809, 1.0
        %v1836 = vadd.f32 %v1811, 1.0
        %v1837 = vadd.f32 %v1813, 1.0
        %v1838 = vadd.f32 %v1815, 1.0
        %v1839 = vadd.f32 %v1817, 1.0
        %v1840 = vadd.f32 %v1819, 1.0
        %v1841 = vadd.f32 %v1821, 1.0
        %v1842 = vadd.f32 %v1823, 1.0
        %v1843 = vadd.f32 %v1825, 1.0
        %v1844 = vrcp.pop %v1826
        %v1845 = vmul.f32 %v1826, %v1844
        %v1846 = vsub.f32 1.0, %v1845
        %v1847 = vmul.f32 %v1844, %v1846
        %v1848 = vadd.f32 %v1844, %v1847
        %vm1849 = vweird.f32 %v1826
        %vm1850 = vweird.f32 %v1844
        %vm1851 = vmor %vm1849, %vm1850
        %v1852 = vsel %vm1851, %v1844, %v1848
        %v1853 = vand.u32 2147483647, %v1826
        %vm1854 = vcmp.eq.f32.partialorder %v1853, 8.507059e+37
        %v1855 = vand.u32 %v1826, 2147483648
        %v1856 = vor.u32 1.1754944e-38, %v1855
        %v1857 = vsel %vm1854, %v1856, %v1852
        %v1858 = vmul.f32 1.0, %v1857
        %v1859 = vrcp.pop %v1827
        %v1860 = vmul.f32 %v1827, %v1859
        %v1861 = vsub.f32 1.0, %v1860
        %v1862 = vmul.f32 %v1859, %v1861
        %v1863 = vadd.f32 %v1859, %v1862
        %vm1864 = vweird.f32 %v1827
        %vm1865 = vweird.f32 %v1859
        %vm1866 = vmor %vm1864, %vm1865
        %v1867 = vsel %vm1866, %v1859, %v1863
        %v1868 = vand.u32 2147483647, %v1827
        %vm1869 = vcmp.eq.f32.partialorder %v1868, 8.507059e+37
        %v1870 = vand.u32 %v1827, 2147483648
        %v1871 = vor.u32 1.1754944e-38, %v1870
        %v1872 = vsel %vm1869, %v1871, %v1867
        %v1873 = vmul.f32 1.0, %v1872
        %v1874 = vrcp.pop %v1828
        %v1875 = vmul.f32 %v1828, %v1874
        %v1876 = vsub.f32 1.0, %v1875
        %v1877 = vmul.f32 %v1874, %v1876
        %v1878 = vadd.f32 %v1874, %v1877
        %vm1879 = vweird.f32 %v1828
        %vm1880 = vweird.f32 %v1874
        %vm1881 = vmor %vm1879, %vm1880
        %v1882 = vsel %vm1881, %v1874, %v1878
        %v1883 = vand.u32 2147483647, %v1828
        %vm1884 = vcmp.eq.f32.partialorder %v1883, 8.507059e+37
        %v1885 = vand.u32 %v1828, 2147483648
        %v1886 = vor.u32 1.1754944e-38, %v1885
        %v1887 = vsel %vm1884, %v1886, %v1882
        %v1888 = vmul.f32 1.0, %v1887
        %v1889 = vrcp.pop %v1829
        %v1890 = vmul.f32 %v1829, %v1889
        %v1891 = vsub.f32 1.0, %v1890
        %v1892 = vmul.f32 %v1889, %v1891
        %v1893 = vadd.f32 %v1889, %v1892
        %vm1894 = vweird.f32 %v1829
        %vm1895 = vweird.f32 %v1889
        %vm1896 = vmor %vm1894, %vm1895
        %v1897 = vsel %vm1896, %v1889, %v1893
        %v1898 = vand.u32 2147483647, %v1829
        %vm1899 = vcmp.eq.f32.partialorder %v1898, 8.507059e+37
        %v1900 = vand.u32 %v1829, 2147483648
        %v1901 = vor.u32 1.1754944e-38, %v1900
        %v1902 = vsel %vm1899, %v1901, %v1897
        %v1903 = vmul.f32 1.0, %v1902
        %v1904 = vrcp.pop %v1830
        %v1905 = vmul.f32 %v1830, %v1904
        %v1906 = vsub.f32 1.0, %v1905
        %v1907 = vmul.f32 %v1904, %v1906
        %v1908 = vadd.f32 %v1904, %v1907
        %vm1909 = vweird.f32 %v1830
        %vm1910 = vweird.f32 %v1904
        %vm1911 = vmor %vm1909, %vm1910
        %v1912 = vsel %vm1911, %v1904, %v1908
        %v1913 = vand.u32 2147483647, %v1830
        %vm1914 = vcmp.eq.f32.partialorder %v1913, 8.507059e+37
        %v1915 = vand.u32 %v1830, 2147483648
        %v1916 = vor.u32 1.1754944e-38, %v1915
        %v1917 = vsel %vm1914, %v1916, %v1912
        %v1918 = vmul.f32 1.0, %v1917
        %v1919 = vrcp.pop %v1831
        %v1920 = vmul.f32 %v1831, %v1919
        %v1921 = vsub.f32 1.0, %v1920
        %v1922 = vmul.f32 %v1919, %v1921
        %v1923 = vadd.f32 %v1919, %v1922
        %vm1924 = vweird.f32 %v1831
        %vm1925 = vweird.f32 %v1919
        %vm1926 = vmor %vm1924, %vm1925
        %v1927 = vsel %vm1926, %v1919, %v1923
        %v1928 = vand.u32 2147483647, %v1831
        %vm1929 = vcmp.eq.f32.partialorder %v1928, 8.507059e+37
        %v1930 = vand.u32 %v1831, 2147483648
        %v1931 = vor.u32 1.1754944e-38, %v1930
        %v1932 = vsel %vm1929, %v1931, %v1927
        %v1933 = vmul.f32 1.0, %v1932
        %v1934 = vrcp.pop %v1832
        %v1935 = vmul.f32 %v1832, %v1934
        %v1936 = vsub.f32 1.0, %v1935
        %v1937 = vmul.f32 %v1934, %v1936
        %v1938 = vadd.f32 %v1934, %v1937
        %vm1939 = vweird.f32 %v1832
        %vm1940 = vweird.f32 %v1934
        %vm1941 = vmor %vm1939, %vm1940
        %v1942 = vsel %vm1941, %v1934, %v1938
        %v1943 = vand.u32 2147483647, %v1832
        %vm1944 = vcmp.eq.f32.partialorder %v1943, 8.507059e+37
        %v1945 = vand.u32 %v1832, 2147483648
        %v1946 = vor.u32 1.1754944e-38, %v1945
        %v1947 = vsel %vm1944, %v1946, %v1942
        %v1948 = vmul.f32 1.0, %v1947
        %v1949 = vrcp.pop %v1833
        %v1950 = vmul.f32 %v1833, %v1949
        %v1951 = vsub.f32 1.0, %v1950
        %v1952 = vmul.f32 %v1949, %v1951
        %v1953 = vadd.f32 %v1949, %v1952
        %vm1954 = vweird.f32 %v1833
        %vm1955 = vweird.f32 %v1949
        %vm1956 = vmor %vm1954, %vm1955
        %v1957 = vsel %vm1956, %v1949, %v1953
        %v1958 = vand.u32 2147483647, %v1833
        %vm1959 = vcmp.eq.f32.partialorder %v1958, 8.507059e+37
        %v1960 = vand.u32 %v1833, 2147483648
        %v1961 = vor.u32 1.1754944e-38, %v1960
        %v1962 = vsel %vm1959, %v1961, %v1957
        %v1963 = vmul.f32 1.0, %v1962
        %v1964 = vrcp.pop %v1834
        %v1965 = vmul.f32 %v1834, %v1964
        %v1966 = vsub.f32 1.0, %v1965
        %v1967 = vmul.f32 %v1964, %v1966
        %v1968 = vadd.f32 %v1964, %v1967
        %vm1969 = vweird.f32 %v1834
        %vm1970 = vweird.f32 %v1964
        %vm1971 = vmor %vm1969, %vm1970
        %v1972 = vsel %vm1971, %v1964, %v1968
        %v1973 = vand.u32 2147483647, %v1834
        %vm1974 = vcmp.eq.f32.partialorder %v1973, 8.507059e+37
        %v1975 = vand.u32 %v1834, 2147483648
        %v1976 = vor.u32 1.1754944e-38, %v1975
        %v1977 = vsel %vm1974, %v1976, %v1972
        %v1978 = vmul.f32 1.0, %v1977
        %v1979 = vrcp.pop %v1835
        %v1980 = vmul.f32 %v1835, %v1979
        %v1981 = vsub.f32 1.0, %v1980
        %v1982 = vmul.f32 %v1979, %v1981
        %v1983 = vadd.f32 %v1979, %v1982
        %vm1984 = vweird.f32 %v1835
        %vm1985 = vweird.f32 %v1979
        %vm1986 = vmor %vm1984, %vm1985
        %v1987 = vsel %vm1986, %v1979, %v1983
        %v1988 = vand.u32 2147483647, %v1835
        %vm1989 = vcmp.eq.f32.partialorder %v1988, 8.507059e+37
        %v1990 = vand.u32 %v1835, 2147483648
        %v1991 = vor.u32 1.1754944e-38, %v1990
        %v1992 = vsel %vm1989, %v1991, %v1987
        %v1993 = vmul.f32 1.0, %v1992
        %v1994 = vrcp.pop %v1836
        %v1995 = vmul.f32 %v1836, %v1994
        %v1996 = vsub.f32 1.0, %v1995
        %v1997 = vmul.f32 %v1994, %v1996
        %v1998 = vadd.f32 %v1994, %v1997
        %vm1999 = vweird.f32 %v1836
        %vm2000 = vweird.f32 %v1994
        %vm2001 = vmor %vm1999, %vm2000
        %v2002 = vsel %vm2001, %v1994, %v1998
        %v2003 = vand.u32 2147483647, %v1836
        %vm2004 = vcmp.eq.f32.partialorder %v2003, 8.507059e+37
        %v2005 = vand.u32 %v1836, 2147483648
        %v2006 = vor.u32 1.1754944e-38, %v2005
        %v2007 = vsel %vm2004, %v2006, %v2002
        %v2008 = vmul.f32 1.0, %v2007
        %v2009 = vrcp.pop %v1837
        %v2010 = vmul.f32 %v1837, %v2009
        %v2011 = vsub.f32 1.0, %v2010
        %v2012 = vmul.f32 %v2009, %v2011
        %v2013 = vadd.f32 %v2009, %v2012
        %vm2014 = vweird.f32 %v1837
        %vm2015 = vweird.f32 %v2009
        %vm2016 = vmor %vm2014, %vm2015
        %v2017 = vsel %vm2016, %v2009, %v2013
        %v2018 = vand.u32 2147483647, %v1837
        %vm2019 = vcmp.eq.f32.partialorder %v2018, 8.507059e+37
        %v2020 = vand.u32 %v1837, 2147483648
        %v2021 = vor.u32 1.1754944e-38, %v2020
        %v2022 = vsel %vm2019, %v2021, %v2017
        %v2023 = vmul.f32 1.0, %v2022
        %v2024 = vrcp.pop %v1838
        %v2025 = vmul.f32 %v1838, %v2024
        %v2026 = vsub.f32 1.0, %v2025
        %v2027 = vmul.f32 %v2024, %v2026
        %v2028 = vadd.f32 %v2024, %v2027
        %vm2029 = vweird.f32 %v1838
        %vm2030 = vweird.f32 %v2024
        %vm2031 = vmor %vm2029, %vm2030
        %v2032 = vsel %vm2031, %v2024, %v2028
        %v2033 = vand.u32 2147483647, %v1838
        %vm2034 = vcmp.eq.f32.partialorder %v2033, 8.507059e+37
        %v2035 = vand.u32 %v1838, 2147483648
        %v2036 = vor.u32 1.1754944e-38, %v2035
        %v2037 = vsel %vm2034, %v2036, %v2032
        %v2038 = vmul.f32 1.0, %v2037
        %v2039 = vrcp.pop %v1839
        %v2040 = vmul.f32 %v1839, %v2039
        %v2041 = vsub.f32 1.0, %v2040
        %v2042 = vmul.f32 %v2039, %v2041
        %v2043 = vadd.f32 %v2039, %v2042
        %vm2044 = vweird.f32 %v1839
        %vm2045 = vweird.f32 %v2039
        %vm2046 = vmor %vm2044, %vm2045
        %v2047 = vsel %vm2046, %v2039, %v2043
        %v2048 = vand.u32 2147483647, %v1839
        %vm2049 = vcmp.eq.f32.partialorder %v2048, 8.507059e+37
        %v2050 = vand.u32 %v1839, 2147483648
        %v2051 = vor.u32 1.1754944e-38, %v2050
        %v2052 = vsel %vm2049, %v2051, %v2047
        %v2053 = vmul.f32 1.0, %v2052
        %v2054 = vrcp.pop %v1840
        %v2055 = vmul.f32 %v1840, %v2054
        %v2056 = vsub.f32 1.0, %v2055
        %v2057 = vmul.f32 %v2054, %v2056
        %v2058 = vadd.f32 %v2054, %v2057
        %vm2059 = vweird.f32 %v1840
        %vm2060 = vweird.f32 %v2054
        %vm2061 = vmor %vm2059, %vm2060
        %v2062 = vsel %vm2061, %v2054, %v2058
        %v2063 = vand.u32 2147483647, %v1840
        %vm2064 = vcmp.eq.f32.partialorder %v2063, 8.507059e+37
        %v2065 = vand.u32 %v1840, 2147483648
        %v2066 = vor.u32 1.1754944e-38, %v2065
        %v2067 = vsel %vm2064, %v2066, %v2062
        %v2068 = vmul.f32 1.0, %v2067
        %v2069 = vrcp.pop %v1841
        %v2070 = vmul.f32 %v1841, %v2069
        %v2071 = vsub.f32 1.0, %v2070
        %v2072 = vmul.f32 %v2069, %v2071
        %v2073 = vadd.f32 %v2069, %v2072
        %vm2074 = vweird.f32 %v1841
        %vm2075 = vweird.f32 %v2069
        %vm2076 = vmor %vm2074, %vm2075
        %v2077 = vsel %vm2076, %v2069, %v2073
        %v2078 = vand.u32 2147483647, %v1841
        %vm2079 = vcmp.eq.f32.partialorder %v2078, 8.507059e+37
        %v2080 = vand.u32 %v1841, 2147483648
        %v2081 = vor.u32 1.1754944e-38, %v2080
        %v2082 = vsel %vm2079, %v2081, %v2077
        %v2083 = vmul.f32 1.0, %v2082
        %v2084 = vrcp.pop %v1842
        %v2085 = vmul.f32 %v1842, %v2084
        %v2086 = vsub.f32 1.0, %v2085
        %v2087 = vmul.f32 %v2084, %v2086
        %v2088 = vadd.f32 %v2084, %v2087
        %vm2089 = vweird.f32 %v1842
        %vm2090 = vweird.f32 %v2084
        %vm2091 = vmor %vm2089, %vm2090
        %v2092 = vsel %vm2091, %v2084, %v2088
        %v2093 = vand.u32 2147483647, %v1842
        %vm2094 = vcmp.eq.f32.partialorder %v2093, 8.507059e+37
        %v2095 = vand.u32 %v1842, 2147483648
        %v2096 = vor.u32 1.1754944e-38, %v2095
        %v2097 = vsel %vm2094, %v2096, %v2092
        %v2098 = vmul.f32 1.0, %v2097
        %v2099 = vrcp.pop %v1843
        %v2100 = vmul.f32 %v1843, %v2099
        %v2101 = vsub.f32 1.0, %v2100
        %v2102 = vmul.f32 %v2099, %v2101
        %v2103 = vadd.f32 %v2099, %v2102
        %vm2104 = vweird.f32 %v1843
        %vm2105 = vweird.f32 %v2099
        %vm2106 = vmor %vm2104, %vm2105
        %v2107 = vsel %vm2106, %v2099, %v2103
        %v2108 = vand.u32 2147483647, %v1843
        %vm2109 = vcmp.eq.f32.partialorder %v2108, 8.507059e+37
        %v2110 = vand.u32 %v1843, 2147483648
        %v2111 = vor.u32 1.1754944e-38, %v2110
        %v2112 = vsel %vm2109, %v2111, %v2107
        %v2113 = vmul.f32 1.0, %v2112
        %v2114 = vadd.f32 %v926, %v1858
        %v2115 = vadd.f32 %v941, %v1873
        %v2116 = vadd.f32 %v956, %v1888
        %v2117 = vadd.f32 %v971, %v1903
        %v2118 = vadd.f32 %v986, %v1918
        %v2119 = vadd.f32 %v1001, %v1933
        %v2120 = vadd.f32 %v1016, %v1948
        %v2121 = vadd.f32 %v1031, %v1963
        %v2122 = vadd.f32 %v1046, %v1978
        %v2123 = vadd.f32 %v1061, %v1993
        %v2124 = vadd.f32 %v1076, %v2008
        %v2125 = vadd.f32 %v1091, %v2023
        %v2126 = vadd.f32 %v1106, %v2038
        %v2127 = vadd.f32 %v1121, %v2053
        %v2128 = vadd.f32 %v1136, %v2068
        %v2129 = vadd.f32 %v1151, %v2083
        %v2130 = vadd.f32 %v1166, %v2098
        %v2131 = vadd.f32 %v1181, %v2113
        %p2132 = scmp.gt.s32.totalorder %s28, 0
        %s2133 = scalar_select %p2132, 1, 0
        %s2134 = scvt.s32.f32 %s2133
        %p2135 = scmp.lt.s32.totalorder %s28, 3
        %s2136 = scalar_select %p2135, 1, 0
        %s2137 = scvt.s32.f32 %s2136
        %v2138 = vstv %s2134
        %v2139 = vmul.f32 %v2122, %v2138
        %v2140 = vmul.f32 %v2131, %v2138
        %v2141 = vstv %s2137
        %v2142 = vmul.f32 %v2122, %v2141
        %v2143 = vmul.f32 %v2131, %v2141
        %v2144 = vld [vmem:[%s3] ss:$2 sm:$0xff]
        %s2145 = scalar_lea.vmem %s3, 1
        %v2146 = vld [vmem:[%s2145] ss:$2 sm:$0xff]
        %2149 = vrot.lane.b32.xlu0 %v2139, 64
        %v2150 = vpop.permute.xlu0 %2149
        %2151 = vrot.lane.b32.xlu0 %v2140, 64
        %v2152 = vpop.permute.xlu0 %2151
        %v2155 = vsel %vm590, 0.0, %v2150
        %v2156 = vsel %vm590, 0.0, %v2152
        %2157 = vst [vmem:[#allocation2] sm:$0xff] %v2155
        %2158 = vst [vmem:[#allocation2 + $0x50] sm:$0xff] %v2156
        %2159 = vst [vmem:[#allocation2 + $0x8] sm:$0xff] %v2114
        %2160 = vst [vmem:[#allocation2 + $0x10] sm:$0xff] %v2115
        %2161 = vst [vmem:[#allocation2 + $0x18] sm:$0xff] %v2116
        %2162 = vst [vmem:[#allocation2 + $0x20] sm:$0xff] %v2117
        %2163 = vst [vmem:[#allocation2 + $0x28] sm:$0xff] %v2118
        %2164 = vst [vmem:[#allocation2 + $0x30] sm:$0xff] %v2119
        %2165 = vst [vmem:[#allocation2 + $0x38] sm:$0xff] %v2120
        %2166 = vst [vmem:[#allocation2 + $0x40] sm:$0xff] %v2121
        %2167 = vst [vmem:[#allocation2 + $0x58] sm:$0xff] %v2123
        %2168 = vst [vmem:[#allocation2 + $0x60] sm:$0xff] %v2124
        %2169 = vst [vmem:[#allocation2 + $0x68] sm:$0xff] %v2125
        %2170 = vst [vmem:[#allocation2 + $0x70] sm:$0xff] %v2126
        %2171 = vst [vmem:[#allocation2 + $0x78] sm:$0xff] %v2127
        %2172 = vst [vmem:[#allocation2 + $0x80] sm:$0xff] %v2128
        %2173 = vst [vmem:[#allocation2 + $0x88] sm:$0xff] %v2129
        %2174 = vst [vmem:[#allocation2 + $0x90] sm:$0xff] %v2130
        %2177 = vrot.lane.b32.xlu0 %v2142, 64
        %v2178 = vpop.permute.xlu0 %2177
        %2179 = vrot.lane.b32.xlu0 %v2143, 64
        %v2180 = vpop.permute.xlu0 %2179
        %v2183 = vsel %vm590, %v2178, 0.0
        %v2184 = vsel %vm590, %v2180, 0.0
        %2185 = vst [vmem:[#allocation2 + $0x48] sm:$0xff] %v2183
        %2186 = vst [vmem:[#allocation2 + $0x98] sm:$0xff] %v2184
        %v2188 = vperm.slane %v2144, 0
        %v2189 = vperm.slane %v2144, 1
        %v2190 = vperm.slane %v2144, 2
        %v2191 = vperm.slane %v2144, 3
        %v2192 = vperm.slane %v2144, 4
        %v2193 = vperm.slane %v2144, 5
        %v2194 = vperm.slane %v2144, 6
        %v2195 = vperm.slane %v2144, 7
        %v2204 = vmul.f32 %v2114, %v2188
        %v2205 = vmul.f32 %v2115, %v2189
        %v2206 = vmul.f32 %v2116, %v2190
        %v2207 = vmul.f32 %v2117, %v2191
        %v2208 = vmul.f32 %v2118, %v2192
        %v2209 = vmul.f32 %v2119, %v2193
        %v2210 = vmul.f32 %v2120, %v2194
        %v2211 = vmul.f32 %v2121, %v2195
        %v2212 = vmul.f32 %v2123, %v2188
        %v2213 = vmul.f32 %v2124, %v2189
        %v2214 = vmul.f32 %v2125, %v2190
        %v2215 = vmul.f32 %v2126, %v2191
        %v2216 = vmul.f32 %v2127, %v2192
        %v2217 = vmul.f32 %v2128, %v2193
        %v2218 = vmul.f32 %v2129, %v2194
        %v2219 = vmul.f32 %v2130, %v2195
        %v2220 = vmul.f32 %v2139, %v2188
        %v2221 = vmul.f32 %v2140, %v2188
        %2222 = vrot.lane.b32.xlu0 %v2188, 64
        %v2223 = vpop.permute.xlu0 %2222
        %v2225 = vmul.f32 %v2142, %v2223
        %v2226 = vmul.f32 %v2143, %v2223
        %2229 = vrot.lane.b32.xlu0 %v2220, 64
        %v2230 = vpop.permute.xlu0 %2229
        %2231 = vrot.lane.b32.xlu0 %v2221, 64
        %v2232 = vpop.permute.xlu0 %2231
        %v2235 = vsel %vm590, 0.0, %v2230
        %v2236 = vsel %vm590, 0.0, %v2232
        %s2237 = scalar_lea.vmem [#allocation2], 160
        %2238 = vst [vmem:[%s2237] sm:$0xff] %v2235
        %2239 = vst [vmem:[%s2237 + $0x50] sm:$0xff] %v2236
        %2240 = vst [vmem:[%s2237 + $0x8] sm:$0xff] %v2204
        %2241 = vst [vmem:[%s2237 + $0x10] sm:$0xff] %v2205
        %2242 = vst [vmem:[%s2237 + $0x18] sm:$0xff] %v2206
        %2243 = vst [vmem:[%s2237 + $0x20] sm:$0xff] %v2207
        %2244 = vst [vmem:[%s2237 + $0x28] sm:$0xff] %v2208
        %2245 = vst [vmem:[%s2237 + $0x30] sm:$0xff] %v2209
        %2246 = vst [vmem:[%s2237 + $0x38] sm:$0xff] %v2210
        %2247 = vst [vmem:[%s2237 + $0x40] sm:$0xff] %v2211
        %2248 = vst [vmem:[%s2237 + $0x58] sm:$0xff] %v2212
        %2249 = vst [vmem:[%s2237 + $0x60] sm:$0xff] %v2213
        %2250 = vst [vmem:[%s2237 + $0x68] sm:$0xff] %v2214
        %2251 = vst [vmem:[%s2237 + $0x70] sm:$0xff] %v2215
        %2252 = vst [vmem:[%s2237 + $0x78] sm:$0xff] %v2216
        %2253 = vst [vmem:[%s2237 + $0x80] sm:$0xff] %v2217
        %2254 = vst [vmem:[%s2237 + $0x88] sm:$0xff] %v2218
        %2255 = vst [vmem:[%s2237 + $0x90] sm:$0xff] %v2219
        %2258 = vrot.lane.b32.xlu0 %v2225, 64
        %v2259 = vpop.permute.xlu0 %2258
        %2260 = vrot.lane.b32.xlu0 %v2226, 64
        %v2261 = vpop.permute.xlu0 %2260
        %v2264 = vsel %vm590, %v2259, 0.0
        %v2265 = vsel %vm590, %v2261, 0.0
        %2266 = vst [vmem:[%s2237 + $0x48] sm:$0xff] %v2264
        %2267 = vst [vmem:[%s2237 + $0x98] sm:$0xff] %v2265
        %v2269 = vperm.slane %v2146, 0
        %v2270 = vperm.slane %v2146, 1
        %v2271 = vperm.slane %v2146, 2
        %v2272 = vperm.slane %v2146, 3
        %v2273 = vperm.slane %v2146, 4
        %v2274 = vperm.slane %v2146, 5
        %v2275 = vperm.slane %v2146, 6
        %v2276 = vperm.slane %v2146, 7
        %v2285 = vmul.f32 %v2114, %v2269
        %v2286 = vmul.f32 %v2115, %v2270
        %v2287 = vmul.f32 %v2116, %v2271
        %v2288 = vmul.f32 %v2117, %v2272
        %v2289 = vmul.f32 %v2118, %v2273
        %v2290 = vmul.f32 %v2119, %v2274
        %v2291 = vmul.f32 %v2120, %v2275
        %v2292 = vmul.f32 %v2121, %v2276
        %v2293 = vmul.f32 %v2123, %v2269
        %v2294 = vmul.f32 %v2124, %v2270
        %v2295 = vmul.f32 %v2125, %v2271
        %v2296 = vmul.f32 %v2126, %v2272
        %v2297 = vmul.f32 %v2127, %v2273
        %v2298 = vmul.f32 %v2128, %v2274
        %v2299 = vmul.f32 %v2129, %v2275
        %v2300 = vmul.f32 %v2130, %v2276
        %v2301 = vmul.f32 %v2139, %v2269
        %v2302 = vmul.f32 %v2140, %v2269
        %2303 = vrot.lane.b32.xlu0 %v2269, 64
        %v2304 = vpop.permute.xlu0 %2303
        %v2306 = vmul.f32 %v2142, %v2304
        %v2307 = vmul.f32 %v2143, %v2304
        %2310 = vrot.lane.b32.xlu0 %v2301, 64
        %v2311 = vpop.permute.xlu0 %2310
        %2312 = vrot.lane.b32.xlu0 %v2302, 64
        %v2313 = vpop.permute.xlu0 %2312
        %v2316 = vsel %vm590, 0.0, %v2311
        %v2317 = vsel %vm590, 0.0, %v2313
        %s2318 = scalar_lea.vmem [#allocation2], 320
        %2319 = vst [vmem:[%s2318] sm:$0xff] %v2316
        %2320 = vst [vmem:[%s2318 + $0x50] sm:$0xff] %v2317
        %2321 = vst [vmem:[%s2318 + $0x8] sm:$0xff] %v2285
        %2322 = vst [vmem:[%s2318 + $0x10] sm:$0xff] %v2286
        %2323 = vst [vmem:[%s2318 + $0x18] sm:$0xff] %v2287
        %2324 = vst [vmem:[%s2318 + $0x20] sm:$0xff] %v2288
        %2325 = vst [vmem:[%s2318 + $0x28] sm:$0xff] %v2289
        %2326 = vst [vmem:[%s2318 + $0x30] sm:$0xff] %v2290
        %2327 = vst [vmem:[%s2318 + $0x38] sm:$0xff] %v2291
        %2328 = vst [vmem:[%s2318 + $0x40] sm:$0xff] %v2292
        %2329 = vst [vmem:[%s2318 + $0x58] sm:$0xff] %v2293
        %2330 = vst [vmem:[%s2318 + $0x60] sm:$0xff] %v2294
        %2331 = vst [vmem:[%s2318 + $0x68] sm:$0xff] %v2295
        %2332 = vst [vmem:[%s2318 + $0x70] sm:$0xff] %v2296
        %2333 = vst [vmem:[%s2318 + $0x78] sm:$0xff] %v2297
        %2334 = vst [vmem:[%s2318 + $0x80] sm:$0xff] %v2298
        %2335 = vst [vmem:[%s2318 + $0x88] sm:$0xff] %v2299
        %2336 = vst [vmem:[%s2318 + $0x90] sm:$0xff] %v2300
        %2339 = vrot.lane.b32.xlu0 %v2306, 64
        %v2340 = vpop.permute.xlu0 %2339
        %2341 = vrot.lane.b32.xlu0 %v2307, 64
        %v2342 = vpop.permute.xlu0 %2341
        %v2345 = vsel %vm590, %v2340, 0.0
        %v2346 = vsel %vm590, %v2342, 0.0
        %2347 = vst [vmem:[%s2318 + $0x48] sm:$0xff] %v2345
        %2348 = vst [vmem:[%s2318 + $0x98] sm:$0xff] %v2346
        %v2349 = vld [vmem:[%s2237] sm:$0xff]
        %v2350 = vld [vmem:[%s2237 + $0x8] sm:$0xff]
        %v2351 = vld [vmem:[%s2237 + $0x10] sm:$0xff]
        %v2352 = vld [vmem:[%s2237 + $0x18] sm:$0xff]
        %v2353 = vld [vmem:[%s2237 + $0x20] sm:$0xff]
        %v2354 = vld [vmem:[%s2237 + $0x28] sm:$0xff]
        %v2355 = vld [vmem:[%s2237 + $0x30] sm:$0xff]
        %v2356 = vld [vmem:[%s2237 + $0x38] sm:$0xff]
        %v2357 = vld [vmem:[%s2237 + $0x40] sm:$0xff]
        %v2358 = vld [vmem:[%s2237 + $0x50] sm:$0xff]
        %v2359 = vld [vmem:[%s2237 + $0x58] sm:$0xff]
        %v2360 = vld [vmem:[%s2237 + $0x60] sm:$0xff]
        %v2361 = vld [vmem:[%s2237 + $0x68] sm:$0xff]
        %v2362 = vld [vmem:[%s2237 + $0x70] sm:$0xff]
        %v2363 = vld [vmem:[%s2237 + $0x78] sm:$0xff]
        %v2364 = vld [vmem:[%s2237 + $0x80] sm:$0xff]
        %v2365 = vld [vmem:[%s2237 + $0x88] sm:$0xff]
        %v2366 = vld [vmem:[%s2237 + $0x90] sm:$0xff]
        %v2367 = vld [vmem:[#allocation2] sm:$0xff]
        %v2368 = vld [vmem:[#allocation2 + $0x8] sm:$0xff]
        %v2369 = vld [vmem:[#allocation2 + $0x10] sm:$0xff]
        %v2370 = vld [vmem:[#allocation2 + $0x18] sm:$0xff]
        %v2371 = vld [vmem:[#allocation2 + $0x20] sm:$0xff]
        %v2372 = vld [vmem:[#allocation2 + $0x28] sm:$0xff]
        %v2373 = vld [vmem:[#allocation2 + $0x30] sm:$0xff]
        %v2374 = vld [vmem:[#allocation2 + $0x38] sm:$0xff]
        %v2375 = vld [vmem:[#allocation2 + $0x40] sm:$0xff]
        %v2376 = vld [vmem:[#allocation2 + $0x50] sm:$0xff]
        %v2377 = vld [vmem:[#allocation2 + $0x58] sm:$0xff]
        %v2378 = vld [vmem:[#allocation2 + $0x60] sm:$0xff]
        %v2379 = vld [vmem:[#allocation2 + $0x68] sm:$0xff]
        %v2380 = vld [vmem:[#allocation2 + $0x70] sm:$0xff]
        %v2381 = vld [vmem:[#allocation2 + $0x78] sm:$0xff]
        %v2382 = vld [vmem:[#allocation2 + $0x80] sm:$0xff]
        %v2383 = vld [vmem:[#allocation2 + $0x88] sm:$0xff]
        %v2384 = vld [vmem:[#allocation2 + $0x90] sm:$0xff]
        %v2385 = vld [vmem:[%s2318] sm:$0xff]
        %v2386 = vld [vmem:[%s2318 + $0x8] sm:$0xff]
        %v2387 = vld [vmem:[%s2318 + $0x10] sm:$0xff]
        %v2388 = vld [vmem:[%s2318 + $0x18] sm:$0xff]
        %v2389 = vld [vmem:[%s2318 + $0x20] sm:$0xff]
        %v2390 = vld [vmem:[%s2318 + $0x28] sm:$0xff]
        %v2391 = vld [vmem:[%s2318 + $0x30] sm:$0xff]
        %v2392 = vld [vmem:[%s2318 + $0x38] sm:$0xff]
        %v2393 = vld [vmem:[%s2318 + $0x40] sm:$0xff]
        %v2394 = vld [vmem:[%s2318 + $0x50] sm:$0xff]
        %v2395 = vld [vmem:[%s2318 + $0x58] sm:$0xff]
        %v2396 = vld [vmem:[%s2318 + $0x60] sm:$0xff]
        %v2397 = vld [vmem:[%s2318 + $0x68] sm:$0xff]
        %v2398 = vld [vmem:[%s2318 + $0x70] sm:$0xff]
        %v2399 = vld [vmem:[%s2318 + $0x78] sm:$0xff]
        %v2400 = vld [vmem:[%s2318 + $0x80] sm:$0xff]
        %v2401 = vld [vmem:[%s2318 + $0x88] sm:$0xff]
        %v2402 = vld [vmem:[%s2318 + $0x90] sm:$0xff]
        %2421 = vrot.lane.b32.xlu0 %v2367, 127
        %v2422 = vpop.permute.xlu0 %2421
        %2423 = vrot.lane.b32.xlu0 %v2368, 127
        %v2424 = vpop.permute.xlu0 %2423
        %2425 = vrot.lane.b32.xlu0 %v2369, 127
        %v2426 = vpop.permute.xlu0 %2425
        %2427 = vrot.lane.b32.xlu0 %v2370, 127
        %v2428 = vpop.permute.xlu0 %2427
        %2429 = vrot.lane.b32.xlu0 %v2371, 127
        %v2430 = vpop.permute.xlu0 %2429
        %2431 = vrot.lane.b32.xlu0 %v2372, 127
        %v2432 = vpop.permute.xlu0 %2431
        %2433 = vrot.lane.b32.xlu0 %v2373, 127
        %v2434 = vpop.permute.xlu0 %2433
        %2435 = vrot.lane.b32.xlu0 %v2374, 127
        %v2436 = vpop.permute.xlu0 %2435
        %2437 = vrot.lane.b32.xlu0 %v2375, 127
        %v2438 = vpop.permute.xlu0 %2437
        %2439 = vrot.lane.b32.xlu0 %v2376, 127
        %v2440 = vpop.permute.xlu0 %2439
        %2441 = vrot.lane.b32.xlu0 %v2377, 127
        %v2442 = vpop.permute.xlu0 %2441
        %2443 = vrot.lane.b32.xlu0 %v2378, 127
        %v2444 = vpop.permute.xlu0 %2443
        %2445 = vrot.lane.b32.xlu0 %v2379, 127
        %v2446 = vpop.permute.xlu0 %2445
        %2447 = vrot.lane.b32.xlu0 %v2380, 127
        %v2448 = vpop.permute.xlu0 %2447
        %2449 = vrot.lane.b32.xlu0 %v2381, 127
        %v2450 = vpop.permute.xlu0 %2449
        %2451 = vrot.lane.b32.xlu0 %v2382, 127
        %v2452 = vpop.permute.xlu0 %2451
        %2453 = vrot.lane.b32.xlu0 %v2383, 127
        %v2454 = vpop.permute.xlu0 %2453
        %2455 = vrot.lane.b32.xlu0 %v2384, 127
        %v2456 = vpop.permute.xlu0 %2455
        %vm2457 = vcmask 1039360
        %v2458 = vsel %vm2457, %v2422, %v2424
        %v2459 = vsel %vm2457, %v2424, %v2426
        %v2460 = vsel %vm2457, %v2426, %v2428
        %v2461 = vsel %vm2457, %v2428, %v2430
        %v2462 = vsel %vm2457, %v2430, %v2432
        %v2463 = vsel %vm2457, %v2432, %v2434
        %v2464 = vsel %vm2457, %v2434, %v2436
        %v2465 = vsel %vm2457, %v2436, %v2438
        %v2466 = vsel %vm2457, %v2440, %v2442
        %v2467 = vsel %vm2457, %v2442, %v2444
        %v2468 = vsel %vm2457, %v2444, %v2446
        %v2469 = vsel %vm2457, %v2446, %v2448
        %v2470 = vsel %vm2457, %v2448, %v2450
        %v2471 = vsel %vm2457, %v2450, %v2452
        %v2472 = vsel %vm2457, %v2452, %v2454
        %v2473 = vsel %vm2457, %v2454, %v2456
        %2492 = vrot.lane.b32.xlu0 %v2385, 126
        %v2493 = vpop.permute.xlu0 %2492
        %2494 = vrot.lane.b32.xlu0 %v2386, 126
        %v2495 = vpop.permute.xlu0 %2494
        %2496 = vrot.lane.b32.xlu0 %v2387, 126
        %v2497 = vpop.permute.xlu0 %2496
        %2498 = vrot.lane.b32.xlu0 %v2388, 126
        %v2499 = vpop.permute.xlu0 %2498
        %2500 = vrot.lane.b32.xlu0 %v2389, 126
        %v2501 = vpop.permute.xlu0 %2500
        %2502 = vrot.lane.b32.xlu0 %v2390, 126
        %v2503 = vpop.permute.xlu0 %2502
        %2504 = vrot.lane.b32.xlu0 %v2391, 126
        %v2505 = vpop.permute.xlu0 %2504
        %2506 = vrot.lane.b32.xlu0 %v2392, 126
        %v2507 = vpop.permute.xlu0 %2506
        %2508 = vrot.lane.b32.xlu0 %v2393, 126
        %v2509 = vpop.permute.xlu0 %2508
        %2510 = vrot.lane.b32.xlu0 %v2394, 126
        %v2511 = vpop.permute.xlu0 %2510
        %2512 = vrot.lane.b32.xlu0 %v2395, 126
        %v2513 = vpop.permute.xlu0 %2512
        %2514 = vrot.lane.b32.xlu0 %v2396, 126
        %v2515 = vpop.permute.xlu0 %2514
        %2516 = vrot.lane.b32.xlu0 %v2397, 126
        %v2517 = vpop.permute.xlu0 %2516
        %2518 = vrot.lane.b32.xlu0 %v2398, 126
        %v2519 = vpop.permute.xlu0 %2518
        %2520 = vrot.lane.b32.xlu0 %v2399, 126
        %v2521 = vpop.permute.xlu0 %2520
        %2522 = vrot.lane.b32.xlu0 %v2400, 126
        %v2523 = vpop.permute.xlu0 %2522
        %2524 = vrot.lane.b32.xlu0 %v2401, 126
        %v2525 = vpop.permute.xlu0 %2524
        %2526 = vrot.lane.b32.xlu0 %v2402, 126
        %v2527 = vpop.permute.xlu0 %2526
        %vm2528 = vcmask 1031168
        %v2529 = vsel %vm2528, %v2493, %v2495
        %v2530 = vsel %vm2528, %v2495, %v2497
        %v2531 = vsel %vm2528, %v2497, %v2499
        %v2532 = vsel %vm2528, %v2499, %v2501
        %v2533 = vsel %vm2528, %v2501, %v2503
        %v2534 = vsel %vm2528, %v2503, %v2505
        %v2535 = vsel %vm2528, %v2505, %v2507
        %v2536 = vsel %vm2528, %v2507, %v2509
        %v2537 = vsel %vm2528, %v2511, %v2513
        %v2538 = vsel %vm2528, %v2513, %v2515
        %v2539 = vsel %vm2528, %v2515, %v2517
        %v2540 = vsel %vm2528, %v2517, %v2519
        %v2541 = vsel %vm2528, %v2519, %v2521
        %v2542 = vsel %vm2528, %v2521, %v2523
        %v2543 = vsel %vm2528, %v2523, %v2525
        %v2544 = vsel %vm2528, %v2525, %v2527
        %v2545 = vld [vmem:[%s10] sm:$0xff]
        %v2546 = vld [vmem:[%s10 + $0x8] sm:$0x3]
        %v2547 = vld [vmem:[%s2318 + $0x48] sm:$0xff]
        %v2548 = vld [vmem:[%s2318 + $0x98] sm:$0xff]
        %2565 = vrot.lane.b32.xlu0 %v2114, 127
        %v2566 = vpop.permute.xlu0 %2565
        %2567 = vrot.lane.b32.xlu0 %v2115, 127
        %v2568 = vpop.permute.xlu0 %2567
        %2569 = vrot.lane.b32.xlu0 %v2116, 127
        %v2570 = vpop.permute.xlu0 %2569
        %2571 = vrot.lane.b32.xlu0 %v2117, 127
        %v2572 = vpop.permute.xlu0 %2571
        %2573 = vrot.lane.b32.xlu0 %v2118, 127
        %v2574 = vpop.permute.xlu0 %2573
        %2575 = vrot.lane.b32.xlu0 %v2119, 127
        %v2576 = vpop.permute.xlu0 %2575
        %2577 = vrot.lane.b32.xlu0 %v2120, 127
        %v2578 = vpop.permute.xlu0 %2577
        %2579 = vrot.lane.b32.xlu0 %v2121, 127
        %v2580 = vpop.permute.xlu0 %2579
        %2581 = vrot.lane.b32.xlu0 %v2123, 127
        %v2582 = vpop.permute.xlu0 %2581
        %2583 = vrot.lane.b32.xlu0 %v2124, 127
        %v2584 = vpop.permute.xlu0 %2583
        %2585 = vrot.lane.b32.xlu0 %v2125, 127
        %v2586 = vpop.permute.xlu0 %2585
        %2587 = vrot.lane.b32.xlu0 %v2126, 127
        %v2588 = vpop.permute.xlu0 %2587
        %2589 = vrot.lane.b32.xlu0 %v2127, 127
        %v2590 = vpop.permute.xlu0 %2589
        %2591 = vrot.lane.b32.xlu0 %v2128, 127
        %v2592 = vpop.permute.xlu0 %2591
        %2593 = vrot.lane.b32.xlu0 %v2129, 127
        %v2594 = vpop.permute.xlu0 %2593
        %2595 = vrot.lane.b32.xlu0 %v2130, 127
        %v2596 = vpop.permute.xlu0 %2595
        %v2597 = vsel %vm2457, %v2566, %v2568
        %v2598 = vsel %vm2457, %v2568, %v2570
        %v2599 = vsel %vm2457, %v2570, %v2572
        %v2600 = vsel %vm2457, %v2572, %v2574
        %v2601 = vsel %vm2457, %v2574, %v2576
        %v2602 = vsel %vm2457, %v2576, %v2578
        %v2603 = vsel %vm2457, %v2578, %v2580
        %v2604 = vsel %vm2457, %v2582, %v2584
        %v2605 = vsel %vm2457, %v2584, %v2586
        %v2606 = vsel %vm2457, %v2586, %v2588
        %v2607 = vsel %vm2457, %v2588, %v2590
        %v2608 = vsel %vm2457, %v2590, %v2592
        %v2609 = vsel %vm2457, %v2592, %v2594
        %v2610 = vsel %vm2457, %v2594, %v2596
        %2613 = vrot.lane.b32.xlu0 %v2547, 126
        %v2614 = vpop.permute.xlu0 %2613
        %2615 = vrot.lane.b32.xlu0 %v2548, 126
        %v2616 = vpop.permute.xlu0 %2615
        %v2617 = vsel %vm2528, %v2509, %v2614
        %v2618 = vsel %vm2528, %v2527, %v2616
        %s2619 = scalar_lea.vmem %s10, 16
        %v2620 = vld [vmem:[%s2619] sm:$0xff]
        %v2621 = vld [vmem:[%s2619 + $0x8] sm:$0x3]
        %2640 = vrot.lane.b32.xlu0 %v2349, 1
        %v2641 = vpop.permute.xlu0 %2640
        %2642 = vrot.lane.b32.xlu0 %v2350, 1
        %v2643 = vpop.permute.xlu0 %2642
        %2644 = vrot.lane.b32.xlu0 %v2351, 1
        %v2645 = vpop.permute.xlu0 %2644
        %2646 = vrot.lane.b32.xlu0 %v2352, 1
        %v2647 = vpop.permute.xlu0 %2646
        %2648 = vrot.lane.b32.xlu0 %v2353, 1
        %v2649 = vpop.permute.xlu0 %2648
        %2650 = vrot.lane.b32.xlu0 %v2354, 1
        %v2651 = vpop.permute.xlu0 %2650
        %2652 = vrot.lane.b32.xlu0 %v2355, 1
        %v2653 = vpop.permute.xlu0 %2652
        %2654 = vrot.lane.b32.xlu0 %v2356, 1
        %v2655 = vpop.permute.xlu0 %2654
        %2656 = vrot.lane.b32.xlu0 %v2357, 1
        %v2657 = vpop.permute.xlu0 %2656
        %2658 = vrot.lane.b32.xlu0 %v2358, 1
        %v2659 = vpop.permute.xlu0 %2658
        %2660 = vrot.lane.b32.xlu0 %v2359, 1
        %v2661 = vpop.permute.xlu0 %2660
        %2662 = vrot.lane.b32.xlu0 %v2360, 1
        %v2663 = vpop.permute.xlu0 %2662
        %2664 = vrot.lane.b32.xlu0 %v2361, 1
        %v2665 = vpop.permute.xlu0 %2664
        %2666 = vrot.lane.b32.xlu0 %v2362, 1
        %v2667 = vpop.permute.xlu0 %2666
        %2668 = vrot.lane.b32.xlu0 %v2363, 1
        %v2669 = vpop.permute.xlu0 %2668
        %2670 = vrot.lane.b32.xlu0 %v2364, 1
        %v2671 = vpop.permute.xlu0 %2670
        %2672 = vrot.lane.b32.xlu0 %v2365, 1
        %v2673 = vpop.permute.xlu0 %2672
        %2674 = vrot.lane.b32.xlu0 %v2366, 1
        %v2675 = vpop.permute.xlu0 %2674
        %2676 = vrot.lane.b32.xlu0 %v2566, 1
        %v2677 = vpop.permute.xlu0 %2676
        %2678 = vrot.lane.b32.xlu0 %v2597, 1
        %v2679 = vpop.permute.xlu0 %2678
        %2680 = vrot.lane.b32.xlu0 %v2598, 1
        %v2681 = vpop.permute.xlu0 %2680
        %2682 = vrot.lane.b32.xlu0 %v2599, 1
        %v2683 = vpop.permute.xlu0 %2682
        %2684 = vrot.lane.b32.xlu0 %v2600, 1
        %v2685 = vpop.permute.xlu0 %2684
        %2686 = vrot.lane.b32.xlu0 %v2601, 1
        %v2687 = vpop.permute.xlu0 %2686
        %2688 = vrot.lane.b32.xlu0 %v2602, 1
        %v2689 = vpop.permute.xlu0 %2688
        %2690 = vrot.lane.b32.xlu0 %v2603, 1
        %v2691 = vpop.permute.xlu0 %2690
        %2692 = vrot.lane.b32.xlu0 %v2580, 1
        %v2693 = vpop.permute.xlu0 %2692
        %2694 = vrot.lane.b32.xlu0 %v2582, 1
        %v2695 = vpop.permute.xlu0 %2694
        %2696 = vrot.lane.b32.xlu0 %v2604, 1
        %v2697 = vpop.permute.xlu0 %2696
        %2698 = vrot.lane.b32.xlu0 %v2605, 1
        %v2699 = vpop.permute.xlu0 %2698
        %2700 = vrot.lane.b32.xlu0 %v2606, 1
        %v2701 = vpop.permute.xlu0 %2700
        %2702 = vrot.lane.b32.xlu0 %v2607, 1
        %v2703 = vpop.permute.xlu0 %2702
        %2704 = vrot.lane.b32.xlu0 %v2608, 1
        %v2705 = vpop.permute.xlu0 %2704
        %2706 = vrot.lane.b32.xlu0 %v2609, 1
        %v2707 = vpop.permute.xlu0 %2706
        %2708 = vrot.lane.b32.xlu0 %v2610, 1
        %v2709 = vpop.permute.xlu0 %2708
        %2710 = vrot.lane.b32.xlu0 %v2596, 1
        %v2711 = vpop.permute.xlu0 %2710
        %2712 = vrot.lane.b32.xlu0 %v2495, 1
        %v2713 = vpop.permute.xlu0 %2712
        %2714 = vrot.lane.b32.xlu0 %v2530, 1
        %v2715 = vpop.permute.xlu0 %2714
        %2716 = vrot.lane.b32.xlu0 %v2531, 1
        %v2717 = vpop.permute.xlu0 %2716
        %2718 = vrot.lane.b32.xlu0 %v2532, 1
        %v2719 = vpop.permute.xlu0 %2718
        %2720 = vrot.lane.b32.xlu0 %v2533, 1
        %v2721 = vpop.permute.xlu0 %2720
        %2722 = vrot.lane.b32.xlu0 %v2534, 1
        %v2723 = vpop.permute.xlu0 %2722
        %2724 = vrot.lane.b32.xlu0 %v2535, 1
        %v2725 = vpop.permute.xlu0 %2724
        %2726 = vrot.lane.b32.xlu0 %v2536, 1
        %v2727 = vpop.permute.xlu0 %2726
        %2728 = vrot.lane.b32.xlu0 %v2617, 1
        %v2729 = vpop.permute.xlu0 %2728
        %2730 = vrot.lane.b32.xlu0 %v2513, 1
        %v2731 = vpop.permute.xlu0 %2730
        %2732 = vrot.lane.b32.xlu0 %v2538, 1
        %v2733 = vpop.permute.xlu0 %2732
        %2734 = vrot.lane.b32.xlu0 %v2539, 1
        %v2735 = vpop.permute.xlu0 %2734
        %2736 = vrot.lane.b32.xlu0 %v2540, 1
        %v2737 = vpop.permute.xlu0 %2736
        %2738 = vrot.lane.b32.xlu0 %v2541, 1
        %v2739 = vpop.permute.xlu0 %2738
        %2740 = vrot.lane.b32.xlu0 %v2542, 1
        %v2741 = vpop.permute.xlu0 %2740
        %2742 = vrot.lane.b32.xlu0 %v2543, 1
        %v2743 = vpop.permute.xlu0 %2742
        %2744 = vrot.lane.b32.xlu0 %v2544, 1
        %v2745 = vpop.permute.xlu0 %2744
        %2746 = vrot.lane.b32.xlu0 %v2618, 1
        %v2747 = vpop.permute.xlu0 %2746
        %vm2748 = vcmask 7168
        %v2749 = vsel %vm2748, %v2641, %v2643
        %v2750 = vsel %vm2748, %v2643, %v2645
        %v2751 = vsel %vm2748, %v2645, %v2647
        %v2752 = vsel %vm2748, %v2647, %v2649
        %v2753 = vsel %vm2748, %v2649, %v2651
        %v2754 = vsel %vm2748, %v2651, %v2653
        %v2755 = vsel %vm2748, %v2653, %v2655
        %v2756 = vsel %vm2748, %v2655, %v2657
        %v2757 = vsel %vm2748, %v2659, %v2661
        %v2758 = vsel %vm2748, %v2661, %v2663
        %v2759 = vsel %vm2748, %v2663, %v2665
        %v2760 = vsel %vm2748, %v2665, %v2667
        %v2761 = vsel %vm2748, %v2667, %v2669
        %v2762 = vsel %vm2748, %v2669, %v2671
        %v2763 = vsel %vm2748, %v2671, %v2673
        %v2764 = vsel %vm2748, %v2673, %v2675
        %v2765 = vsel %vm2748, %v2677, %v2679
        %v2766 = vsel %vm2748, %v2679, %v2681
        %v2767 = vsel %vm2748, %v2681, %v2683
        %v2768 = vsel %vm2748, %v2683, %v2685
        %v2769 = vsel %vm2748, %v2685, %v2687
        %v2770 = vsel %vm2748, %v2687, %v2689
        %v2771 = vsel %vm2748, %v2689, %v2691
        %v2772 = vsel %vm2748, %v2691, %v2693
        %v2773 = vsel %vm2748, %v2695, %v2697
        %v2774 = vsel %vm2748, %v2697, %v2699
        %v2775 = vsel %vm2748, %v2699, %v2701
        %v2776 = vsel %vm2748, %v2701, %v2703
        %v2777 = vsel %vm2748, %v2703, %v2705
        %v2778 = vsel %vm2748, %v2705, %v2707
        %v2779 = vsel %vm2748, %v2707, %v2709
        %v2780 = vsel %vm2748, %v2709, %v2711
        %v2781 = vsel %vm2748, %v2713, %v2715
        %v2782 = vsel %vm2748, %v2715, %v2717
        %v2783 = vsel %vm2748, %v2717, %v2719
        %v2784 = vsel %vm2748, %v2719, %v2721
        %v2785 = vsel %vm2748, %v2721, %v2723
        %v2786 = vsel %vm2748, %v2723, %v2725
        %v2787 = vsel %vm2748, %v2725, %v2727
        %v2788 = vsel %vm2748, %v2727, %v2729
        %v2789 = vsel %vm2748, %v2731, %v2733
        %v2790 = vsel %vm2748, %v2733, %v2735
        %v2791 = vsel %vm2748, %v2735, %v2737
        %v2792 = vsel %vm2748, %v2737, %v2739
        %v2793 = vsel %vm2748, %v2739, %v2741
        %v2794 = vsel %vm2748, %v2741, %v2743
        %v2795 = vsel %vm2748, %v2743, %v2745
        %v2796 = vsel %vm2748, %v2745, %v2747
        %vm2845 = vcmask 392192
        %v2847 = vsel %vm2845, %v2620, 0
        %v2850 = vsel %vm2845, %v2621, 0
        %2852 = vmatpush.msra.mxu0 0.0
        %2853 = vmatpush.msra.mxu0 0.0
        %2854 = vmatpush.msra.mxu0 0.0
        %2855 = vmatpush.msra.mxu0 0.0
        %2856 = vmatpush.msra.mxu0 0.0
        %2857 = vmatpush.msra.mxu0 0.0
        %2858 = vmatpush.msra.mxu0 0.0
        %2859 = vmatpush.msra.mxu0 0.0
        %2860 = vmatpush.msra.mxu0 0.0
        %2861 = vmatpush.msra.mxu0 0.0
        %2862 = vmatpush.msra.mxu0 %v2789
        %2863 = vmatpush.msra.mxu0 %v2781
        %2864 = vmatpush.msra.mxu0 %v2773
        %2865 = vmatpush.msra.mxu0 %v2765
        %2866 = vmatpush.msra.mxu0 %v2757
        %2867 = vmatpush.msra.mxu0 %v2749
        %2868 = vmatmul.f32.gmra.mxu0 %v2847
        %v2869 = vpop.f32.mrf.mxu0
        %v2870 = vadd.f32 0.0, %v2869
        %2871 = vmatmul.f32.gmra.mxu0 %v2850
        %v2872 = vpop.f32.mrf.mxu0
        %v2873 = vadd.f32 0.0, %v2872
        %2874 = vdwg.mxu0
        %2875 = vmatpush.msra.mxu0 0.0
        %2876 = vmatpush.msra.mxu0 0.0
        %2877 = vmatpush.msra.mxu0 0.0
        %2878 = vmatpush.msra.mxu0 0.0
        %2879 = vmatpush.msra.mxu0 0.0
        %2880 = vmatpush.msra.mxu0 0.0
        %2881 = vmatpush.msra.mxu0 0.0
        %2882 = vmatpush.msra.mxu0 0.0
        %2883 = vmatpush.msra.mxu0 0.0
        %2884 = vmatpush.msra.mxu0 0.0
        %2885 = vmatpush.msra.mxu0 %v2790
        %2886 = vmatpush.msra.mxu0 %v2782
        %2887 = vmatpush.msra.mxu0 %v2774
        %2888 = vmatpush.msra.mxu0 %v2766
        %2889 = vmatpush.msra.mxu0 %v2758
        %2890 = vmatpush.msra.mxu0 %v2750
        %2891 = vmatmul.f32.gmra.mxu0 %v2847
        %v2892 = vpop.f32.mrf.mxu0
        %v2893 = vadd.f32 0.0, %v2892
        %2894 = vmatmul.f32.gmra.mxu0 %v2850
        %v2895 = vpop.f32.mrf.mxu0
        %v2896 = vadd.f32 0.0, %v2895
        %2897 = vdwg.mxu0
        %2898 = vmatpush.msra.mxu0 0.0
        %2899 = vmatpush.msra.mxu0 0.0
        %2900 = vmatpush.msra.mxu0 0.0
        %2901 = vmatpush.msra.mxu0 0.0
        %2902 = vmatpush.msra.mxu0 0.0
        %2903 = vmatpush.msra.mxu0 0.0
        %2904 = vmatpush.msra.mxu0 0.0
        %2905 = vmatpush.msra.mxu0 0.0
        %2906 = vmatpush.msra.mxu0 0.0
        %2907 = vmatpush.msra.mxu0 0.0
        %2908 = vmatpush.msra.mxu0 %v2791
        %2909 = vmatpush.msra.mxu0 %v2783
        %2910 = vmatpush.msra.mxu0 %v2775
        %2911 = vmatpush.msra.mxu0 %v2767
        %2912 = vmatpush.msra.mxu0 %v2759
        %2913 = vmatpush.msra.mxu0 %v2751
        %2914 = vmatmul.f32.gmra.mxu0 %v2847
        %v2915 = vpop.f32.mrf.mxu0
        %v2916 = vadd.f32 0.0, %v2915
        %2917 = vmatmul.f32.gmra.mxu0 %v2850
        %v2918 = vpop.f32.mrf.mxu0
        %v2919 = vadd.f32 0.0, %v2918
        %2920 = vdwg.mxu0
        %2921 = vmatpush.msra.mxu0 0.0
        %2922 = vmatpush.msra.mxu0 0.0
        %2923 = vmatpush.msra.mxu0 0.0
        %2924 = vmatpush.msra.mxu0 0.0
        %2925 = vmatpush.msra.mxu0 0.0
        %2926 = vmatpush.msra.mxu0 0.0
        %2927 = vmatpush.msra.mxu0 0.0
        %2928 = vmatpush.msra.mxu0 0.0
        %2929 = vmatpush.msra.mxu0 0.0
        %2930 = vmatpush.msra.mxu0 0.0
        %2931 = vmatpush.msra.mxu0 %v2792
        %2932 = vmatpush.msra.mxu0 %v2784
        %2933 = vmatpush.msra.mxu0 %v2776
        %2934 = vmatpush.msra.mxu0 %v2768
        %2935 = vmatpush.msra.mxu0 %v2760
        %2936 = vmatpush.msra.mxu0 %v2752
        %2937 = vmatmul.f32.gmra.mxu0 %v2847
        %v2938 = vpop.f32.mrf.mxu0
        %v2939 = vadd.f32 0.0, %v2938
        %2940 = vmatmul.f32.gmra.mxu0 %v2850
        %v2941 = vpop.f32.mrf.mxu0
        %v2942 = vadd.f32 0.0, %v2941
        %2943 = vdwg.mxu0
        %2944 = vmatpush.msra.mxu0 0.0
        %2945 = vmatpush.msra.mxu0 0.0
        %2946 = vmatpush.msra.mxu0 0.0
        %2947 = vmatpush.msra.mxu0 0.0
        %2948 = vmatpush.msra.mxu0 0.0
        %2949 = vmatpush.msra.mxu0 0.0
        %2950 = vmatpush.msra.mxu0 0.0
        %2951 = vmatpush.msra.mxu0 0.0
        %2952 = vmatpush.msra.mxu0 0.0
        %2953 = vmatpush.msra.mxu0 0.0
        %2954 = vmatpush.msra.mxu0 %v2793
        %2955 = vmatpush.msra.mxu0 %v2785
        %2956 = vmatpush.msra.mxu0 %v2777
        %2957 = vmatpush.msra.mxu0 %v2769
        %2958 = vmatpush.msra.mxu0 %v2761
        %2959 = vmatpush.msra.mxu0 %v2753
        %2960 = vmatmul.f32.gmra.mxu0 %v2847
        %v2961 = vpop.f32.mrf.mxu0
        %v2962 = vadd.f32 0.0, %v2961
        %2963 = vmatmul.f32.gmra.mxu0 %v2850
        %v2964 = vpop.f32.mrf.mxu0
        %v2965 = vadd.f32 0.0, %v2964
        %2966 = vdwg.mxu0
        %2967 = vmatpush.msra.mxu0 0.0
        %2968 = vmatpush.msra.mxu0 0.0
        %2969 = vmatpush.msra.mxu0 0.0
        %2970 = vmatpush.msra.mxu0 0.0
        %2971 = vmatpush.msra.mxu0 0.0
        %2972 = vmatpush.msra.mxu0 0.0
        %2973 = vmatpush.msra.mxu0 0.0
        %2974 = vmatpush.msra.mxu0 0.0
        %2975 = vmatpush.msra.mxu0 0.0
        %2976 = vmatpush.msra.mxu0 0.0
        %2977 = vmatpush.msra.mxu0 %v2794
        %2978 = vmatpush.msra.mxu0 %v2786
        %2979 = vmatpush.msra.mxu0 %v2778
        %2980 = vmatpush.msra.mxu0 %v2770
        %2981 = vmatpush.msra.mxu0 %v2762
        %2982 = vmatpush.msra.mxu0 %v2754
        %2983 = vmatmul.f32.gmra.mxu0 %v2847
        %v2984 = vpop.f32.mrf.mxu0
        %v2985 = vadd.f32 0.0, %v2984
        %2986 = vmatmul.f32.gmra.mxu0 %v2850
        %v2987 = vpop.f32.mrf.mxu0
        %v2988 = vadd.f32 0.0, %v2987
        %2989 = vdwg.mxu0
        %2990 = vmatpush.msra.mxu0 0.0
        %2991 = vmatpush.msra.mxu0 0.0
        %2992 = vmatpush.msra.mxu0 0.0
        %2993 = vmatpush.msra.mxu0 0.0
        %2994 = vmatpush.msra.mxu0 0.0
        %2995 = vmatpush.msra.mxu0 0.0
        %2996 = vmatpush.msra.mxu0 0.0
        %2997 = vmatpush.msra.mxu0 0.0
        %2998 = vmatpush.msra.mxu0 0.0
        %2999 = vmatpush.msra.mxu0 0.0
        %3000 = vmatpush.msra.mxu0 %v2795
        %3001 = vmatpush.msra.mxu0 %v2787
        %3002 = vmatpush.msra.mxu0 %v2779
        %3003 = vmatpush.msra.mxu0 %v2771
        %3004 = vmatpush.msra.mxu0 %v2763
        %3005 = vmatpush.msra.mxu0 %v2755
        %3006 = vmatmul.f32.gmra.mxu0 %v2847
        %v3007 = vpop.f32.mrf.mxu0
        %v3008 = vadd.f32 0.0, %v3007
        %3009 = vmatmul.f32.gmra.mxu0 %v2850
        %v3010 = vpop.f32.mrf.mxu0
        %v3011 = vadd.f32 0.0, %v3010
        %3012 = vdwg.mxu0
        %3013 = vmatpush.msra.mxu0 0.0
        %3014 = vmatpush.msra.mxu0 0.0
        %3015 = vmatpush.msra.mxu0 0.0
        %3016 = vmatpush.msra.mxu0 0.0
        %3017 = vmatpush.msra.mxu0 0.0
        %3018 = vmatpush.msra.mxu0 0.0
        %3019 = vmatpush.msra.mxu0 0.0
        %3020 = vmatpush.msra.mxu0 0.0
        %3021 = vmatpush.msra.mxu0 0.0
        %3022 = vmatpush.msra.mxu0 0.0
        %3023 = vmatpush.msra.mxu0 %v2796
        %3024 = vmatpush.msra.mxu0 %v2788
        %3025 = vmatpush.msra.mxu0 %v2780
        %3026 = vmatpush.msra.mxu0 %v2772
        %3027 = vmatpush.msra.mxu0 %v2764
        %3028 = vmatpush.msra.mxu0 %v2756
        %3029 = vmatmul.f32.gmra.mxu0 %v2847
        %v3030 = vpop.f32.mrf.mxu0
        %v3031 = vadd.f32 0.0, %v3030
        %3032 = vmatmul.f32.gmra.mxu0 %v2850
        %v3033 = vpop.f32.mrf.mxu0
        %v3034 = vadd.f32 0.0, %v3033
        %3035 = vdwg.mxu0
        %3036 = vrot.lane.b32.xlu0 %v2349, 65
        %v3037 = vpop.permute.xlu0 %3036
        %3038 = vrot.lane.b32.xlu0 %v2350, 65
        %v3039 = vpop.permute.xlu0 %3038
        %3040 = vrot.lane.b32.xlu0 %v2351, 65
        %v3041 = vpop.permute.xlu0 %3040
        %3042 = vrot.lane.b32.xlu0 %v2352, 65
        %v3043 = vpop.permute.xlu0 %3042
        %3044 = vrot.lane.b32.xlu0 %v2353, 65
        %v3045 = vpop.permute.xlu0 %3044
        %3046 = vrot.lane.b32.xlu0 %v2354, 65
        %v3047 = vpop.permute.xlu0 %3046
        %3048 = vrot.lane.b32.xlu0 %v2355, 65
        %v3049 = vpop.permute.xlu0 %3048
        %3050 = vrot.lane.b32.xlu0 %v2356, 65
        %v3051 = vpop.permute.xlu0 %3050
        %3052 = vrot.lane.b32.xlu0 %v2357, 65
        %v3053 = vpop.permute.xlu0 %3052
        %3054 = vrot.lane.b32.xlu0 %v2358, 65
        %v3055 = vpop.permute.xlu0 %3054
        %3056 = vrot.lane.b32.xlu0 %v2359, 65
        %v3057 = vpop.permute.xlu0 %3056
        %3058 = vrot.lane.b32.xlu0 %v2360, 65
        %v3059 = vpop.permute.xlu0 %3058
        %3060 = vrot.lane.b32.xlu0 %v2361, 65
        %v3061 = vpop.permute.xlu0 %3060
        %3062 = vrot.lane.b32.xlu0 %v2362, 65
        %v3063 = vpop.permute.xlu0 %3062
        %3064 = vrot.lane.b32.xlu0 %v2363, 65
        %v3065 = vpop.permute.xlu0 %3064
        %3066 = vrot.lane.b32.xlu0 %v2364, 65
        %v3067 = vpop.permute.xlu0 %3066
        %3068 = vrot.lane.b32.xlu0 %v2365, 65
        %v3069 = vpop.permute.xlu0 %3068
        %3070 = vrot.lane.b32.xlu0 %v2366, 65
        %v3071 = vpop.permute.xlu0 %3070
        %3072 = vrot.lane.b32.xlu0 %v2458, 65
        %v3073 = vpop.permute.xlu0 %3072
        %3074 = vrot.lane.b32.xlu0 %v2459, 65
        %v3075 = vpop.permute.xlu0 %3074
        %3076 = vrot.lane.b32.xlu0 %v2460, 65
        %v3077 = vpop.permute.xlu0 %3076
        %3078 = vrot.lane.b32.xlu0 %v2461, 65
        %v3079 = vpop.permute.xlu0 %3078
        %3080 = vrot.lane.b32.xlu0 %v2462, 65
        %v3081 = vpop.permute.xlu0 %3080
        %3082 = vrot.lane.b32.xlu0 %v2463, 65
        %v3083 = vpop.permute.xlu0 %3082
        %3084 = vrot.lane.b32.xlu0 %v2464, 65
        %v3085 = vpop.permute.xlu0 %3084
        %3086 = vrot.lane.b32.xlu0 %v2465, 65
        %v3087 = vpop.permute.xlu0 %3086
        %3088 = vrot.lane.b32.xlu0 %v2438, 65
        %v3089 = vpop.permute.xlu0 %3088
        %3090 = vrot.lane.b32.xlu0 %v2466, 65
        %v3091 = vpop.permute.xlu0 %3090
        %3092 = vrot.lane.b32.xlu0 %v2467, 65
        %v3093 = vpop.permute.xlu0 %3092
        %3094 = vrot.lane.b32.xlu0 %v2468, 65
        %v3095 = vpop.permute.xlu0 %3094
        %3096 = vrot.lane.b32.xlu0 %v2469, 65
        %v3097 = vpop.permute.xlu0 %3096
        %3098 = vrot.lane.b32.xlu0 %v2470, 65
        %v3099 = vpop.permute.xlu0 %3098
        %3100 = vrot.lane.b32.xlu0 %v2471, 65
        %v3101 = vpop.permute.xlu0 %3100
        %3102 = vrot.lane.b32.xlu0 %v2472, 65
        %v3103 = vpop.permute.xlu0 %3102
        %3104 = vrot.lane.b32.xlu0 %v2473, 65
        %v3105 = vpop.permute.xlu0 %3104
        %3106 = vrot.lane.b32.xlu0 %v2456, 65
        %v3107 = vpop.permute.xlu0 %3106
        %3108 = vrot.lane.b32.xlu0 %v2529, 65
        %v3109 = vpop.permute.xlu0 %3108
        %3110 = vrot.lane.b32.xlu0 %v2530, 65
        %v3111 = vpop.permute.xlu0 %3110
        %3112 = vrot.lane.b32.xlu0 %v2531, 65
        %v3113 = vpop.permute.xlu0 %3112
        %3114 = vrot.lane.b32.xlu0 %v2532, 65
        %v3115 = vpop.permute.xlu0 %3114
        %3116 = vrot.lane.b32.xlu0 %v2533, 65
        %v3117 = vpop.permute.xlu0 %3116
        %3118 = vrot.lane.b32.xlu0 %v2534, 65
        %v3119 = vpop.permute.xlu0 %3118
        %3120 = vrot.lane.b32.xlu0 %v2535, 65
        %v3121 = vpop.permute.xlu0 %3120
        %3122 = vrot.lane.b32.xlu0 %v2536, 65
        %v3123 = vpop.permute.xlu0 %3122
        %3124 = vrot.lane.b32.xlu0 %v2509, 65
        %v3125 = vpop.permute.xlu0 %3124
        %3126 = vrot.lane.b32.xlu0 %v2537, 65
        %v3127 = vpop.permute.xlu0 %3126
        %3128 = vrot.lane.b32.xlu0 %v2538, 65
        %v3129 = vpop.permute.xlu0 %3128
        %3130 = vrot.lane.b32.xlu0 %v2539, 65
        %v3131 = vpop.permute.xlu0 %3130
        %3132 = vrot.lane.b32.xlu0 %v2540, 65
        %v3133 = vpop.permute.xlu0 %3132
        %3134 = vrot.lane.b32.xlu0 %v2541, 65
        %v3135 = vpop.permute.xlu0 %3134
        %3136 = vrot.lane.b32.xlu0 %v2542, 65
        %v3137 = vpop.permute.xlu0 %3136
        %3138 = vrot.lane.b32.xlu0 %v2543, 65
        %v3139 = vpop.permute.xlu0 %3138
        %3140 = vrot.lane.b32.xlu0 %v2544, 65
        %v3141 = vpop.permute.xlu0 %3140
        %3142 = vrot.lane.b32.xlu0 %v2527, 65
        %v3143 = vpop.permute.xlu0 %3142
        %vm3144 = vcmask 531456
        %v3145 = vsel %vm3144, %v3037, %v3039
        %v3146 = vsel %vm3144, %v3039, %v3041
        %v3147 = vsel %vm3144, %v3041, %v3043
        %v3148 = vsel %vm3144, %v3043, %v3045
        %v3149 = vsel %vm3144, %v3045, %v3047
        %v3150 = vsel %vm3144, %v3047, %v3049
        %v3151 = vsel %vm3144, %v3049, %v3051
        %v3152 = vsel %vm3144, %v3051, %v3053
        %v3153 = vsel %vm3144, %v3055, %v3057
        %v3154 = vsel %vm3144, %v3057, %v3059
        %v3155 = vsel %vm3144, %v3059, %v3061
        %v3156 = vsel %vm3144, %v3061, %v3063
        %v3157 = vsel %vm3144, %v3063, %v3065
        %v3158 = vsel %vm3144, %v3065, %v3067
        %v3159 = vsel %vm3144, %v3067, %v3069
        %v3160 = vsel %vm3144, %v3069, %v3071
        %v3161 = vsel %vm3144, %v3073, %v3075
        %v3162 = vsel %vm3144, %v3075, %v3077
        %v3163 = vsel %vm3144, %v3077, %v3079
        %v3164 = vsel %vm3144, %v3079, %v3081
        %v3165 = vsel %vm3144, %v3081, %v3083
        %v3166 = vsel %vm3144, %v3083, %v3085
        %v3167 = vsel %vm3144, %v3085, %v3087
        %v3168 = vsel %vm3144, %v3087, %v3089
        %v3169 = vsel %vm3144, %v3091, %v3093
        %v3170 = vsel %vm3144, %v3093, %v3095
        %v3171 = vsel %vm3144, %v3095, %v3097
        %v3172 = vsel %vm3144, %v3097, %v3099
        %v3173 = vsel %vm3144, %v3099, %v3101
        %v3174 = vsel %vm3144, %v3101, %v3103
        %v3175 = vsel %vm3144, %v3103, %v3105
        %v3176 = vsel %vm3144, %v3105, %v3107
        %v3177 = vsel %vm3144, %v3109, %v3111
        %v3178 = vsel %vm3144, %v3111, %v3113
        %v3179 = vsel %vm3144, %v3113, %v3115
        %v3180 = vsel %vm3144, %v3115, %v3117
        %v3181 = vsel %vm3144, %v3117, %v3119
        %v3182 = vsel %vm3144, %v3119, %v3121
        %v3183 = vsel %vm3144, %v3121, %v3123
        %v3184 = vsel %vm3144, %v3123, %v3125
        %v3185 = vsel %vm3144, %v3127, %v3129
        %v3186 = vsel %vm3144, %v3129, %v3131
        %v3187 = vsel %vm3144, %v3131, %v3133
        %v3188 = vsel %vm3144, %v3133, %v3135
        %v3189 = vsel %vm3144, %v3135, %v3137
        %v3190 = vsel %vm3144, %v3137, %v3139
        %v3191 = vsel %vm3144, %v3139, %v3141
        %v3192 = vsel %vm3144, %v3141, %v3143
        %v3242 = vsel %vm2845, %v2545, 0
        %v3245 = vsel %vm2845, %v2546, 0
        %3247 = vmatpush.msra.mxu0 0.0
        %3248 = vmatpush.msra.mxu0 0.0
        %3249 = vmatpush.msra.mxu0 0.0
        %3250 = vmatpush.msra.mxu0 0.0
        %3251 = vmatpush.msra.mxu0 0.0
        %3252 = vmatpush.msra.mxu0 0.0
        %3253 = vmatpush.msra.mxu0 0.0
        %3254 = vmatpush.msra.mxu0 0.0
        %3255 = vmatpush.msra.mxu0 0.0
        %3256 = vmatpush.msra.mxu0 0.0
        %3257 = vmatpush.msra.mxu0 %v3185
        %3258 = vmatpush.msra.mxu0 %v3177
        %3259 = vmatpush.msra.mxu0 %v3169
        %3260 = vmatpush.msra.mxu0 %v3161
        %3261 = vmatpush.msra.mxu0 %v3153
        %3262 = vmatpush.msra.mxu0 %v3145
        %3263 = vmatmul.f32.gmra.mxu0 %v3242
        %v3264 = vpop.f32.mrf.mxu0
        %v3265 = vadd.f32 %v2870, %v3264
        %3266 = vmatmul.f32.gmra.mxu0 %v3245
        %v3267 = vpop.f32.mrf.mxu0
        %v3268 = vadd.f32 %v2873, %v3267
        %3269 = vdwg.mxu0
        %3270 = vmatpush.msra.mxu0 0.0
        %3271 = vmatpush.msra.mxu0 0.0
        %3272 = vmatpush.msra.mxu0 0.0
        %3273 = vmatpush.msra.mxu0 0.0
        %3274 = vmatpush.msra.mxu0 0.0
        %3275 = vmatpush.msra.mxu0 0.0
        %3276 = vmatpush.msra.mxu0 0.0
        %3277 = vmatpush.msra.mxu0 0.0
        %3278 = vmatpush.msra.mxu0 0.0
        %3279 = vmatpush.msra.mxu0 0.0
        %3280 = vmatpush.msra.mxu0 %v3186
        %3281 = vmatpush.msra.mxu0 %v3178
        %3282 = vmatpush.msra.mxu0 %v3170
        %3283 = vmatpush.msra.mxu0 %v3162
        %3284 = vmatpush.msra.mxu0 %v3154
        %3285 = vmatpush.msra.mxu0 %v3146
        %3286 = vmatmul.f32.gmra.mxu0 %v3242
        %v3287 = vpop.f32.mrf.mxu0
        %v3288 = vadd.f32 %v2893, %v3287
        %3289 = vmatmul.f32.gmra.mxu0 %v3245
        %v3290 = vpop.f32.mrf.mxu0
        %v3291 = vadd.f32 %v2896, %v3290
        %3292 = vdwg.mxu0
        %3293 = vmatpush.msra.mxu0 0.0
        %3294 = vmatpush.msra.mxu0 0.0
        %3295 = vmatpush.msra.mxu0 0.0
        %3296 = vmatpush.msra.mxu0 0.0
        %3297 = vmatpush.msra.mxu0 0.0
        %3298 = vmatpush.msra.mxu0 0.0
        %3299 = vmatpush.msra.mxu0 0.0
        %3300 = vmatpush.msra.mxu0 0.0
        %3301 = vmatpush.msra.mxu0 0.0
        %3302 = vmatpush.msra.mxu0 0.0
        %3303 = vmatpush.msra.mxu0 %v3187
        %3304 = vmatpush.msra.mxu0 %v3179
        %3305 = vmatpush.msra.mxu0 %v3171
        %3306 = vmatpush.msra.mxu0 %v3163
        %3307 = vmatpush.msra.mxu0 %v3155
        %3308 = vmatpush.msra.mxu0 %v3147
        %3309 = vmatmul.f32.gmra.mxu0 %v3242
        %v3310 = vpop.f32.mrf.mxu0
        %v3311 = vadd.f32 %v2916, %v3310
        %3312 = vmatmul.f32.gmra.mxu0 %v3245
        %v3313 = vpop.f32.mrf.mxu0
        %v3314 = vadd.f32 %v2919, %v3313
        %3315 = vdwg.mxu0
        %3316 = vmatpush.msra.mxu0 0.0
        %3317 = vmatpush.msra.mxu0 0.0
        %3318 = vmatpush.msra.mxu0 0.0
        %3319 = vmatpush.msra.mxu0 0.0
        %3320 = vmatpush.msra.mxu0 0.0
        %3321 = vmatpush.msra.mxu0 0.0
        %3322 = vmatpush.msra.mxu0 0.0
        %3323 = vmatpush.msra.mxu0 0.0
        %3324 = vmatpush.msra.mxu0 0.0
        %3325 = vmatpush.msra.mxu0 0.0
        %3326 = vmatpush.msra.mxu0 %v3188
        %3327 = vmatpush.msra.mxu0 %v3180
        %3328 = vmatpush.msra.mxu0 %v3172
        %3329 = vmatpush.msra.mxu0 %v3164
        %3330 = vmatpush.msra.mxu0 %v3156
        %3331 = vmatpush.msra.mxu0 %v3148
        %3332 = vmatmul.f32.gmra.mxu0 %v3242
        %v3333 = vpop.f32.mrf.mxu0
        %v3334 = vadd.f32 %v2939, %v3333
        %3335 = vmatmul.f32.gmra.mxu0 %v3245
        %v3336 = vpop.f32.mrf.mxu0
        %v3337 = vadd.f32 %v2942, %v3336
        %3338 = vdwg.mxu0
        %3339 = vmatpush.msra.mxu0 0.0
        %3340 = vmatpush.msra.mxu0 0.0
        %3341 = vmatpush.msra.mxu0 0.0
        %3342 = vmatpush.msra.mxu0 0.0
        %3343 = vmatpush.msra.mxu0 0.0
        %3344 = vmatpush.msra.mxu0 0.0
        %3345 = vmatpush.msra.mxu0 0.0
        %3346 = vmatpush.msra.mxu0 0.0
        %3347 = vmatpush.msra.mxu0 0.0
        %3348 = vmatpush.msra.mxu0 0.0
        %3349 = vmatpush.msra.mxu0 %v3189
        %3350 = vmatpush.msra.mxu0 %v3181
        %3351 = vmatpush.msra.mxu0 %v3173
        %3352 = vmatpush.msra.mxu0 %v3165
        %3353 = vmatpush.msra.mxu0 %v3157
        %3354 = vmatpush.msra.mxu0 %v3149
        %3355 = vmatmul.f32.gmra.mxu0 %v3242
        %v3356 = vpop.f32.mrf.mxu0
        %v3357 = vadd.f32 %v2962, %v3356
        %3358 = vmatmul.f32.gmra.mxu0 %v3245
        %v3359 = vpop.f32.mrf.mxu0
        %v3360 = vadd.f32 %v2965, %v3359
        %3361 = vdwg.mxu0
        %3362 = vmatpush.msra.mxu0 0.0
        %3363 = vmatpush.msra.mxu0 0.0
        %3364 = vmatpush.msra.mxu0 0.0
        %3365 = vmatpush.msra.mxu0 0.0
        %3366 = vmatpush.msra.mxu0 0.0
        %3367 = vmatpush.msra.mxu0 0.0
        %3368 = vmatpush.msra.mxu0 0.0
        %3369 = vmatpush.msra.mxu0 0.0
        %3370 = vmatpush.msra.mxu0 0.0
        %3371 = vmatpush.msra.mxu0 0.0
        %3372 = vmatpush.msra.mxu0 %v3190
        %3373 = vmatpush.msra.mxu0 %v3182
        %3374 = vmatpush.msra.mxu0 %v3174
        %3375 = vmatpush.msra.mxu0 %v3166
        %3376 = vmatpush.msra.mxu0 %v3158
        %3377 = vmatpush.msra.mxu0 %v3150
        %3378 = vmatmul.f32.gmra.mxu0 %v3242
        %v3379 = vpop.f32.mrf.mxu0
        %v3380 = vadd.f32 %v2985, %v3379
        %3381 = vmatmul.f32.gmra.mxu0 %v3245
        %v3382 = vpop.f32.mrf.mxu0
        %v3383 = vadd.f32 %v2988, %v3382
        %3384 = vdwg.mxu0
        %3385 = vmatpush.msra.mxu0 0.0
        %3386 = vmatpush.msra.mxu0 0.0
        %3387 = vmatpush.msra.mxu0 0.0
        %3388 = vmatpush.msra.mxu0 0.0
        %3389 = vmatpush.msra.mxu0 0.0
        %3390 = vmatpush.msra.mxu0 0.0
        %3391 = vmatpush.msra.mxu0 0.0
        %3392 = vmatpush.msra.mxu0 0.0
        %3393 = vmatpush.msra.mxu0 0.0
        %3394 = vmatpush.msra.mxu0 0.0
        %3395 = vmatpush.msra.mxu0 %v3191
        %3396 = vmatpush.msra.mxu0 %v3183
        %3397 = vmatpush.msra.mxu0 %v3175
        %3398 = vmatpush.msra.mxu0 %v3167
        %3399 = vmatpush.msra.mxu0 %v3159
        %3400 = vmatpush.msra.mxu0 %v3151
        %3401 = vmatmul.f32.gmra.mxu0 %v3242
        %v3402 = vpop.f32.mrf.mxu0
        %v3403 = vadd.f32 %v3008, %v3402
        %3404 = vmatmul.f32.gmra.mxu0 %v3245
        %v3405 = vpop.f32.mrf.mxu0
        %v3406 = vadd.f32 %v3011, %v3405
        %3407 = vdwg.mxu0
        %3408 = vmatpush.msra.mxu0 0.0
        %3409 = vmatpush.msra.mxu0 0.0
        %3410 = vmatpush.msra.mxu0 0.0
        %3411 = vmatpush.msra.mxu0 0.0
        %3412 = vmatpush.msra.mxu0 0.0
        %3413 = vmatpush.msra.mxu0 0.0
        %3414 = vmatpush.msra.mxu0 0.0
        %3415 = vmatpush.msra.mxu0 0.0
        %3416 = vmatpush.msra.mxu0 0.0
        %3417 = vmatpush.msra.mxu0 0.0
        %3418 = vmatpush.msra.mxu0 %v3192
        %3419 = vmatpush.msra.mxu0 %v3184
        %3420 = vmatpush.msra.mxu0 %v3176
        %3421 = vmatpush.msra.mxu0 %v3168
        %3422 = vmatpush.msra.mxu0 %v3160
        %3423 = vmatpush.msra.mxu0 %v3152
        %3424 = vmatmul.f32.gmra.mxu0 %v3242
        %v3425 = vpop.f32.mrf.mxu0
        %v3426 = vadd.f32 %v3031, %v3425
        %3427 = vmatmul.f32.gmra.mxu0 %v3245
        %v3428 = vpop.f32.mrf.mxu0
        %v3429 = vadd.f32 %v3034, %v3428
        %3430 = vdwg.mxu0
        %v3431 = vld [vmem:[%s2237 + $0x8] sm:$0xff]
        %v3432 = vld [vmem:[%s2237 + $0x10] sm:$0xff]
        %v3433 = vld [vmem:[%s2237 + $0x18] sm:$0xff]
        %v3434 = vld [vmem:[%s2237 + $0x20] sm:$0xff]
        %v3435 = vld [vmem:[%s2237 + $0x28] sm:$0xff]
        %v3436 = vld [vmem:[%s2237 + $0x30] sm:$0xff]
        %v3437 = vld [vmem:[%s2237 + $0x38] sm:$0xff]
        %v3438 = vld [vmem:[%s2237 + $0x40] sm:$0xff]
        %v3439 = vld [vmem:[%s2237 + $0x48] sm:$0xff]
        %v3440 = vld [vmem:[%s2237 + $0x58] sm:$0xff]
        %v3441 = vld [vmem:[%s2237 + $0x60] sm:$0xff]
        %v3442 = vld [vmem:[%s2237 + $0x68] sm:$0xff]
        %v3443 = vld [vmem:[%s2237 + $0x70] sm:$0xff]
        %v3444 = vld [vmem:[%s2237 + $0x78] sm:$0xff]
        %v3445 = vld [vmem:[%s2237 + $0x80] sm:$0xff]
        %v3446 = vld [vmem:[%s2237 + $0x88] sm:$0xff]
        %v3447 = vld [vmem:[%s2237 + $0x90] sm:$0xff]
        %v3448 = vld [vmem:[%s2237 + $0x98] sm:$0xff]
        %v3449 = vld [vmem:[#allocation2 + $0x8] sm:$0xff]
        %v3450 = vld [vmem:[#allocation2 + $0x10] sm:$0xff]
        %v3451 = vld [vmem:[#allocation2 + $0x18] sm:$0xff]
        %v3452 = vld [vmem:[#allocation2 + $0x20] sm:$0xff]
        %v3453 = vld [vmem:[#allocation2 + $0x28] sm:$0xff]
        %v3454 = vld [vmem:[#allocation2 + $0x30] sm:$0xff]
        %v3455 = vld [vmem:[#allocation2 + $0x38] sm:$0xff]
        %v3456 = vld [vmem:[#allocation2 + $0x40] sm:$0xff]
        %v3457 = vld [vmem:[#allocation2 + $0x48] sm:$0xff]
        %v3458 = vld [vmem:[#allocation2 + $0x58] sm:$0xff]
        %v3459 = vld [vmem:[#allocation2 + $0x60] sm:$0xff]
        %v3460 = vld [vmem:[#allocation2 + $0x68] sm:$0xff]
        %v3461 = vld [vmem:[#allocation2 + $0x70] sm:$0xff]
        %v3462 = vld [vmem:[#allocation2 + $0x78] sm:$0xff]
        %v3463 = vld [vmem:[#allocation2 + $0x80] sm:$0xff]
        %v3464 = vld [vmem:[#allocation2 + $0x88] sm:$0xff]
        %v3465 = vld [vmem:[#allocation2 + $0x90] sm:$0xff]
        %v3466 = vld [vmem:[#allocation2 + $0x98] sm:$0xff]
        %3485 = vrot.lane.b32.xlu0 %v3449, 127
        %v3486 = vpop.permute.xlu0 %3485
        %3487 = vrot.lane.b32.xlu0 %v3450, 127
        %v3488 = vpop.permute.xlu0 %3487
        %3489 = vrot.lane.b32.xlu0 %v3451, 127
        %v3490 = vpop.permute.xlu0 %3489
        %3491 = vrot.lane.b32.xlu0 %v3452, 127
        %v3492 = vpop.permute.xlu0 %3491
        %3493 = vrot.lane.b32.xlu0 %v3453, 127
        %v3494 = vpop.permute.xlu0 %3493
        %3495 = vrot.lane.b32.xlu0 %v3454, 127
        %v3496 = vpop.permute.xlu0 %3495
        %3497 = vrot.lane.b32.xlu0 %v3455, 127
        %v3498 = vpop.permute.xlu0 %3497
        %3499 = vrot.lane.b32.xlu0 %v3456, 127
        %v3500 = vpop.permute.xlu0 %3499
        %3501 = vrot.lane.b32.xlu0 %v3457, 127
        %v3502 = vpop.permute.xlu0 %3501
        %3503 = vrot.lane.b32.xlu0 %v3458, 127
        %v3504 = vpop.permute.xlu0 %3503
        %3505 = vrot.lane.b32.xlu0 %v3459, 127
        %v3506 = vpop.permute.xlu0 %3505
        %3507 = vrot.lane.b32.xlu0 %v3460, 127
        %v3508 = vpop.permute.xlu0 %3507
        %3509 = vrot.lane.b32.xlu0 %v3461, 127
        %v3510 = vpop.permute.xlu0 %3509
        %3511 = vrot.lane.b32.xlu0 %v3462, 127
        %v3512 = vpop.permute.xlu0 %3511
        %3513 = vrot.lane.b32.xlu0 %v3463, 127
        %v3514 = vpop.permute.xlu0 %3513
        %3515 = vrot.lane.b32.xlu0 %v3464, 127
        %v3516 = vpop.permute.xlu0 %3515
        %3517 = vrot.lane.b32.xlu0 %v3465, 127
        %v3518 = vpop.permute.xlu0 %3517
        %3519 = vrot.lane.b32.xlu0 %v3466, 127
        %v3520 = vpop.permute.xlu0 %3519
        %v3521 = vsel %vm2457, %v3486, %v3488
        %v3522 = vsel %vm2457, %v3488, %v3490
        %v3523 = vsel %vm2457, %v3490, %v3492
        %v3524 = vsel %vm2457, %v3492, %v3494
        %v3525 = vsel %vm2457, %v3494, %v3496
        %v3526 = vsel %vm2457, %v3496, %v3498
        %v3527 = vsel %vm2457, %v3498, %v3500
        %v3528 = vsel %vm2457, %v3500, %v3502
        %v3529 = vsel %vm2457, %v3504, %v3506
        %v3530 = vsel %vm2457, %v3506, %v3508
        %v3531 = vsel %vm2457, %v3508, %v3510
        %v3532 = vsel %vm2457, %v3510, %v3512
        %v3533 = vsel %vm2457, %v3512, %v3514
        %v3534 = vsel %vm2457, %v3514, %v3516
        %v3535 = vsel %vm2457, %v3516, %v3518
        %v3536 = vsel %vm2457, %v3518, %v3520
        %s3537 = scalar_lea.vmem %s10, 32
        %v3538 = vld [vmem:[%s3537] sm:$0xff]
        %v3539 = vld [vmem:[%s3537 + $0x8] sm:$0x3]
        %3558 = vrot.lane.b32.xlu0 %v3431, 65
        %v3559 = vpop.permute.xlu0 %3558
        %3560 = vrot.lane.b32.xlu0 %v3432, 65
        %v3561 = vpop.permute.xlu0 %3560
        %3562 = vrot.lane.b32.xlu0 %v3433, 65
        %v3563 = vpop.permute.xlu0 %3562
        %3564 = vrot.lane.b32.xlu0 %v3434, 65
        %v3565 = vpop.permute.xlu0 %3564
        %3566 = vrot.lane.b32.xlu0 %v3435, 65
        %v3567 = vpop.permute.xlu0 %3566
        %3568 = vrot.lane.b32.xlu0 %v3436, 65
        %v3569 = vpop.permute.xlu0 %3568
        %3570 = vrot.lane.b32.xlu0 %v3437, 65
        %v3571 = vpop.permute.xlu0 %3570
        %3572 = vrot.lane.b32.xlu0 %v3438, 65
        %v3573 = vpop.permute.xlu0 %3572
        %3574 = vrot.lane.b32.xlu0 %v3439, 65
        %v3575 = vpop.permute.xlu0 %3574
        %3576 = vrot.lane.b32.xlu0 %v3440, 65
        %v3577 = vpop.permute.xlu0 %3576
        %3578 = vrot.lane.b32.xlu0 %v3441, 65
        %v3579 = vpop.permute.xlu0 %3578
        %3580 = vrot.lane.b32.xlu0 %v3442, 65
        %v3581 = vpop.permute.xlu0 %3580
        %3582 = vrot.lane.b32.xlu0 %v3443, 65
        %v3583 = vpop.permute.xlu0 %3582
        %3584 = vrot.lane.b32.xlu0 %v3444, 65
        %v3585 = vpop.permute.xlu0 %3584
        %3586 = vrot.lane.b32.xlu0 %v3445, 65
        %v3587 = vpop.permute.xlu0 %3586
        %3588 = vrot.lane.b32.xlu0 %v3446, 65
        %v3589 = vpop.permute.xlu0 %3588
        %3590 = vrot.lane.b32.xlu0 %v3447, 65
        %v3591 = vpop.permute.xlu0 %3590
        %3592 = vrot.lane.b32.xlu0 %v3448, 65
        %v3593 = vpop.permute.xlu0 %3592
        %3594 = vrot.lane.b32.xlu0 %v3521, 65
        %v3595 = vpop.permute.xlu0 %3594
        %3596 = vrot.lane.b32.xlu0 %v3522, 65
        %v3597 = vpop.permute.xlu0 %3596
        %3598 = vrot.lane.b32.xlu0 %v3523, 65
        %v3599 = vpop.permute.xlu0 %3598
        %3600 = vrot.lane.b32.xlu0 %v3524, 65
        %v3601 = vpop.permute.xlu0 %3600
        %3602 = vrot.lane.b32.xlu0 %v3525, 65
        %v3603 = vpop.permute.xlu0 %3602
        %3604 = vrot.lane.b32.xlu0 %v3526, 65
        %v3605 = vpop.permute.xlu0 %3604
        %3606 = vrot.lane.b32.xlu0 %v3527, 65
        %v3607 = vpop.permute.xlu0 %3606
        %3608 = vrot.lane.b32.xlu0 %v3528, 65
        %v3609 = vpop.permute.xlu0 %3608
        %3610 = vrot.lane.b32.xlu0 %v3502, 65
        %v3611 = vpop.permute.xlu0 %3610
        %3612 = vrot.lane.b32.xlu0 %v3529, 65
        %v3613 = vpop.permute.xlu0 %3612
        %3614 = vrot.lane.b32.xlu0 %v3530, 65
        %v3615 = vpop.permute.xlu0 %3614
        %3616 = vrot.lane.b32.xlu0 %v3531, 65
        %v3617 = vpop.permute.xlu0 %3616
        %3618 = vrot.lane.b32.xlu0 %v3532, 65
        %v3619 = vpop.permute.xlu0 %3618
        %3620 = vrot.lane.b32.xlu0 %v3533, 65
        %v3621 = vpop.permute.xlu0 %3620
        %3622 = vrot.lane.b32.xlu0 %v3534, 65
        %v3623 = vpop.permute.xlu0 %3622
        %3624 = vrot.lane.b32.xlu0 %v3535, 65
        %v3625 = vpop.permute.xlu0 %3624
        %3626 = vrot.lane.b32.xlu0 %v3536, 65
        %v3627 = vpop.permute.xlu0 %3626
        %3628 = vrot.lane.b32.xlu0 %v3520, 65
        %v3629 = vpop.permute.xlu0 %3628
        %3630 = vrot.lane.b32.xlu0 %v2617, 65
        %v3631 = vpop.permute.xlu0 %3630
        %3632 = vrot.lane.b32.xlu0 %v2614, 65
        %v3633 = vpop.permute.xlu0 %3632
        %3634 = vrot.lane.b32.xlu0 %v2618, 65
        %v3635 = vpop.permute.xlu0 %3634
        %3636 = vrot.lane.b32.xlu0 %v2616, 65
        %v3637 = vpop.permute.xlu0 %3636
        %v3638 = vsel %vm3144, %v3559, %v3561
        %v3639 = vsel %vm3144, %v3561, %v3563
        %v3640 = vsel %vm3144, %v3563, %v3565
        %v3641 = vsel %vm3144, %v3565, %v3567
        %v3642 = vsel %vm3144, %v3567, %v3569
        %v3643 = vsel %vm3144, %v3569, %v3571
        %v3644 = vsel %vm3144, %v3571, %v3573
        %v3645 = vsel %vm3144, %v3573, %v3575
        %v3646 = vsel %vm3144, %v3577, %v3579
        %v3647 = vsel %vm3144, %v3579, %v3581
        %v3648 = vsel %vm3144, %v3581, %v3583
        %v3649 = vsel %vm3144, %v3583, %v3585
        %v3650 = vsel %vm3144, %v3585, %v3587
        %v3651 = vsel %vm3144, %v3587, %v3589
        %v3652 = vsel %vm3144, %v3589, %v3591
        %v3653 = vsel %vm3144, %v3591, %v3593
        %v3654 = vsel %vm3144, %v3595, %v3597
        %v3655 = vsel %vm3144, %v3597, %v3599
        %v3656 = vsel %vm3144, %v3599, %v3601
        %v3657 = vsel %vm3144, %v3601, %v3603
        %v3658 = vsel %vm3144, %v3603, %v3605
        %v3659 = vsel %vm3144, %v3605, %v3607
        %v3660 = vsel %vm3144, %v3607, %v3609
        %v3661 = vsel %vm3144, %v3609, %v3611
        %v3662 = vsel %vm3144, %v3613, %v3615
        %v3663 = vsel %vm3144, %v3615, %v3617
        %v3664 = vsel %vm3144, %v3617, %v3619
        %v3665 = vsel %vm3144, %v3619, %v3621
        %v3666 = vsel %vm3144, %v3621, %v3623
        %v3667 = vsel %vm3144, %v3623, %v3625
        %v3668 = vsel %vm3144, %v3625, %v3627
        %v3669 = vsel %vm3144, %v3627, %v3629
        %v3670 = vsel %vm3144, %v3123, %v3631
        %v3671 = vsel %vm3144, %v3631, %v3633
        %v3672 = vsel %vm3144, %v3141, %v3635
        %v3673 = vsel %vm3144, %v3635, %v3637
        %v3711 = vsel %vm2845, %v3538, 0
        %v3714 = vsel %vm2845, %v3539, 0
        %3716 = vmatpush.msra.mxu0 0.0
        %3717 = vmatpush.msra.mxu0 0.0
        %3718 = vmatpush.msra.mxu0 0.0
        %3719 = vmatpush.msra.mxu0 0.0
        %3720 = vmatpush.msra.mxu0 0.0
        %3721 = vmatpush.msra.mxu0 0.0
        %3722 = vmatpush.msra.mxu0 0.0
        %3723 = vmatpush.msra.mxu0 0.0
        %3724 = vmatpush.msra.mxu0 0.0
        %3725 = vmatpush.msra.mxu0 0.0
        %3726 = vmatpush.msra.mxu0 %v3186
        %3727 = vmatpush.msra.mxu0 %v3178
        %3728 = vmatpush.msra.mxu0 %v3662
        %3729 = vmatpush.msra.mxu0 %v3654
        %3730 = vmatpush.msra.mxu0 %v3646
        %3731 = vmatpush.msra.mxu0 %v3638
        %3732 = vmatmul.f32.gmra.mxu0 %v3711
        %v3733 = vpop.f32.mrf.mxu0
        %v3734 = vadd.f32 0.0, %v3733
        %3735 = vmatmul.f32.gmra.mxu0 %v3714
        %v3736 = vpop.f32.mrf.mxu0
        %v3737 = vadd.f32 0.0, %v3736
        %3738 = vdwg.mxu0
        %3739 = vmatpush.msra.mxu0 0.0
        %3740 = vmatpush.msra.mxu0 0.0
        %3741 = vmatpush.msra.mxu0 0.0
        %3742 = vmatpush.msra.mxu0 0.0
        %3743 = vmatpush.msra.mxu0 0.0
        %3744 = vmatpush.msra.mxu0 0.0
        %3745 = vmatpush.msra.mxu0 0.0
        %3746 = vmatpush.msra.mxu0 0.0
        %3747 = vmatpush.msra.mxu0 0.0
        %3748 = vmatpush.msra.mxu0 0.0
        %3749 = vmatpush.msra.mxu0 %v3187
        %3750 = vmatpush.msra.mxu0 %v3179
        %3751 = vmatpush.msra.mxu0 %v3663
        %3752 = vmatpush.msra.mxu0 %v3655
        %3753 = vmatpush.msra.mxu0 %v3647
        %3754 = vmatpush.msra.mxu0 %v3639
        %3755 = vmatmul.f32.gmra.mxu0 %v3711
        %v3756 = vpop.f32.mrf.mxu0
        %v3757 = vadd.f32 0.0, %v3756
        %3758 = vmatmul.f32.gmra.mxu0 %v3714
        %v3759 = vpop.f32.mrf.mxu0
        %v3760 = vadd.f32 0.0, %v3759
        %3761 = vdwg.mxu0
        %3762 = vmatpush.msra.mxu0 0.0
        %3763 = vmatpush.msra.mxu0 0.0
        %3764 = vmatpush.msra.mxu0 0.0
        %3765 = vmatpush.msra.mxu0 0.0
        %3766 = vmatpush.msra.mxu0 0.0
        %3767 = vmatpush.msra.mxu0 0.0
        %3768 = vmatpush.msra.mxu0 0.0
        %3769 = vmatpush.msra.mxu0 0.0
        %3770 = vmatpush.msra.mxu0 0.0
        %3771 = vmatpush.msra.mxu0 0.0
        %3772 = vmatpush.msra.mxu0 %v3188
        %3773 = vmatpush.msra.mxu0 %v3180
        %3774 = vmatpush.msra.mxu0 %v3664
        %3775 = vmatpush.msra.mxu0 %v3656
        %3776 = vmatpush.msra.mxu0 %v3648
        %3777 = vmatpush.msra.mxu0 %v3640
        %3778 = vmatmul.f32.gmra.mxu0 %v3711
        %v3779 = vpop.f32.mrf.mxu0
        %v3780 = vadd.f32 0.0, %v3779
        %3781 = vmatmul.f32.gmra.mxu0 %v3714
        %v3782 = vpop.f32.mrf.mxu0
        %v3783 = vadd.f32 0.0, %v3782
        %3784 = vdwg.mxu0
        %3785 = vmatpush.msra.mxu0 0.0
        %3786 = vmatpush.msra.mxu0 0.0
        %3787 = vmatpush.msra.mxu0 0.0
        %3788 = vmatpush.msra.mxu0 0.0
        %3789 = vmatpush.msra.mxu0 0.0
        %3790 = vmatpush.msra.mxu0 0.0
        %3791 = vmatpush.msra.mxu0 0.0
        %3792 = vmatpush.msra.mxu0 0.0
        %3793 = vmatpush.msra.mxu0 0.0
        %3794 = vmatpush.msra.mxu0 0.0
        %3795 = vmatpush.msra.mxu0 %v3189
        %3796 = vmatpush.msra.mxu0 %v3181
        %3797 = vmatpush.msra.mxu0 %v3665
        %3798 = vmatpush.msra.mxu0 %v3657
        %3799 = vmatpush.msra.mxu0 %v3649
        %3800 = vmatpush.msra.mxu0 %v3641
        %3801 = vmatmul.f32.gmra.mxu0 %v3711
        %v3802 = vpop.f32.mrf.mxu0
        %v3803 = vadd.f32 0.0, %v3802
        %3804 = vmatmul.f32.gmra.mxu0 %v3714
        %v3805 = vpop.f32.mrf.mxu0
        %v3806 = vadd.f32 0.0, %v3805
        %3807 = vdwg.mxu0
        %3808 = vmatpush.msra.mxu0 0.0
        %3809 = vmatpush.msra.mxu0 0.0
        %3810 = vmatpush.msra.mxu0 0.0
        %3811 = vmatpush.msra.mxu0 0.0
        %3812 = vmatpush.msra.mxu0 0.0
        %3813 = vmatpush.msra.mxu0 0.0
        %3814 = vmatpush.msra.mxu0 0.0
        %3815 = vmatpush.msra.mxu0 0.0
        %3816 = vmatpush.msra.mxu0 0.0
        %3817 = vmatpush.msra.mxu0 0.0
        %3818 = vmatpush.msra.mxu0 %v3190
        %3819 = vmatpush.msra.mxu0 %v3182
        %3820 = vmatpush.msra.mxu0 %v3666
        %3821 = vmatpush.msra.mxu0 %v3658
        %3822 = vmatpush.msra.mxu0 %v3650
        %3823 = vmatpush.msra.mxu0 %v3642
        %3824 = vmatmul.f32.gmra.mxu0 %v3711
        %v3825 = vpop.f32.mrf.mxu0
        %v3826 = vadd.f32 0.0, %v3825
        %3827 = vmatmul.f32.gmra.mxu0 %v3714
        %v3828 = vpop.f32.mrf.mxu0
        %v3829 = vadd.f32 0.0, %v3828
        %3830 = vdwg.mxu0
        %3831 = vmatpush.msra.mxu0 0.0
        %3832 = vmatpush.msra.mxu0 0.0
        %3833 = vmatpush.msra.mxu0 0.0
        %3834 = vmatpush.msra.mxu0 0.0
        %3835 = vmatpush.msra.mxu0 0.0
        %3836 = vmatpush.msra.mxu0 0.0
        %3837 = vmatpush.msra.mxu0 0.0
        %3838 = vmatpush.msra.mxu0 0.0
        %3839 = vmatpush.msra.mxu0 0.0
        %3840 = vmatpush.msra.mxu0 0.0
        %3841 = vmatpush.msra.mxu0 %v3191
        %3842 = vmatpush.msra.mxu0 %v3183
        %3843 = vmatpush.msra.mxu0 %v3667
        %3844 = vmatpush.msra.mxu0 %v3659
        %3845 = vmatpush.msra.mxu0 %v3651
        %3846 = vmatpush.msra.mxu0 %v3643
        %3847 = vmatmul.f32.gmra.mxu0 %v3711
        %v3848 = vpop.f32.mrf.mxu0
        %v3849 = vadd.f32 0.0, %v3848
        %3850 = vmatmul.f32.gmra.mxu0 %v3714
        %v3851 = vpop.f32.mrf.mxu0
        %v3852 = vadd.f32 0.0, %v3851
        %3853 = vdwg.mxu0
        %3854 = vmatpush.msra.mxu0 0.0
        %3855 = vmatpush.msra.mxu0 0.0
        %3856 = vmatpush.msra.mxu0 0.0
        %3857 = vmatpush.msra.mxu0 0.0
        %3858 = vmatpush.msra.mxu0 0.0
        %3859 = vmatpush.msra.mxu0 0.0
        %3860 = vmatpush.msra.mxu0 0.0
        %3861 = vmatpush.msra.mxu0 0.0
        %3862 = vmatpush.msra.mxu0 0.0
        %3863 = vmatpush.msra.mxu0 0.0
        %3864 = vmatpush.msra.mxu0 %v3672
        %3865 = vmatpush.msra.mxu0 %v3670
        %3866 = vmatpush.msra.mxu0 %v3668
        %3867 = vmatpush.msra.mxu0 %v3660
        %3868 = vmatpush.msra.mxu0 %v3652
        %3869 = vmatpush.msra.mxu0 %v3644
        %3870 = vmatmul.f32.gmra.mxu0 %v3711
        %v3871 = vpop.f32.mrf.mxu0
        %v3872 = vadd.f32 0.0, %v3871
        %3873 = vmatmul.f32.gmra.mxu0 %v3714
        %v3874 = vpop.f32.mrf.mxu0
        %v3875 = vadd.f32 0.0, %v3874
        %3876 = vdwg.mxu0
        %3877 = vmatpush.msra.mxu0 0.0
        %3878 = vmatpush.msra.mxu0 0.0
        %3879 = vmatpush.msra.mxu0 0.0
        %3880 = vmatpush.msra.mxu0 0.0
        %3881 = vmatpush.msra.mxu0 0.0
        %3882 = vmatpush.msra.mxu0 0.0
        %3883 = vmatpush.msra.mxu0 0.0
        %3884 = vmatpush.msra.mxu0 0.0
        %3885 = vmatpush.msra.mxu0 0.0
        %3886 = vmatpush.msra.mxu0 0.0
        %3887 = vmatpush.msra.mxu0 %v3673
        %3888 = vmatpush.msra.mxu0 %v3671
        %3889 = vmatpush.msra.mxu0 %v3669
        %3890 = vmatpush.msra.mxu0 %v3661
        %3891 = vmatpush.msra.mxu0 %v3653
        %3892 = vmatpush.msra.mxu0 %v3645
        %3893 = vmatmul.f32.gmra.mxu0 %v3711
        %v3894 = vpop.f32.mrf.mxu0
        %v3895 = vadd.f32 0.0, %v3894
        %3896 = vmatmul.f32.gmra.mxu0 %v3714
        %v3897 = vpop.f32.mrf.mxu0
        %v3898 = vadd.f32 0.0, %v3897
        %3899 = vdwg.mxu0
        %v3900 = vadd.f32 %v3265, %v3734
        %v3901 = vadd.f32 %v3288, %v3757
        %v3902 = vadd.f32 %v3311, %v3780
        %v3903 = vadd.f32 %v3334, %v3803
        %v3904 = vadd.f32 %v3357, %v3826
        %v3905 = vadd.f32 %v3380, %v3849
        %v3906 = vadd.f32 %v3403, %v3872
        %v3907 = vadd.f32 %v3426, %v3895
        %v3908 = vadd.f32 %v3268, %v3737
        %v3909 = vadd.f32 %v3291, %v3760
        %v3910 = vadd.f32 %v3314, %v3783
        %v3911 = vadd.f32 %v3337, %v3806
        %v3912 = vadd.f32 %v3360, %v3829
        %v3913 = vadd.f32 %v3383, %v3852
        %v3914 = vadd.f32 %v3406, %v3875
        %v3915 = vadd.f32 %v3429, %v3898
        %v3916 = vld [vmem:[%s11] sm:$0xff]
        %v3917 = vld [vmem:[%s11 + $0x8] sm:$0x3]
        %3919 = vset.pattern.permute.xlu0 0
        %3920 = vperm.xlu0 %3919, %v3916
        %v3921 = vpop.permute.xlu0 %3920
        %3924 = vset.pattern.permute.xlu0 0
        %3925 = vperm.xlu0 %3924, %v3917
        %v3926 = vpop.permute.xlu0 %3925
        %v3928 = vadd.f32 %v3900, %v3921
        %v3929 = vadd.f32 %v3901, %v3921
        %v3930 = vadd.f32 %v3902, %v3921
        %v3931 = vadd.f32 %v3903, %v3921
        %v3932 = vadd.f32 %v3904, %v3921
        %v3933 = vadd.f32 %v3905, %v3921
        %v3934 = vadd.f32 %v3906, %v3921
        %v3935 = vadd.f32 %v3907, %v3921
        %v3936 = vadd.f32 %v3908, %v3926
        %v3937 = vadd.f32 %v3909, %v3926
        %v3938 = vadd.f32 %v3910, %v3926
        %v3939 = vadd.f32 %v3911, %v3926
        %v3940 = vadd.f32 %v3912, %v3926
        %v3941 = vadd.f32 %v3913, %v3926
        %v3942 = vadd.f32 %v3914, %v3926
        %v3943 = vadd.f32 %v3915, %v3926
        %v3944 = vxor.u32 %v3928, 2147483648
        %v3945 = vxor.u32 %v3929, 2147483648
        %v3946 = vxor.u32 %v3930, 2147483648
        %v3947 = vxor.u32 %v3931, 2147483648
        %v3948 = vxor.u32 %v3932, 2147483648
        %v3949 = vxor.u32 %v3933, 2147483648
        %v3950 = vxor.u32 %v3934, 2147483648
        %v3951 = vxor.u32 %v3935, 2147483648
        %v3952 = vxor.u32 %v3936, 2147483648
        %v3953 = vxor.u32 %v3937, 2147483648
        %v3954 = vxor.u32 %v3938, 2147483648
        %v3955 = vxor.u32 %v3939, 2147483648
        %v3956 = vxor.u32 %v3940, 2147483648
        %v3957 = vxor.u32 %v3941, 2147483648
        %v3958 = vxor.u32 %v3942, 2147483648
        %v3959 = vxor.u32 %v3943, 2147483648
        %v3960 = vmul.f32 %v3944, 1.442695
        %v3961 = vpow.pop %v3960
        %v3962 = vmul.f32 %v3945, 1.442695
        %v3963 = vpow.pop %v3962
        %v3964 = vmul.f32 %v3946, 1.442695
        %v3965 = vpow.pop %v3964
        %v3966 = vmul.f32 %v3947, 1.442695
        %v3967 = vpow.pop %v3966
        %v3968 = vmul.f32 %v3948, 1.442695
        %v3969 = vpow.pop %v3968
        %v3970 = vmul.f32 %v3949, 1.442695
        %v3971 = vpow.pop %v3970
        %v3972 = vmul.f32 %v3950, 1.442695
        %v3973 = vpow.pop %v3972
        %v3974 = vmul.f32 %v3951, 1.442695
        %v3975 = vpow.pop %v3974
        %v3976 = vmul.f32 %v3952, 1.442695
        %v3977 = vpow.pop %v3976
        %v3978 = vmul.f32 %v3953, 1.442695
        %v3979 = vpow.pop %v3978
        %v3980 = vmul.f32 %v3954, 1.442695
        %v3981 = vpow.pop %v3980
        %v3982 = vmul.f32 %v3955, 1.442695
        %v3983 = vpow.pop %v3982
        %v3984 = vmul.f32 %v3956, 1.442695
        %v3985 = vpow.pop %v3984
        %v3986 = vmul.f32 %v3957, 1.442695
        %v3987 = vpow.pop %v3986
        %v3988 = vmul.f32 %v3958, 1.442695
        %v3989 = vpow.pop %v3988
        %v3990 = vmul.f32 %v3959, 1.442695
        %v3991 = vpow.pop %v3990
        %v3992 = vadd.f32 %v3961, 1.0
        %v3993 = vadd.f32 %v3963, 1.0
        %v3994 = vadd.f32 %v3965, 1.0
        %v3995 = vadd.f32 %v3967, 1.0
        %v3996 = vadd.f32 %v3969, 1.0
        %v3997 = vadd.f32 %v3971, 1.0
        %v3998 = vadd.f32 %v3973, 1.0
        %v3999 = vadd.f32 %v3975, 1.0
        %v4000 = vadd.f32 %v3977, 1.0
        %v4001 = vadd.f32 %v3979, 1.0
        %v4002 = vadd.f32 %v3981, 1.0
        %v4003 = vadd.f32 %v3983, 1.0
        %v4004 = vadd.f32 %v3985, 1.0
        %v4005 = vadd.f32 %v3987, 1.0
        %v4006 = vadd.f32 %v3989, 1.0
        %v4007 = vadd.f32 %v3991, 1.0
        %v4008 = vrcp.pop %v3992
        %v4009 = vmul.f32 %v3992, %v4008
        %v4010 = vsub.f32 1.0, %v4009
        %v4011 = vmul.f32 %v4008, %v4010
        %v4012 = vadd.f32 %v4008, %v4011
        %vm4013 = vweird.f32 %v3992
        %vm4014 = vweird.f32 %v4008
        %vm4015 = vmor %vm4013, %vm4014
        %v4016 = vsel %vm4015, %v4008, %v4012
        %v4017 = vand.u32 2147483647, %v3992
        %vm4018 = vcmp.eq.f32.partialorder %v4017, 8.507059e+37
        %v4019 = vand.u32 %v3992, 2147483648
        %v4020 = vor.u32 1.1754944e-38, %v4019
        %v4021 = vsel %vm4018, %v4020, %v4016
        %v4022 = vmul.f32 1.0, %v4021
        %v4023 = vrcp.pop %v3993
        %v4024 = vmul.f32 %v3993, %v4023
        %v4025 = vsub.f32 1.0, %v4024
        %v4026 = vmul.f32 %v4023, %v4025
        %v4027 = vadd.f32 %v4023, %v4026
        %vm4028 = vweird.f32 %v3993
        %vm4029 = vweird.f32 %v4023
        %vm4030 = vmor %vm4028, %vm4029
        %v4031 = vsel %vm4030, %v4023, %v4027
        %v4032 = vand.u32 2147483647, %v3993
        %vm4033 = vcmp.eq.f32.partialorder %v4032, 8.507059e+37
        %v4034 = vand.u32 %v3993, 2147483648
        %v4035 = vor.u32 1.1754944e-38, %v4034
        %v4036 = vsel %vm4033, %v4035, %v4031
        %v4037 = vmul.f32 1.0, %v4036
        %v4038 = vrcp.pop %v3994
        %v4039 = vmul.f32 %v3994, %v4038
        %v4040 = vsub.f32 1.0, %v4039
        %v4041 = vmul.f32 %v4038, %v4040
        %v4042 = vadd.f32 %v4038, %v4041
        %vm4043 = vweird.f32 %v3994
        %vm4044 = vweird.f32 %v4038
        %vm4045 = vmor %vm4043, %vm4044
        %v4046 = vsel %vm4045, %v4038, %v4042
        %v4047 = vand.u32 2147483647, %v3994
        %vm4048 = vcmp.eq.f32.partialorder %v4047, 8.507059e+37
        %v4049 = vand.u32 %v3994, 2147483648
        %v4050 = vor.u32 1.1754944e-38, %v4049
        %v4051 = vsel %vm4048, %v4050, %v4046
        %v4052 = vmul.f32 1.0, %v4051
        %v4053 = vrcp.pop %v3995
        %v4054 = vmul.f32 %v3995, %v4053
        %v4055 = vsub.f32 1.0, %v4054
        %v4056 = vmul.f32 %v4053, %v4055
        %v4057 = vadd.f32 %v4053, %v4056
        %vm4058 = vweird.f32 %v3995
        %vm4059 = vweird.f32 %v4053
        %vm4060 = vmor %vm4058, %vm4059
        %v4061 = vsel %vm4060, %v4053, %v4057
        %v4062 = vand.u32 2147483647, %v3995
        %vm4063 = vcmp.eq.f32.partialorder %v4062, 8.507059e+37
        %v4064 = vand.u32 %v3995, 2147483648
        %v4065 = vor.u32 1.1754944e-38, %v4064
        %v4066 = vsel %vm4063, %v4065, %v4061
        %v4067 = vmul.f32 1.0, %v4066
        %v4068 = vrcp.pop %v3996
        %v4069 = vmul.f32 %v3996, %v4068
        %v4070 = vsub.f32 1.0, %v4069
        %v4071 = vmul.f32 %v4068, %v4070
        %v4072 = vadd.f32 %v4068, %v4071
        %vm4073 = vweird.f32 %v3996
        %vm4074 = vweird.f32 %v4068
        %vm4075 = vmor %vm4073, %vm4074
        %v4076 = vsel %vm4075, %v4068, %v4072
        %v4077 = vand.u32 2147483647, %v3996
        %vm4078 = vcmp.eq.f32.partialorder %v4077, 8.507059e+37
        %v4079 = vand.u32 %v3996, 2147483648
        %v4080 = vor.u32 1.1754944e-38, %v4079
        %v4081 = vsel %vm4078, %v4080, %v4076
        %v4082 = vmul.f32 1.0, %v4081
        %v4083 = vrcp.pop %v3997
        %v4084 = vmul.f32 %v3997, %v4083
        %v4085 = vsub.f32 1.0, %v4084
        %v4086 = vmul.f32 %v4083, %v4085
        %v4087 = vadd.f32 %v4083, %v4086
        %vm4088 = vweird.f32 %v3997
        %vm4089 = vweird.f32 %v4083
        %vm4090 = vmor %vm4088, %vm4089
        %v4091 = vsel %vm4090, %v4083, %v4087
        %v4092 = vand.u32 2147483647, %v3997
        %vm4093 = vcmp.eq.f32.partialorder %v4092, 8.507059e+37
        %v4094 = vand.u32 %v3997, 2147483648
        %v4095 = vor.u32 1.1754944e-38, %v4094
        %v4096 = vsel %vm4093, %v4095, %v4091
        %v4097 = vmul.f32 1.0, %v4096
        %v4098 = vrcp.pop %v3998
        %v4099 = vmul.f32 %v3998, %v4098
        %v4100 = vsub.f32 1.0, %v4099
        %v4101 = vmul.f32 %v4098, %v4100
        %v4102 = vadd.f32 %v4098, %v4101
        %vm4103 = vweird.f32 %v3998
        %vm4104 = vweird.f32 %v4098
        %vm4105 = vmor %vm4103, %vm4104
        %v4106 = vsel %vm4105, %v4098, %v4102
        %v4107 = vand.u32 2147483647, %v3998
        %vm4108 = vcmp.eq.f32.partialorder %v4107, 8.507059e+37
        %v4109 = vand.u32 %v3998, 2147483648
        %v4110 = vor.u32 1.1754944e-38, %v4109
        %v4111 = vsel %vm4108, %v4110, %v4106
        %v4112 = vmul.f32 1.0, %v4111
        %v4113 = vrcp.pop %v3999
        %v4114 = vmul.f32 %v3999, %v4113
        %v4115 = vsub.f32 1.0, %v4114
        %v4116 = vmul.f32 %v4113, %v4115
        %v4117 = vadd.f32 %v4113, %v4116
        %vm4118 = vweird.f32 %v3999
        %vm4119 = vweird.f32 %v4113
        %vm4120 = vmor %vm4118, %vm4119
        %v4121 = vsel %vm4120, %v4113, %v4117
        %v4122 = vand.u32 2147483647, %v3999
        %vm4123 = vcmp.eq.f32.partialorder %v4122, 8.507059e+37
        %v4124 = vand.u32 %v3999, 2147483648
        %v4125 = vor.u32 1.1754944e-38, %v4124
        %v4126 = vsel %vm4123, %v4125, %v4121
        %v4127 = vmul.f32 1.0, %v4126
        %v4128 = vrcp.pop %v4000
        %v4129 = vmul.f32 %v4000, %v4128
        %v4130 = vsub.f32 1.0, %v4129
        %v4131 = vmul.f32 %v4128, %v4130
        %v4132 = vadd.f32 %v4128, %v4131
        %vm4133 = vweird.f32 %v4000
        %vm4134 = vweird.f32 %v4128
        %vm4135 = vmor %vm4133, %vm4134
        %v4136 = vsel %vm4135, %v4128, %v4132
        %v4137 = vand.u32 2147483647, %v4000
        %vm4138 = vcmp.eq.f32.partialorder %v4137, 8.507059e+37
        %v4139 = vand.u32 %v4000, 2147483648
        %v4140 = vor.u32 1.1754944e-38, %v4139
        %v4141 = vsel %vm4138, %v4140, %v4136
        %v4142 = vmul.f32 1.0, %v4141
        %v4143 = vrcp.pop %v4001
        %v4144 = vmul.f32 %v4001, %v4143
        %v4145 = vsub.f32 1.0, %v4144
        %v4146 = vmul.f32 %v4143, %v4145
        %v4147 = vadd.f32 %v4143, %v4146
        %vm4148 = vweird.f32 %v4001
        %vm4149 = vweird.f32 %v4143
        %vm4150 = vmor %vm4148, %vm4149
        %v4151 = vsel %vm4150, %v4143, %v4147
        %v4152 = vand.u32 2147483647, %v4001
        %vm4153 = vcmp.eq.f32.partialorder %v4152, 8.507059e+37
        %v4154 = vand.u32 %v4001, 2147483648
        %v4155 = vor.u32 1.1754944e-38, %v4154
        %v4156 = vsel %vm4153, %v4155, %v4151
        %v4157 = vmul.f32 1.0, %v4156
        %v4158 = vrcp.pop %v4002
        %v4159 = vmul.f32 %v4002, %v4158
        %v4160 = vsub.f32 1.0, %v4159
        %v4161 = vmul.f32 %v4158, %v4160
        %v4162 = vadd.f32 %v4158, %v4161
        %vm4163 = vweird.f32 %v4002
        %vm4164 = vweird.f32 %v4158
        %vm4165 = vmor %vm4163, %vm4164
        %v4166 = vsel %vm4165, %v4158, %v4162
        %v4167 = vand.u32 2147483647, %v4002
        %vm4168 = vcmp.eq.f32.partialorder %v4167, 8.507059e+37
        %v4169 = vand.u32 %v4002, 2147483648
        %v4170 = vor.u32 1.1754944e-38, %v4169
        %v4171 = vsel %vm4168, %v4170, %v4166
        %v4172 = vmul.f32 1.0, %v4171
        %v4173 = vrcp.pop %v4003
        %v4174 = vmul.f32 %v4003, %v4173
        %v4175 = vsub.f32 1.0, %v4174
        %v4176 = vmul.f32 %v4173, %v4175
        %v4177 = vadd.f32 %v4173, %v4176
        %vm4178 = vweird.f32 %v4003
        %vm4179 = vweird.f32 %v4173
        %vm4180 = vmor %vm4178, %vm4179
        %v4181 = vsel %vm4180, %v4173, %v4177
        %v4182 = vand.u32 2147483647, %v4003
        %vm4183 = vcmp.eq.f32.partialorder %v4182, 8.507059e+37
        %v4184 = vand.u32 %v4003, 2147483648
        %v4185 = vor.u32 1.1754944e-38, %v4184
        %v4186 = vsel %vm4183, %v4185, %v4181
        %v4187 = vmul.f32 1.0, %v4186
        %v4188 = vrcp.pop %v4004
        %v4189 = vmul.f32 %v4004, %v4188
        %v4190 = vsub.f32 1.0, %v4189
        %v4191 = vmul.f32 %v4188, %v4190
        %v4192 = vadd.f32 %v4188, %v4191
        %vm4193 = vweird.f32 %v4004
        %vm4194 = vweird.f32 %v4188
        %vm4195 = vmor %vm4193, %vm4194
        %v4196 = vsel %vm4195, %v4188, %v4192
        %v4197 = vand.u32 2147483647, %v4004
        %vm4198 = vcmp.eq.f32.partialorder %v4197, 8.507059e+37
        %v4199 = vand.u32 %v4004, 2147483648
        %v4200 = vor.u32 1.1754944e-38, %v4199
        %v4201 = vsel %vm4198, %v4200, %v4196
        %v4202 = vmul.f32 1.0, %v4201
        %v4203 = vrcp.pop %v4005
        %v4204 = vmul.f32 %v4005, %v4203
        %v4205 = vsub.f32 1.0, %v4204
        %v4206 = vmul.f32 %v4203, %v4205
        %v4207 = vadd.f32 %v4203, %v4206
        %vm4208 = vweird.f32 %v4005
        %vm4209 = vweird.f32 %v4203
        %vm4210 = vmor %vm4208, %vm4209
        %v4211 = vsel %vm4210, %v4203, %v4207
        %v4212 = vand.u32 2147483647, %v4005
        %vm4213 = vcmp.eq.f32.partialorder %v4212, 8.507059e+37
        %v4214 = vand.u32 %v4005, 2147483648
        %v4215 = vor.u32 1.1754944e-38, %v4214
        %v4216 = vsel %vm4213, %v4215, %v4211
        %v4217 = vmul.f32 1.0, %v4216
        %v4218 = vrcp.pop %v4006
        %v4219 = vmul.f32 %v4006, %v4218
        %v4220 = vsub.f32 1.0, %v4219
        %v4221 = vmul.f32 %v4218, %v4220
        %v4222 = vadd.f32 %v4218, %v4221
        %vm4223 = vweird.f32 %v4006
        %vm4224 = vweird.f32 %v4218
        %vm4225 = vmor %vm4223, %vm4224
        %v4226 = vsel %vm4225, %v4218, %v4222
        %v4227 = vand.u32 2147483647, %v4006
        %vm4228 = vcmp.eq.f32.partialorder %v4227, 8.507059e+37
        %v4229 = vand.u32 %v4006, 2147483648
        %v4230 = vor.u32 1.1754944e-38, %v4229
        %v4231 = vsel %vm4228, %v4230, %v4226
        %v4232 = vmul.f32 1.0, %v4231
        %v4233 = vrcp.pop %v4007
        %v4234 = vmul.f32 %v4007, %v4233
        %v4235 = vsub.f32 1.0, %v4234
        %v4236 = vmul.f32 %v4233, %v4235
        %v4237 = vadd.f32 %v4233, %v4236
        %vm4238 = vweird.f32 %v4007
        %vm4239 = vweird.f32 %v4233
        %vm4240 = vmor %vm4238, %vm4239
        %v4241 = vsel %vm4240, %v4233, %v4237
        %v4242 = vand.u32 2147483647, %v4007
        %vm4243 = vcmp.eq.f32.partialorder %v4242, 8.507059e+37
        %v4244 = vand.u32 %v4007, 2147483648
        %v4245 = vor.u32 1.1754944e-38, %v4244
        %v4246 = vsel %vm4243, %v4245, %v4241
        %v4247 = vmul.f32 1.0, %v4246
        %4248 = vst [vmem:[%s509] sm:$0xff] %v4022
        %4249 = vst [vmem:[%s509 + $0x8] sm:$0xff] %v4037
        %4250 = vst [vmem:[%s509 + $0x10] sm:$0xff] %v4052
        %4251 = vst [vmem:[%s509 + $0x18] sm:$0xff] %v4067
        %4252 = vst [vmem:[%s509 + $0x20] sm:$0xff] %v4082
        %4253 = vst [vmem:[%s509 + $0x28] sm:$0xff] %v4097
        %4254 = vst [vmem:[%s509 + $0x30] sm:$0xff] %v4112
        %4255 = vst [vmem:[%s509 + $0x38] sm:$0xff] %v4127
        %4256 = vst [vmem:[%s509 + $0x40] sm:$0x3] %v4142
        %4257 = vst [vmem:[%s509 + $0x48] sm:$0x3] %v4157
        %4258 = vst [vmem:[%s509 + $0x50] sm:$0x3] %v4172
        %4259 = vst [vmem:[%s509 + $0x58] sm:$0x3] %v4187
        %4260 = vst [vmem:[%s509 + $0x60] sm:$0x3] %v4202
        %4261 = vst [vmem:[%s509 + $0x68] sm:$0x3] %v4217
        %4262 = vst [vmem:[%s509 + $0x70] sm:$0x3] %v4232
        %4263 = vst [vmem:[%s509 + $0x78] sm:$0x3] %v4247
        %s4264 = sand.u32 %s330, 1
        %s4265 = sand.u32 %s330, 1
        %s4266 = smul.addr %s4265, 128
        %s4267 = scalar_lea.vmem [#allocation3], %s4266
        // Predicated region
        $region69: #{tpu_custom_call.1} parent=67 // pred_check
          %p4268 = pneg %p340
        $region70: #{tpu_custom_call.1} parent=67 // pred_check_branch
          %4270 = sbr.rel (%p4268) target = $region72
        $region71: #{tpu_custom_call.1} parent=67 // pred_region
          %s4271 = smul.u32 8, %s28
          %s4272 = smul.addr %s27, 64
          %s4273 = sadd.s32 %s4271, %s4272
          %s4274 = smul.addr %s4273, 8
          %s4275 = scalar_lea.vmem %s12, %s4274
          // Predicated region
          $region73: #{tpu_custom_call.1} parent=71 // pred_check
            _
          $region74: #{tpu_custom_call.1} parent=71 // pred_check_branch
            %4277 = sbr.rel (0) target = $region76
          $region75: #{tpu_custom_call.1} parent=71 // pred_region
            // Predicated region
            $region77: #{tpu_custom_call.1} parent=75 // pred_check
              _
            $region78: #{tpu_custom_call.1} parent=75 // pred_check_branch
              %4279 = sbr.rel (0) target = $region80
            $region79: #{tpu_custom_call.1} parent=75 // pred_region
              loop: start=0, step=1, limit=1
              $region81: #{tpu_custom_call.1} parent=79 // loop_pre_header
                _
              $region82: #{tpu_custom_call.1} parent=79 // loop_header
                %s4281 = sphi 0, %s4285
                %p4282 = scmp.ge.s32.totalorder %s4281, 1
                %s4286 = sphi %s4267, %s4267
                %s4287 = sphi %s4275, %s4275
              $region83: #{tpu_custom_call.1} parent=79 // loop_header_branch
                %4284 = sbr.rel (%p4282) target = $region87
              $region84: #{tpu_custom_call.1} parent=79 // loop_body
                %v4288 = vld [vmem:[%s4286] sm:$0xff]
                %4289 = vst [vmem:[%s4287] sm:$0xff] %v4288
                %v4290 = vld [vmem:[%s4286 + $0x8] sm:$0xff]
                %4291 = vst [vmem:[%s4287 + $0x8] sm:$0xff] %v4290
                %v4292 = vld [vmem:[%s4286 + $0x10] sm:$0xff]
                %4293 = vst [vmem:[%s4287 + $0x10] sm:$0xff] %v4292
                %v4294 = vld [vmem:[%s4286 + $0x18] sm:$0xff]
                %4295 = vst [vmem:[%s4287 + $0x18] sm:$0xff] %v4294
                %v4296 = vld [vmem:[%s4286 + $0x20] sm:$0xff]
                %4297 = vst [vmem:[%s4287 + $0x20] sm:$0xff] %v4296
                %v4298 = vld [vmem:[%s4286 + $0x28] sm:$0xff]
                %4299 = vst [vmem:[%s4287 + $0x28] sm:$0xff] %v4298
                %v4300 = vld [vmem:[%s4286 + $0x30] sm:$0xff]
                %4301 = vst [vmem:[%s4287 + $0x30] sm:$0xff] %v4300
                %v4302 = vld [vmem:[%s4286 + $0x38] sm:$0xff]
                %4303 = vst [vmem:[%s4287 + $0x38] sm:$0xff] %v4302
                %v4304 = vld [vmem:[%s4286 + $0x40] sm:$0xff]
                %4305 = vst [vmem:[%s4287 + $0x100] sm:$0xff] %v4304
                %v4306 = vld [vmem:[%s4286 + $0x48] sm:$0xff]
                %4307 = vst [vmem:[%s4287 + $0x108] sm:$0xff] %v4306
                %v4308 = vld [vmem:[%s4286 + $0x50] sm:$0xff]
                %4309 = vst [vmem:[%s4287 + $0x110] sm:$0xff] %v4308
                %v4310 = vld [vmem:[%s4286 + $0x58] sm:$0xff]
                %4311 = vst [vmem:[%s4287 + $0x118] sm:$0xff] %v4310
                %v4312 = vld [vmem:[%s4286 + $0x60] sm:$0xff]
                %4313 = vst [vmem:[%s4287 + $0x120] sm:$0xff] %v4312
                %v4314 = vld [vmem:[%s4286 + $0x68] sm:$0xff]
                %4315 = vst [vmem:[%s4287 + $0x128] sm:$0xff] %v4314
                %v4316 = vld [vmem:[%s4286 + $0x70] sm:$0xff]
                %4317 = vst [vmem:[%s4287 + $0x130] sm:$0xff] %v4316
                %v4318 = vld [vmem:[%s4286 + $0x78] sm:$0xff]
                %4319 = vst [vmem:[%s4287 + $0x138] sm:$0xff] %v4318
              $region85: #{tpu_custom_call.1} parent=79 // loop_footer
                %s4285 = sadd.s32 1, %s4281
              $region86: #{tpu_custom_call.1} parent=79 // loop_footer_branch
                %4280 = sbr.rel target = $region82
              $region87: #{tpu_custom_call.1} parent=79 // loop_exit
                _
            $region80: #{tpu_custom_call.1} parent=75 // pred_fallthru
              _
            // Predicated region
            $region88: #{tpu_custom_call.1} parent=75 // pred_check
              _
            $region89: #{tpu_custom_call.1} parent=75 // pred_check_branch
              %4321 = sbr.rel target = $region91
            $region90: #{tpu_custom_call.1} parent=75 // pred_region
              _
            $region91: #{tpu_custom_call.1} parent=75 // pred_fallthru
              _
          $region76: #{tpu_custom_call.1} parent=71 // pred_fallthru
            _
          %4322 = vnop
        $region72: #{tpu_custom_call.1} parent=67 // pred_fallthru
          _
      $region68: #{tpu_custom_call.1} parent=5 // pred_fallthru
        _
      %p4323 = scmp.le.s32.totalorder 2, %s18
      // Predicated region
      $region92: #{tpu_custom_call.1} parent=5 // pred_check
        %p4324 = pneg %p4323
      $region93: #{tpu_custom_call.1} parent=5 // pred_check_branch
        %4326 = sbr.rel (%p4324) target = $region95
      $region94: #{tpu_custom_call.1} parent=5 // pred_region
        %s4327 = ssub.s32 %s18, 2
        // Predicated region
        $region96: #{tpu_custom_call.1} parent=94 // pred_check
          %p4328 = pneg %p346
        $region97: #{tpu_custom_call.1} parent=94 // pred_check_branch
          %4330 = sbr.rel (%p4328) target = $region99
        $region98: #{tpu_custom_call.1} parent=94 // pred_region
          %s4331 = sand.u32 %s331, 1
          %s4332 = sand.u32 %s331, 1
          %s4333 = smul.addr %s4332, 128
          %s4334 = scalar_lea.vmem [#allocation3], %s4333
        $region99: #{tpu_custom_call.1} parent=94 // pred_fallthru
          _
      $region95: #{tpu_custom_call.1} parent=5 // pred_fallthru
        _
    $region6: #{tpu_custom_call.1} parent=1 // loop_footer
      %s22 = sadd.s32 1, %s18
    $region7: #{tpu_custom_call.1} parent=1 // loop_footer_branch
      %17 = sbr.rel target = $region3
    $region8: #{tpu_custom_call.1} parent=1 // loop_exit
      _

// kernel: tpu_custom_call.1
$region0: #{tpu_custom_call.1}
  #allocation0 [shape = 'u32[]', space=smem, size = 0x4, offset = 0x4, fixed_abs, tag = 'smem constant byte address 0x4 - core index']
  #allocation1 [shape = 'u32[72,128]{1,0:T(1,128)}', space=vmem, size = 0x9000, scoped, tag = 'internal scratch']
  #allocation2 [shape = 'f32[3,16,1280]{2,1,0:T(8,128)}', space=vmem, size = 0x3c000, scoped, tag = 'scratch operand']
  %s0 = inlined_call_operand.vmem [shape: f32[2,3,4096], index: 0, kind: input, shape index: {}]
  %s1 = inlined_call_operand.vmem [shape: f32[2,3,4096], index: 1, kind: input, shape index: {}]
  %s2 = inlined_call_operand.vmem [shape: f32[2,3,4096], index: 2, kind: input, shape index: {}]
  %s3 = inlined_call_operand.vmem [shape: f32[2,1024], index: 3, kind: input, shape index: {}]
  %s4 = inlined_call_operand.vmem [shape: f32[16,3], index: 4, kind: input, shape index: {}]
  %s5 = inlined_call_operand.vmem [shape: f32[16,1], index: 5, kind: input, shape index: {}]
  %s6 = inlined_call_operand.vmem [shape: f32[8,16], index: 6, kind: input, shape index: {}]
  %s7 = inlined_call_operand.vmem [shape: f32[8,1], index: 7, kind: input, shape index: {}]
  %s8 = inlined_call_operand.vmem [shape: f32[16,8], index: 8, kind: input, shape index: {}]
  %s9 = inlined_call_operand.vmem [shape: f32[16,1], index: 9, kind: input, shape index: {}]
  %s10 = inlined_call_operand.vmem [shape: f32[3,10,48], index: 10, kind: input, shape index: {}]
  %s11 = inlined_call_operand.vmem [shape: f32[10,1], index: 11, kind: input, shape index: {}]
  %s12 = inlined_call_operand.vmem [shape: f32[2,10,4096], index: 12, kind: output, shape index: {}]
  %s13 = sld [smem:[#allocation0]]
  $region100: #{tpu_custom_call.1} parent=0
    _
  %s15 = ssub.s32 1, %s13
  %s16 = scalar_select 0, %s15, %s13
  $region1: #{tpu_custom_call.1} parent=0
    #allocation3 [shape = 'u8[131072]{0}', space=vmem, size = 0x20000, scoped, tag = 'output window, operand 0']
    loop: start=0, step=1, limit=10
    $region2: #{tpu_custom_call.1} parent=1 // loop_pre_header
      _
    $region3: #{tpu_custom_call.1} parent=1 // loop_header
      %s18 = sphi 0, %s22
      %p19 = scmp.ge.s32.totalorder %s18, 10
      %s25 = sphi 0, %s37
      %s26 = sphi 0, %s33
      %s27 = sphi 0, %s25
      %s28 = sphi 0, %s26
      %s29 = sphi 0, %s27
      %s30 = sphi 0, %s28
      %s42 = sphi 0, %s44
      %s45 = sphi 0, %s42
      %s46 = sphi 0, %s45
      %s62 = sphi 0, %s46
      %s76 = sphi 0, %s78
      %s79 = sphi 0, %s76
      %s80 = sphi 0, %s79
      %s96 = sphi 0, %s80
      %s110 = sphi 0, %s112
      %s113 = sphi 0, %s110
      %s114 = sphi 0, %s113
      %s130 = sphi 0, %s114
      %s134 = sphi 0, %s134
      %s136 = sphi 0, %s134
      %s137 = sphi 0, %s136
      %s151 = sphi 0, %s137
      %s155 = sphi 0, %s155
      %s157 = sphi 0, %s155
      %s158 = sphi 0, %s157
      %s172 = sphi 0, %s158
      %s176 = sphi 0, %s176
      %s178 = sphi 0, %s176
      %s179 = sphi 0, %s178
      %s193 = sphi 0, %s179
      %s197 = sphi 0, %s197
      %s199 = sphi 0, %s197
      %s200 = sphi 0, %s199
      %s214 = sphi 0, %s200
      %s218 = sphi 0, %s218
      %s220 = sphi 0, %s218
      %s221 = sphi 0, %s220
      %s235 = sphi 0, %s221
      %s239 = sphi 0, %s239
      %s241 = sphi 0, %s239
      %s242 = sphi 0, %s241
      %s256 = sphi 0, %s242
      %s260 = sphi 0, %s260
      %s262 = sphi 0, %s260
      %s263 = sphi 0, %s262
      %s277 = sphi 0, %s263
      %s281 = sphi 0, %s281
      %s283 = sphi 0, %s281
      %s284 = sphi 0, %s283
      %s298 = sphi 0, %s284
      %s302 = sphi 0, %s302
      %s304 = sphi 0, %s302
      %s305 = sphi 0, %s304
      %s319 = sphi 0, %s305
      %s327 = sphi 0, %s329
      %s330 = sphi 0, %s327
      %s331 = sphi 0, %s330
      %s347 = sphi 0, %s331
    $region4: #{tpu_custom_call.1} parent=1 // loop_header_branch
      %21 = sbr.rel (%p19) target = $region8
    $region5: #{tpu_custom_call.1} parent=1 // loop_body
      %s23 = ssub.s32 %s18, 1
      %s24 = ssub.s32 %s18, 2
      %s31 = sadd.s32 1, %s26
      %p32 = scmp.ge.s32.totalorder %s31, 4
      %s33 = scalar_select %p32, 0, %s31
      %s34 = sadd.s32 1, %s25
      %s35 = scalar_select %p32, %s34, %s25
      %p36 = scmp.ge.s32.totalorder %s35, 2
      %s37 = scalar_select %p36, 0, %s35
      %s38 = ssub.s32 %s25, %s37
      %s39 = ssub.s32 %s26, %s33
      %s40 = sor.u32 %s38, %s39
      %p41 = scmp.eq.s32.totalorder %s40, 0
      %s43 = sadd.s32 %s42, 1
      %s44 = scalar_select %p41, %s42, %s43
      %p47 = pneg %p41
      %p48 = scmp.eq.s32.totalorder %s18, 7
      %p49 = por %p47, %p48
      %p50 = scmp.ne.s32.totalorder %s42, %s45
      %p51 = scmp.eq.s32.totalorder %s18, 0
      %p52 = por %p50, %p51
      %p53 = scmp.ne.s32.totalorder %s42, %s45
      %p54 = scmp.eq.s32.totalorder %s23, 7
      %p55 = por %p53, %p54
      %p56 = scmp.ne.s32.totalorder %s45, %s46
      %p57 = scmp.eq.s32.totalorder %s23, 0
      %p58 = por %p56, %p57
      %p59 = scmp.ne.s32.totalorder %s45, %s46
      %p60 = scmp.eq.s32.totalorder %s24, 7
      %p61 = por %p59, %p60
      %p63 = scmp.ne.s32.totalorder %s46, %s62
      %p64 = scmp.eq.s32.totalorder %s24, 0
      %p65 = por %p63, %p64
      %s66 = ssub.s32 %s26, 1
      %p67 = scmp.gt.s32.totalorder %s66, 0
      %s68 = scalar_select %p67, %s66, 0
      %s69 = ssub.s32 %s33, 1
      %p70 = scmp.gt.s32.totalorder %s69, 0
      %s71 = scalar_select %p70, %s69, 0
      %s72 = ssub.s32 %s25, %s37
      %s73 = ssub.s32 %s68, %s71
      %s74 = sor.u32 %s72, %s73
      %p75 = scmp.eq.s32.totalorder %s74, 0
      %s77 = sadd.s32 %s76, 1
      %s78 = scalar_select %p75, %s76, %s77
      %p81 = pneg %p75
      %p82 = scmp.eq.s32.totalorder %s18, 7
      %p83 = por %p81, %p82
      %p84 = scmp.ne.s32.totalorder %s76, %s79
      %p85 = scmp.eq.s32.totalorder %s18, 0
      %p86 = por %p84, %p85
      %p87 = scmp.ne.s32.totalorder %s76, %s79
      %p88 = scmp.eq.s32.totalorder %s23, 7
      %p89 = por %p87, %p88
      %p90 = scmp.ne.s32.totalorder %s79, %s80
      %p91 = scmp.eq.s32.totalorder %s23, 0
      %p92 = por %p90, %p91
      %p93 = scmp.ne.s32.totalorder %s79, %s80
      %p94 = scmp.eq.s32.totalorder %s24, 7
      %p95 = por %p93, %p94
      %p97 = scmp.ne.s32.totalorder %s80, %s96
      %p98 = scmp.eq.s32.totalorder %s24, 0
      %p99 = por %p97, %p98
      %s100 = sadd.s32 %s26, 1
      %p101 = scmp.lt.s32.totalorder %s100, 3
      %s102 = scalar_select %p101, %s100, 3
      %s103 = sadd.s32 %s33, 1
      %p104 = scmp.lt.s32.totalorder %s103, 3
      %s105 = scalar_select %p104, %s103, 3
      %s106 = ssub.s32 %s25, %s37
      %s107 = ssub.s32 %s102, %s105
      %s108 = sor.u32 %s106, %s107
      %p109 = scmp.eq.s32.totalorder %s108, 0
      %s111 = sadd.s32 %s110, 1
      %s112 = scalar_select %p109, %s110, %s111
      %p115 = pneg %p109
      %p116 = scmp.eq.s32.totalorder %s18, 7
      %p117 = por %p115, %p116
      %p118 = scmp.ne.s32.totalorder %s110, %s113
      %p119 = scmp.eq.s32.totalorder %s18, 0
      %p120 = por %p118, %p119
      %p121 = scmp.ne.s32.totalorder %s110, %s113
      %p122 = scmp.eq.s32.totalorder %s23, 7
      %p123 = por %p121, %p122
      %p124 = scmp.ne.s32.totalorder %s113, %s114
      %p125 = scmp.eq.s32.totalorder %s23, 0
      %p126 = por %p124, %p125
      %p127 = scmp.ne.s32.totalorder %s113, %s114
      %p128 = scmp.eq.s32.totalorder %s24, 7
      %p129 = por %p127, %p128
      %p131 = scmp.ne.s32.totalorder %s114, %s130
      %p132 = scmp.eq.s32.totalorder %s24, 0
      %p133 = por %p131, %p132
      %s135 = sadd.s32 %s134, 1
      %p138 = scmp.eq.s32.totalorder %s18, 7
      %p139 = scmp.ne.s32.totalorder %s134, %s136
      %p140 = scmp.eq.s32.totalorder %s18, 0
      %p141 = por %p139, %p140
      %p142 = scmp.ne.s32.totalorder %s134, %s136
      %p143 = scmp.eq.s32.totalorder %s23, 7
      %p144 = por %p142, %p143
      %p145 = scmp.ne.s32.totalorder %s136, %s137
      %p146 = scmp.eq.s32.totalorder %s23, 0
      %p147 = por %p145, %p146
      %p148 = scmp.ne.s32.totalorder %s136, %s137
      %p149 = scmp.eq.s32.totalorder %s24, 7
      %p150 = por %p148, %p149
      %p152 = scmp.ne.s32.totalorder %s137, %s151
      %p153 = scmp.eq.s32.totalorder %s24, 0
      %p154 = por %p152, %p153
      %s156 = sadd.s32 %s155, 1
      %p159 = scmp.eq.s32.totalorder %s18, 7
      %p160 = scmp.ne.s32.totalorder %s155, %s157
      %p161 = scmp.eq.s32.totalorder %s18, 0
      %p162 = por %p160, %p161
      %p163 = scmp.ne.s32.totalorder %s155, %s157
      %p164 = scmp.eq.s32.totalorder %s23, 7
      %p165 = por %p163, %p164
      %p166 = scmp.ne.s32.totalorder %s157, %s158
      %p167 = scmp.eq.s32.totalorder %s23, 0
      %p168 = por %p166, %p167
      %p169 = scmp.ne.s32.totalorder %s157, %s158
      %p170 = scmp.eq.s32.totalorder %s24, 7
      %p171 = por %p169, %p170
      %p173 = scmp.ne.s32.totalorder %s158, %s172
      %p174 = scmp.eq.s32.totalorder %s24, 0
      %p175 = por %p173, %p174
      %s177 = sadd.s32 %s176, 1
      %p180 = scmp.eq.s32.totalorder %s18, 7
      %p181 = scmp.ne.s32.totalorder %s176, %s178
      %p182 = scmp.eq.s32.totalorder %s18, 0
      %p183 = por %p181, %p182
      %p184 = scmp.ne.s32.totalorder %s176, %s178
      %p185 = scmp.eq.s32.totalorder %s23, 7
      %p186 = por %p184, %p185
      %p187 = scmp.ne.s32.totalorder %s178, %s179
      %p188 = scmp.eq.s32.totalorder %s23, 0
      %p189 = por %p187, %p188
      %p190 = scmp.ne.s32.totalorder %s178, %s179
      %p191 = scmp.eq.s32.totalorder %s24, 7
      %p192 = por %p190, %p191
      %p194 = scmp.ne.s32.totalorder %s179, %s193
      %p195 = scmp.eq.s32.totalorder %s24, 0
      %p196 = por %p194, %p195
      %s198 = sadd.s32 %s197, 1
      %p201 = scmp.eq.s32.totalorder %s18, 7
      %p202 = scmp.ne.s32.totalorder %s197, %s199
      %p203 = scmp.eq.s32.totalorder %s18, 0
      %p204 = por %p202, %p203
      %p205 = scmp.ne.s32.totalorder %s197, %s199
      %p206 = scmp.eq.s32.totalorder %s23, 7
      %p207 = por %p205, %p206
      %p208 = scmp.ne.s32.totalorder %s199, %s200
      %p209 = scmp.eq.s32.totalorder %s23, 0
      %p210 = por %p208, %p209
      %p211 = scmp.ne.s32.totalorder %s199, %s200
      %p212 = scmp.eq.s32.totalorder %s24, 7
      %p213 = por %p211, %p212
      %p215 = scmp.ne.s32.totalorder %s200, %s214
      %p216 = scmp.eq.s32.totalorder %s24, 0
      %p217 = por %p215, %p216
      %s219 = sadd.s32 %s218, 1
      %p222 = scmp.eq.s32.totalorder %s18, 7
      %p223 = scmp.ne.s32.totalorder %s218, %s220
      %p224 = scmp.eq.s32.totalorder %s18, 0
      %p225 = por %p223, %p224
      %p226 = scmp.ne.s32.totalorder %s218, %s220
      %p227 = scmp.eq.s32.totalorder %s23, 7
      %p228 = por %p226, %p227
      %p229 = scmp.ne.s32.totalorder %s220, %s221
      %p230 = scmp.eq.s32.totalorder %s23, 0
      %p231 = por %p229, %p230
      %p232 = scmp.ne.s32.totalorder %s220, %s221
      %p233 = scmp.eq.s32.totalorder %s24, 7
      %p234 = por %p232, %p233
      %p236 = scmp.ne.s32.totalorder %s221, %s235
      %p237 = scmp.eq.s32.totalorder %s24, 0
      %p238 = por %p236, %p237
      %s240 = sadd.s32 %s239, 1
      %p243 = scmp.eq.s32.totalorder %s18, 7
      %p244 = scmp.ne.s32.totalorder %s239, %s241
      %p245 = scmp.eq.s32.totalorder %s18, 0
      %p246 = por %p244, %p245
      %p247 = scmp.ne.s32.totalorder %s239, %s241
      %p248 = scmp.eq.s32.totalorder %s23, 7
      %p249 = por %p247, %p248
      %p250 = scmp.ne.s32.totalorder %s241, %s242
      %p251 = scmp.eq.s32.totalorder %s23, 0
      %p252 = por %p250, %p251
      %p253 = scmp.ne.s32.totalorder %s241, %s242
      %p254 = scmp.eq.s32.totalorder %s24, 7
      %p255 = por %p253, %p254
      %p257 = scmp.ne.s32.totalorder %s242, %s256
      %p258 = scmp.eq.s32.totalorder %s24, 0
      %p259 = por %p257, %p258
      %s261 = sadd.s32 %s260, 1
      %p264 = scmp.eq.s32.totalorder %s18, 7
      %p265 = scmp.ne.s32.totalorder %s260, %s262
      %p266 = scmp.eq.s32.totalorder %s18, 0
      %p267 = por %p265, %p266
      %p268 = scmp.ne.s32.totalorder %s260, %s262
      %p269 = scmp.eq.s32.totalorder %s23, 7
      %p270 = por %p268, %p269
      %p271 = scmp.ne.s32.totalorder %s262, %s263
      %p272 = scmp.eq.s32.totalorder %s23, 0
      %p273 = por %p271, %p272
      %p274 = scmp.ne.s32.totalorder %s262, %s263
      %p275 = scmp.eq.s32.totalorder %s24, 7
      %p276 = por %p274, %p275
      %p278 = scmp.ne.s32.totalorder %s263, %s277
      %p279 = scmp.eq.s32.totalorder %s24, 0
      %p280 = por %p278, %p279
      %s282 = sadd.s32 %s281, 1
      %p285 = scmp.eq.s32.totalorder %s18, 7
      %p286 = scmp.ne.s32.totalorder %s281, %s283
      %p287 = scmp.eq.s32.totalorder %s18, 0
      %p288 = por %p286, %p287
      %p289 = scmp.ne.s32.totalorder %s281, %s283
      %p290 = scmp.eq.s32.totalorder %s23, 7
      %p291 = por %p289, %p290
      %p292 = scmp.ne.s32.totalorder %s283, %s284
      %p293 = scmp.eq.s32.totalorder %s23, 0
      %p294 = por %p292, %p293
      %p295 = scmp.ne.s32.totalorder %s283, %s284
      %p296 = scmp.eq.s32.totalorder %s24, 7
      %p297 = por %p295, %p296
      %p299 = scmp.ne.s32.totalorder %s284, %s298
      %p300 = scmp.eq.s32.totalorder %s24, 0
      %p301 = por %p299, %p300
      %s303 = sadd.s32 %s302, 1
      %p306 = scmp.eq.s32.totalorder %s18, 7
      %p307 = scmp.ne.s32.totalorder %s302, %s304
      %p308 = scmp.eq.s32.totalorder %s18, 0
      %p309 = por %p307, %p308
      %p310 = scmp.ne.s32.totalorder %s302, %s304
      %p311 = scmp.eq.s32.totalorder %s23, 7
      %p312 = por %p310, %p311
      %p313 = scmp.ne.s32.totalorder %s304, %s305
      %p314 = scmp.eq.s32.totalorder %s23, 0
      %p315 = por %p313, %p314
      %p316 = scmp.ne.s32.totalorder %s304, %s305
      %p317 = scmp.eq.s32.totalorder %s24, 7
      %p318 = por %p316, %p317
      %p320 = scmp.ne.s32.totalorder %s305, %s319
      %p321 = scmp.eq.s32.totalorder %s24, 0
      %p322 = por %p320, %p321
      %s323 = ssub.s32 %s25, %s37
      %s324 = ssub.s32 %s26, %s33
      %s325 = sor.u32 %s323, %s324
      %p326 = scmp.eq.s32.totalorder %s325, 0
      %s328 = sadd.s32 %s327, 1
      %s329 = scalar_select %p326, %s327, %s328
      %p332 = pneg %p326
      %p333 = scmp.eq.s32.totalorder %s18, 7
      %p334 = por %p332, %p333
      %p335 = scmp.ne.s32.totalorder %s327, %s330
      %p336 = scmp.eq.s32.totalorder %s18, 0
      %p337 = por %p335, %p336
      %p338 = scmp.ne.s32.totalorder %s327, %s330
      %p339 = scmp.eq.s32.totalorder %s23, 7
      %p340 = por %p338, %p339
      %p341 = scmp.ne.s32.totalorder %s330, %s331
      %p342 = scmp.eq.s32.totalorder %s23, 0
      %p343 = por %p341, %p342
      %p344 = scmp.ne.s32.totalorder %s330, %s331
      %p345 = scmp.eq.s32.totalorder %s24, 7
      %p346 = por %p344, %p345
      %p348 = scmp.ne.s32.totalorder %s331, %s347
      %p349 = scmp.eq.s32.totalorder %s24, 0
      %p350 = por %p348, %p349
      %p351 = scmp.le.s32.totalorder 1, %s18
      %p352 = scmp.lt.s32.totalorder %s18, 9
      %p353 = pnand %p351, %p352
      %p354 = pneg %p353
      // Predicated region
      $region9: #{tpu_custom_call.1} parent=5 // pred_check
        _
      $region10: #{tpu_custom_call.1} parent=5 // pred_check_branch
        %356 = sbr.rel (%p353) target = $region12
      $region11: #{tpu_custom_call.1} parent=5 // pred_region
        %s357 = ssub.s32 %s18, 1
        // Predicated region
        $region13: #{tpu_custom_call.1} parent=11 // pred_check
          %p358 = pneg %p147
        $region14: #{tpu_custom_call.1} parent=11 // pred_check_branch
          %360 = sbr.rel (%p358) target = $region16
        $region15: #{tpu_custom_call.1} parent=11 // pred_region
          _
        $region16: #{tpu_custom_call.1} parent=11 // pred_fallthru
          _
        // Predicated region
        $region17: #{tpu_custom_call.1} parent=11 // pred_check
          %p361 = pneg %p168
        $region18: #{tpu_custom_call.1} parent=11 // pred_check_branch
          %363 = sbr.rel (%p361) target = $region20
        $region19: #{tpu_custom_call.1} parent=11 // pred_region
          _
        $region20: #{tpu_custom_call.1} parent=11 // pred_fallthru
          _
        // Predicated region
        $region21: #{tpu_custom_call.1} parent=11 // pred_check
          %p364 = pneg %p189
        $region22: #{tpu_custom_call.1} parent=11 // pred_check_branch
          %366 = sbr.rel (%p364) target = $region24
        $region23: #{tpu_custom_call.1} parent=11 // pred_region
          _
        $region24: #{tpu_custom_call.1} parent=11 // pred_fallthru
          _
        // Predicated region
        $region25: #{tpu_custom_call.1} parent=11 // pred_check
          %p367 = pneg %p210
        $region26: #{tpu_custom_call.1} parent=11 // pred_check_branch
          %369 = sbr.rel (%p367) target = $region28
        $region27: #{tpu_custom_call.1} parent=11 // pred_region
          _
        $region28: #{tpu_custom_call.1} parent=11 // pred_fallthru
          _
        // Predicated region
        $region29: #{tpu_custom_call.1} parent=11 // pred_check
          %p370 = pneg %p231
        $region30: #{tpu_custom_call.1} parent=11 // pred_check_branch
          %372 = sbr.rel (%p370) target = $region32
        $region31: #{tpu_custom_call.1} parent=11 // pred_region
          _
        $region32: #{tpu_custom_call.1} parent=11 // pred_fallthru
          _
        // Predicated region
        $region33: #{tpu_custom_call.1} parent=11 // pred_check
          %p373 = pneg %p252
        $region34: #{tpu_custom_call.1} parent=11 // pred_check_branch
          %375 = sbr.rel (%p373) target = $region36
        $region35: #{tpu_custom_call.1} parent=11 // pred_region
          _
        $region36: #{tpu_custom_call.1} parent=11 // pred_fallthru
          _
        // Predicated region
        $region37: #{tpu_custom_call.1} parent=11 // pred_check
          %p376 = pneg %p273
        $region38: #{tpu_custom_call.1} parent=11 // pred_check_branch
          %378 = sbr.rel (%p376) target = $region40
        $region39: #{tpu_custom_call.1} parent=11 // pred_region
          _
        $region40: #{tpu_custom_call.1} parent=11 // pred_fallthru
          _
        // Predicated region
        $region41: #{tpu_custom_call.1} parent=11 // pred_check
          %p379 = pneg %p294
        $region42: #{tpu_custom_call.1} parent=11 // pred_check_branch
          %381 = sbr.rel (%p379) target = $region44
        $region43: #{tpu_custom_call.1} parent=11 // pred_region
          _
        $region44: #{tpu_custom_call.1} parent=11 // pred_fallthru
          _
        // Predicated region
        $region45: #{tpu_custom_call.1} parent=11 // pred_check
          %p382 = pneg %p315
        $region46: #{tpu_custom_call.1} parent=11 // pred_check_branch
          %384 = sbr.rel (%p382) target = $region48
        $region47: #{tpu_custom_call.1} parent=11 // pred_region
          _
        $region48: #{tpu_custom_call.1} parent=11 // pred_fallthru
          _
      $region12: #{tpu_custom_call.1} parent=5 // pred_fallthru
        _
      %p385 = scmp.lt.s32.totalorder %s18, 8
      // Predicated region
      $region49: #{tpu_custom_call.1} parent=5 // pred_check
        %p386 = pneg %p385
      $region50: #{tpu_custom_call.1} parent=5 // pred_check_branch
        %388 = sbr.rel (%p386) target = $region52
      $region51: #{tpu_custom_call.1} parent=5 // pred_region
        // Predicated region
        $region53: #{tpu_custom_call.1} parent=51 // pred_check
          %p389 = pneg %p52
        $region54: #{tpu_custom_call.1} parent=51 // pred_check_branch
          %391 = sbr.rel (%p389) target = $region56
        $region55: #{tpu_custom_call.1} parent=51 // pred_region
          %s392 = smul.u32 8, %s26
          %p393 = scmp.lt.s32.totalorder %s25, 1
          %s394 = scalar_select %p393, %s25, 1
          %p395 = scmp.lt.s32.totalorder %s392, 31
          %s396 = scalar_select %p395, %s392, 31
          %s397 = smul.addr %s394, 32
          %s398 = sadd.s32 %s396, %s397
          %s399 = smul.addr %s398, 4
          %s400 = scalar_lea.vmem %s0, %s399
          %s401 = smul.u32 8, %s26
        $region56: #{tpu_custom_call.1} parent=51 // pred_fallthru
          _
        // Predicated region
        $region57: #{tpu_custom_call.1} parent=51 // pred_check
          %p402 = pneg %p86
        $region58: #{tpu_custom_call.1} parent=51 // pred_check_branch
          %404 = sbr.rel (%p402) target = $region60
        $region59: #{tpu_custom_call.1} parent=51 // pred_region
          %s405 = ssub.s32 %s26, 1
          %p406 = scmp.gt.s32.totalorder %s405, 0
          %s407 = scalar_select %p406, %s405, 0
          %s408 = smul.u32 8, %s407
          %p409 = scmp.lt.s32.totalorder %s25, 1
          %s410 = scalar_select %p409, %s25, 1
          %p411 = scmp.lt.s32.totalorder %s408, 31
          %s412 = scalar_select %p411, %s408, 31
          %s413 = smul.addr %s410, 32
          %s414 = sadd.s32 %s412, %s413
          %s415 = smul.addr %s414, 4
          %s416 = scalar_lea.vmem %s1, %s415
          %s417 = ssub.s32 %s26, 1
          %p418 = scmp.gt.s32.totalorder %s417, 0
          %s419 = scalar_select %p418, %s417, 0
          %s420 = smul.u32 8, %s419
        $region60: #{tpu_custom_call.1} parent=51 // pred_fallthru
          _
        // Predicated region
        $region61: #{tpu_custom_call.1} parent=51 // pred_check
          %p421 = pneg %p120
        $region62: #{tpu_custom_call.1} parent=51 // pred_check_branch
          %423 = sbr.rel (%p421) target = $region64
        $region63: #{tpu_custom_call.1} parent=51 // pred_region
          %s424 = sadd.s32 %s26, 1
          %p425 = scmp.lt.s32.totalorder %s424, 3
          %s426 = scalar_select %p425, %s424, 3
          %s427 = smul.u32 8, %s426
          %p428 = scmp.lt.s32.totalorder %s25, 1
          %s429 = scalar_select %p428, %s25, 1
          %p430 = scmp.lt.s32.totalorder %s427, 31
          %s431 = scalar_select %p430, %s427, 31
          %s432 = smul.addr %s429, 32
          %s433 = sadd.s32 %s431, %s432
          %s434 = smul.addr %s433, 4
          %s435 = scalar_lea.vmem %s2, %s434
          %s436 = sadd.s32 %s26, 1
          %p437 = scmp.lt.s32.totalorder %s436, 3
          %s438 = scalar_select %p437, %s436, 3
          %s439 = smul.u32 8, %s438
        $region64: #{tpu_custom_call.1} parent=51 // pred_fallthru
          _
      $region52: #{tpu_custom_call.1} parent=5 // pred_fallthru
        _
      %p440 = scmp.le.s32.totalorder 1, %s18
      %p441 = scmp.lt.s32.totalorder %s18, 9
      %p442 = pnand %p440, %p441
      %p443 = pneg %p442
      // Predicated region
      $region65: #{tpu_custom_call.1} parent=5 // pred_check
        _
      $region66: #{tpu_custom_call.1} parent=5 // pred_check_branch
        %445 = sbr.rel (%p442) target = $region68
      $region67: #{tpu_custom_call.1} parent=5 // pred_region
        %s446 = ssub.s32 %s18, 1
        %s447 = smul.u32 8, %s28
        %p448 = scmp.lt.s32.totalorder %s27, 1
        %s449 = scalar_select %p448, %s27, 1
        %p450 = scmp.lt.s32.totalorder %s447, 31
        %s451 = scalar_select %p450, %s447, 31
        %s452 = smul.addr %s449, 32
        %s453 = sadd.s32 %s451, %s452
        %s454 = smul.addr %s453, 4
        %s455 = scalar_lea.vmem %s0, %s454
        %p456 = pneg %p58
        %p457 = pneg %p55
        %s458 = ssub.s32 %s28, 1
        %p459 = scmp.gt.s32.totalorder %s458, 0
        %s460 = scalar_select %p459, %s458, 0
        %s461 = smul.u32 8, %s460
        %p462 = scmp.lt.s32.totalorder %s27, 1
        %s463 = scalar_select %p462, %s27, 1
        %p464 = scmp.lt.s32.totalorder %s461, 31
        %s465 = scalar_select %p464, %s461, 31
        %s466 = smul.addr %s463, 32
        %s467 = sadd.s32 %s465, %s466
        %s468 = smul.addr %s467, 4
        %s469 = scalar_lea.vmem %s1, %s468
        %p470 = pneg %p92
        %p471 = pneg %p89
        %s472 = sadd.s32 %s28, 1
        %p473 = scmp.lt.s32.totalorder %s472, 3
        %s474 = scalar_select %p473, %s472, 3
        %s475 = smul.u32 8, %s474
        %p476 = scmp.lt.s32.totalorder %s27, 1
        %s477 = scalar_select %p476, %s27, 1
        %p478 = scmp.lt.s32.totalorder %s475, 31
        %s479 = scalar_select %p478, %s475, 31
        %s480 = smul.addr %s477, 32
        %s481 = sadd.s32 %s479, %s480
        %s482 = smul.addr %s481, 4
        %s483 = scalar_lea.vmem %s2, %s482
        %p484 = pneg %p126
        %p485 = pneg %p123
        %p486 = pneg %p147
        %p487 = pneg %p144
        %p488 = pneg %p168
        %p489 = pneg %p165
        %p490 = pneg %p189
        %p491 = pneg %p186
        %p492 = pneg %p210
        %p493 = pneg %p207
        %p494 = pneg %p231
        %p495 = pneg %p228
        %p496 = pneg %p252
        %p497 = pneg %p249
        %p498 = pneg %p273
        %p499 = pneg %p270
        %p500 = pneg %p294
        %p501 = pneg %p291
        %p502 = pneg %p315
        %p503 = pneg %p312
        %p504 = pneg %p343
        %p505 = pneg %p340
        %s506 = sand.u32 %s330, 1
        %s507 = sand.u32 %s330, 1
        %s508 = smul.addr %s507, 128
        %s509 = scalar_lea.vmem [#allocation3], %s508
        %s510 = smul.u32 8, %s28
        %p511 = scmp.lt.s32.totalorder %s27, 1
        %s512 = scalar_select %p511, %s27, 1
        %p513 = scmp.lt.s32.totalorder %s510, 31
        %s514 = scalar_select %p513, %s510, 31
        %s515 = smul.addr %s512, 32
        %s516 = sadd.s32 %s514, %s515
        %s517 = smul.addr %s516, 4
        %s518 = scalar_lea.vmem %s0, %s517
        %s519 = smul.u32 8, %s28
        %s520 = ssub.s32 %s28, 1
        %p521 = scmp.gt.s32.totalorder %s520, 0
        %s522 = scalar_select %p521, %s520, 0
        %s523 = smul.u32 8, %s522
        %p524 = scmp.lt.s32.totalorder %s27, 1
        %s525 = scalar_select %p524, %s27, 1
        %p526 = scmp.lt.s32.totalorder %s523, 31
        %s527 = scalar_select %p526, %s523, 31
        %s528 = smul.addr %s525, 32
        %s529 = sadd.s32 %s527, %s528
        %s530 = smul.addr %s529, 4
        %s531 = scalar_lea.vmem %s1, %s530
        %s532 = ssub.s32 %s28, 1
        %p533 = scmp.gt.s32.totalorder %s532, 0
        %s534 = scalar_select %p533, %s532, 0
        %s535 = smul.u32 8, %s534
        %s536 = sadd.s32 %s28, 1
        %p537 = scmp.lt.s32.totalorder %s536, 3
        %s538 = scalar_select %p537, %s536, 3
        %s539 = smul.u32 8, %s538
        %p540 = scmp.lt.s32.totalorder %s27, 1
        %s541 = scalar_select %p540, %s27, 1
        %p542 = scmp.lt.s32.totalorder %s539, 31
        %s543 = scalar_select %p542, %s539, 31
        %s544 = smul.addr %s541, 32
        %s545 = sadd.s32 %s543, %s544
        %s546 = smul.addr %s545, 4
        %s547 = scalar_lea.vmem %s2, %s546
        %s548 = sadd.s32 %s28, 1
        %p549 = scmp.lt.s32.totalorder %s548, 3
        %s550 = scalar_select %p549, %s548, 3
        %s551 = smul.u32 8, %s550
        %s552 = smul.u32 8, %s28
        %v553 = vld [vmem:[%s531 + $0x1c] sm:$0x7]
        %v554 = vld [vmem:[%s547] sm:$0x7]
        %v555 = vld [vmem:[%s518] sm:$0x77]
        %v556 = vld [vmem:[%s518 + $0x8] sm:$0x77]
        %v557 = vld [vmem:[%s518 + $0x10] sm:$0x77]
        %v558 = vld [vmem:[%s518 + $0x18] sm:$0x77]
        %563 = vst [vmem:[#allocation1] ss:$2 sm:$0xff] %v555
        %s564 = scalar_lea.vmem [#allocation1], 16
        %565 = vst [vmem:[%s564] ss:$2 sm:$0xff] %v556
        %s566 = scalar_lea.vmem [#allocation1], 32
        %567 = vst [vmem:[%s566] ss:$2 sm:$0xff] %v557
        %s568 = scalar_lea.vmem [#allocation1], 48
        %569 = vst [vmem:[%s568] ss:$2 sm:$0xff] %v558
        %v570 = vld.sshfl [vmem:[#allocation1] sm:$0xff pattern:$0x75316420]
        %v571 = vld.sshfl [vmem:[#allocation1 + $0x8] sm:$0xff pattern:$0x75316420]
        %v572 = vld.sshfl [vmem:[#allocation1 + $0x10] sm:$0xff pattern:$0x75316420]
        %v573 = vld.sshfl [vmem:[#allocation1 + $0x18] sm:$0xff pattern:$0x75316420]
        %v574 = vld.sshfl [vmem:[#allocation1 + $0x20] sm:$0xff pattern:$0x75316420]
        %v575 = vld.sshfl [vmem:[#allocation1 + $0x28] sm:$0xff pattern:$0x75316420]
        %v576 = vld.sshfl [vmem:[#allocation1 + $0x30] sm:$0xff pattern:$0x75316420]
        %v577 = vld.sshfl [vmem:[#allocation1 + $0x38] sm:$0xff pattern:$0x75316420]
        %579 = vst [vmem:[#allocation1] ss:$2 sm:$0xff] %v553
        %v580 = vld.sshfl [vmem:[#allocation1] sm:$0xff pattern:$0x75316420]
        %581 = vrot.lane.b32.xlu0 %v580, 64
        %v582 = vpop.permute.xlu0 %581
        %585 = vst [vmem:[#allocation1] ss:$2 sm:$0xff] %v554
        %v586 = vld.sshfl [vmem:[#allocation1] sm:$0xff pattern:$0x75316420]
        %587 = vrot.lane.b32.xlu0 %v586, 64
        %v588 = vpop.permute.xlu0 %587
        %vm590 = vcmask 523264
        %v591 = vsel %vm590, %v582, %v588
        %v592 = vld [vmem:[%s4] sm:$0xff]
        %v593 = vld [vmem:[%s4 + $0x8] sm:$0xff]
        %v594 = vld [vmem:[%s5] sm:$0xff]
        %v595 = vld [vmem:[%s5 + $0x8] sm:$0xff]
        %597 = vset.pattern.permute.xlu0 0
        %598 = vperm.xlu0 %597, %v594
        %v599 = vpop.permute.xlu0 %598
        %602 = vset.pattern.permute.xlu0 0
        %603 = vperm.xlu0 %602, %v595
        %v604 = vpop.permute.xlu0 %603
        %vm606 = vcmask 23552
        %v608 = vsel %vm606, %v592, 0
        %v611 = vsel %vm606, %v593, 0
        %vm613 = vcmask 1042432
        %v614 = vsel %vm613, %v570, 0
        %v616 = vsel %vm613, %v571, 0
        %v618 = vsel %vm613, %v572, 0
        %v620 = vsel %vm613, %v573, 0
        %v622 = vsel %vm613, %v574, 0
        %v624 = vsel %vm613, %v575, 0
        %v626 = vsel %vm613, %v576, 0
        %v628 = vsel %vm613, %v577, 0
        %v631 = vsel %vm613, %v591, 0
        %633 = vmatpush.msra.mxu0 0.0
        %634 = vmatpush.msra.mxu0 0.0
        %635 = vmatpush.msra.mxu0 0.0
        %636 = vmatpush.msra.mxu0 0.0
        %637 = vmatpush.msra.mxu0 0.0
        %638 = vmatpush.msra.mxu0 0.0
        %639 = vmatpush.msra.mxu0 0.0
        %640 = vmatpush.msra.mxu0 0.0
        %641 = vmatpush.msra.mxu0 0.0
        %642 = vmatpush.msra.mxu0 0.0
        %643 = vmatpush.msra.mxu0 0.0
        %644 = vmatpush.msra.mxu0 0.0
        %645 = vmatpush.msra.mxu0 0.0
        %646 = vmatpush.msra.mxu0 0.0
        %647 = vmatpush.msra.mxu0 0.0
        %648 = vmatpush.msra.mxu0 %v614
        %649 = vmatmul.f32.gmra.mxu0 %v608
        %v650 = vpop.f32.mrf.mxu0
        %v651 = vadd.f32 %v599, %v650
        %652 = vmatmul.f32.gmra.mxu0 %v611
        %v653 = vpop.f32.mrf.mxu0
        %v654 = vadd.f32 %v604, %v653
        %655 = vdwg.mxu0
        %656 = vmatpush.msra.mxu0 0.0
        %657 = vmatpush.msra.mxu0 0.0
        %658 = vmatpush.msra.mxu0 0.0
        %659 = vmatpush.msra.mxu0 0.0
        %660 = vmatpush.msra.mxu0 0.0
        %661 = vmatpush.msra.mxu0 0.0
        %662 = vmatpush.msra.mxu0 0.0
        %663 = vmatpush.msra.mxu0 0.0
        %664 = vmatpush.msra.mxu0 0.0
        %665 = vmatpush.msra.mxu0 0.0
        %666 = vmatpush.msra.mxu0 0.0
        %667 = vmatpush.msra.mxu0 0.0
        %668 = vmatpush.msra.mxu0 0.0
        %669 = vmatpush.msra.mxu0 0.0
        %670 = vmatpush.msra.mxu0 0.0
        %671 = vmatpush.msra.mxu0 %v616
        %672 = vmatmul.f32.gmra.mxu0 %v608
        %v673 = vpop.f32.mrf.mxu0
        %v674 = vadd.f32 %v599, %v673
        %675 = vmatmul.f32.gmra.mxu0 %v611
        %v676 = vpop.f32.mrf.mxu0
        %v677 = vadd.f32 %v604, %v676
        %678 = vdwg.mxu0
        %679 = vmatpush.msra.mxu0 0.0
        %680 = vmatpush.msra.mxu0 0.0
        %681 = vmatpush.msra.mxu0 0.0
        %682 = vmatpush.msra.mxu0 0.0
        %683 = vmatpush.msra.mxu0 0.0
        %684 = vmatpush.msra.mxu0 0.0
        %685 = vmatpush.msra.mxu0 0.0
        %686 = vmatpush.msra.mxu0 0.0
        %687 = vmatpush.msra.mxu0 0.0
        %688 = vmatpush.msra.mxu0 0.0
        %689 = vmatpush.msra.mxu0 0.0
        %690 = vmatpush.msra.mxu0 0.0
        %691 = vmatpush.msra.mxu0 0.0
        %692 = vmatpush.msra.mxu0 0.0
        %693 = vmatpush.msra.mxu0 0.0
        %694 = vmatpush.msra.mxu0 %v618
        %695 = vmatmul.f32.gmra.mxu0 %v608
        %v696 = vpop.f32.mrf.mxu0
        %v697 = vadd.f32 %v599, %v696
        %698 = vmatmul.f32.gmra.mxu0 %v611
        %v699 = vpop.f32.mrf.mxu0
        %v700 = vadd.f32 %v604, %v699
        %701 = vdwg.mxu0
        %702 = vmatpush.msra.mxu0 0.0
        %703 = vmatpush.msra.mxu0 0.0
        %704 = vmatpush.msra.mxu0 0.0
        %705 = vmatpush.msra.mxu0 0.0
        %706 = vmatpush.msra.mxu0 0.0
        %707 = vmatpush.msra.mxu0 0.0
        %708 = vmatpush.msra.mxu0 0.0
        %709 = vmatpush.msra.mxu0 0.0
        %710 = vmatpush.msra.mxu0 0.0
        %711 = vmatpush.msra.mxu0 0.0
        %712 = vmatpush.msra.mxu0 0.0
        %713 = vmatpush.msra.mxu0 0.0
        %714 = vmatpush.msra.mxu0 0.0
        %715 = vmatpush.msra.mxu0 0.0
        %716 = vmatpush.msra.mxu0 0.0
        %717 = vmatpush.msra.mxu0 %v620
        %718 = vmatmul.f32.gmra.mxu0 %v608
        %v719 = vpop.f32.mrf.mxu0
        %v720 = vadd.f32 %v599, %v719
        %721 = vmatmul.f32.gmra.mxu0 %v611
        %v722 = vpop.f32.mrf.mxu0
        %v723 = vadd.f32 %v604, %v722
        %724 = vdwg.mxu0
        %725 = vmatpush.msra.mxu0 0.0
        %726 = vmatpush.msra.mxu0 0.0
        %727 = vmatpush.msra.mxu0 0.0
        %728 = vmatpush.msra.mxu0 0.0
        %729 = vmatpush.msra.mxu0 0.0
        %730 = vmatpush.msra.mxu0 0.0
        %731 = vmatpush.msra.mxu0 0.0
        %732 = vmatpush.msra.mxu0 0.0
        %733 = vmatpush.msra.mxu0 0.0
        %734 = vmatpush.msra.mxu0 0.0
        %735 = vmatpush.msra.mxu0 0.0
        %736 = vmatpush.msra.mxu0 0.0
        %737 = vmatpush.msra.mxu0 0.0
        %738 = vmatpush.msra.mxu0 0.0
        %739 = vmatpush.msra.mxu0 0.0
        %740 = vmatpush.msra.mxu0 %v622
        %741 = vmatmul.f32.gmra.mxu0 %v608
        %v742 = vpop.f32.mrf.mxu0
        %v743 = vadd.f32 %v599, %v742
        %744 = vmatmul.f32.gmra.mxu0 %v611
        %v745 = vpop.f32.mrf.mxu0
        %v746 = vadd.f32 %v604, %v745
        %747 = vdwg.mxu0
        %748 = vmatpush.msra.mxu0 0.0
        %749 = vmatpush.msra.mxu0 0.0
        %750 = vmatpush.msra.mxu0 0.0
        %751 = vmatpush.msra.mxu0 0.0
        %752 = vmatpush.msra.mxu0 0.0
        %753 = vmatpush.msra.mxu0 0.0
        %754 = vmatpush.msra.mxu0 0.0
        %755 = vmatpush.msra.mxu0 0.0
        %756 = vmatpush.msra.mxu0 0.0
        %757 = vmatpush.msra.mxu0 0.0
        %758 = vmatpush.msra.mxu0 0.0
        %759 = vmatpush.msra.mxu0 0.0
        %760 = vmatpush.msra.mxu0 0.0
        %761 = vmatpush.msra.mxu0 0.0
        %762 = vmatpush.msra.mxu0 0.0
        %763 = vmatpush.msra.mxu0 %v624
        %764 = vmatmul.f32.gmra.mxu0 %v608
        %v765 = vpop.f32.mrf.mxu0
        %v766 = vadd.f32 %v599, %v765
        %767 = vmatmul.f32.gmra.mxu0 %v611
        %v768 = vpop.f32.mrf.mxu0
        %v769 = vadd.f32 %v604, %v768
        %770 = vdwg.mxu0
        %771 = vmatpush.msra.mxu0 0.0
        %772 = vmatpush.msra.mxu0 0.0
        %773 = vmatpush.msra.mxu0 0.0
        %774 = vmatpush.msra.mxu0 0.0
        %775 = vmatpush.msra.mxu0 0.0
        %776 = vmatpush.msra.mxu0 0.0
        %777 = vmatpush.msra.mxu0 0.0
        %778 = vmatpush.msra.mxu0 0.0
        %779 = vmatpush.msra.mxu0 0.0
        %780 = vmatpush.msra.mxu0 0.0
        %781 = vmatpush.msra.mxu0 0.0
        %782 = vmatpush.msra.mxu0 0.0
        %783 = vmatpush.msra.mxu0 0.0
        %784 = vmatpush.msra.mxu0 0.0
        %785 = vmatpush.msra.mxu0 0.0
        %786 = vmatpush.msra.mxu0 %v626
        %787 = vmatmul.f32.gmra.mxu0 %v608
        %v788 = vpop.f32.mrf.mxu0
        %v789 = vadd.f32 %v599, %v788
        %790 = vmatmul.f32.gmra.mxu0 %v611
        %v791 = vpop.f32.mrf.mxu0
        %v792 = vadd.f32 %v604, %v791
        %793 = vdwg.mxu0
        %794 = vmatpush.msra.mxu0 0.0
        %795 = vmatpush.msra.mxu0 0.0
        %796 = vmatpush.msra.mxu0 0.0
        %797 = vmatpush.msra.mxu0 0.0
        %798 = vmatpush.msra.mxu0 0.0
        %799 = vmatpush.msra.mxu0 0.0
        %800 = vmatpush.msra.mxu0 0.0
        %801 = vmatpush.msra.mxu0 0.0
        %802 = vmatpush.msra.mxu0 0.0
        %803 = vmatpush.msra.mxu0 0.0
        %804 = vmatpush.msra.mxu0 0.0
        %805 = vmatpush.msra.mxu0 0.0
        %806 = vmatpush.msra.mxu0 0.0
        %807 = vmatpush.msra.mxu0 0.0
        %808 = vmatpush.msra.mxu0 0.0
        %809 = vmatpush.msra.mxu0 %v628
        %810 = vmatmul.f32.gmra.mxu0 %v608
        %v811 = vpop.f32.mrf.mxu0
        %v812 = vadd.f32 %v599, %v811
        %813 = vmatmul.f32.gmra.mxu0 %v611
        %v814 = vpop.f32.mrf.mxu0
        %v815 = vadd.f32 %v604, %v814
        %816 = vdwg.mxu0
        %817 = vmatpush.msra.mxu0 0.0
        %818 = vmatpush.msra.mxu0 0.0
        %819 = vmatpush.msra.mxu0 0.0
        %820 = vmatpush.msra.mxu0 0.0
        %821 = vmatpush.msra.mxu0 0.0
        %822 = vmatpush.msra.mxu0 0.0
        %823 = vmatpush.msra.mxu0 0.0
        %824 = vmatpush.msra.mxu0 0.0
        %825 = vmatpush.msra.mxu0 0.0
        %826 = vmatpush.msra.mxu0 0.0
        %827 = vmatpush.msra.mxu0 0.0
        %828 = vmatpush.msra.mxu0 0.0
        %829 = vmatpush.msra.mxu0 0.0
        %830 = vmatpush.msra.mxu0 0.0
        %831 = vmatpush.msra.mxu0 0.0
        %832 = vmatpush.msra.mxu0 %v631
        %833 = vmatmul.f32.gmra.mxu0 %v608
        %v834 = vpop.f32.mrf.mxu0
        %v835 = vadd.f32 %v599, %v834
        %836 = vmatmul.f32.gmra.mxu0 %v611
        %v837 = vpop.f32.mrf.mxu0
        %v838 = vadd.f32 %v604, %v837
        %839 = vdwg.mxu0
        %v840 = vxor.u32 %v651, 2147483648
        %v841 = vxor.u32 %v674, 2147483648
        %v842 = vxor.u32 %v697, 2147483648
        %v843 = vxor.u32 %v720, 2147483648
        %v844 = vxor.u32 %v743, 2147483648
        %v845 = vxor.u32 %v766, 2147483648
        %v846 = vxor.u32 %v789, 2147483648
        %v847 = vxor.u32 %v812, 2147483648
        %v848 = vxor.u32 %v835, 2147483648
        %v849 = vxor.u32 %v654, 2147483648
        %v850 = vxor.u32 %v677, 2147483648
        %v851 = vxor.u32 %v700, 2147483648
        %v852 = vxor.u32 %v723, 2147483648
        %v853 = vxor.u32 %v746, 2147483648
        %v854 = vxor.u32 %v769, 2147483648
        %v855 = vxor.u32 %v792, 2147483648
        %v856 = vxor.u32 %v815, 2147483648
        %v857 = vxor.u32 %v838, 2147483648
        %v858 = vmul.f32 %v840, 1.442695
        %v859 = vpow.pop %v858
        %v860 = vmul.f32 %v841, 1.442695
        %v861 = vpow.pop %v860
        %v862 = vmul.f32 %v842, 1.442695
        %v863 = vpow.pop %v862
        %v864 = vmul.f32 %v843, 1.442695
        %v865 = vpow.pop %v864
        %v866 = vmul.f32 %v844, 1.442695
        %v867 = vpow.pop %v866
        %v868 = vmul.f32 %v845, 1.442695
        %v869 = vpow.pop %v868
        %v870 = vmul.f32 %v846, 1.442695
        %v871 = vpow.pop %v870
        %v872 = vmul.f32 %v847, 1.442695
        %v873 = vpow.pop %v872
        %v874 = vmul.f32 %v848, 1.442695
        %v875 = vpow.pop %v874
        %v876 = vmul.f32 %v849, 1.442695
        %v877 = vpow.pop %v876
        %v878 = vmul.f32 %v850, 1.442695
        %v879 = vpow.pop %v878
        %v880 = vmul.f32 %v851, 1.442695
        %v881 = vpow.pop %v880
        %v882 = vmul.f32 %v852, 1.442695
        %v883 = vpow.pop %v882
        %v884 = vmul.f32 %v853, 1.442695
        %v885 = vpow.pop %v884
        %v886 = vmul.f32 %v854, 1.442695
        %v887 = vpow.pop %v886
        %v888 = vmul.f32 %v855, 1.442695
        %v889 = vpow.pop %v888
        %v890 = vmul.f32 %v856, 1.442695
        %v891 = vpow.pop %v890
        %v892 = vmul.f32 %v857, 1.442695
        %v893 = vpow.pop %v892
        %v894 = vadd.f32 %v859, 1.0
        %v895 = vadd.f32 %v861, 1.0
        %v896 = vadd.f32 %v863, 1.0
        %v897 = vadd.f32 %v865, 1.0
        %v898 = vadd.f32 %v867, 1.0
        %v899 = vadd.f32 %v869, 1.0
        %v900 = vadd.f32 %v871, 1.0
        %v901 = vadd.f32 %v873, 1.0
        %v902 = vadd.f32 %v875, 1.0
        %v903 = vadd.f32 %v877, 1.0
        %v904 = vadd.f32 %v879, 1.0
        %v905 = vadd.f32 %v881, 1.0
        %v906 = vadd.f32 %v883, 1.0
        %v907 = vadd.f32 %v885, 1.0
        %v908 = vadd.f32 %v887, 1.0
        %v909 = vadd.f32 %v889, 1.0
        %v910 = vadd.f32 %v891, 1.0
        %v911 = vadd.f32 %v893, 1.0
        %v912 = vrcp.pop %v894
        %v913 = vmul.f32 %v894, %v912
        %v914 = vsub.f32 1.0, %v913
        %v915 = vmul.f32 %v912, %v914
        %v916 = vadd.f32 %v912, %v915
        %vm917 = vweird.f32 %v894
        %vm918 = vweird.f32 %v912
        %vm919 = vmor %vm917, %vm918
        %v920 = vsel %vm919, %v912, %v916
        %v921 = vand.u32 2147483647, %v894
        %vm922 = vcmp.eq.f32.partialorder %v921, 8.507059e+37
        %v923 = vand.u32 %v894, 2147483648
        %v924 = vor.u32 1.1754944e-38, %v923
        %v925 = vsel %vm922, %v924, %v920
        %v926 = vmul.f32 1.0, %v925
        %v927 = vrcp.pop %v895
        %v928 = vmul.f32 %v895, %v927
        %v929 = vsub.f32 1.0, %v928
        %v930 = vmul.f32 %v927, %v929
        %v931 = vadd.f32 %v927, %v930
        %vm932 = vweird.f32 %v895
        %vm933 = vweird.f32 %v927
        %vm934 = vmor %vm932, %vm933
        %v935 = vsel %vm934, %v927, %v931
        %v936 = vand.u32 2147483647, %v895
        %vm937 = vcmp.eq.f32.partialorder %v936, 8.507059e+37
        %v938 = vand.u32 %v895, 2147483648
        %v939 = vor.u32 1.1754944e-38, %v938
        %v940 = vsel %vm937, %v939, %v935
        %v941 = vmul.f32 1.0, %v940
        %v942 = vrcp.pop %v896
        %v943 = vmul.f32 %v896, %v942
        %v944 = vsub.f32 1.0, %v943
        %v945 = vmul.f32 %v942, %v944
        %v946 = vadd.f32 %v942, %v945
        %vm947 = vweird.f32 %v896
        %vm948 = vweird.f32 %v942
        %vm949 = vmor %vm947, %vm948
        %v950 = vsel %vm949, %v942, %v946
        %v951 = vand.u32 2147483647, %v896
        %vm952 = vcmp.eq.f32.partialorder %v951, 8.507059e+37
        %v953 = vand.u32 %v896, 2147483648
        %v954 = vor.u32 1.1754944e-38, %v953
        %v955 = vsel %vm952, %v954, %v950
        %v956 = vmul.f32 1.0, %v955
        %v957 = vrcp.pop %v897
        %v958 = vmul.f32 %v897, %v957
        %v959 = vsub.f32 1.0, %v958
        %v960 = vmul.f32 %v957, %v959
        %v961 = vadd.f32 %v957, %v960
        %vm962 = vweird.f32 %v897
        %vm963 = vweird.f32 %v957
        %vm964 = vmor %vm962, %vm963
        %v965 = vsel %vm964, %v957, %v961
        %v966 = vand.u32 2147483647, %v897
        %vm967 = vcmp.eq.f32.partialorder %v966, 8.507059e+37
        %v968 = vand.u32 %v897, 2147483648
        %v969 = vor.u32 1.1754944e-38, %v968
        %v970 = vsel %vm967, %v969, %v965
        %v971 = vmul.f32 1.0, %v970
        %v972 = vrcp.pop %v898
        %v973 = vmul.f32 %v898, %v972
        %v974 = vsub.f32 1.0, %v973
        %v975 = vmul.f32 %v972, %v974
        %v976 = vadd.f32 %v972, %v975
        %vm977 = vweird.f32 %v898
        %vm978 = vweird.f32 %v972
        %vm979 = vmor %vm977, %vm978
        %v980 = vsel %vm979, %v972, %v976
        %v981 = vand.u32 2147483647, %v898
        %vm982 = vcmp.eq.f32.partialorder %v981, 8.507059e+37
        %v983 = vand.u32 %v898, 2147483648
        %v984 = vor.u32 1.1754944e-38, %v983
        %v985 = vsel %vm982, %v984, %v980
        %v986 = vmul.f32 1.0, %v985
        %v987 = vrcp.pop %v899
        %v988 = vmul.f32 %v899, %v987
        %v989 = vsub.f32 1.0, %v988
        %v990 = vmul.f32 %v987, %v989
        %v991 = vadd.f32 %v987, %v990
        %vm992 = vweird.f32 %v899
        %vm993 = vweird.f32 %v987
        %vm994 = vmor %vm992, %vm993
        %v995 = vsel %vm994, %v987, %v991
        %v996 = vand.u32 2147483647, %v899
        %vm997 = vcmp.eq.f32.partialorder %v996, 8.507059e+37
        %v998 = vand.u32 %v899, 2147483648
        %v999 = vor.u32 1.1754944e-38, %v998
        %v1000 = vsel %vm997, %v999, %v995
        %v1001 = vmul.f32 1.0, %v1000
        %v1002 = vrcp.pop %v900
        %v1003 = vmul.f32 %v900, %v1002
        %v1004 = vsub.f32 1.0, %v1003
        %v1005 = vmul.f32 %v1002, %v1004
        %v1006 = vadd.f32 %v1002, %v1005
        %vm1007 = vweird.f32 %v900
        %vm1008 = vweird.f32 %v1002
        %vm1009 = vmor %vm1007, %vm1008
        %v1010 = vsel %vm1009, %v1002, %v1006
        %v1011 = vand.u32 2147483647, %v900
        %vm1012 = vcmp.eq.f32.partialorder %v1011, 8.507059e+37
        %v1013 = vand.u32 %v900, 2147483648
        %v1014 = vor.u32 1.1754944e-38, %v1013
        %v1015 = vsel %vm1012, %v1014, %v1010
        %v1016 = vmul.f32 1.0, %v1015
        %v1017 = vrcp.pop %v901
        %v1018 = vmul.f32 %v901, %v1017
        %v1019 = vsub.f32 1.0, %v1018
        %v1020 = vmul.f32 %v1017, %v1019
        %v1021 = vadd.f32 %v1017, %v1020
        %vm1022 = vweird.f32 %v901
        %vm1023 = vweird.f32 %v1017
        %vm1024 = vmor %vm1022, %vm1023
        %v1025 = vsel %vm1024, %v1017, %v1021
        %v1026 = vand.u32 2147483647, %v901
        %vm1027 = vcmp.eq.f32.partialorder %v1026, 8.507059e+37
        %v1028 = vand.u32 %v901, 2147483648
        %v1029 = vor.u32 1.1754944e-38, %v1028
        %v1030 = vsel %vm1027, %v1029, %v1025
        %v1031 = vmul.f32 1.0, %v1030
        %v1032 = vrcp.pop %v902
        %v1033 = vmul.f32 %v902, %v1032
        %v1034 = vsub.f32 1.0, %v1033
        %v1035 = vmul.f32 %v1032, %v1034
        %v1036 = vadd.f32 %v1032, %v1035
        %vm1037 = vweird.f32 %v902
        %vm1038 = vweird.f32 %v1032
        %vm1039 = vmor %vm1037, %vm1038
        %v1040 = vsel %vm1039, %v1032, %v1036
        %v1041 = vand.u32 2147483647, %v902
        %vm1042 = vcmp.eq.f32.partialorder %v1041, 8.507059e+37
        %v1043 = vand.u32 %v902, 2147483648
        %v1044 = vor.u32 1.1754944e-38, %v1043
        %v1045 = vsel %vm1042, %v1044, %v1040
        %v1046 = vmul.f32 1.0, %v1045
        %v1047 = vrcp.pop %v903
        %v1048 = vmul.f32 %v903, %v1047
        %v1049 = vsub.f32 1.0, %v1048
        %v1050 = vmul.f32 %v1047, %v1049
        %v1051 = vadd.f32 %v1047, %v1050
        %vm1052 = vweird.f32 %v903
        %vm1053 = vweird.f32 %v1047
        %vm1054 = vmor %vm1052, %vm1053
        %v1055 = vsel %vm1054, %v1047, %v1051
        %v1056 = vand.u32 2147483647, %v903
        %vm1057 = vcmp.eq.f32.partialorder %v1056, 8.507059e+37
        %v1058 = vand.u32 %v903, 2147483648
        %v1059 = vor.u32 1.1754944e-38, %v1058
        %v1060 = vsel %vm1057, %v1059, %v1055
        %v1061 = vmul.f32 1.0, %v1060
        %v1062 = vrcp.pop %v904
        %v1063 = vmul.f32 %v904, %v1062
        %v1064 = vsub.f32 1.0, %v1063
        %v1065 = vmul.f32 %v1062, %v1064
        %v1066 = vadd.f32 %v1062, %v1065
        %vm1067 = vweird.f32 %v904
        %vm1068 = vweird.f32 %v1062
        %vm1069 = vmor %vm1067, %vm1068
        %v1070 = vsel %vm1069, %v1062, %v1066
        %v1071 = vand.u32 2147483647, %v904
        %vm1072 = vcmp.eq.f32.partialorder %v1071, 8.507059e+37
        %v1073 = vand.u32 %v904, 2147483648
        %v1074 = vor.u32 1.1754944e-38, %v1073
        %v1075 = vsel %vm1072, %v1074, %v1070
        %v1076 = vmul.f32 1.0, %v1075
        %v1077 = vrcp.pop %v905
        %v1078 = vmul.f32 %v905, %v1077
        %v1079 = vsub.f32 1.0, %v1078
        %v1080 = vmul.f32 %v1077, %v1079
        %v1081 = vadd.f32 %v1077, %v1080
        %vm1082 = vweird.f32 %v905
        %vm1083 = vweird.f32 %v1077
        %vm1084 = vmor %vm1082, %vm1083
        %v1085 = vsel %vm1084, %v1077, %v1081
        %v1086 = vand.u32 2147483647, %v905
        %vm1087 = vcmp.eq.f32.partialorder %v1086, 8.507059e+37
        %v1088 = vand.u32 %v905, 2147483648
        %v1089 = vor.u32 1.1754944e-38, %v1088
        %v1090 = vsel %vm1087, %v1089, %v1085
        %v1091 = vmul.f32 1.0, %v1090
        %v1092 = vrcp.pop %v906
        %v1093 = vmul.f32 %v906, %v1092
        %v1094 = vsub.f32 1.0, %v1093
        %v1095 = vmul.f32 %v1092, %v1094
        %v1096 = vadd.f32 %v1092, %v1095
        %vm1097 = vweird.f32 %v906
        %vm1098 = vweird.f32 %v1092
        %vm1099 = vmor %vm1097, %vm1098
        %v1100 = vsel %vm1099, %v1092, %v1096
        %v1101 = vand.u32 2147483647, %v906
        %vm1102 = vcmp.eq.f32.partialorder %v1101, 8.507059e+37
        %v1103 = vand.u32 %v906, 2147483648
        %v1104 = vor.u32 1.1754944e-38, %v1103
        %v1105 = vsel %vm1102, %v1104, %v1100
        %v1106 = vmul.f32 1.0, %v1105
        %v1107 = vrcp.pop %v907
        %v1108 = vmul.f32 %v907, %v1107
        %v1109 = vsub.f32 1.0, %v1108
        %v1110 = vmul.f32 %v1107, %v1109
        %v1111 = vadd.f32 %v1107, %v1110
        %vm1112 = vweird.f32 %v907
        %vm1113 = vweird.f32 %v1107
        %vm1114 = vmor %vm1112, %vm1113
        %v1115 = vsel %vm1114, %v1107, %v1111
        %v1116 = vand.u32 2147483647, %v907
        %vm1117 = vcmp.eq.f32.partialorder %v1116, 8.507059e+37
        %v1118 = vand.u32 %v907, 2147483648
        %v1119 = vor.u32 1.1754944e-38, %v1118
        %v1120 = vsel %vm1117, %v1119, %v1115
        %v1121 = vmul.f32 1.0, %v1120
        %v1122 = vrcp.pop %v908
        %v1123 = vmul.f32 %v908, %v1122
        %v1124 = vsub.f32 1.0, %v1123
        %v1125 = vmul.f32 %v1122, %v1124
        %v1126 = vadd.f32 %v1122, %v1125
        %vm1127 = vweird.f32 %v908
        %vm1128 = vweird.f32 %v1122
        %vm1129 = vmor %vm1127, %vm1128
        %v1130 = vsel %vm1129, %v1122, %v1126
        %v1131 = vand.u32 2147483647, %v908
        %vm1132 = vcmp.eq.f32.partialorder %v1131, 8.507059e+37
        %v1133 = vand.u32 %v908, 2147483648
        %v1134 = vor.u32 1.1754944e-38, %v1133
        %v1135 = vsel %vm1132, %v1134, %v1130
        %v1136 = vmul.f32 1.0, %v1135
        %v1137 = vrcp.pop %v909
        %v1138 = vmul.f32 %v909, %v1137
        %v1139 = vsub.f32 1.0, %v1138
        %v1140 = vmul.f32 %v1137, %v1139
        %v1141 = vadd.f32 %v1137, %v1140
        %vm1142 = vweird.f32 %v909
        %vm1143 = vweird.f32 %v1137
        %vm1144 = vmor %vm1142, %vm1143
        %v1145 = vsel %vm1144, %v1137, %v1141
        %v1146 = vand.u32 2147483647, %v909
        %vm1147 = vcmp.eq.f32.partialorder %v1146, 8.507059e+37
        %v1148 = vand.u32 %v909, 2147483648
        %v1149 = vor.u32 1.1754944e-38, %v1148
        %v1150 = vsel %vm1147, %v1149, %v1145
        %v1151 = vmul.f32 1.0, %v1150
        %v1152 = vrcp.pop %v910
        %v1153 = vmul.f32 %v910, %v1152
        %v1154 = vsub.f32 1.0, %v1153
        %v1155 = vmul.f32 %v1152, %v1154
        %v1156 = vadd.f32 %v1152, %v1155
        %vm1157 = vweird.f32 %v910
        %vm1158 = vweird.f32 %v1152
        %vm1159 = vmor %vm1157, %vm1158
        %v1160 = vsel %vm1159, %v1152, %v1156
        %v1161 = vand.u32 2147483647, %v910
        %vm1162 = vcmp.eq.f32.partialorder %v1161, 8.507059e+37
        %v1163 = vand.u32 %v910, 2147483648
        %v1164 = vor.u32 1.1754944e-38, %v1163
        %v1165 = vsel %vm1162, %v1164, %v1160
        %v1166 = vmul.f32 1.0, %v1165
        %v1167 = vrcp.pop %v911
        %v1168 = vmul.f32 %v911, %v1167
        %v1169 = vsub.f32 1.0, %v1168
        %v1170 = vmul.f32 %v1167, %v1169
        %v1171 = vadd.f32 %v1167, %v1170
        %vm1172 = vweird.f32 %v911
        %vm1173 = vweird.f32 %v1167
        %vm1174 = vmor %vm1172, %vm1173
        %v1175 = vsel %vm1174, %v1167, %v1171
        %v1176 = vand.u32 2147483647, %v911
        %vm1177 = vcmp.eq.f32.partialorder %v1176, 8.507059e+37
        %v1178 = vand.u32 %v911, 2147483648
        %v1179 = vor.u32 1.1754944e-38, %v1178
        %v1180 = vsel %vm1177, %v1179, %v1175
        %v1181 = vmul.f32 1.0, %v1180
        %v1182 = vld [vmem:[%s6] sm:$0xff]
        %v1183 = vld [vmem:[%s7] sm:$0xff]
        %1185 = vset.pattern.permute.xlu0 0
        %1186 = vperm.xlu0 %1185, %v1183
        %v1187 = vpop.permute.xlu0 %1186
        %vm1189 = vcmask 130048
        %v1191 = vsel %vm1189, %v1182, 0
        %1193 = vmatpush.msra.mxu0 0.0
        %1194 = vmatpush.msra.mxu0 0.0
        %1195 = vmatpush.msra.mxu0 0.0
        %1196 = vmatpush.msra.mxu0 0.0
        %1197 = vmatpush.msra.mxu0 0.0
        %1198 = vmatpush.msra.mxu0 0.0
        %1199 = vmatpush.msra.mxu0 0.0
        %1200 = vmatpush.msra.mxu0 0.0
        %1201 = vmatpush.msra.mxu0 0.0
        %1202 = vmatpush.msra.mxu0 0.0
        %1203 = vmatpush.msra.mxu0 0.0
        %1204 = vmatpush.msra.mxu0 0.0
        %1205 = vmatpush.msra.mxu0 0.0
        %1206 = vmatpush.msra.mxu0 0.0
        %1207 = vmatpush.msra.mxu0 %v1061
        %1208 = vmatpush.msra.mxu0 %v926
        %1209 = vmatmul.f32.gmra.mxu0 %v1191
        %v1210 = vpop.f32.mrf.mxu0
        %v1211 = vadd.f32 %v1187, %v1210
        %1212 = vdwg.mxu0
        %1213 = vmatpush.msra.mxu0 0.0
        %1214 = vmatpush.msra.mxu0 0.0
        %1215 = vmatpush.msra.mxu0 0.0
        %1216 = vmatpush.msra.mxu0 0.0
        %1217 = vmatpush.msra.mxu0 0.0
        %1218 = vmatpush.msra.mxu0 0.0
        %1219 = vmatpush.msra.mxu0 0.0
        %1220 = vmatpush.msra.mxu0 0.0
        %1221 = vmatpush.msra.mxu0 0.0
        %1222 = vmatpush.msra.mxu0 0.0
        %1223 = vmatpush.msra.mxu0 0.0
        %1224 = vmatpush.msra.mxu0 0.0
        %1225 = vmatpush.msra.mxu0 0.0
        %1226 = vmatpush.msra.mxu0 0.0
        %1227 = vmatpush.msra.mxu0 %v1076
        %1228 = vmatpush.msra.mxu0 %v941
        %1229 = vmatmul.f32.gmra.mxu0 %v1191
        %v1230 = vpop.f32.mrf.mxu0
        %v1231 = vadd.f32 %v1187, %v1230
        %1232 = vdwg.mxu0
        %1233 = vmatpush.msra.mxu0 0.0
        %1234 = vmatpush.msra.mxu0 0.0
        %1235 = vmatpush.msra.mxu0 0.0
        %1236 = vmatpush.msra.mxu0 0.0
        %1237 = vmatpush.msra.mxu0 0.0
        %1238 = vmatpush.msra.mxu0 0.0
        %1239 = vmatpush.msra.mxu0 0.0
        %1240 = vmatpush.msra.mxu0 0.0
        %1241 = vmatpush.msra.mxu0 0.0
        %1242 = vmatpush.msra.mxu0 0.0
        %1243 = vmatpush.msra.mxu0 0.0
        %1244 = vmatpush.msra.mxu0 0.0
        %1245 = vmatpush.msra.mxu0 0.0
        %1246 = vmatpush.msra.mxu0 0.0
        %1247 = vmatpush.msra.mxu0 %v1091
        %1248 = vmatpush.msra.mxu0 %v956
        %1249 = vmatmul.f32.gmra.mxu0 %v1191
        %v1250 = vpop.f32.mrf.mxu0
        %v1251 = vadd.f32 %v1187, %v1250
        %1252 = vdwg.mxu0
        %1253 = vmatpush.msra.mxu0 0.0
        %1254 = vmatpush.msra.mxu0 0.0
        %1255 = vmatpush.msra.mxu0 0.0
        %1256 = vmatpush.msra.mxu0 0.0
        %1257 = vmatpush.msra.mxu0 0.0
        %1258 = vmatpush.msra.mxu0 0.0
        %1259 = vmatpush.msra.mxu0 0.0
        %1260 = vmatpush.msra.mxu0 0.0
        %1261 = vmatpush.msra.mxu0 0.0
        %1262 = vmatpush.msra.mxu0 0.0
        %1263 = vmatpush.msra.mxu0 0.0
        %1264 = vmatpush.msra.mxu0 0.0
        %1265 = vmatpush.msra.mxu0 0.0
        %1266 = vmatpush.msra.mxu0 0.0
        %1267 = vmatpush.msra.mxu0 %v1106
        %1268 = vmatpush.msra.mxu0 %v971
        %1269 = vmatmul.f32.gmra.mxu0 %v1191
        %v1270 = vpop.f32.mrf.mxu0
        %v1271 = vadd.f32 %v1187, %v1270
        %1272 = vdwg.mxu0
        %1273 = vmatpush.msra.mxu0 0.0
        %1274 = vmatpush.msra.mxu0 0.0
        %1275 = vmatpush.msra.mxu0 0.0
        %1276 = vmatpush.msra.mxu0 0.0
        %1277 = vmatpush.msra.mxu0 0.0
        %1278 = vmatpush.msra.mxu0 0.0
        %1279 = vmatpush.msra.mxu0 0.0
        %1280 = vmatpush.msra.mxu0 0.0
        %1281 = vmatpush.msra.mxu0 0.0
        %1282 = vmatpush.msra.mxu0 0.0
        %1283 = vmatpush.msra.mxu0 0.0
        %1284 = vmatpush.msra.mxu0 0.0
        %1285 = vmatpush.msra.mxu0 0.0
        %1286 = vmatpush.msra.mxu0 0.0
        %1287 = vmatpush.msra.mxu0 %v1121
        %1288 = vmatpush.msra.mxu0 %v986
        %1289 = vmatmul.f32.gmra.mxu0 %v1191
        %v1290 = vpop.f32.mrf.mxu0
        %v1291 = vadd.f32 %v1187, %v1290
        %1292 = vdwg.mxu0
        %1293 = vmatpush.msra.mxu0 0.0
        %1294 = vmatpush.msra.mxu0 0.0
        %1295 = vmatpush.msra.mxu0 0.0
        %1296 = vmatpush.msra.mxu0 0.0
        %1297 = vmatpush.msra.mxu0 0.0
        %1298 = vmatpush.msra.mxu0 0.0
        %1299 = vmatpush.msra.mxu0 0.0
        %1300 = vmatpush.msra.mxu0 0.0
        %1301 = vmatpush.msra.mxu0 0.0
        %1302 = vmatpush.msra.mxu0 0.0
        %1303 = vmatpush.msra.mxu0 0.0
        %1304 = vmatpush.msra.mxu0 0.0
        %1305 = vmatpush.msra.mxu0 0.0
        %1306 = vmatpush.msra.mxu0 0.0
        %1307 = vmatpush.msra.mxu0 %v1136
        %1308 = vmatpush.msra.mxu0 %v1001
        %1309 = vmatmul.f32.gmra.mxu0 %v1191
        %v1310 = vpop.f32.mrf.mxu0
        %v1311 = vadd.f32 %v1187, %v1310
        %1312 = vdwg.mxu0
        %1313 = vmatpush.msra.mxu0 0.0
        %1314 = vmatpush.msra.mxu0 0.0
        %1315 = vmatpush.msra.mxu0 0.0
        %1316 = vmatpush.msra.mxu0 0.0
        %1317 = vmatpush.msra.mxu0 0.0
        %1318 = vmatpush.msra.mxu0 0.0
        %1319 = vmatpush.msra.mxu0 0.0
        %1320 = vmatpush.msra.mxu0 0.0
        %1321 = vmatpush.msra.mxu0 0.0
        %1322 = vmatpush.msra.mxu0 0.0
        %1323 = vmatpush.msra.mxu0 0.0
        %1324 = vmatpush.msra.mxu0 0.0
        %1325 = vmatpush.msra.mxu0 0.0
        %1326 = vmatpush.msra.mxu0 0.0
        %1327 = vmatpush.msra.mxu0 %v1151
        %1328 = vmatpush.msra.mxu0 %v1016
        %1329 = vmatmul.f32.gmra.mxu0 %v1191
        %v1330 = vpop.f32.mrf.mxu0
        %v1331 = vadd.f32 %v1187, %v1330
        %1332 = vdwg.mxu0
        %1333 = vmatpush.msra.mxu0 0.0
        %1334 = vmatpush.msra.mxu0 0.0
        %1335 = vmatpush.msra.mxu0 0.0
        %1336 = vmatpush.msra.mxu0 0.0
        %1337 = vmatpush.msra.mxu0 0.0
        %1338 = vmatpush.msra.mxu0 0.0
        %1339 = vmatpush.msra.mxu0 0.0
        %1340 = vmatpush.msra.mxu0 0.0
        %1341 = vmatpush.msra.mxu0 0.0
        %1342 = vmatpush.msra.mxu0 0.0
        %1343 = vmatpush.msra.mxu0 0.0
        %1344 = vmatpush.msra.mxu0 0.0
        %1345 = vmatpush.msra.mxu0 0.0
        %1346 = vmatpush.msra.mxu0 0.0
        %1347 = vmatpush.msra.mxu0 %v1166
        %1348 = vmatpush.msra.mxu0 %v1031
        %1349 = vmatmul.f32.gmra.mxu0 %v1191
        %v1350 = vpop.f32.mrf.mxu0
        %v1351 = vadd.f32 %v1187, %v1350
        %1352 = vdwg.mxu0
        %1353 = vmatpush.msra.mxu0 0.0
        %1354 = vmatpush.msra.mxu0 0.0
        %1355 = vmatpush.msra.mxu0 0.0
        %1356 = vmatpush.msra.mxu0 0.0
        %1357 = vmatpush.msra.mxu0 0.0
        %1358 = vmatpush.msra.mxu0 0.0
        %1359 = vmatpush.msra.mxu0 0.0
        %1360 = vmatpush.msra.mxu0 0.0
        %1361 = vmatpush.msra.mxu0 0.0
        %1362 = vmatpush.msra.mxu0 0.0
        %1363 = vmatpush.msra.mxu0 0.0
        %1364 = vmatpush.msra.mxu0 0.0
        %1365 = vmatpush.msra.mxu0 0.0
        %1366 = vmatpush.msra.mxu0 0.0
        %1367 = vmatpush.msra.mxu0 %v1181
        %1368 = vmatpush.msra.mxu0 %v1046
        %1369 = vmatmul.f32.gmra.mxu0 %v1191
        %v1370 = vpop.f32.mrf.mxu0
        %v1371 = vadd.f32 %v1187, %v1370
        %1372 = vdwg.mxu0
        %v1373 = vxor.u32 %v1211, 2147483648
        %v1374 = vxor.u32 %v1231, 2147483648
        %v1375 = vxor.u32 %v1251, 2147483648
        %v1376 = vxor.u32 %v1271, 2147483648
        %v1377 = vxor.u32 %v1291, 2147483648
        %v1378 = vxor.u32 %v1311, 2147483648
        %v1379 = vxor.u32 %v1331, 2147483648
        %v1380 = vxor.u32 %v1351, 2147483648
        %v1381 = vxor.u32 %v1371, 2147483648
        %v1382 = vmul.f32 %v1373, 1.442695
        %v1383 = vpow.pop %v1382
        %v1384 = vmul.f32 %v1374, 1.442695
        %v1385 = vpow.pop %v1384
        %v1386 = vmul.f32 %v1375, 1.442695
        %v1387 = vpow.pop %v1386
        %v1388 = vmul.f32 %v1376, 1.442695
        %v1389 = vpow.pop %v1388
        %v1390 = vmul.f32 %v1377, 1.442695
        %v1391 = vpow.pop %v1390
        %v1392 = vmul.f32 %v1378, 1.442695
        %v1393 = vpow.pop %v1392
        %v1394 = vmul.f32 %v1379, 1.442695
        %v1395 = vpow.pop %v1394
        %v1396 = vmul.f32 %v1380, 1.442695
        %v1397 = vpow.pop %v1396
        %v1398 = vmul.f32 %v1381, 1.442695
        %v1399 = vpow.pop %v1398
        %v1400 = vadd.f32 %v1383, 1.0
        %v1401 = vadd.f32 %v1385, 1.0
        %v1402 = vadd.f32 %v1387, 1.0
        %v1403 = vadd.f32 %v1389, 1.0
        %v1404 = vadd.f32 %v1391, 1.0
        %v1405 = vadd.f32 %v1393, 1.0
        %v1406 = vadd.f32 %v1395, 1.0
        %v1407 = vadd.f32 %v1397, 1.0
        %v1408 = vadd.f32 %v1399, 1.0
        %v1409 = vrcp.pop %v1400
        %v1410 = vmul.f32 %v1400, %v1409
        %v1411 = vsub.f32 1.0, %v1410
        %v1412 = vmul.f32 %v1409, %v1411
        %v1413 = vadd.f32 %v1409, %v1412
        %vm1414 = vweird.f32 %v1400
        %vm1415 = vweird.f32 %v1409
        %vm1416 = vmor %vm1414, %vm1415
        %v1417 = vsel %vm1416, %v1409, %v1413
        %v1418 = vand.u32 2147483647, %v1400
        %vm1419 = vcmp.eq.f32.partialorder %v1418, 8.507059e+37
        %v1420 = vand.u32 %v1400, 2147483648
        %v1421 = vor.u32 1.1754944e-38, %v1420
        %v1422 = vsel %vm1419, %v1421, %v1417
        %v1423 = vmul.f32 1.0, %v1422
        %v1424 = vrcp.pop %v1401
        %v1425 = vmul.f32 %v1401, %v1424
        %v1426 = vsub.f32 1.0, %v1425
        %v1427 = vmul.f32 %v1424, %v1426
        %v1428 = vadd.f32 %v1424, %v1427
        %vm1429 = vweird.f32 %v1401
        %vm1430 = vweird.f32 %v1424
        %vm1431 = vmor %vm1429, %vm1430
        %v1432 = vsel %vm1431, %v1424, %v1428
        %v1433 = vand.u32 2147483647, %v1401
        %vm1434 = vcmp.eq.f32.partialorder %v1433, 8.507059e+37
        %v1435 = vand.u32 %v1401, 2147483648
        %v1436 = vor.u32 1.1754944e-38, %v1435
        %v1437 = vsel %vm1434, %v1436, %v1432
        %v1438 = vmul.f32 1.0, %v1437
        %v1439 = vrcp.pop %v1402
        %v1440 = vmul.f32 %v1402, %v1439
        %v1441 = vsub.f32 1.0, %v1440
        %v1442 = vmul.f32 %v1439, %v1441
        %v1443 = vadd.f32 %v1439, %v1442
        %vm1444 = vweird.f32 %v1402
        %vm1445 = vweird.f32 %v1439
        %vm1446 = vmor %vm1444, %vm1445
        %v1447 = vsel %vm1446, %v1439, %v1443
        %v1448 = vand.u32 2147483647, %v1402
        %vm1449 = vcmp.eq.f32.partialorder %v1448, 8.507059e+37
        %v1450 = vand.u32 %v1402, 2147483648
        %v1451 = vor.u32 1.1754944e-38, %v1450
        %v1452 = vsel %vm1449, %v1451, %v1447
        %v1453 = vmul.f32 1.0, %v1452
        %v1454 = vrcp.pop %v1403
        %v1455 = vmul.f32 %v1403, %v1454
        %v1456 = vsub.f32 1.0, %v1455
        %v1457 = vmul.f32 %v1454, %v1456
        %v1458 = vadd.f32 %v1454, %v1457
        %vm1459 = vweird.f32 %v1403
        %vm1460 = vweird.f32 %v1454
        %vm1461 = vmor %vm1459, %vm1460
        %v1462 = vsel %vm1461, %v1454, %v1458
        %v1463 = vand.u32 2147483647, %v1403
        %vm1464 = vcmp.eq.f32.partialorder %v1463, 8.507059e+37
        %v1465 = vand.u32 %v1403, 2147483648
        %v1466 = vor.u32 1.1754944e-38, %v1465
        %v1467 = vsel %vm1464, %v1466, %v1462
        %v1468 = vmul.f32 1.0, %v1467
        %v1469 = vrcp.pop %v1404
        %v1470 = vmul.f32 %v1404, %v1469
        %v1471 = vsub.f32 1.0, %v1470
        %v1472 = vmul.f32 %v1469, %v1471
        %v1473 = vadd.f32 %v1469, %v1472
        %vm1474 = vweird.f32 %v1404
        %vm1475 = vweird.f32 %v1469
        %vm1476 = vmor %vm1474, %vm1475
        %v1477 = vsel %vm1476, %v1469, %v1473
        %v1478 = vand.u32 2147483647, %v1404
        %vm1479 = vcmp.eq.f32.partialorder %v1478, 8.507059e+37
        %v1480 = vand.u32 %v1404, 2147483648
        %v1481 = vor.u32 1.1754944e-38, %v1480
        %v1482 = vsel %vm1479, %v1481, %v1477
        %v1483 = vmul.f32 1.0, %v1482
        %v1484 = vrcp.pop %v1405
        %v1485 = vmul.f32 %v1405, %v1484
        %v1486 = vsub.f32 1.0, %v1485
        %v1487 = vmul.f32 %v1484, %v1486
        %v1488 = vadd.f32 %v1484, %v1487
        %vm1489 = vweird.f32 %v1405
        %vm1490 = vweird.f32 %v1484
        %vm1491 = vmor %vm1489, %vm1490
        %v1492 = vsel %vm1491, %v1484, %v1488
        %v1493 = vand.u32 2147483647, %v1405
        %vm1494 = vcmp.eq.f32.partialorder %v1493, 8.507059e+37
        %v1495 = vand.u32 %v1405, 2147483648
        %v1496 = vor.u32 1.1754944e-38, %v1495
        %v1497 = vsel %vm1494, %v1496, %v1492
        %v1498 = vmul.f32 1.0, %v1497
        %v1499 = vrcp.pop %v1406
        %v1500 = vmul.f32 %v1406, %v1499
        %v1501 = vsub.f32 1.0, %v1500
        %v1502 = vmul.f32 %v1499, %v1501
        %v1503 = vadd.f32 %v1499, %v1502
        %vm1504 = vweird.f32 %v1406
        %vm1505 = vweird.f32 %v1499
        %vm1506 = vmor %vm1504, %vm1505
        %v1507 = vsel %vm1506, %v1499, %v1503
        %v1508 = vand.u32 2147483647, %v1406
        %vm1509 = vcmp.eq.f32.partialorder %v1508, 8.507059e+37
        %v1510 = vand.u32 %v1406, 2147483648
        %v1511 = vor.u32 1.1754944e-38, %v1510
        %v1512 = vsel %vm1509, %v1511, %v1507
        %v1513 = vmul.f32 1.0, %v1512
        %v1514 = vrcp.pop %v1407
        %v1515 = vmul.f32 %v1407, %v1514
        %v1516 = vsub.f32 1.0, %v1515
        %v1517 = vmul.f32 %v1514, %v1516
        %v1518 = vadd.f32 %v1514, %v1517
        %vm1519 = vweird.f32 %v1407
        %vm1520 = vweird.f32 %v1514
        %vm1521 = vmor %vm1519, %vm1520
        %v1522 = vsel %vm1521, %v1514, %v1518
        %v1523 = vand.u32 2147483647, %v1407
        %vm1524 = vcmp.eq.f32.partialorder %v1523, 8.507059e+37
        %v1525 = vand.u32 %v1407, 2147483648
        %v1526 = vor.u32 1.1754944e-38, %v1525
        %v1527 = vsel %vm1524, %v1526, %v1522
        %v1528 = vmul.f32 1.0, %v1527
        %v1529 = vrcp.pop %v1408
        %v1530 = vmul.f32 %v1408, %v1529
        %v1531 = vsub.f32 1.0, %v1530
        %v1532 = vmul.f32 %v1529, %v1531
        %v1533 = vadd.f32 %v1529, %v1532
        %vm1534 = vweird.f32 %v1408
        %vm1535 = vweird.f32 %v1529
        %vm1536 = vmor %vm1534, %vm1535
        %v1537 = vsel %vm1536, %v1529, %v1533
        %v1538 = vand.u32 2147483647, %v1408
        %vm1539 = vcmp.eq.f32.partialorder %v1538, 8.507059e+37
        %v1540 = vand.u32 %v1408, 2147483648
        %v1541 = vor.u32 1.1754944e-38, %v1540
        %v1542 = vsel %vm1539, %v1541, %v1537
        %v1543 = vmul.f32 1.0, %v1542
        %v1544 = vld [vmem:[%s8] sm:$0xff]
        %v1545 = vld [vmem:[%s8 + $0x8] sm:$0xff]
        %v1546 = vld [vmem:[%s9] sm:$0xff]
        %v1547 = vld [vmem:[%s9 + $0x8] sm:$0xff]
        %1549 = vset.pattern.permute.xlu0 0
        %1550 = vperm.xlu0 %1549, %v1546
        %v1551 = vpop.permute.xlu0 %1550
        %1554 = vset.pattern.permute.xlu0 0
        %1555 = vperm.xlu0 %1554, %v1547
        %v1556 = vpop.permute.xlu0 %1555
        %vm1558 = vcmask 64512
        %v1560 = vsel %vm1558, %v1544, 0
        %v1563 = vsel %vm1558, %v1545, 0
        %1565 = vmatpush.msra.mxu0 0.0
        %1566 = vmatpush.msra.mxu0 0.0
        %1567 = vmatpush.msra.mxu0 0.0
        %1568 = vmatpush.msra.mxu0 0.0
        %1569 = vmatpush.msra.mxu0 0.0
        %1570 = vmatpush.msra.mxu0 0.0
        %1571 = vmatpush.msra.mxu0 0.0
        %1572 = vmatpush.msra.mxu0 0.0
        %1573 = vmatpush.msra.mxu0 0.0
        %1574 = vmatpush.msra.mxu0 0.0
        %1575 = vmatpush.msra.mxu0 0.0
        %1576 = vmatpush.msra.mxu0 0.0
        %1577 = vmatpush.msra.mxu0 0.0
        %1578 = vmatpush.msra.mxu0 0.0
        %1579 = vmatpush.msra.mxu0 0.0
        %1580 = vmatpush.msra.mxu0 %v1423
        %1581 = vmatmul.f32.gmra.mxu0 %v1560
        %v1582 = vpop.f32.mrf.mxu0
        %v1583 = vadd.f32 %v1551, %v1582
        %1584 = vmatmul.f32.gmra.mxu0 %v1563
        %v1585 = vpop.f32.mrf.mxu0
        %v1586 = vadd.f32 %v1556, %v1585
        %1587 = vdwg.mxu0
        %1588 = vmatpush.msra.mxu0 0.0
        %1589 = vmatpush.msra.mxu0 0.0
        %1590 = vmatpush.msra.mxu0 0.0
        %1591 = vmatpush.msra.mxu0 0.0
        %1592 = vmatpush.msra.mxu0 0.0
        %1593 = vmatpush.msra.mxu0 0.0
        %1594 = vmatpush.msra.mxu0 0.0
        %1595 = vmatpush.msra.mxu0 0.0
        %1596 = vmatpush.msra.mxu0 0.0
        %1597 = vmatpush.msra.mxu0 0.0
        %1598 = vmatpush.msra.mxu0 0.0
        %1599 = vmatpush.msra.mxu0 0.0
        %1600 = vmatpush.msra.mxu0 0.0
        %1601 = vmatpush.msra.mxu0 0.0
        %1602 = vmatpush.msra.mxu0 0.0
        %1603 = vmatpush.msra.mxu0 %v1438
        %1604 = vmatmul.f32.gmra.mxu0 %v1560
        %v1605 = vpop.f32.mrf.mxu0
        %v1606 = vadd.f32 %v1551, %v1605
        %1607 = vmatmul.f32.gmra.mxu0 %v1563
        %v1608 = vpop.f32.mrf.mxu0
        %v1609 = vadd.f32 %v1556, %v1608
        %1610 = vdwg.mxu0
        %1611 = vmatpush.msra.mxu0 0.0
        %1612 = vmatpush.msra.mxu0 0.0
        %1613 = vmatpush.msra.mxu0 0.0
        %1614 = vmatpush.msra.mxu0 0.0
        %1615 = vmatpush.msra.mxu0 0.0
        %1616 = vmatpush.msra.mxu0 0.0
        %1617 = vmatpush.msra.mxu0 0.0
        %1618 = vmatpush.msra.mxu0 0.0
        %1619 = vmatpush.msra.mxu0 0.0
        %1620 = vmatpush.msra.mxu0 0.0
        %1621 = vmatpush.msra.mxu0 0.0
        %1622 = vmatpush.msra.mxu0 0.0
        %1623 = vmatpush.msra.mxu0 0.0
        %1624 = vmatpush.msra.mxu0 0.0
        %1625 = vmatpush.msra.mxu0 0.0
        %1626 = vmatpush.msra.mxu0 %v1453
        %1627 = vmatmul.f32.gmra.mxu0 %v1560
        %v1628 = vpop.f32.mrf.mxu0
        %v1629 = vadd.f32 %v1551, %v1628
        %1630 = vmatmul.f32.gmra.mxu0 %v1563
        %v1631 = vpop.f32.mrf.mxu0
        %v1632 = vadd.f32 %v1556, %v1631
        %1633 = vdwg.mxu0
        %1634 = vmatpush.msra.mxu0 0.0
        %1635 = vmatpush.msra.mxu0 0.0
        %1636 = vmatpush.msra.mxu0 0.0
        %1637 = vmatpush.msra.mxu0 0.0
        %1638 = vmatpush.msra.mxu0 0.0
        %1639 = vmatpush.msra.mxu0 0.0
        %1640 = vmatpush.msra.mxu0 0.0
        %1641 = vmatpush.msra.mxu0 0.0
        %1642 = vmatpush.msra.mxu0 0.0
        %1643 = vmatpush.msra.mxu0 0.0
        %1644 = vmatpush.msra.mxu0 0.0
        %1645 = vmatpush.msra.mxu0 0.0
        %1646 = vmatpush.msra.mxu0 0.0
        %1647 = vmatpush.msra.mxu0 0.0
        %1648 = vmatpush.msra.mxu0 0.0
        %1649 = vmatpush.msra.mxu0 %v1468
        %1650 = vmatmul.f32.gmra.mxu0 %v1560
        %v1651 = vpop.f32.mrf.mxu0
        %v1652 = vadd.f32 %v1551, %v1651
        %1653 = vmatmul.f32.gmra.mxu0 %v1563
        %v1654 = vpop.f32.mrf.mxu0
        %v1655 = vadd.f32 %v1556, %v1654
        %1656 = vdwg.mxu0
        %1657 = vmatpush.msra.mxu0 0.0
        %1658 = vmatpush.msra.mxu0 0.0
        %1659 = vmatpush.msra.mxu0 0.0
        %1660 = vmatpush.msra.mxu0 0.0
        %1661 = vmatpush.msra.mxu0 0.0
        %1662 = vmatpush.msra.mxu0 0.0
        %1663 = vmatpush.msra.mxu0 0.0
        %1664 = vmatpush.msra.mxu0 0.0
        %1665 = vmatpush.msra.mxu0 0.0
        %1666 = vmatpush.msra.mxu0 0.0
        %1667 = vmatpush.msra.mxu0 0.0
        %1668 = vmatpush.msra.mxu0 0.0
        %1669 = vmatpush.msra.mxu0 0.0
        %1670 = vmatpush.msra.mxu0 0.0
        %1671 = vmatpush.msra.mxu0 0.0
        %1672 = vmatpush.msra.mxu0 %v1483
        %1673 = vmatmul.f32.gmra.mxu0 %v1560
        %v1674 = vpop.f32.mrf.mxu0
        %v1675 = vadd.f32 %v1551, %v1674
        %1676 = vmatmul.f32.gmra.mxu0 %v1563
        %v1677 = vpop.f32.mrf.mxu0
        %v1678 = vadd.f32 %v1556, %v1677
        %1679 = vdwg.mxu0
        %1680 = vmatpush.msra.mxu0 0.0
        %1681 = vmatpush.msra.mxu0 0.0
        %1682 = vmatpush.msra.mxu0 0.0
        %1683 = vmatpush.msra.mxu0 0.0
        %1684 = vmatpush.msra.mxu0 0.0
        %1685 = vmatpush.msra.mxu0 0.0
        %1686 = vmatpush.msra.mxu0 0.0
        %1687 = vmatpush.msra.mxu0 0.0
        %1688 = vmatpush.msra.mxu0 0.0
        %1689 = vmatpush.msra.mxu0 0.0
        %1690 = vmatpush.msra.mxu0 0.0
        %1691 = vmatpush.msra.mxu0 0.0
        %1692 = vmatpush.msra.mxu0 0.0
        %1693 = vmatpush.msra.mxu0 0.0
        %1694 = vmatpush.msra.mxu0 0.0
        %1695 = vmatpush.msra.mxu0 %v1498
        %1696 = vmatmul.f32.gmra.mxu0 %v1560
        %v1697 = vpop.f32.mrf.mxu0
        %v1698 = vadd.f32 %v1551, %v1697
        %1699 = vmatmul.f32.gmra.mxu0 %v1563
        %v1700 = vpop.f32.mrf.mxu0
        %v1701 = vadd.f32 %v1556, %v1700
        %1702 = vdwg.mxu0
        %1703 = vmatpush.msra.mxu0 0.0
        %1704 = vmatpush.msra.mxu0 0.0
        %1705 = vmatpush.msra.mxu0 0.0
        %1706 = vmatpush.msra.mxu0 0.0
        %1707 = vmatpush.msra.mxu0 0.0
        %1708 = vmatpush.msra.mxu0 0.0
        %1709 = vmatpush.msra.mxu0 0.0
        %1710 = vmatpush.msra.mxu0 0.0
        %1711 = vmatpush.msra.mxu0 0.0
        %1712 = vmatpush.msra.mxu0 0.0
        %1713 = vmatpush.msra.mxu0 0.0
        %1714 = vmatpush.msra.mxu0 0.0
        %1715 = vmatpush.msra.mxu0 0.0
        %1716 = vmatpush.msra.mxu0 0.0
        %1717 = vmatpush.msra.mxu0 0.0
        %1718 = vmatpush.msra.mxu0 %v1513
        %1719 = vmatmul.f32.gmra.mxu0 %v1560
        %v1720 = vpop.f32.mrf.mxu0
        %v1721 = vadd.f32 %v1551, %v1720
        %1722 = vmatmul.f32.gmra.mxu0 %v1563
        %v1723 = vpop.f32.mrf.mxu0
        %v1724 = vadd.f32 %v1556, %v1723
        %1725 = vdwg.mxu0
        %1726 = vmatpush.msra.mxu0 0.0
        %1727 = vmatpush.msra.mxu0 0.0
        %1728 = vmatpush.msra.mxu0 0.0
        %1729 = vmatpush.msra.mxu0 0.0
        %1730 = vmatpush.msra.mxu0 0.0
        %1731 = vmatpush.msra.mxu0 0.0
        %1732 = vmatpush.msra.mxu0 0.0
        %1733 = vmatpush.msra.mxu0 0.0
        %1734 = vmatpush.msra.mxu0 0.0
        %1735 = vmatpush.msra.mxu0 0.0
        %1736 = vmatpush.msra.mxu0 0.0
        %1737 = vmatpush.msra.mxu0 0.0
        %1738 = vmatpush.msra.mxu0 0.0
        %1739 = vmatpush.msra.mxu0 0.0
        %1740 = vmatpush.msra.mxu0 0.0
        %1741 = vmatpush.msra.mxu0 %v1528
        %1742 = vmatmul.f32.gmra.mxu0 %v1560
        %v1743 = vpop.f32.mrf.mxu0
        %v1744 = vadd.f32 %v1551, %v1743
        %1745 = vmatmul.f32.gmra.mxu0 %v1563
        %v1746 = vpop.f32.mrf.mxu0
        %v1747 = vadd.f32 %v1556, %v1746
        %1748 = vdwg.mxu0
        %1749 = vmatpush.msra.mxu0 0.0
        %1750 = vmatpush.msra.mxu0 0.0
        %1751 = vmatpush.msra.mxu0 0.0
        %1752 = vmatpush.msra.mxu0 0.0
        %1753 = vmatpush.msra.mxu0 0.0
        %1754 = vmatpush.msra.mxu0 0.0
        %1755 = vmatpush.msra.mxu0 0.0
        %1756 = vmatpush.msra.mxu0 0.0
        %1757 = vmatpush.msra.mxu0 0.0
        %1758 = vmatpush.msra.mxu0 0.0
        %1759 = vmatpush.msra.mxu0 0.0
        %1760 = vmatpush.msra.mxu0 0.0
        %1761 = vmatpush.msra.mxu0 0.0
        %1762 = vmatpush.msra.mxu0 0.0
        %1763 = vmatpush.msra.mxu0 0.0
        %1764 = vmatpush.msra.mxu0 %v1543
        %1765 = vmatmul.f32.gmra.mxu0 %v1560
        %v1766 = vpop.f32.mrf.mxu0
        %v1767 = vadd.f32 %v1551, %v1766
        %1768 = vmatmul.f32.gmra.mxu0 %v1563
        %v1769 = vpop.f32.mrf.mxu0
        %v1770 = vadd.f32 %v1556, %v1769
        %1771 = vdwg.mxu0
        %v1772 = vxor.u32 %v1583, 2147483648
        %v1773 = vxor.u32 %v1606, 2147483648
        %v1774 = vxor.u32 %v1629, 2147483648
        %v1775 = vxor.u32 %v1652, 2147483648
        %v1776 = vxor.u32 %v1675, 2147483648
        %v1777 = vxor.u32 %v1698, 2147483648
        %v1778 = vxor.u32 %v1721, 2147483648
        %v1779 = vxor.u32 %v1744, 2147483648
        %v1780 = vxor.u32 %v1767, 2147483648
        %v1781 = vxor.u32 %v1586, 2147483648
        %v1782 = vxor.u32 %v1609, 2147483648
        %v1783 = vxor.u32 %v1632, 2147483648
        %v1784 = vxor.u32 %v1655, 2147483648
        %v1785 = vxor.u32 %v1678, 2147483648
        %v1786 = vxor.u32 %v1701, 2147483648
        %v1787 = vxor.u32 %v1724, 2147483648
        %v1788 = vxor.u32 %v1747, 2147483648
        %v1789 = vxor.u32 %v1770, 2147483648
        %v1790 = vmul.f32 %v1772, 1.442695
        %v1791 = vpow.pop %v1790
        %v1792 = vmul.f32 %v1773, 1.442695
        %v1793 = vpow.pop %v1792
        %v1794 = vmul.f32 %v1774, 1.442695
        %v1795 = vpow.pop %v1794
        %v1796 = vmul.f32 %v1775, 1.442695
        %v1797 = vpow.pop %v1796
        %v1798 = vmul.f32 %v1776, 1.442695
        %v1799 = vpow.pop %v1798
        %v1800 = vmul.f32 %v1777, 1.442695
        %v1801 = vpow.pop %v1800
        %v1802 = vmul.f32 %v1778, 1.442695
        %v1803 = vpow.pop %v1802
        %v1804 = vmul.f32 %v1779, 1.442695
        %v1805 = vpow.pop %v1804
        %v1806 = vmul.f32 %v1780, 1.442695
        %v1807 = vpow.pop %v1806
        %v1808 = vmul.f32 %v1781, 1.442695
        %v1809 = vpow.pop %v1808
        %v1810 = vmul.f32 %v1782, 1.442695
        %v1811 = vpow.pop %v1810
        %v1812 = vmul.f32 %v1783, 1.442695
        %v1813 = vpow.pop %v1812
        %v1814 = vmul.f32 %v1784, 1.442695
        %v1815 = vpow.pop %v1814
        %v1816 = vmul.f32 %v1785, 1.442695
        %v1817 = vpow.pop %v1816
        %v1818 = vmul.f32 %v1786, 1.442695
        %v1819 = vpow.pop %v1818
        %v1820 = vmul.f32 %v1787, 1.442695
        %v1821 = vpow.pop %v1820
        %v1822 = vmul.f32 %v1788, 1.442695
        %v1823 = vpow.pop %v1822
        %v1824 = vmul.f32 %v1789, 1.442695
        %v1825 = vpow.pop %v1824
        %v1826 = vadd.f32 %v1791, 1.0
        %v1827 = vadd.f32 %v1793, 1.0
        %v1828 = vadd.f32 %v1795, 1.0
        %v1829 = vadd.f32 %v1797, 1.0
        %v1830 = vadd.f32 %v1799, 1.0
        %v1831 = vadd.f32 %v1801, 1.0
        %v1832 = vadd.f32 %v1803, 1.0
        %v1833 = vadd.f32 %v1805, 1.0
        %v1834 = vadd.f32 %v1807, 1.0
        %v1835 = vadd.f32 %v1809, 1.0
        %v1836 = vadd.f32 %v1811, 1.0
        %v1837 = vadd.f32 %v1813, 1.0
        %v1838 = vadd.f32 %v1815, 1.0
        %v1839 = vadd.f32 %v1817, 1.0
        %v1840 = vadd.f32 %v1819, 1.0
        %v1841 = vadd.f32 %v1821, 1.0
        %v1842 = vadd.f32 %v1823, 1.0
        %v1843 = vadd.f32 %v1825, 1.0
        %v1844 = vrcp.pop %v1826
        %v1845 = vmul.f32 %v1826, %v1844
        %v1846 = vsub.f32 1.0, %v1845
        %v1847 = vmul.f32 %v1844, %v1846
        %v1848 = vadd.f32 %v1844, %v1847
        %vm1849 = vweird.f32 %v1826
        %vm1850 = vweird.f32 %v1844
        %vm1851 = vmor %vm1849, %vm1850
        %v1852 = vsel %vm1851, %v1844, %v1848
        %v1853 = vand.u32 2147483647, %v1826
        %vm1854 = vcmp.eq.f32.partialorder %v1853, 8.507059e+37
        %v1855 = vand.u32 %v1826, 2147483648
        %v1856 = vor.u32 1.1754944e-38, %v1855
        %v1857 = vsel %vm1854, %v1856, %v1852
        %v1858 = vmul.f32 1.0, %v1857
        %v1859 = vrcp.pop %v1827
        %v1860 = vmul.f32 %v1827, %v1859
        %v1861 = vsub.f32 1.0, %v1860
        %v1862 = vmul.f32 %v1859, %v1861
        %v1863 = vadd.f32 %v1859, %v1862
        %vm1864 = vweird.f32 %v1827
        %vm1865 = vweird.f32 %v1859
        %vm1866 = vmor %vm1864, %vm1865
        %v1867 = vsel %vm1866, %v1859, %v1863
        %v1868 = vand.u32 2147483647, %v1827
        %vm1869 = vcmp.eq.f32.partialorder %v1868, 8.507059e+37
        %v1870 = vand.u32 %v1827, 2147483648
        %v1871 = vor.u32 1.1754944e-38, %v1870
        %v1872 = vsel %vm1869, %v1871, %v1867
        %v1873 = vmul.f32 1.0, %v1872
        %v1874 = vrcp.pop %v1828
        %v1875 = vmul.f32 %v1828, %v1874
        %v1876 = vsub.f32 1.0, %v1875
        %v1877 = vmul.f32 %v1874, %v1876
        %v1878 = vadd.f32 %v1874, %v1877
        %vm1879 = vweird.f32 %v1828
        %vm1880 = vweird.f32 %v1874
        %vm1881 = vmor %vm1879, %vm1880
        %v1882 = vsel %vm1881, %v1874, %v1878
        %v1883 = vand.u32 2147483647, %v1828
        %vm1884 = vcmp.eq.f32.partialorder %v1883, 8.507059e+37
        %v1885 = vand.u32 %v1828, 2147483648
        %v1886 = vor.u32 1.1754944e-38, %v1885
        %v1887 = vsel %vm1884, %v1886, %v1882
        %v1888 = vmul.f32 1.0, %v1887
        %v1889 = vrcp.pop %v1829
        %v1890 = vmul.f32 %v1829, %v1889
        %v1891 = vsub.f32 1.0, %v1890
        %v1892 = vmul.f32 %v1889, %v1891
        %v1893 = vadd.f32 %v1889, %v1892
        %vm1894 = vweird.f32 %v1829
        %vm1895 = vweird.f32 %v1889
        %vm1896 = vmor %vm1894, %vm1895
        %v1897 = vsel %vm1896, %v1889, %v1893
        %v1898 = vand.u32 2147483647, %v1829
        %vm1899 = vcmp.eq.f32.partialorder %v1898, 8.507059e+37
        %v1900 = vand.u32 %v1829, 2147483648
        %v1901 = vor.u32 1.1754944e-38, %v1900
        %v1902 = vsel %vm1899, %v1901, %v1897
        %v1903 = vmul.f32 1.0, %v1902
        %v1904 = vrcp.pop %v1830
        %v1905 = vmul.f32 %v1830, %v1904
        %v1906 = vsub.f32 1.0, %v1905
        %v1907 = vmul.f32 %v1904, %v1906
        %v1908 = vadd.f32 %v1904, %v1907
        %vm1909 = vweird.f32 %v1830
        %vm1910 = vweird.f32 %v1904
        %vm1911 = vmor %vm1909, %vm1910
        %v1912 = vsel %vm1911, %v1904, %v1908
        %v1913 = vand.u32 2147483647, %v1830
        %vm1914 = vcmp.eq.f32.partialorder %v1913, 8.507059e+37
        %v1915 = vand.u32 %v1830, 2147483648
        %v1916 = vor.u32 1.1754944e-38, %v1915
        %v1917 = vsel %vm1914, %v1916, %v1912
        %v1918 = vmul.f32 1.0, %v1917
        %v1919 = vrcp.pop %v1831
        %v1920 = vmul.f32 %v1831, %v1919
        %v1921 = vsub.f32 1.0, %v1920
        %v1922 = vmul.f32 %v1919, %v1921
        %v1923 = vadd.f32 %v1919, %v1922
        %vm1924 = vweird.f32 %v1831
        %vm1925 = vweird.f32 %v1919
        %vm1926 = vmor %vm1924, %vm1925
        %v1927 = vsel %vm1926, %v1919, %v1923
        %v1928 = vand.u32 2147483647, %v1831
        %vm1929 = vcmp.eq.f32.partialorder %v1928, 8.507059e+37
        %v1930 = vand.u32 %v1831, 2147483648
        %v1931 = vor.u32 1.1754944e-38, %v1930
        %v1932 = vsel %vm1929, %v1931, %v1927
        %v1933 = vmul.f32 1.0, %v1932
        %v1934 = vrcp.pop %v1832
        %v1935 = vmul.f32 %v1832, %v1934
        %v1936 = vsub.f32 1.0, %v1935
        %v1937 = vmul.f32 %v1934, %v1936
        %v1938 = vadd.f32 %v1934, %v1937
        %vm1939 = vweird.f32 %v1832
        %vm1940 = vweird.f32 %v1934
        %vm1941 = vmor %vm1939, %vm1940
        %v1942 = vsel %vm1941, %v1934, %v1938
        %v1943 = vand.u32 2147483647, %v1832
        %vm1944 = vcmp.eq.f32.partialorder %v1943, 8.507059e+37
        %v1945 = vand.u32 %v1832, 2147483648
        %v1946 = vor.u32 1.1754944e-38, %v1945
        %v1947 = vsel %vm1944, %v1946, %v1942
        %v1948 = vmul.f32 1.0, %v1947
        %v1949 = vrcp.pop %v1833
        %v1950 = vmul.f32 %v1833, %v1949
        %v1951 = vsub.f32 1.0, %v1950
        %v1952 = vmul.f32 %v1949, %v1951
        %v1953 = vadd.f32 %v1949, %v1952
        %vm1954 = vweird.f32 %v1833
        %vm1955 = vweird.f32 %v1949
        %vm1956 = vmor %vm1954, %vm1955
        %v1957 = vsel %vm1956, %v1949, %v1953
        %v1958 = vand.u32 2147483647, %v1833
        %vm1959 = vcmp.eq.f32.partialorder %v1958, 8.507059e+37
        %v1960 = vand.u32 %v1833, 2147483648
        %v1961 = vor.u32 1.1754944e-38, %v1960
        %v1962 = vsel %vm1959, %v1961, %v1957
        %v1963 = vmul.f32 1.0, %v1962
        %v1964 = vrcp.pop %v1834
        %v1965 = vmul.f32 %v1834, %v1964
        %v1966 = vsub.f32 1.0, %v1965
        %v1967 = vmul.f32 %v1964, %v1966
        %v1968 = vadd.f32 %v1964, %v1967
        %vm1969 = vweird.f32 %v1834
        %vm1970 = vweird.f32 %v1964
        %vm1971 = vmor %vm1969, %vm1970
        %v1972 = vsel %vm1971, %v1964, %v1968
        %v1973 = vand.u32 2147483647, %v1834
        %vm1974 = vcmp.eq.f32.partialorder %v1973, 8.507059e+37
        %v1975 = vand.u32 %v1834, 2147483648
        %v1976 = vor.u32 1.1754944e-38, %v1975
        %v1977 = vsel %vm1974, %v1976, %v1972
        %v1978 = vmul.f32 1.0, %v1977
        %v1979 = vrcp.pop %v1835
        %v1980 = vmul.f32 %v1835, %v1979
        %v1981 = vsub.f32 1.0, %v1980
        %v1982 = vmul.f32 %v1979, %v1981
        %v1983 = vadd.f32 %v1979, %v1982
        %vm1984 = vweird.f32 %v1835
        %vm1985 = vweird.f32 %v1979
        %vm1986 = vmor %vm1984, %vm1985
        %v1987 = vsel %vm1986, %v1979, %v1983
        %v1988 = vand.u32 2147483647, %v1835
        %vm1989 = vcmp.eq.f32.partialorder %v1988, 8.507059e+37
        %v1990 = vand.u32 %v1835, 2147483648
        %v1991 = vor.u32 1.1754944e-38, %v1990
        %v1992 = vsel %vm1989, %v1991, %v1987
        %v1993 = vmul.f32 1.0, %v1992
        %v1994 = vrcp.pop %v1836
        %v1995 = vmul.f32 %v1836, %v1994
        %v1996 = vsub.f32 1.0, %v1995
        %v1997 = vmul.f32 %v1994, %v1996
        %v1998 = vadd.f32 %v1994, %v1997
        %vm1999 = vweird.f32 %v1836
        %vm2000 = vweird.f32 %v1994
        %vm2001 = vmor %vm1999, %vm2000
        %v2002 = vsel %vm2001, %v1994, %v1998
        %v2003 = vand.u32 2147483647, %v1836
        %vm2004 = vcmp.eq.f32.partialorder %v2003, 8.507059e+37
        %v2005 = vand.u32 %v1836, 2147483648
        %v2006 = vor.u32 1.1754944e-38, %v2005
        %v2007 = vsel %vm2004, %v2006, %v2002
        %v2008 = vmul.f32 1.0, %v2007
        %v2009 = vrcp.pop %v1837
        %v2010 = vmul.f32 %v1837, %v2009
        %v2011 = vsub.f32 1.0, %v2010
        %v2012 = vmul.f32 %v2009, %v2011
        %v2013 = vadd.f32 %v2009, %v2012
        %vm2014 = vweird.f32 %v1837
        %vm2015 = vweird.f32 %v2009
        %vm2016 = vmor %vm2014, %vm2015
        %v2017 = vsel %vm2016, %v2009, %v2013
        %v2018 = vand.u32 2147483647, %v1837
        %vm2019 = vcmp.eq.f32.partialorder %v2018, 8.507059e+37
        %v2020 = vand.u32 %v1837, 2147483648
        %v2021 = vor.u32 1.1754944e-38, %v2020
        %v2022 = vsel %vm2019, %v2021, %v2017
        %v2023 = vmul.f32 1.0, %v2022
        %v2024 = vrcp.pop %v1838
        %v2025 = vmul.f32 %v1838, %v2024
        %v2026 = vsub.f32 1.0, %v2025
        %v2027 = vmul.f32 %v2024, %v2026
        %v2028 = vadd.f32 %v2024, %v2027
        %vm2029 = vweird.f32 %v1838
        %vm2030 = vweird.f32 %v2024
        %vm2031 = vmor %vm2029, %vm2030
        %v2032 = vsel %vm2031, %v2024, %v2028
        %v2033 = vand.u32 2147483647, %v1838
        %vm2034 = vcmp.eq.f32.partialorder %v2033, 8.507059e+37
        %v2035 = vand.u32 %v1838, 2147483648
        %v2036 = vor.u32 1.1754944e-38, %v2035
        %v2037 = vsel %vm2034, %v2036, %v2032
        %v2038 = vmul.f32 1.0, %v2037
        %v2039 = vrcp.pop %v1839
        %v2040 = vmul.f32 %v1839, %v2039
        %v2041 = vsub.f32 1.0, %v2040
        %v2042 = vmul.f32 %v2039, %v2041
        %v2043 = vadd.f32 %v2039, %v2042
        %vm2044 = vweird.f32 %v1839
        %vm2045 = vweird.f32 %v2039
        %vm2046 = vmor %vm2044, %vm2045
        %v2047 = vsel %vm2046, %v2039, %v2043
        %v2048 = vand.u32 2147483647, %v1839
        %vm2049 = vcmp.eq.f32.partialorder %v2048, 8.507059e+37
        %v2050 = vand.u32 %v1839, 2147483648
        %v2051 = vor.u32 1.1754944e-38, %v2050
        %v2052 = vsel %vm2049, %v2051, %v2047
        %v2053 = vmul.f32 1.0, %v2052
        %v2054 = vrcp.pop %v1840
        %v2055 = vmul.f32 %v1840, %v2054
        %v2056 = vsub.f32 1.0, %v2055
        %v2057 = vmul.f32 %v2054, %v2056
        %v2058 = vadd.f32 %v2054, %v2057
        %vm2059 = vweird.f32 %v1840
        %vm2060 = vweird.f32 %v2054
        %vm2061 = vmor %vm2059, %vm2060
        %v2062 = vsel %vm2061, %v2054, %v2058
        %v2063 = vand.u32 2147483647, %v1840
        %vm2064 = vcmp.eq.f32.partialorder %v2063, 8.507059e+37
        %v2065 = vand.u32 %v1840, 2147483648
        %v2066 = vor.u32 1.1754944e-38, %v2065
        %v2067 = vsel %vm2064, %v2066, %v2062
        %v2068 = vmul.f32 1.0, %v2067
        %v2069 = vrcp.pop %v1841
        %v2070 = vmul.f32 %v1841, %v2069
        %v2071 = vsub.f32 1.0, %v2070
        %v2072 = vmul.f32 %v2069, %v2071
        %v2073 = vadd.f32 %v2069, %v2072
        %vm2074 = vweird.f32 %v1841
        %vm2075 = vweird.f32 %v2069
        %vm2076 = vmor %vm2074, %vm2075
        %v2077 = vsel %vm2076, %v2069, %v2073
        %v2078 = vand.u32 2147483647, %v1841
        %vm2079 = vcmp.eq.f32.partialorder %v2078, 8.507059e+37
        %v2080 = vand.u32 %v1841, 2147483648
        %v2081 = vor.u32 1.1754944e-38, %v2080
        %v2082 = vsel %vm2079, %v2081, %v2077
        %v2083 = vmul.f32 1.0, %v2082
        %v2084 = vrcp.pop %v1842
        %v2085 = vmul.f32 %v1842, %v2084
        %v2086 = vsub.f32 1.0, %v2085
        %v2087 = vmul.f32 %v2084, %v2086
        %v2088 = vadd.f32 %v2084, %v2087
        %vm2089 = vweird.f32 %v1842
        %vm2090 = vweird.f32 %v2084
        %vm2091 = vmor %vm2089, %vm2090
        %v2092 = vsel %vm2091, %v2084, %v2088
        %v2093 = vand.u32 2147483647, %v1842
        %vm2094 = vcmp.eq.f32.partialorder %v2093, 8.507059e+37
        %v2095 = vand.u32 %v1842, 2147483648
        %v2096 = vor.u32 1.1754944e-38, %v2095
        %v2097 = vsel %vm2094, %v2096, %v2092
        %v2098 = vmul.f32 1.0, %v2097
        %v2099 = vrcp.pop %v1843
        %v2100 = vmul.f32 %v1843, %v2099
        %v2101 = vsub.f32 1.0, %v2100
        %v2102 = vmul.f32 %v2099, %v2101
        %v2103 = vadd.f32 %v2099, %v2102
        %vm2104 = vweird.f32 %v1843
        %vm2105 = vweird.f32 %v2099
        %vm2106 = vmor %vm2104, %vm2105
        %v2107 = vsel %vm2106, %v2099, %v2103
        %v2108 = vand.u32 2147483647, %v1843
        %vm2109 = vcmp.eq.f32.partialorder %v2108, 8.507059e+37
        %v2110 = vand.u32 %v1843, 2147483648
        %v2111 = vor.u32 1.1754944e-38, %v2110
        %v2112 = vsel %vm2109, %v2111, %v2107
        %v2113 = vmul.f32 1.0, %v2112
        %v2114 = vadd.f32 %v926, %v1858
        %v2115 = vadd.f32 %v941, %v1873
        %v2116 = vadd.f32 %v956, %v1888
        %v2117 = vadd.f32 %v971, %v1903
        %v2118 = vadd.f32 %v986, %v1918
        %v2119 = vadd.f32 %v1001, %v1933
        %v2120 = vadd.f32 %v1016, %v1948
        %v2121 = vadd.f32 %v1031, %v1963
        %v2122 = vadd.f32 %v1046, %v1978
        %v2123 = vadd.f32 %v1061, %v1993
        %v2124 = vadd.f32 %v1076, %v2008
        %v2125 = vadd.f32 %v1091, %v2023
        %v2126 = vadd.f32 %v1106, %v2038
        %v2127 = vadd.f32 %v1121, %v2053
        %v2128 = vadd.f32 %v1136, %v2068
        %v2129 = vadd.f32 %v1151, %v2083
        %v2130 = vadd.f32 %v1166, %v2098
        %v2131 = vadd.f32 %v1181, %v2113
        %p2132 = scmp.gt.s32.totalorder %s28, 0
        %s2133 = scalar_select %p2132, 1, 0
        %s2134 = scvt.s32.f32 %s2133
        %p2135 = scmp.lt.s32.totalorder %s28, 3
        %s2136 = scalar_select %p2135, 1, 0
        %s2137 = scvt.s32.f32 %s2136
        %v2138 = vstv %s2134
        %v2139 = vmul.f32 %v2122, %v2138
        %v2140 = vmul.f32 %v2131, %v2138
        %v2141 = vstv %s2137
        %v2142 = vmul.f32 %v2122, %v2141
        %v2143 = vmul.f32 %v2131, %v2141
        %v2144 = vld [vmem:[%s3] ss:$2 sm:$0xff]
        %s2145 = scalar_lea.vmem %s3, 1
        %v2146 = vld [vmem:[%s2145] ss:$2 sm:$0xff]
        %2149 = vrot.lane.b32.xlu0 %v2139, 64
        %v2150 = vpop.permute.xlu0 %2149
        %2151 = vrot.lane.b32.xlu0 %v2140, 64
        %v2152 = vpop.permute.xlu0 %2151
        %v2155 = vsel %vm590, 0.0, %v2150
        %v2156 = vsel %vm590, 0.0, %v2152
        %2157 = vst [vmem:[#allocation2] sm:$0xff] %v2155
        %2158 = vst [vmem:[#allocation2 + $0x50] sm:$0xff] %v2156
        %2159 = vst [vmem:[#allocation2 + $0x8] sm:$0xff] %v2114
        %2160 = vst [vmem:[#allocation2 + $0x10] sm:$0xff] %v2115
        %2161 = vst [vmem:[#allocation2 + $0x18] sm:$0xff] %v2116
        %2162 = vst [vmem:[#allocation2 + $0x20] sm:$0xff] %v2117
        %2163 = vst [vmem:[#allocation2 + $0x28] sm:$0xff] %v2118
        %2164 = vst [vmem:[#allocation2 + $0x30] sm:$0xff] %v2119
        %2165 = vst [vmem:[#allocation2 + $0x38] sm:$0xff] %v2120
        %2166 = vst [vmem:[#allocation2 + $0x40] sm:$0xff] %v2121
        %2167 = vst [vmem:[#allocation2 + $0x58] sm:$0xff] %v2123
        %2168 = vst [vmem:[#allocation2 + $0x60] sm:$0xff] %v2124
        %2169 = vst [vmem:[#allocation2 + $0x68] sm:$0xff] %v2125
        %2170 = vst [vmem:[#allocation2 + $0x70] sm:$0xff] %v2126
        %2171 = vst [vmem:[#allocation2 + $0x78] sm:$0xff] %v2127
        %2172 = vst [vmem:[#allocation2 + $0x80] sm:$0xff] %v2128
        %2173 = vst [vmem:[#allocation2 + $0x88] sm:$0xff] %v2129
        %2174 = vst [vmem:[#allocation2 + $0x90] sm:$0xff] %v2130
        %2177 = vrot.lane.b32.xlu0 %v2142, 64
        %v2178 = vpop.permute.xlu0 %2177
        %2179 = vrot.lane.b32.xlu0 %v2143, 64
        %v2180 = vpop.permute.xlu0 %2179
        %v2183 = vsel %vm590, %v2178, 0.0
        %v2184 = vsel %vm590, %v2180, 0.0
        %2185 = vst [vmem:[#allocation2 + $0x48] sm:$0xff] %v2183
        %2186 = vst [vmem:[#allocation2 + $0x98] sm:$0xff] %v2184
        %v2188 = vperm.slane %v2144, 0
        %v2189 = vperm.slane %v2144, 1
        %v2190 = vperm.slane %v2144, 2
        %v2191 = vperm.slane %v2144, 3
        %v2192 = vperm.slane %v2144, 4
        %v2193 = vperm.slane %v2144, 5
        %v2194 = vperm.slane %v2144, 6
        %v2195 = vperm.slane %v2144, 7
        %v2204 = vmul.f32 %v2114, %v2188
        %v2205 = vmul.f32 %v2115, %v2189
        %v2206 = vmul.f32 %v2116, %v2190
        %v2207 = vmul.f32 %v2117, %v2191
        %v2208 = vmul.f32 %v2118, %v2192
        %v2209 = vmul.f32 %v2119, %v2193
        %v2210 = vmul.f32 %v2120, %v2194
        %v2211 = vmul.f32 %v2121, %v2195
        %v2212 = vmul.f32 %v2123, %v2188
        %v2213 = vmul.f32 %v2124, %v2189
        %v2214 = vmul.f32 %v2125, %v2190
        %v2215 = vmul.f32 %v2126, %v2191
        %v2216 = vmul.f32 %v2127, %v2192
        %v2217 = vmul.f32 %v2128, %v2193
        %v2218 = vmul.f32 %v2129, %v2194
        %v2219 = vmul.f32 %v2130, %v2195
        %v2220 = vmul.f32 %v2139, %v2188
        %v2221 = vmul.f32 %v2140, %v2188
        %2222 = vrot.lane.b32.xlu0 %v2188, 64
        %v2223 = vpop.permute.xlu0 %2222
        %v2225 = vmul.f32 %v2142, %v2223
        %v2226 = vmul.f32 %v2143, %v2223
        %2229 = vrot.lane.b32.xlu0 %v2220, 64
        %v2230 = vpop.permute.xlu0 %2229
        %2231 = vrot.lane.b32.xlu0 %v2221, 64
        %v2232 = vpop.permute.xlu0 %2231
        %v2235 = vsel %vm590, 0.0, %v2230
        %v2236 = vsel %vm590, 0.0, %v2232
        %s2237 = scalar_lea.vmem [#allocation2], 160
        %2238 = vst [vmem:[%s2237] sm:$0xff] %v2235
        %2239 = vst [vmem:[%s2237 + $0x50] sm:$0xff] %v2236
        %2240 = vst [vmem:[%s2237 + $0x8] sm:$0xff] %v2204
        %2241 = vst [vmem:[%s2237 + $0x10] sm:$0xff] %v2205
        %2242 = vst [vmem:[%s2237 + $0x18] sm:$0xff] %v2206
        %2243 = vst [vmem:[%s2237 + $0x20] sm:$0xff] %v2207
        %2244 = vst [vmem:[%s2237 + $0x28] sm:$0xff] %v2208
        %2245 = vst [vmem:[%s2237 + $0x30] sm:$0xff] %v2209
        %2246 = vst [vmem:[%s2237 + $0x38] sm:$0xff] %v2210
        %2247 = vst [vmem:[%s2237 + $0x40] sm:$0xff] %v2211
        %2248 = vst [vmem:[%s2237 + $0x58] sm:$0xff] %v2212
        %2249 = vst [vmem:[%s2237 + $0x60] sm:$0xff] %v2213
        %2250 = vst [vmem:[%s2237 + $0x68] sm:$0xff] %v2214
        %2251 = vst [vmem:[%s2237 + $0x70] sm:$0xff] %v2215
        %2252 = vst [vmem:[%s2237 + $0x78] sm:$0xff] %v2216
        %2253 = vst [vmem:[%s2237 + $0x80] sm:$0xff] %v2217
        %2254 = vst [vmem:[%s2237 + $0x88] sm:$0xff] %v2218
        %2255 = vst [vmem:[%s2237 + $0x90] sm:$0xff] %v2219
        %2258 = vrot.lane.b32.xlu0 %v2225, 64
        %v2259 = vpop.permute.xlu0 %2258
        %2260 = vrot.lane.b32.xlu0 %v2226, 64
        %v2261 = vpop.permute.xlu0 %2260
        %v2264 = vsel %vm590, %v2259, 0.0
        %v2265 = vsel %vm590, %v2261, 0.0
        %2266 = vst [vmem:[%s2237 + $0x48] sm:$0xff] %v2264
        %2267 = vst [vmem:[%s2237 + $0x98] sm:$0xff] %v2265
        %v2269 = vperm.slane %v2146, 0
        %v2270 = vperm.slane %v2146, 1
        %v2271 = vperm.slane %v2146, 2
        %v2272 = vperm.slane %v2146, 3
        %v2273 = vperm.slane %v2146, 4
        %v2274 = vperm.slane %v2146, 5
        %v2275 = vperm.slane %v2146, 6
        %v2276 = vperm.slane %v2146, 7
        %v2285 = vmul.f32 %v2114, %v2269
        %v2286 = vmul.f32 %v2115, %v2270
        %v2287 = vmul.f32 %v2116, %v2271
        %v2288 = vmul.f32 %v2117, %v2272
        %v2289 = vmul.f32 %v2118, %v2273
        %v2290 = vmul.f32 %v2119, %v2274
        %v2291 = vmul.f32 %v2120, %v2275
        %v2292 = vmul.f32 %v2121, %v2276
        %v2293 = vmul.f32 %v2123, %v2269
        %v2294 = vmul.f32 %v2124, %v2270
        %v2295 = vmul.f32 %v2125, %v2271
        %v2296 = vmul.f32 %v2126, %v2272
        %v2297 = vmul.f32 %v2127, %v2273
        %v2298 = vmul.f32 %v2128, %v2274
        %v2299 = vmul.f32 %v2129, %v2275
        %v2300 = vmul.f32 %v2130, %v2276
        %v2301 = vmul.f32 %v2139, %v2269
        %v2302 = vmul.f32 %v2140, %v2269
        %2303 = vrot.lane.b32.xlu0 %v2269, 64
        %v2304 = vpop.permute.xlu0 %2303
        %v2306 = vmul.f32 %v2142, %v2304
        %v2307 = vmul.f32 %v2143, %v2304
        %2310 = vrot.lane.b32.xlu0 %v2301, 64
        %v2311 = vpop.permute.xlu0 %2310
        %2312 = vrot.lane.b32.xlu0 %v2302, 64
        %v2313 = vpop.permute.xlu0 %2312
        %v2316 = vsel %vm590, 0.0, %v2311
        %v2317 = vsel %vm590, 0.0, %v2313
        %s2318 = scalar_lea.vmem [#allocation2], 320
        %2319 = vst [vmem:[%s2318] sm:$0xff] %v2316
        %2320 = vst [vmem:[%s2318 + $0x50] sm:$0xff] %v2317
        %2321 = vst [vmem:[%s2318 + $0x8] sm:$0xff] %v2285
        %2322 = vst [vmem:[%s2318 + $0x10] sm:$0xff] %v2286
        %2323 = vst [vmem:[%s2318 + $0x18] sm:$0xff] %v2287
        %2324 = vst [vmem:[%s2318 + $0x20] sm:$0xff] %v2288
        %2325 = vst [vmem:[%s2318 + $0x28] sm:$0xff] %v2289
        %2326 = vst [vmem:[%s2318 + $0x30] sm:$0xff] %v2290
        %2327 = vst [vmem:[%s2318 + $0x38] sm:$0xff] %v2291
        %2328 = vst [vmem:[%s2318 + $0x40] sm:$0xff] %v2292
        %2329 = vst [vmem:[%s2318 + $0x58] sm:$0xff] %v2293
        %2330 = vst [vmem:[%s2318 + $0x60] sm:$0xff] %v2294
        %2331 = vst [vmem:[%s2318 + $0x68] sm:$0xff] %v2295
        %2332 = vst [vmem:[%s2318 + $0x70] sm:$0xff] %v2296
        %2333 = vst [vmem:[%s2318 + $0x78] sm:$0xff] %v2297
        %2334 = vst [vmem:[%s2318 + $0x80] sm:$0xff] %v2298
        %2335 = vst [vmem:[%s2318 + $0x88] sm:$0xff] %v2299
        %2336 = vst [vmem:[%s2318 + $0x90] sm:$0xff] %v2300
        %2339 = vrot.lane.b32.xlu0 %v2306, 64
        %v2340 = vpop.permute.xlu0 %2339
        %2341 = vrot.lane.b32.xlu0 %v2307, 64
        %v2342 = vpop.permute.xlu0 %2341
        %v2345 = vsel %vm590, %v2340, 0.0
        %v2346 = vsel %vm590, %v2342, 0.0
        %2347 = vst [vmem:[%s2318 + $0x48] sm:$0xff] %v2345
        %2348 = vst [vmem:[%s2318 + $0x98] sm:$0xff] %v2346
        %v2349 = vld [vmem:[%s2237] sm:$0xff]
        %v2350 = vld [vmem:[%s2237 + $0x8] sm:$0xff]
        %v2351 = vld [vmem:[%s2237 + $0x10] sm:$0xff]
        %v2352 = vld [vmem:[%s2237 + $0x18] sm:$0xff]
        %v2353 = vld [vmem:[%s2237 + $0x20] sm:$0xff]
        %v2354 = vld [vmem:[%s2237 + $0x28] sm:$0xff]
        %v2355 = vld [vmem:[%s2237 + $0x30] sm:$0xff]
        %v2356 = vld [vmem:[%s2237 + $0x38] sm:$0xff]
        %v2357 = vld [vmem:[%s2237 + $0x40] sm:$0xff]
        %v2358 = vld [vmem:[%s2237 + $0x50] sm:$0xff]
        %v2359 = vld [vmem:[%s2237 + $0x58] sm:$0xff]
        %v2360 = vld [vmem:[%s2237 + $0x60] sm:$0xff]
        %v2361 = vld [vmem:[%s2237 + $0x68] sm:$0xff]
        %v2362 = vld [vmem:[%s2237 + $0x70] sm:$0xff]
        %v2363 = vld [vmem:[%s2237 + $0x78] sm:$0xff]
        %v2364 = vld [vmem:[%s2237 + $0x80] sm:$0xff]
        %v2365 = vld [vmem:[%s2237 + $0x88] sm:$0xff]
        %v2366 = vld [vmem:[%s2237 + $0x90] sm:$0xff]
        %v2367 = vld [vmem:[#allocation2] sm:$0xff]
        %v2368 = vld [vmem:[#allocation2 + $0x8] sm:$0xff]
        %v2369 = vld [vmem:[#allocation2 + $0x10] sm:$0xff]
        %v2370 = vld [vmem:[#allocation2 + $0x18] sm:$0xff]
        %v2371 = vld [vmem:[#allocation2 + $0x20] sm:$0xff]
        %v2372 = vld [vmem:[#allocation2 + $0x28] sm:$0xff]
        %v2373 = vld [vmem:[#allocation2 + $0x30] sm:$0xff]
        %v2374 = vld [vmem:[#allocation2 + $0x38] sm:$0xff]
        %v2375 = vld [vmem:[#allocation2 + $0x40] sm:$0xff]
        %v2376 = vld [vmem:[#allocation2 + $0x50] sm:$0xff]
        %v2377 = vld [vmem:[#allocation2 + $0x58] sm:$0xff]
        %v2378 = vld [vmem:[#allocation2 + $0x60] sm:$0xff]
        %v2379 = vld [vmem:[#allocation2 + $0x68] sm:$0xff]
        %v2380 = vld [vmem:[#allocation2 + $0x70] sm:$0xff]
        %v2381 = vld [vmem:[#allocation2 + $0x78] sm:$0xff]
        %v2382 = vld [vmem:[#allocation2 + $0x80] sm:$0xff]
        %v2383 = vld [vmem:[#allocation2 + $0x88] sm:$0xff]
        %v2384 = vld [vmem:[#allocation2 + $0x90] sm:$0xff]
        %v2385 = vld [vmem:[%s2318] sm:$0xff]
        %v2386 = vld [vmem:[%s2318 + $0x8] sm:$0xff]
        %v2387 = vld [vmem:[%s2318 + $0x10] sm:$0xff]
        %v2388 = vld [vmem:[%s2318 + $0x18] sm:$0xff]
        %v2389 = vld [vmem:[%s2318 + $0x20] sm:$0xff]
        %v2390 = vld [vmem:[%s2318 + $0x28] sm:$0xff]
        %v2391 = vld [vmem:[%s2318 + $0x30] sm:$0xff]
        %v2392 = vld [vmem:[%s2318 + $0x38] sm:$0xff]
        %v2393 = vld [vmem:[%s2318 + $0x40] sm:$0xff]
        %v2394 = vld [vmem:[%s2318 + $0x50] sm:$0xff]
        %v2395 = vld [vmem:[%s2318 + $0x58] sm:$0xff]
        %v2396 = vld [vmem:[%s2318 + $0x60] sm:$0xff]
        %v2397 = vld [vmem:[%s2318 + $0x68] sm:$0xff]
        %v2398 = vld [vmem:[%s2318 + $0x70] sm:$0xff]
        %v2399 = vld [vmem:[%s2318 + $0x78] sm:$0xff]
        %v2400 = vld [vmem:[%s2318 + $0x80] sm:$0xff]
        %v2401 = vld [vmem:[%s2318 + $0x88] sm:$0xff]
        %v2402 = vld [vmem:[%s2318 + $0x90] sm:$0xff]
        %2421 = vrot.lane.b32.xlu0 %v2367, 127
        %v2422 = vpop.permute.xlu0 %2421
        %2423 = vrot.lane.b32.xlu0 %v2368, 127
        %v2424 = vpop.permute.xlu0 %2423
        %2425 = vrot.lane.b32.xlu0 %v2369, 127
        %v2426 = vpop.permute.xlu0 %2425
        %2427 = vrot.lane.b32.xlu0 %v2370, 127
        %v2428 = vpop.permute.xlu0 %2427
        %2429 = vrot.lane.b32.xlu0 %v2371, 127
        %v2430 = vpop.permute.xlu0 %2429
        %2431 = vrot.lane.b32.xlu0 %v2372, 127
        %v2432 = vpop.permute.xlu0 %2431
        %2433 = vrot.lane.b32.xlu0 %v2373, 127
        %v2434 = vpop.permute.xlu0 %2433
        %2435 = vrot.lane.b32.xlu0 %v2374, 127
        %v2436 = vpop.permute.xlu0 %2435
        %2437 = vrot.lane.b32.xlu0 %v2375, 127
        %v2438 = vpop.permute.xlu0 %2437
        %2439 = vrot.lane.b32.xlu0 %v2376, 127
        %v2440 = vpop.permute.xlu0 %2439
        %2441 = vrot.lane.b32.xlu0 %v2377, 127
        %v2442 = vpop.permute.xlu0 %2441
        %2443 = vrot.lane.b32.xlu0 %v2378, 127
        %v2444 = vpop.permute.xlu0 %2443
        %2445 = vrot.lane.b32.xlu0 %v2379, 127
        %v2446 = vpop.permute.xlu0 %2445
        %2447 = vrot.lane.b32.xlu0 %v2380, 127
        %v2448 = vpop.permute.xlu0 %2447
        %2449 = vrot.lane.b32.xlu0 %v2381, 127
        %v2450 = vpop.permute.xlu0 %2449
        %2451 = vrot.lane.b32.xlu0 %v2382, 127
        %v2452 = vpop.permute.xlu0 %2451
        %2453 = vrot.lane.b32.xlu0 %v2383, 127
        %v2454 = vpop.permute.xlu0 %2453
        %2455 = vrot.lane.b32.xlu0 %v2384, 127
        %v2456 = vpop.permute.xlu0 %2455
        %vm2457 = vcmask 1039360
        %v2458 = vsel %vm2457, %v2422, %v2424
        %v2459 = vsel %vm2457, %v2424, %v2426
        %v2460 = vsel %vm2457, %v2426, %v2428
        %v2461 = vsel %vm2457, %v2428, %v2430
        %v2462 = vsel %vm2457, %v2430, %v2432
        %v2463 = vsel %vm2457, %v2432, %v2434
        %v2464 = vsel %vm2457, %v2434, %v2436
        %v2465 = vsel %vm2457, %v2436, %v2438
        %v2466 = vsel %vm2457, %v2440, %v2442
        %v2467 = vsel %vm2457, %v2442, %v2444
        %v2468 = vsel %vm2457, %v2444, %v2446
        %v2469 = vsel %vm2457, %v2446, %v2448
        %v2470 = vsel %vm2457, %v2448, %v2450
        %v2471 = vsel %vm2457, %v2450, %v2452
        %v2472 = vsel %vm2457, %v2452, %v2454
        %v2473 = vsel %vm2457, %v2454, %v2456
        %2492 = vrot.lane.b32.xlu0 %v2385, 126
        %v2493 = vpop.permute.xlu0 %2492
        %2494 = vrot.lane.b32.xlu0 %v2386, 126
        %v2495 = vpop.permute.xlu0 %2494
        %2496 = vrot.lane.b32.xlu0 %v2387, 126
        %v2497 = vpop.permute.xlu0 %2496
        %2498 = vrot.lane.b32.xlu0 %v2388, 126
        %v2499 = vpop.permute.xlu0 %2498
        %2500 = vrot.lane.b32.xlu0 %v2389, 126
        %v2501 = vpop.permute.xlu0 %2500
        %2502 = vrot.lane.b32.xlu0 %v2390, 126
        %v2503 = vpop.permute.xlu0 %2502
        %2504 = vrot.lane.b32.xlu0 %v2391, 126
        %v2505 = vpop.permute.xlu0 %2504
        %2506 = vrot.lane.b32.xlu0 %v2392, 126
        %v2507 = vpop.permute.xlu0 %2506
        %2508 = vrot.lane.b32.xlu0 %v2393, 126
        %v2509 = vpop.permute.xlu0 %2508
        %2510 = vrot.lane.b32.xlu0 %v2394, 126
        %v2511 = vpop.permute.xlu0 %2510
        %2512 = vrot.lane.b32.xlu0 %v2395, 126
        %v2513 = vpop.permute.xlu0 %2512
        %2514 = vrot.lane.b32.xlu0 %v2396, 126
        %v2515 = vpop.permute.xlu0 %2514
        %2516 = vrot.lane.b32.xlu0 %v2397, 126
        %v2517 = vpop.permute.xlu0 %2516
        %2518 = vrot.lane.b32.xlu0 %v2398, 126
        %v2519 = vpop.permute.xlu0 %2518
        %2520 = vrot.lane.b32.xlu0 %v2399, 126
        %v2521 = vpop.permute.xlu0 %2520
        %2522 = vrot.lane.b32.xlu0 %v2400, 126
        %v2523 = vpop.permute.xlu0 %2522
        %2524 = vrot.lane.b32.xlu0 %v2401, 126
        %v2525 = vpop.permute.xlu0 %2524
        %2526 = vrot.lane.b32.xlu0 %v2402, 126
        %v2527 = vpop.permute.xlu0 %2526
        %vm2528 = vcmask 1031168
        %v2529 = vsel %vm2528, %v2493, %v2495
        %v2530 = vsel %vm2528, %v2495, %v2497
        %v2531 = vsel %vm2528, %v2497, %v2499
        %v2532 = vsel %vm2528, %v2499, %v2501
        %v2533 = vsel %vm2528, %v2501, %v2503
        %v2534 = vsel %vm2528, %v2503, %v2505
        %v2535 = vsel %vm2528, %v2505, %v2507
        %v2536 = vsel %vm2528, %v2507, %v2509
        %v2537 = vsel %vm2528, %v2511, %v2513
        %v2538 = vsel %vm2528, %v2513, %v2515
        %v2539 = vsel %vm2528, %v2515, %v2517
        %v2540 = vsel %vm2528, %v2517, %v2519
        %v2541 = vsel %vm2528, %v2519, %v2521
        %v2542 = vsel %vm2528, %v2521, %v2523
        %v2543 = vsel %vm2528, %v2523, %v2525
        %v2544 = vsel %vm2528, %v2525, %v2527
        %v2545 = vld [vmem:[%s10] sm:$0xff]
        %v2546 = vld [vmem:[%s10 + $0x8] sm:$0x3]
        %v2547 = vld [vmem:[%s2318 + $0x48] sm:$0xff]
        %v2548 = vld [vmem:[%s2318 + $0x98] sm:$0xff]
        %2565 = vrot.lane.b32.xlu0 %v2114, 127
        %v2566 = vpop.permute.xlu0 %2565
        %2567 = vrot.lane.b32.xlu0 %v2115, 127
        %v2568 = vpop.permute.xlu0 %2567
        %2569 = vrot.lane.b32.xlu0 %v2116, 127
        %v2570 = vpop.permute.xlu0 %2569
        %2571 = vrot.lane.b32.xlu0 %v2117, 127
        %v2572 = vpop.permute.xlu0 %2571
        %2573 = vrot.lane.b32.xlu0 %v2118, 127
        %v2574 = vpop.permute.xlu0 %2573
        %2575 = vrot.lane.b32.xlu0 %v2119, 127
        %v2576 = vpop.permute.xlu0 %2575
        %2577 = vrot.lane.b32.xlu0 %v2120, 127
        %v2578 = vpop.permute.xlu0 %2577
        %2579 = vrot.lane.b32.xlu0 %v2121, 127
        %v2580 = vpop.permute.xlu0 %2579
        %2581 = vrot.lane.b32.xlu0 %v2123, 127
        %v2582 = vpop.permute.xlu0 %2581
        %2583 = vrot.lane.b32.xlu0 %v2124, 127
        %v2584 = vpop.permute.xlu0 %2583
        %2585 = vrot.lane.b32.xlu0 %v2125, 127
        %v2586 = vpop.permute.xlu0 %2585
        %2587 = vrot.lane.b32.xlu0 %v2126, 127
        %v2588 = vpop.permute.xlu0 %2587
        %2589 = vrot.lane.b32.xlu0 %v2127, 127
        %v2590 = vpop.permute.xlu0 %2589
        %2591 = vrot.lane.b32.xlu0 %v2128, 127
        %v2592 = vpop.permute.xlu0 %2591
        %2593 = vrot.lane.b32.xlu0 %v2129, 127
        %v2594 = vpop.permute.xlu0 %2593
        %2595 = vrot.lane.b32.xlu0 %v2130, 127
        %v2596 = vpop.permute.xlu0 %2595
        %v2597 = vsel %vm2457, %v2566, %v2568
        %v2598 = vsel %vm2457, %v2568, %v2570
        %v2599 = vsel %vm2457, %v2570, %v2572
        %v2600 = vsel %vm2457, %v2572, %v2574
        %v2601 = vsel %vm2457, %v2574, %v2576
        %v2602 = vsel %vm2457, %v2576, %v2578
        %v2603 = vsel %vm2457, %v2578, %v2580
        %v2604 = vsel %vm2457, %v2582, %v2584
        %v2605 = vsel %vm2457, %v2584, %v2586
        %v2606 = vsel %vm2457, %v2586, %v2588
        %v2607 = vsel %vm2457, %v2588, %v2590
        %v2608 = vsel %vm2457, %v2590, %v2592
        %v2609 = vsel %vm2457, %v2592, %v2594
        %v2610 = vsel %vm2457, %v2594, %v2596
        %2613 = vrot.lane.b32.xlu0 %v2547, 126
        %v2614 = vpop.permute.xlu0 %2613
        %2615 = vrot.lane.b32.xlu0 %v2548, 126
        %v2616 = vpop.permute.xlu0 %2615
        %v2617 = vsel %vm2528, %v2509, %v2614
        %v2618 = vsel %vm2528, %v2527, %v2616
        %s2619 = scalar_lea.vmem %s10, 16
        %v2620 = vld [vmem:[%s2619] sm:$0xff]
        %v2621 = vld [vmem:[%s2619 + $0x8] sm:$0x3]
        %2640 = vrot.lane.b32.xlu0 %v2349, 1
        %v2641 = vpop.permute.xlu0 %2640
        %2642 = vrot.lane.b32.xlu0 %v2350, 1
        %v2643 = vpop.permute.xlu0 %2642
        %2644 = vrot.lane.b32.xlu0 %v2351, 1
        %v2645 = vpop.permute.xlu0 %2644
        %2646 = vrot.lane.b32.xlu0 %v2352, 1
        %v2647 = vpop.permute.xlu0 %2646
        %2648 = vrot.lane.b32.xlu0 %v2353, 1
        %v2649 = vpop.permute.xlu0 %2648
        %2650 = vrot.lane.b32.xlu0 %v2354, 1
        %v2651 = vpop.permute.xlu0 %2650
        %2652 = vrot.lane.b32.xlu0 %v2355, 1
        %v2653 = vpop.permute.xlu0 %2652
        %2654 = vrot.lane.b32.xlu0 %v2356, 1
        %v2655 = vpop.permute.xlu0 %2654
        %2656 = vrot.lane.b32.xlu0 %v2357, 1
        %v2657 = vpop.permute.xlu0 %2656
        %2658 = vrot.lane.b32.xlu0 %v2358, 1
        %v2659 = vpop.permute.xlu0 %2658
        %2660 = vrot.lane.b32.xlu0 %v2359, 1
        %v2661 = vpop.permute.xlu0 %2660
        %2662 = vrot.lane.b32.xlu0 %v2360, 1
        %v2663 = vpop.permute.xlu0 %2662
        %2664 = vrot.lane.b32.xlu0 %v2361, 1
        %v2665 = vpop.permute.xlu0 %2664
        %2666 = vrot.lane.b32.xlu0 %v2362, 1
        %v2667 = vpop.permute.xlu0 %2666
        %2668 = vrot.lane.b32.xlu0 %v2363, 1
        %v2669 = vpop.permute.xlu0 %2668
        %2670 = vrot.lane.b32.xlu0 %v2364, 1
        %v2671 = vpop.permute.xlu0 %2670
        %2672 = vrot.lane.b32.xlu0 %v2365, 1
        %v2673 = vpop.permute.xlu0 %2672
        %2674 = vrot.lane.b32.xlu0 %v2366, 1
        %v2675 = vpop.permute.xlu0 %2674
        %2676 = vrot.lane.b32.xlu0 %v2566, 1
        %v2677 = vpop.permute.xlu0 %2676
        %2678 = vrot.lane.b32.xlu0 %v2597, 1
        %v2679 = vpop.permute.xlu0 %2678
        %2680 = vrot.lane.b32.xlu0 %v2598, 1
        %v2681 = vpop.permute.xlu0 %2680
        %2682 = vrot.lane.b32.xlu0 %v2599, 1
        %v2683 = vpop.permute.xlu0 %2682
        %2684 = vrot.lane.b32.xlu0 %v2600, 1
        %v2685 = vpop.permute.xlu0 %2684
        %2686 = vrot.lane.b32.xlu0 %v2601, 1
        %v2687 = vpop.permute.xlu0 %2686
        %2688 = vrot.lane.b32.xlu0 %v2602, 1
        %v2689 = vpop.permute.xlu0 %2688
        %2690 = vrot.lane.b32.xlu0 %v2603, 1
        %v2691 = vpop.permute.xlu0 %2690
        %2692 = vrot.lane.b32.xlu0 %v2580, 1
        %v2693 = vpop.permute.xlu0 %2692
        %2694 = vrot.lane.b32.xlu0 %v2582, 1
        %v2695 = vpop.permute.xlu0 %2694
        %2696 = vrot.lane.b32.xlu0 %v2604, 1
        %v2697 = vpop.permute.xlu0 %2696
        %2698 = vrot.lane.b32.xlu0 %v2605, 1
        %v2699 = vpop.permute.xlu0 %2698
        %2700 = vrot.lane.b32.xlu0 %v2606, 1
        %v2701 = vpop.permute.xlu0 %2700
        %2702 = vrot.lane.b32.xlu0 %v2607, 1
        %v2703 = vpop.permute.xlu0 %2702
        %2704 = vrot.lane.b32.xlu0 %v2608, 1
        %v2705 = vpop.permute.xlu0 %2704
        %2706 = vrot.lane.b32.xlu0 %v2609, 1
        %v2707 = vpop.permute.xlu0 %2706
        %2708 = vrot.lane.b32.xlu0 %v2610, 1
        %v2709 = vpop.permute.xlu0 %2708
        %2710 = vrot.lane.b32.xlu0 %v2596, 1
        %v2711 = vpop.permute.xlu0 %2710
        %2712 = vrot.lane.b32.xlu0 %v2495, 1
        %v2713 = vpop.permute.xlu0 %2712
        %2714 = vrot.lane.b32.xlu0 %v2530, 1
        %v2715 = vpop.permute.xlu0 %2714
        %2716 = vrot.lane.b32.xlu0 %v2531, 1
        %v2717 = vpop.permute.xlu0 %2716
        %2718 = vrot.lane.b32.xlu0 %v2532, 1
        %v2719 = vpop.permute.xlu0 %2718
        %2720 = vrot.lane.b32.xlu0 %v2533, 1
        %v2721 = vpop.permute.xlu0 %2720
        %2722 = vrot.lane.b32.xlu0 %v2534, 1
        %v2723 = vpop.permute.xlu0 %2722
        %2724 = vrot.lane.b32.xlu0 %v2535, 1
        %v2725 = vpop.permute.xlu0 %2724
        %2726 = vrot.lane.b32.xlu0 %v2536, 1
        %v2727 = vpop.permute.xlu0 %2726
        %2728 = vrot.lane.b32.xlu0 %v2617, 1
        %v2729 = vpop.permute.xlu0 %2728
        %2730 = vrot.lane.b32.xlu0 %v2513, 1
        %v2731 = vpop.permute.xlu0 %2730
        %2732 = vrot.lane.b32.xlu0 %v2538, 1
        %v2733 = vpop.permute.xlu0 %2732
        %2734 = vrot.lane.b32.xlu0 %v2539, 1
        %v2735 = vpop.permute.xlu0 %2734
        %2736 = vrot.lane.b32.xlu0 %v2540, 1
        %v2737 = vpop.permute.xlu0 %2736
        %2738 = vrot.lane.b32.xlu0 %v2541, 1
        %v2739 = vpop.permute.xlu0 %2738
        %2740 = vrot.lane.b32.xlu0 %v2542, 1
        %v2741 = vpop.permute.xlu0 %2740
        %2742 = vrot.lane.b32.xlu0 %v2543, 1
        %v2743 = vpop.permute.xlu0 %2742
        %2744 = vrot.lane.b32.xlu0 %v2544, 1
        %v2745 = vpop.permute.xlu0 %2744
        %2746 = vrot.lane.b32.xlu0 %v2618, 1
        %v2747 = vpop.permute.xlu0 %2746
        %vm2748 = vcmask 7168
        %v2749 = vsel %vm2748, %v2641, %v2643
        %v2750 = vsel %vm2748, %v2643, %v2645
        %v2751 = vsel %vm2748, %v2645, %v2647
        %v2752 = vsel %vm2748, %v2647, %v2649
        %v2753 = vsel %vm2748, %v2649, %v2651
        %v2754 = vsel %vm2748, %v2651, %v2653
        %v2755 = vsel %vm2748, %v2653, %v2655
        %v2756 = vsel %vm2748, %v2655, %v2657
        %v2757 = vsel %vm2748, %v2659, %v2661
        %v2758 = vsel %vm2748, %v2661, %v2663
        %v2759 = vsel %vm2748, %v2663, %v2665
        %v2760 = vsel %vm2748, %v2665, %v2667
        %v2761 = vsel %vm2748, %v2667, %v2669
        %v2762 = vsel %vm2748, %v2669, %v2671
        %v2763 = vsel %vm2748, %v2671, %v2673
        %v2764 = vsel %vm2748, %v2673, %v2675
        %v2765 = vsel %vm2748, %v2677, %v2679
        %v2766 = vsel %vm2748, %v2679, %v2681
        %v2767 = vsel %vm2748, %v2681, %v2683
        %v2768 = vsel %vm2748, %v2683, %v2685
        %v2769 = vsel %vm2748, %v2685, %v2687
        %v2770 = vsel %vm2748, %v2687, %v2689
        %v2771 = vsel %vm2748, %v2689, %v2691
        %v2772 = vsel %vm2748, %v2691, %v2693
        %v2773 = vsel %vm2748, %v2695, %v2697
        %v2774 = vsel %vm2748, %v2697, %v2699
        %v2775 = vsel %vm2748, %v2699, %v2701
        %v2776 = vsel %vm2748, %v2701, %v2703
        %v2777 = vsel %vm2748, %v2703, %v2705
        %v2778 = vsel %vm2748, %v2705, %v2707
        %v2779 = vsel %vm2748, %v2707, %v2709
        %v2780 = vsel %vm2748, %v2709, %v2711
        %v2781 = vsel %vm2748, %v2713, %v2715
        %v2782 = vsel %vm2748, %v2715, %v2717
        %v2783 = vsel %vm2748, %v2717, %v2719
        %v2784 = vsel %vm2748, %v2719, %v2721
        %v2785 = vsel %vm2748, %v2721, %v2723
        %v2786 = vsel %vm2748, %v2723, %v2725
        %v2787 = vsel %vm2748, %v2725, %v2727
        %v2788 = vsel %vm2748, %v2727, %v2729
        %v2789 = vsel %vm2748, %v2731, %v2733
        %v2790 = vsel %vm2748, %v2733, %v2735
        %v2791 = vsel %vm2748, %v2735, %v2737
        %v2792 = vsel %vm2748, %v2737, %v2739
        %v2793 = vsel %vm2748, %v2739, %v2741
        %v2794 = vsel %vm2748, %v2741, %v2743
        %v2795 = vsel %vm2748, %v2743, %v2745
        %v2796 = vsel %vm2748, %v2745, %v2747
        %vm2845 = vcmask 392192
        %v2847 = vsel %vm2845, %v2620, 0
        %v2850 = vsel %vm2845, %v2621, 0
        %2852 = vmatpush.msra.mxu0 0.0
        %2853 = vmatpush.msra.mxu0 0.0
        %2854 = vmatpush.msra.mxu0 0.0
        %2855 = vmatpush.msra.mxu0 0.0
        %2856 = vmatpush.msra.mxu0 0.0
        %2857 = vmatpush.msra.mxu0 0.0
        %2858 = vmatpush.msra.mxu0 0.0
        %2859 = vmatpush.msra.mxu0 0.0
        %2860 = vmatpush.msra.mxu0 0.0
        %2861 = vmatpush.msra.mxu0 0.0
        %2862 = vmatpush.msra.mxu0 %v2789
        %2863 = vmatpush.msra.mxu0 %v2781
        %2864 = vmatpush.msra.mxu0 %v2773
        %2865 = vmatpush.msra.mxu0 %v2765
        %2866 = vmatpush.msra.mxu0 %v2757
        %2867 = vmatpush.msra.mxu0 %v2749
        %2868 = vmatmul.f32.gmra.mxu0 %v2847
        %v2869 = vpop.f32.mrf.mxu0
        %v2870 = vadd.f32 0.0, %v2869
        %2871 = vmatmul.f32.gmra.mxu0 %v2850
        %v2872 = vpop.f32.mrf.mxu0
        %v2873 = vadd.f32 0.0, %v2872
        %2874 = vdwg.mxu0
        %2875 = vmatpush.msra.mxu0 0.0
        %2876 = vmatpush.msra.mxu0 0.0
        %2877 = vmatpush.msra.mxu0 0.0
        %2878 = vmatpush.msra.mxu0 0.0
        %2879 = vmatpush.msra.mxu0 0.0
        %2880 = vmatpush.msra.mxu0 0.0
        %2881 = vmatpush.msra.mxu0 0.0
        %2882 = vmatpush.msra.mxu0 0.0
        %2883 = vmatpush.msra.mxu0 0.0
        %2884 = vmatpush.msra.mxu0 0.0
        %2885 = vmatpush.msra.mxu0 %v2790
        %2886 = vmatpush.msra.mxu0 %v2782
        %2887 = vmatpush.msra.mxu0 %v2774
        %2888 = vmatpush.msra.mxu0 %v2766
        %2889 = vmatpush.msra.mxu0 %v2758
        %2890 = vmatpush.msra.mxu0 %v2750
        %2891 = vmatmul.f32.gmra.mxu0 %v2847
        %v2892 = vpop.f32.mrf.mxu0
        %v2893 = vadd.f32 0.0, %v2892
        %2894 = vmatmul.f32.gmra.mxu0 %v2850
        %v2895 = vpop.f32.mrf.mxu0
        %v2896 = vadd.f32 0.0, %v2895
        %2897 = vdwg.mxu0
        %2898 = vmatpush.msra.mxu0 0.0
        %2899 = vmatpush.msra.mxu0 0.0
        %2900 = vmatpush.msra.mxu0 0.0
        %2901 = vmatpush.msra.mxu0 0.0
        %2902 = vmatpush.msra.mxu0 0.0
        %2903 = vmatpush.msra.mxu0 0.0
        %2904 = vmatpush.msra.mxu0 0.0
        %2905 = vmatpush.msra.mxu0 0.0
        %2906 = vmatpush.msra.mxu0 0.0
        %2907 = vmatpush.msra.mxu0 0.0
        %2908 = vmatpush.msra.mxu0 %v2791
        %2909 = vmatpush.msra.mxu0 %v2783
        %2910 = vmatpush.msra.mxu0 %v2775
        %2911 = vmatpush.msra.mxu0 %v2767
        %2912 = vmatpush.msra.mxu0 %v2759
        %2913 = vmatpush.msra.mxu0 %v2751
        %2914 = vmatmul.f32.gmra.mxu0 %v2847
        %v2915 = vpop.f32.mrf.mxu0
        %v2916 = vadd.f32 0.0, %v2915
        %2917 = vmatmul.f32.gmra.mxu0 %v2850
        %v2918 = vpop.f32.mrf.mxu0
        %v2919 = vadd.f32 0.0, %v2918
        %2920 = vdwg.mxu0
        %2921 = vmatpush.msra.mxu0 0.0
        %2922 = vmatpush.msra.mxu0 0.0
        %2923 = vmatpush.msra.mxu0 0.0
        %2924 = vmatpush.msra.mxu0 0.0
        %2925 = vmatpush.msra.mxu0 0.0
        %2926 = vmatpush.msra.mxu0 0.0
        %2927 = vmatpush.msra.mxu0 0.0
        %2928 = vmatpush.msra.mxu0 0.0
        %2929 = vmatpush.msra.mxu0 0.0
        %2930 = vmatpush.msra.mxu0 0.0
        %2931 = vmatpush.msra.mxu0 %v2792
        %2932 = vmatpush.msra.mxu0 %v2784
        %2933 = vmatpush.msra.mxu0 %v2776
        %2934 = vmatpush.msra.mxu0 %v2768
        %2935 = vmatpush.msra.mxu0 %v2760
        %2936 = vmatpush.msra.mxu0 %v2752
        %2937 = vmatmul.f32.gmra.mxu0 %v2847
        %v2938 = vpop.f32.mrf.mxu0
        %v2939 = vadd.f32 0.0, %v2938
        %2940 = vmatmul.f32.gmra.mxu0 %v2850
        %v2941 = vpop.f32.mrf.mxu0
        %v2942 = vadd.f32 0.0, %v2941
        %2943 = vdwg.mxu0
        %2944 = vmatpush.msra.mxu0 0.0
        %2945 = vmatpush.msra.mxu0 0.0
        %2946 = vmatpush.msra.mxu0 0.0
        %2947 = vmatpush.msra.mxu0 0.0
        %2948 = vmatpush.msra.mxu0 0.0
        %2949 = vmatpush.msra.mxu0 0.0
        %2950 = vmatpush.msra.mxu0 0.0
        %2951 = vmatpush.msra.mxu0 0.0
        %2952 = vmatpush.msra.mxu0 0.0
        %2953 = vmatpush.msra.mxu0 0.0
        %2954 = vmatpush.msra.mxu0 %v2793
        %2955 = vmatpush.msra.mxu0 %v2785
        %2956 = vmatpush.msra.mxu0 %v2777
        %2957 = vmatpush.msra.mxu0 %v2769
        %2958 = vmatpush.msra.mxu0 %v2761
        %2959 = vmatpush.msra.mxu0 %v2753
        %2960 = vmatmul.f32.gmra.mxu0 %v2847
        %v2961 = vpop.f32.mrf.mxu0
        %v2962 = vadd.f32 0.0, %v2961
        %2963 = vmatmul.f32.gmra.mxu0 %v2850
        %v2964 = vpop.f32.mrf.mxu0
        %v2965 = vadd.f32 0.0, %v2964
        %2966 = vdwg.mxu0
        %2967 = vmatpush.msra.mxu0 0.0
        %2968 = vmatpush.msra.mxu0 0.0
        %2969 = vmatpush.msra.mxu0 0.0
        %2970 = vmatpush.msra.mxu0 0.0
        %2971 = vmatpush.msra.mxu0 0.0
        %2972 = vmatpush.msra.mxu0 0.0
        %2973 = vmatpush.msra.mxu0 0.0
        %2974 = vmatpush.msra.mxu0 0.0
        %2975 = vmatpush.msra.mxu0 0.0
        %2976 = vmatpush.msra.mxu0 0.0
        %2977 = vmatpush.msra.mxu0 %v2794
        %2978 = vmatpush.msra.mxu0 %v2786
        %2979 = vmatpush.msra.mxu0 %v2778
        %2980 = vmatpush.msra.mxu0 %v2770
        %2981 = vmatpush.msra.mxu0 %v2762
        %2982 = vmatpush.msra.mxu0 %v2754
        %2983 = vmatmul.f32.gmra.mxu0 %v2847
        %v2984 = vpop.f32.mrf.mxu0
        %v2985 = vadd.f32 0.0, %v2984
        %2986 = vmatmul.f32.gmra.mxu0 %v2850
        %v2987 = vpop.f32.mrf.mxu0
        %v2988 = vadd.f32 0.0, %v2987
        %2989 = vdwg.mxu0
        %2990 = vmatpush.msra.mxu0 0.0
        %2991 = vmatpush.msra.mxu0 0.0
        %2992 = vmatpush.msra.mxu0 0.0
        %2993 = vmatpush.msra.mxu0 0.0
        %2994 = vmatpush.msra.mxu0 0.0
        %2995 = vmatpush.msra.mxu0 0.0
        %2996 = vmatpush.msra.mxu0 0.0
        %2997 = vmatpush.msra.mxu0 0.0
        %2998 = vmatpush.msra.mxu0 0.0
        %2999 = vmatpush.msra.mxu0 0.0
        %3000 = vmatpush.msra.mxu0 %v2795
        %3001 = vmatpush.msra.mxu0 %v2787
        %3002 = vmatpush.msra.mxu0 %v2779
        %3003 = vmatpush.msra.mxu0 %v2771
        %3004 = vmatpush.msra.mxu0 %v2763
        %3005 = vmatpush.msra.mxu0 %v2755
        %3006 = vmatmul.f32.gmra.mxu0 %v2847
        %v3007 = vpop.f32.mrf.mxu0
        %v3008 = vadd.f32 0.0, %v3007
        %3009 = vmatmul.f32.gmra.mxu0 %v2850
        %v3010 = vpop.f32.mrf.mxu0
        %v3011 = vadd.f32 0.0, %v3010
        %3012 = vdwg.mxu0
        %3013 = vmatpush.msra.mxu0 0.0
        %3014 = vmatpush.msra.mxu0 0.0
        %3015 = vmatpush.msra.mxu0 0.0
        %3016 = vmatpush.msra.mxu0 0.0
        %3017 = vmatpush.msra.mxu0 0.0
        %3018 = vmatpush.msra.mxu0 0.0
        %3019 = vmatpush.msra.mxu0 0.0
        %3020 = vmatpush.msra.mxu0 0.0
        %3021 = vmatpush.msra.mxu0 0.0
        %3022 = vmatpush.msra.mxu0 0.0
        %3023 = vmatpush.msra.mxu0 %v2796
        %3024 = vmatpush.msra.mxu0 %v2788
        %3025 = vmatpush.msra.mxu0 %v2780
        %3026 = vmatpush.msra.mxu0 %v2772
        %3027 = vmatpush.msra.mxu0 %v2764
        %3028 = vmatpush.msra.mxu0 %v2756
        %3029 = vmatmul.f32.gmra.mxu0 %v2847
        %v3030 = vpop.f32.mrf.mxu0
        %v3031 = vadd.f32 0.0, %v3030
        %3032 = vmatmul.f32.gmra.mxu0 %v2850
        %v3033 = vpop.f32.mrf.mxu0
        %v3034 = vadd.f32 0.0, %v3033
        %3035 = vdwg.mxu0
        %3036 = vrot.lane.b32.xlu0 %v2349, 65
        %v3037 = vpop.permute.xlu0 %3036
        %3038 = vrot.lane.b32.xlu0 %v2350, 65
        %v3039 = vpop.permute.xlu0 %3038
        %3040 = vrot.lane.b32.xlu0 %v2351, 65
        %v3041 = vpop.permute.xlu0 %3040
        %3042 = vrot.lane.b32.xlu0 %v2352, 65
        %v3043 = vpop.permute.xlu0 %3042
        %3044 = vrot.lane.b32.xlu0 %v2353, 65
        %v3045 = vpop.permute.xlu0 %3044
        %3046 = vrot.lane.b32.xlu0 %v2354, 65
        %v3047 = vpop.permute.xlu0 %3046
        %3048 = vrot.lane.b32.xlu0 %v2355, 65
        %v3049 = vpop.permute.xlu0 %3048
        %3050 = vrot.lane.b32.xlu0 %v2356, 65
        %v3051 = vpop.permute.xlu0 %3050
        %3052 = vrot.lane.b32.xlu0 %v2357, 65
        %v3053 = vpop.permute.xlu0 %3052
        %3054 = vrot.lane.b32.xlu0 %v2358, 65
        %v3055 = vpop.permute.xlu0 %3054
        %3056 = vrot.lane.b32.xlu0 %v2359, 65
        %v3057 = vpop.permute.xlu0 %3056
        %3058 = vrot.lane.b32.xlu0 %v2360, 65
        %v3059 = vpop.permute.xlu0 %3058
        %3060 = vrot.lane.b32.xlu0 %v2361, 65
        %v3061 = vpop.permute.xlu0 %3060
        %3062 = vrot.lane.b32.xlu0 %v2362, 65
        %v3063 = vpop.permute.xlu0 %3062
        %3064 = vrot.lane.b32.xlu0 %v2363, 65
        %v3065 = vpop.permute.xlu0 %3064
        %3066 = vrot.lane.b32.xlu0 %v2364, 65
        %v3067 = vpop.permute.xlu0 %3066
        %3068 = vrot.lane.b32.xlu0 %v2365, 65
        %v3069 = vpop.permute.xlu0 %3068
        %3070 = vrot.lane.b32.xlu0 %v2366, 65
        %v3071 = vpop.permute.xlu0 %3070
        %3072 = vrot.lane.b32.xlu0 %v2458, 65
        %v3073 = vpop.permute.xlu0 %3072
        %3074 = vrot.lane.b32.xlu0 %v2459, 65
        %v3075 = vpop.permute.xlu0 %3074
        %3076 = vrot.lane.b32.xlu0 %v2460, 65
        %v3077 = vpop.permute.xlu0 %3076
        %3078 = vrot.lane.b32.xlu0 %v2461, 65
        %v3079 = vpop.permute.xlu0 %3078
        %3080 = vrot.lane.b32.xlu0 %v2462, 65
        %v3081 = vpop.permute.xlu0 %3080
        %3082 = vrot.lane.b32.xlu0 %v2463, 65
        %v3083 = vpop.permute.xlu0 %3082
        %3084 = vrot.lane.b32.xlu0 %v2464, 65
        %v3085 = vpop.permute.xlu0 %3084
        %3086 = vrot.lane.b32.xlu0 %v2465, 65
        %v3087 = vpop.permute.xlu0 %3086
        %3088 = vrot.lane.b32.xlu0 %v2438, 65
        %v3089 = vpop.permute.xlu0 %3088
        %3090 = vrot.lane.b32.xlu0 %v2466, 65
        %v3091 = vpop.permute.xlu0 %3090
        %3092 = vrot.lane.b32.xlu0 %v2467, 65
        %v3093 = vpop.permute.xlu0 %3092
        %3094 = vrot.lane.b32.xlu0 %v2468, 65
        %v3095 = vpop.permute.xlu0 %3094
        %3096 = vrot.lane.b32.xlu0 %v2469, 65
        %v3097 = vpop.permute.xlu0 %3096
        %3098 = vrot.lane.b32.xlu0 %v2470, 65
        %v3099 = vpop.permute.xlu0 %3098
        %3100 = vrot.lane.b32.xlu0 %v2471, 65
        %v3101 = vpop.permute.xlu0 %3100
        %3102 = vrot.lane.b32.xlu0 %v2472, 65
        %v3103 = vpop.permute.xlu0 %3102
        %3104 = vrot.lane.b32.xlu0 %v2473, 65
        %v3105 = vpop.permute.xlu0 %3104
        %3106 = vrot.lane.b32.xlu0 %v2456, 65
        %v3107 = vpop.permute.xlu0 %3106
        %3108 = vrot.lane.b32.xlu0 %v2529, 65
        %v3109 = vpop.permute.xlu0 %3108
        %3110 = vrot.lane.b32.xlu0 %v2530, 65
        %v3111 = vpop.permute.xlu0 %3110
        %3112 = vrot.lane.b32.xlu0 %v2531, 65
        %v3113 = vpop.permute.xlu0 %3112
        %3114 = vrot.lane.b32.xlu0 %v2532, 65
        %v3115 = vpop.permute.xlu0 %3114
        %3116 = vrot.lane.b32.xlu0 %v2533, 65
        %v3117 = vpop.permute.xlu0 %3116
        %3118 = vrot.lane.b32.xlu0 %v2534, 65
        %v3119 = vpop.permute.xlu0 %3118
        %3120 = vrot.lane.b32.xlu0 %v2535, 65
        %v3121 = vpop.permute.xlu0 %3120
        %3122 = vrot.lane.b32.xlu0 %v2536, 65
        %v3123 = vpop.permute.xlu0 %3122
        %3124 = vrot.lane.b32.xlu0 %v2509, 65
        %v3125 = vpop.permute.xlu0 %3124
        %3126 = vrot.lane.b32.xlu0 %v2537, 65
        %v3127 = vpop.permute.xlu0 %3126
        %3128 = vrot.lane.b32.xlu0 %v2538, 65
        %v3129 = vpop.permute.xlu0 %3128
        %3130 = vrot.lane.b32.xlu0 %v2539, 65
        %v3131 = vpop.permute.xlu0 %3130
        %3132 = vrot.lane.b32.xlu0 %v2540, 65
        %v3133 = vpop.permute.xlu0 %3132
        %3134 = vrot.lane.b32.xlu0 %v2541, 65
        %v3135 = vpop.permute.xlu0 %3134
        %3136 = vrot.lane.b32.xlu0 %v2542, 65
        %v3137 = vpop.permute.xlu0 %3136
        %3138 = vrot.lane.b32.xlu0 %v2543, 65
        %v3139 = vpop.permute.xlu0 %3138
        %3140 = vrot.lane.b32.xlu0 %v2544, 65
        %v3141 = vpop.permute.xlu0 %3140
        %3142 = vrot.lane.b32.xlu0 %v2527, 65
        %v3143 = vpop.permute.xlu0 %3142
        %vm3144 = vcmask 531456
        %v3145 = vsel %vm3144, %v3037, %v3039
        %v3146 = vsel %vm3144, %v3039, %v3041
        %v3147 = vsel %vm3144, %v3041, %v3043
        %v3148 = vsel %vm3144, %v3043, %v3045
        %v3149 = vsel %vm3144, %v3045, %v3047
        %v3150 = vsel %vm3144, %v3047, %v3049
        %v3151 = vsel %vm3144, %v3049, %v3051
        %v3152 = vsel %vm3144, %v3051, %v3053
        %v3153 = vsel %vm3144, %v3055, %v3057
        %v3154 = vsel %vm3144, %v3057, %v3059
        %v3155 = vsel %vm3144, %v3059, %v3061
        %v3156 = vsel %vm3144, %v3061, %v3063
        %v3157 = vsel %vm3144, %v3063, %v3065
        %v3158 = vsel %vm3144, %v3065, %v3067
        %v3159 = vsel %vm3144, %v3067, %v3069
        %v3160 = vsel %vm3144, %v3069, %v3071
        %v3161 = vsel %vm3144, %v3073, %v3075
        %v3162 = vsel %vm3144, %v3075, %v3077
        %v3163 = vsel %vm3144, %v3077, %v3079
        %v3164 = vsel %vm3144, %v3079, %v3081
        %v3165 = vsel %vm3144, %v3081, %v3083
        %v3166 = vsel %vm3144, %v3083, %v3085
        %v3167 = vsel %vm3144, %v3085, %v3087
        %v3168 = vsel %vm3144, %v3087, %v3089
        %v3169 = vsel %vm3144, %v3091, %v3093
        %v3170 = vsel %vm3144, %v3093, %v3095
        %v3171 = vsel %vm3144, %v3095, %v3097
        %v3172 = vsel %vm3144, %v3097, %v3099
        %v3173 = vsel %vm3144, %v3099, %v3101
        %v3174 = vsel %vm3144, %v3101, %v3103
        %v3175 = vsel %vm3144, %v3103, %v3105
        %v3176 = vsel %vm3144, %v3105, %v3107
        %v3177 = vsel %vm3144, %v3109, %v3111
        %v3178 = vsel %vm3144, %v3111, %v3113
        %v3179 = vsel %vm3144, %v3113, %v3115
        %v3180 = vsel %vm3144, %v3115, %v3117
        %v3181 = vsel %vm3144, %v3117, %v3119
        %v3182 = vsel %vm3144, %v3119, %v3121
        %v3183 = vsel %vm3144, %v3121, %v3123
        %v3184 = vsel %vm3144, %v3123, %v3125
        %v3185 = vsel %vm3144, %v3127, %v3129
        %v3186 = vsel %vm3144, %v3129, %v3131
        %v3187 = vsel %vm3144, %v3131, %v3133
        %v3188 = vsel %vm3144, %v3133, %v3135
        %v3189 = vsel %vm3144, %v3135, %v3137
        %v3190 = vsel %vm3144, %v3137, %v3139
        %v3191 = vsel %vm3144, %v3139, %v3141
        %v3192 = vsel %vm3144, %v3141, %v3143
        %v3242 = vsel %vm2845, %v2545, 0
        %v3245 = vsel %vm2845, %v2546, 0
        %3247 = vmatpush.msra.mxu0 0.0
        %3248 = vmatpush.msra.mxu0 0.0
        %3249 = vmatpush.msra.mxu0 0.0
        %3250 = vmatpush.msra.mxu0 0.0
        %3251 = vmatpush.msra.mxu0 0.0
        %3252 = vmatpush.msra.mxu0 0.0
        %3253 = vmatpush.msra.mxu0 0.0
        %3254 = vmatpush.msra.mxu0 0.0
        %3255 = vmatpush.msra.mxu0 0.0
        %3256 = vmatpush.msra.mxu0 0.0
        %3257 = vmatpush.msra.mxu0 %v3185
        %3258 = vmatpush.msra.mxu0 %v3177
        %3259 = vmatpush.msra.mxu0 %v3169
        %3260 = vmatpush.msra.mxu0 %v3161
        %3261 = vmatpush.msra.mxu0 %v3153
        %3262 = vmatpush.msra.mxu0 %v3145
        %3263 = vmatmul.f32.gmra.mxu0 %v3242
        %v3264 = vpop.f32.mrf.mxu0
        %v3265 = vadd.f32 %v2870, %v3264
        %3266 = vmatmul.f32.gmra.mxu0 %v3245
        %v3267 = vpop.f32.mrf.mxu0
        %v3268 = vadd.f32 %v2873, %v3267
        %3269 = vdwg.mxu0
        %3270 = vmatpush.msra.mxu0 0.0
        %3271 = vmatpush.msra.mxu0 0.0
        %3272 = vmatpush.msra.mxu0 0.0
        %3273 = vmatpush.msra.mxu0 0.0
        %3274 = vmatpush.msra.mxu0 0.0
        %3275 = vmatpush.msra.mxu0 0.0
        %3276 = vmatpush.msra.mxu0 0.0
        %3277 = vmatpush.msra.mxu0 0.0
        %3278 = vmatpush.msra.mxu0 0.0
        %3279 = vmatpush.msra.mxu0 0.0
        %3280 = vmatpush.msra.mxu0 %v3186
        %3281 = vmatpush.msra.mxu0 %v3178
        %3282 = vmatpush.msra.mxu0 %v3170
        %3283 = vmatpush.msra.mxu0 %v3162
        %3284 = vmatpush.msra.mxu0 %v3154
        %3285 = vmatpush.msra.mxu0 %v3146
        %3286 = vmatmul.f32.gmra.mxu0 %v3242
        %v3287 = vpop.f32.mrf.mxu0
        %v3288 = vadd.f32 %v2893, %v3287
        %3289 = vmatmul.f32.gmra.mxu0 %v3245
        %v3290 = vpop.f32.mrf.mxu0
        %v3291 = vadd.f32 %v2896, %v3290
        %3292 = vdwg.mxu0
        %3293 = vmatpush.msra.mxu0 0.0
        %3294 = vmatpush.msra.mxu0 0.0
        %3295 = vmatpush.msra.mxu0 0.0
        %3296 = vmatpush.msra.mxu0 0.0
        %3297 = vmatpush.msra.mxu0 0.0
        %3298 = vmatpush.msra.mxu0 0.0
        %3299 = vmatpush.msra.mxu0 0.0
        %3300 = vmatpush.msra.mxu0 0.0
        %3301 = vmatpush.msra.mxu0 0.0
        %3302 = vmatpush.msra.mxu0 0.0
        %3303 = vmatpush.msra.mxu0 %v3187
        %3304 = vmatpush.msra.mxu0 %v3179
        %3305 = vmatpush.msra.mxu0 %v3171
        %3306 = vmatpush.msra.mxu0 %v3163
        %3307 = vmatpush.msra.mxu0 %v3155
        %3308 = vmatpush.msra.mxu0 %v3147
        %3309 = vmatmul.f32.gmra.mxu0 %v3242
        %v3310 = vpop.f32.mrf.mxu0
        %v3311 = vadd.f32 %v2916, %v3310
        %3312 = vmatmul.f32.gmra.mxu0 %v3245
        %v3313 = vpop.f32.mrf.mxu0
        %v3314 = vadd.f32 %v2919, %v3313
        %3315 = vdwg.mxu0
        %3316 = vmatpush.msra.mxu0 0.0
        %3317 = vmatpush.msra.mxu0 0.0
        %3318 = vmatpush.msra.mxu0 0.0
        %3319 = vmatpush.msra.mxu0 0.0
        %3320 = vmatpush.msra.mxu0 0.0
        %3321 = vmatpush.msra.mxu0 0.0
        %3322 = vmatpush.msra.mxu0 0.0
        %3323 = vmatpush.msra.mxu0 0.0
        %3324 = vmatpush.msra.mxu0 0.0
        %3325 = vmatpush.msra.mxu0 0.0
        %3326 = vmatpush.msra.mxu0 %v3188
        %3327 = vmatpush.msra.mxu0 %v3180
        %3328 = vmatpush.msra.mxu0 %v3172
        %3329 = vmatpush.msra.mxu0 %v3164
        %3330 = vmatpush.msra.mxu0 %v3156
        %3331 = vmatpush.msra.mxu0 %v3148
        %3332 = vmatmul.f32.gmra.mxu0 %v3242
        %v3333 = vpop.f32.mrf.mxu0
        %v3334 = vadd.f32 %v2939, %v3333
        %3335 = vmatmul.f32.gmra.mxu0 %v3245
        %v3336 = vpop.f32.mrf.mxu0
        %v3337 = vadd.f32 %v2942, %v3336
        %3338 = vdwg.mxu0
        %3339 = vmatpush.msra.mxu0 0.0
        %3340 = vmatpush.msra.mxu0 0.0
        %3341 = vmatpush.msra.mxu0 0.0
        %3342 = vmatpush.msra.mxu0 0.0
        %3343 = vmatpush.msra.mxu0 0.0
        %3344 = vmatpush.msra.mxu0 0.0
        %3345 = vmatpush.msra.mxu0 0.0
        %3346 = vmatpush.msra.mxu0 0.0
        %3347 = vmatpush.msra.mxu0 0.0
        %3348 = vmatpush.msra.mxu0 0.0
        %3349 = vmatpush.msra.mxu0 %v3189
        %3350 = vmatpush.msra.mxu0 %v3181
        %3351 = vmatpush.msra.mxu0 %v3173
        %3352 = vmatpush.msra.mxu0 %v3165
        %3353 = vmatpush.msra.mxu0 %v3157
        %3354 = vmatpush.msra.mxu0 %v3149
        %3355 = vmatmul.f32.gmra.mxu0 %v3242
        %v3356 = vpop.f32.mrf.mxu0
        %v3357 = vadd.f32 %v2962, %v3356
        %3358 = vmatmul.f32.gmra.mxu0 %v3245
        %v3359 = vpop.f32.mrf.mxu0
        %v3360 = vadd.f32 %v2965, %v3359
        %3361 = vdwg.mxu0
        %3362 = vmatpush.msra.mxu0 0.0
        %3363 = vmatpush.msra.mxu0 0.0
        %3364 = vmatpush.msra.mxu0 0.0
        %3365 = vmatpush.msra.mxu0 0.0
        %3366 = vmatpush.msra.mxu0 0.0
        %3367 = vmatpush.msra.mxu0 0.0
        %3368 = vmatpush.msra.mxu0 0.0
        %3369 = vmatpush.msra.mxu0 0.0
        %3370 = vmatpush.msra.mxu0 0.0
        %3371 = vmatpush.msra.mxu0 0.0
        %3372 = vmatpush.msra.mxu0 %v3190
        %3373 = vmatpush.msra.mxu0 %v3182
        %3374 = vmatpush.msra.mxu0 %v3174
        %3375 = vmatpush.msra.mxu0 %v3166
        %3376 = vmatpush.msra.mxu0 %v3158
        %3377 = vmatpush.msra.mxu0 %v3150
        %3378 = vmatmul.f32.gmra.mxu0 %v3242
        %v3379 = vpop.f32.mrf.mxu0
        %v3380 = vadd.f32 %v2985, %v3379
        %3381 = vmatmul.f32.gmra.mxu0 %v3245
        %v3382 = vpop.f32.mrf.mxu0
        %v3383 = vadd.f32 %v2988, %v3382
        %3384 = vdwg.mxu0
        %3385 = vmatpush.msra.mxu0 0.0
        %3386 = vmatpush.msra.mxu0 0.0
        %3387 = vmatpush.msra.mxu0 0.0
        %3388 = vmatpush.msra.mxu0 0.0
        %3389 = vmatpush.msra.mxu0 0.0
        %3390 = vmatpush.msra.mxu0 0.0
        %3391 = vmatpush.msra.mxu0 0.0
        %3392 = vmatpush.msra.mxu0 0.0
        %3393 = vmatpush.msra.mxu0 0.0
        %3394 = vmatpush.msra.mxu0 0.0
        %3395 = vmatpush.msra.mxu0 %v3191
        %3396 = vmatpush.msra.mxu0 %v3183
        %3397 = vmatpush.msra.mxu0 %v3175
        %3398 = vmatpush.msra.mxu0 %v3167
        %3399 = vmatpush.msra.mxu0 %v3159
        %3400 = vmatpush.msra.mxu0 %v3151
        %3401 = vmatmul.f32.gmra.mxu0 %v3242
        %v3402 = vpop.f32.mrf.mxu0
        %v3403 = vadd.f32 %v3008, %v3402
        %3404 = vmatmul.f32.gmra.mxu0 %v3245
        %v3405 = vpop.f32.mrf.mxu0
        %v3406 = vadd.f32 %v3011, %v3405
        %3407 = vdwg.mxu0
        %3408 = vmatpush.msra.mxu0 0.0
        %3409 = vmatpush.msra.mxu0 0.0
        %3410 = vmatpush.msra.mxu0 0.0
        %3411 = vmatpush.msra.mxu0 0.0
        %3412 = vmatpush.msra.mxu0 0.0
        %3413 = vmatpush.msra.mxu0 0.0
        %3414 = vmatpush.msra.mxu0 0.0
        %3415 = vmatpush.msra.mxu0 0.0
        %3416 = vmatpush.msra.mxu0 0.0
        %3417 = vmatpush.msra.mxu0 0.0
        %3418 = vmatpush.msra.mxu0 %v3192
        %3419 = vmatpush.msra.mxu0 %v3184
        %3420 = vmatpush.msra.mxu0 %v3176
        %3421 = vmatpush.msra.mxu0 %v3168
        %3422 = vmatpush.msra.mxu0 %v3160
        %3423 = vmatpush.msra.mxu0 %v3152
        %3424 = vmatmul.f32.gmra.mxu0 %v3242
        %v3425 = vpop.f32.mrf.mxu0
        %v3426 = vadd.f32 %v3031, %v3425
        %3427 = vmatmul.f32.gmra.mxu0 %v3245
        %v3428 = vpop.f32.mrf.mxu0
        %v3429 = vadd.f32 %v3034, %v3428
        %3430 = vdwg.mxu0
        %v3431 = vld [vmem:[%s2237 + $0x8] sm:$0xff]
        %v3432 = vld [vmem:[%s2237 + $0x10] sm:$0xff]
        %v3433 = vld [vmem:[%s2237 + $0x18] sm:$0xff]
        %v3434 = vld [vmem:[%s2237 + $0x20] sm:$0xff]
        %v3435 = vld [vmem:[%s2237 + $0x28] sm:$0xff]
        %v3436 = vld [vmem:[%s2237 + $0x30] sm:$0xff]
        %v3437 = vld [vmem:[%s2237 + $0x38] sm:$0xff]
        %v3438 = vld [vmem:[%s2237 + $0x40] sm:$0xff]
        %v3439 = vld [vmem:[%s2237 + $0x48] sm:$0xff]
        %v3440 = vld [vmem:[%s2237 + $0x58] sm:$0xff]
        %v3441 = vld [vmem:[%s2237 + $0x60] sm:$0xff]
        %v3442 = vld [vmem:[%s2237 + $0x68] sm:$0xff]
        %v3443 = vld [vmem:[%s2237 + $0x70] sm:$0xff]
        %v3444 = vld [vmem:[%s2237 + $0x78] sm:$0xff]
        %v3445 = vld [vmem:[%s2237 + $0x80] sm:$0xff]
        %v3446 = vld [vmem:[%s2237 + $0x88] sm:$0xff]
        %v3447 = vld [vmem:[%s2237 + $0x90] sm:$0xff]
        %v3448 = vld [vmem:[%s2237 + $0x98] sm:$0xff]
        %v3449 = vld [vmem:[#allocation2 + $0x8] sm:$0xff]
        %v3450 = vld [vmem:[#allocation2 + $0x10] sm:$0xff]
        %v3451 = vld [vmem:[#allocation2 + $0x18] sm:$0xff]
        %v3452 = vld [vmem:[#allocation2 + $0x20] sm:$0xff]
        %v3453 = vld [vmem:[#allocation2 + $0x28] sm:$0xff]
        %v3454 = vld [vmem:[#allocation2 + $0x30] sm:$0xff]
        %v3455 = vld [vmem:[#allocation2 + $0x38] sm:$0xff]
        %v3456 = vld [vmem:[#allocation2 + $0x40] sm:$0xff]
        %v3457 = vld [vmem:[#allocation2 + $0x48] sm:$0xff]
        %v3458 = vld [vmem:[#allocation2 + $0x58] sm:$0xff]
        %v3459 = vld [vmem:[#allocation2 + $0x60] sm:$0xff]
        %v3460 = vld [vmem:[#allocation2 + $0x68] sm:$0xff]
        %v3461 = vld [vmem:[#allocation2 + $0x70] sm:$0xff]
        %v3462 = vld [vmem:[#allocation2 + $0x78] sm:$0xff]
        %v3463 = vld [vmem:[#allocation2 + $0x80] sm:$0xff]
        %v3464 = vld [vmem:[#allocation2 + $0x88] sm:$0xff]
        %v3465 = vld [vmem:[#allocation2 + $0x90] sm:$0xff]
        %v3466 = vld [vmem:[#allocation2 + $0x98] sm:$0xff]
        %3485 = vrot.lane.b32.xlu0 %v3449, 127
        %v3486 = vpop.permute.xlu0 %3485
        %3487 = vrot.lane.b32.xlu0 %v3450, 127
        %v3488 = vpop.permute.xlu0 %3487
        %3489 = vrot.lane.b32.xlu0 %v3451, 127
        %v3490 = vpop.permute.xlu0 %3489
        %3491 = vrot.lane.b32.xlu0 %v3452, 127
        %v3492 = vpop.permute.xlu0 %3491
        %3493 = vrot.lane.b32.xlu0 %v3453, 127
        %v3494 = vpop.permute.xlu0 %3493
        %3495 = vrot.lane.b32.xlu0 %v3454, 127
        %v3496 = vpop.permute.xlu0 %3495
        %3497 = vrot.lane.b32.xlu0 %v3455, 127
        %v3498 = vpop.permute.xlu0 %3497
        %3499 = vrot.lane.b32.xlu0 %v3456, 127
        %v3500 = vpop.permute.xlu0 %3499
        %3501 = vrot.lane.b32.xlu0 %v3457, 127
        %v3502 = vpop.permute.xlu0 %3501
        %3503 = vrot.lane.b32.xlu0 %v3458, 127
        %v3504 = vpop.permute.xlu0 %3503
        %3505 = vrot.lane.b32.xlu0 %v3459, 127
        %v3506 = vpop.permute.xlu0 %3505
        %3507 = vrot.lane.b32.xlu0 %v3460, 127
        %v3508 = vpop.permute.xlu0 %3507
        %3509 = vrot.lane.b32.xlu0 %v3461, 127
        %v3510 = vpop.permute.xlu0 %3509
        %3511 = vrot.lane.b32.xlu0 %v3462, 127
        %v3512 = vpop.permute.xlu0 %3511
        %3513 = vrot.lane.b32.xlu0 %v3463, 127
        %v3514 = vpop.permute.xlu0 %3513
        %3515 = vrot.lane.b32.xlu0 %v3464, 127
        %v3516 = vpop.permute.xlu0 %3515
        %3517 = vrot.lane.b32.xlu0 %v3465, 127
        %v3518 = vpop.permute.xlu0 %3517
        %3519 = vrot.lane.b32.xlu0 %v3466, 127
        %v3520 = vpop.permute.xlu0 %3519
        %v3521 = vsel %vm2457, %v3486, %v3488
        %v3522 = vsel %vm2457, %v3488, %v3490
        %v3523 = vsel %vm2457, %v3490, %v3492
        %v3524 = vsel %vm2457, %v3492, %v3494
        %v3525 = vsel %vm2457, %v3494, %v3496
        %v3526 = vsel %vm2457, %v3496, %v3498
        %v3527 = vsel %vm2457, %v3498, %v3500
        %v3528 = vsel %vm2457, %v3500, %v3502
        %v3529 = vsel %vm2457, %v3504, %v3506
        %v3530 = vsel %vm2457, %v3506, %v3508
        %v3531 = vsel %vm2457, %v3508, %v3510
        %v3532 = vsel %vm2457, %v3510, %v3512
        %v3533 = vsel %vm2457, %v3512, %v3514
        %v3534 = vsel %vm2457, %v3514, %v3516
        %v3535 = vsel %vm2457, %v3516, %v3518
        %v3536 = vsel %vm2457, %v3518, %v3520
        %s3537 = scalar_lea.vmem %s10, 32
        %v3538 = vld [vmem:[%s3537] sm:$0xff]
        %v3539 = vld [vmem:[%s3537 + $0x8] sm:$0x3]
        %3558 = vrot.lane.b32.xlu0 %v3431, 65
        %v3559 = vpop.permute.xlu0 %3558
        %3560 = vrot.lane.b32.xlu0 %v3432, 65
        %v3561 = vpop.permute.xlu0 %3560
        %3562 = vrot.lane.b32.xlu0 %v3433, 65
        %v3563 = vpop.permute.xlu0 %3562
        %3564 = vrot.lane.b32.xlu0 %v3434, 65
        %v3565 = vpop.permute.xlu0 %3564
        %3566 = vrot.lane.b32.xlu0 %v3435, 65
        %v3567 = vpop.permute.xlu0 %3566
        %3568 = vrot.lane.b32.xlu0 %v3436, 65
        %v3569 = vpop.permute.xlu0 %3568
        %3570 = vrot.lane.b32.xlu0 %v3437, 65
        %v3571 = vpop.permute.xlu0 %3570
        %3572 = vrot.lane.b32.xlu0 %v3438, 65
        %v3573 = vpop.permute.xlu0 %3572
        %3574 = vrot.lane.b32.xlu0 %v3439, 65
        %v3575 = vpop.permute.xlu0 %3574
        %3576 = vrot.lane.b32.xlu0 %v3440, 65
        %v3577 = vpop.permute.xlu0 %3576
        %3578 = vrot.lane.b32.xlu0 %v3441, 65
        %v3579 = vpop.permute.xlu0 %3578
        %3580 = vrot.lane.b32.xlu0 %v3442, 65
        %v3581 = vpop.permute.xlu0 %3580
        %3582 = vrot.lane.b32.xlu0 %v3443, 65
        %v3583 = vpop.permute.xlu0 %3582
        %3584 = vrot.lane.b32.xlu0 %v3444, 65
        %v3585 = vpop.permute.xlu0 %3584
        %3586 = vrot.lane.b32.xlu0 %v3445, 65
        %v3587 = vpop.permute.xlu0 %3586
        %3588 = vrot.lane.b32.xlu0 %v3446, 65
        %v3589 = vpop.permute.xlu0 %3588
        %3590 = vrot.lane.b32.xlu0 %v3447, 65
        %v3591 = vpop.permute.xlu0 %3590
        %3592 = vrot.lane.b32.xlu0 %v3448, 65
        %v3593 = vpop.permute.xlu0 %3592
        %3594 = vrot.lane.b32.xlu0 %v3521, 65
        %v3595 = vpop.permute.xlu0 %3594
        %3596 = vrot.lane.b32.xlu0 %v3522, 65
        %v3597 = vpop.permute.xlu0 %3596
        %3598 = vrot.lane.b32.xlu0 %v3523, 65
        %v3599 = vpop.permute.xlu0 %3598
        %3600 = vrot.lane.b32.xlu0 %v3524, 65
        %v3601 = vpop.permute.xlu0 %3600
        %3602 = vrot.lane.b32.xlu0 %v3525, 65
        %v3603 = vpop.permute.xlu0 %3602
        %3604 = vrot.lane.b32.xlu0 %v3526, 65
        %v3605 = vpop.permute.xlu0 %3604
        %3606 = vrot.lane.b32.xlu0 %v3527, 65
        %v3607 = vpop.permute.xlu0 %3606
        %3608 = vrot.lane.b32.xlu0 %v3528, 65
        %v3609 = vpop.permute.xlu0 %3608
        %3610 = vrot.lane.b32.xlu0 %v3502, 65
        %v3611 = vpop.permute.xlu0 %3610
        %3612 = vrot.lane.b32.xlu0 %v3529, 65
        %v3613 = vpop.permute.xlu0 %3612
        %3614 = vrot.lane.b32.xlu0 %v3530, 65
        %v3615 = vpop.permute.xlu0 %3614
        %3616 = vrot.lane.b32.xlu0 %v3531, 65
        %v3617 = vpop.permute.xlu0 %3616
        %3618 = vrot.lane.b32.xlu0 %v3532, 65
        %v3619 = vpop.permute.xlu0 %3618
        %3620 = vrot.lane.b32.xlu0 %v3533, 65
        %v3621 = vpop.permute.xlu0 %3620
        %3622 = vrot.lane.b32.xlu0 %v3534, 65
        %v3623 = vpop.permute.xlu0 %3622
        %3624 = vrot.lane.b32.xlu0 %v3535, 65
        %v3625 = vpop.permute.xlu0 %3624
        %3626 = vrot.lane.b32.xlu0 %v3536, 65
        %v3627 = vpop.permute.xlu0 %3626
        %3628 = vrot.lane.b32.xlu0 %v3520, 65
        %v3629 = vpop.permute.xlu0 %3628
        %3630 = vrot.lane.b32.xlu0 %v2617, 65
        %v3631 = vpop.permute.xlu0 %3630
        %3632 = vrot.lane.b32.xlu0 %v2614, 65
        %v3633 = vpop.permute.xlu0 %3632
        %3634 = vrot.lane.b32.xlu0 %v2618, 65
        %v3635 = vpop.permute.xlu0 %3634
        %3636 = vrot.lane.b32.xlu0 %v2616, 65
        %v3637 = vpop.permute.xlu0 %3636
        %v3638 = vsel %vm3144, %v3559, %v3561
        %v3639 = vsel %vm3144, %v3561, %v3563
        %v3640 = vsel %vm3144, %v3563, %v3565
        %v3641 = vsel %vm3144, %v3565, %v3567
        %v3642 = vsel %vm3144, %v3567, %v3569
        %v3643 = vsel %vm3144, %v3569, %v3571
        %v3644 = vsel %vm3144, %v3571, %v3573
        %v3645 = vsel %vm3144, %v3573, %v3575
        %v3646 = vsel %vm3144, %v3577, %v3579
        %v3647 = vsel %vm3144, %v3579, %v3581
        %v3648 = vsel %vm3144, %v3581, %v3583
        %v3649 = vsel %vm3144, %v3583, %v3585
        %v3650 = vsel %vm3144, %v3585, %v3587
        %v3651 = vsel %vm3144, %v3587, %v3589
        %v3652 = vsel %vm3144, %v3589, %v3591
        %v3653 = vsel %vm3144, %v3591, %v3593
        %v3654 = vsel %vm3144, %v3595, %v3597
        %v3655 = vsel %vm3144, %v3597, %v3599
        %v3656 = vsel %vm3144, %v3599, %v3601
        %v3657 = vsel %vm3144, %v3601, %v3603
        %v3658 = vsel %vm3144, %v3603, %v3605
        %v3659 = vsel %vm3144, %v3605, %v3607
        %v3660 = vsel %vm3144, %v3607, %v3609
        %v3661 = vsel %vm3144, %v3609, %v3611
        %v3662 = vsel %vm3144, %v3613, %v3615
        %v3663 = vsel %vm3144, %v3615, %v3617
        %v3664 = vsel %vm3144, %v3617, %v3619
        %v3665 = vsel %vm3144, %v3619, %v3621
        %v3666 = vsel %vm3144, %v3621, %v3623
        %v3667 = vsel %vm3144, %v3623, %v3625
        %v3668 = vsel %vm3144, %v3625, %v3627
        %v3669 = vsel %vm3144, %v3627, %v3629
        %v3670 = vsel %vm3144, %v3123, %v3631
        %v3671 = vsel %vm3144, %v3631, %v3633
        %v3672 = vsel %vm3144, %v3141, %v3635
        %v3673 = vsel %vm3144, %v3635, %v3637
        %v3711 = vsel %vm2845, %v3538, 0
        %v3714 = vsel %vm2845, %v3539, 0
        %3716 = vmatpush.msra.mxu0 0.0
        %3717 = vmatpush.msra.mxu0 0.0
        %3718 = vmatpush.msra.mxu0 0.0
        %3719 = vmatpush.msra.mxu0 0.0
        %3720 = vmatpush.msra.mxu0 0.0
        %3721 = vmatpush.msra.mxu0 0.0
        %3722 = vmatpush.msra.mxu0 0.0
        %3723 = vmatpush.msra.mxu0 0.0
        %3724 = vmatpush.msra.mxu0 0.0
        %3725 = vmatpush.msra.mxu0 0.0
        %3726 = vmatpush.msra.mxu0 %v3186
        %3727 = vmatpush.msra.mxu0 %v3178
        %3728 = vmatpush.msra.mxu0 %v3662
        %3729 = vmatpush.msra.mxu0 %v3654
        %3730 = vmatpush.msra.mxu0 %v3646
        %3731 = vmatpush.msra.mxu0 %v3638
        %3732 = vmatmul.f32.gmra.mxu0 %v3711
        %v3733 = vpop.f32.mrf.mxu0
        %v3734 = vadd.f32 0.0, %v3733
        %3735 = vmatmul.f32.gmra.mxu0 %v3714
        %v3736 = vpop.f32.mrf.mxu0
        %v3737 = vadd.f32 0.0, %v3736
        %3738 = vdwg.mxu0
        %3739 = vmatpush.msra.mxu0 0.0
        %3740 = vmatpush.msra.mxu0 0.0
        %3741 = vmatpush.msra.mxu0 0.0
        %3742 = vmatpush.msra.mxu0 0.0
        %3743 = vmatpush.msra.mxu0 0.0
        %3744 = vmatpush.msra.mxu0 0.0
        %3745 = vmatpush.msra.mxu0 0.0
        %3746 = vmatpush.msra.mxu0 0.0
        %3747 = vmatpush.msra.mxu0 0.0
        %3748 = vmatpush.msra.mxu0 0.0
        %3749 = vmatpush.msra.mxu0 %v3187
        %3750 = vmatpush.msra.mxu0 %v3179
        %3751 = vmatpush.msra.mxu0 %v3663
        %3752 = vmatpush.msra.mxu0 %v3655
        %3753 = vmatpush.msra.mxu0 %v3647
        %3754 = vmatpush.msra.mxu0 %v3639
        %3755 = vmatmul.f32.gmra.mxu0 %v3711
        %v3756 = vpop.f32.mrf.mxu0
        %v3757 = vadd.f32 0.0, %v3756
        %3758 = vmatmul.f32.gmra.mxu0 %v3714
        %v3759 = vpop.f32.mrf.mxu0
        %v3760 = vadd.f32 0.0, %v3759
        %3761 = vdwg.mxu0
        %3762 = vmatpush.msra.mxu0 0.0
        %3763 = vmatpush.msra.mxu0 0.0
        %3764 = vmatpush.msra.mxu0 0.0
        %3765 = vmatpush.msra.mxu0 0.0
        %3766 = vmatpush.msra.mxu0 0.0
        %3767 = vmatpush.msra.mxu0 0.0
        %3768 = vmatpush.msra.mxu0 0.0
        %3769 = vmatpush.msra.mxu0 0.0
        %3770 = vmatpush.msra.mxu0 0.0
        %3771 = vmatpush.msra.mxu0 0.0
        %3772 = vmatpush.msra.mxu0 %v3188
        %3773 = vmatpush.msra.mxu0 %v3180
        %3774 = vmatpush.msra.mxu0 %v3664
        %3775 = vmatpush.msra.mxu0 %v3656
        %3776 = vmatpush.msra.mxu0 %v3648
        %3777 = vmatpush.msra.mxu0 %v3640
        %3778 = vmatmul.f32.gmra.mxu0 %v3711
        %v3779 = vpop.f32.mrf.mxu0
        %v3780 = vadd.f32 0.0, %v3779
        %3781 = vmatmul.f32.gmra.mxu0 %v3714
        %v3782 = vpop.f32.mrf.mxu0
        %v3783 = vadd.f32 0.0, %v3782
        %3784 = vdwg.mxu0
        %3785 = vmatpush.msra.mxu0 0.0
        %3786 = vmatpush.msra.mxu0 0.0
        %3787 = vmatpush.msra.mxu0 0.0
        %3788 = vmatpush.msra.mxu0 0.0
        %3789 = vmatpush.msra.mxu0 0.0
        %3790 = vmatpush.msra.mxu0 0.0
        %3791 = vmatpush.msra.mxu0 0.0
        %3792 = vmatpush.msra.mxu0 0.0
        %3793 = vmatpush.msra.mxu0 0.0
        %3794 = vmatpush.msra.mxu0 0.0
        %3795 = vmatpush.msra.mxu0 %v3189
        %3796 = vmatpush.msra.mxu0 %v3181
        %3797 = vmatpush.msra.mxu0 %v3665
        %3798 = vmatpush.msra.mxu0 %v3657
        %3799 = vmatpush.msra.mxu0 %v3649
        %3800 = vmatpush.msra.mxu0 %v3641
        %3801 = vmatmul.f32.gmra.mxu0 %v3711
        %v3802 = vpop.f32.mrf.mxu0
        %v3803 = vadd.f32 0.0, %v3802
        %3804 = vmatmul.f32.gmra.mxu0 %v3714
        %v3805 = vpop.f32.mrf.mxu0
        %v3806 = vadd.f32 0.0, %v3805
        %3807 = vdwg.mxu0
        %3808 = vmatpush.msra.mxu0 0.0
        %3809 = vmatpush.msra.mxu0 0.0
        %3810 = vmatpush.msra.mxu0 0.0
        %3811 = vmatpush.msra.mxu0 0.0
        %3812 = vmatpush.msra.mxu0 0.0
        %3813 = vmatpush.msra.mxu0 0.0
        %3814 = vmatpush.msra.mxu0 0.0
        %3815 = vmatpush.msra.mxu0 0.0
        %3816 = vmatpush.msra.mxu0 0.0
        %3817 = vmatpush.msra.mxu0 0.0
        %3818 = vmatpush.msra.mxu0 %v3190
        %3819 = vmatpush.msra.mxu0 %v3182
        %3820 = vmatpush.msra.mxu0 %v3666
        %3821 = vmatpush.msra.mxu0 %v3658
        %3822 = vmatpush.msra.mxu0 %v3650
        %3823 = vmatpush.msra.mxu0 %v3642
        %3824 = vmatmul.f32.gmra.mxu0 %v3711
        %v3825 = vpop.f32.mrf.mxu0
        %v3826 = vadd.f32 0.0, %v3825
        %3827 = vmatmul.f32.gmra.mxu0 %v3714
        %v3828 = vpop.f32.mrf.mxu0
        %v3829 = vadd.f32 0.0, %v3828
        %3830 = vdwg.mxu0
        %3831 = vmatpush.msra.mxu0 0.0
        %3832 = vmatpush.msra.mxu0 0.0
        %3833 = vmatpush.msra.mxu0 0.0
        %3834 = vmatpush.msra.mxu0 0.0
        %3835 = vmatpush.msra.mxu0 0.0
        %3836 = vmatpush.msra.mxu0 0.0
        %3837 = vmatpush.msra.mxu0 0.0
        %3838 = vmatpush.msra.mxu0 0.0
        %3839 = vmatpush.msra.mxu0 0.0
        %3840 = vmatpush.msra.mxu0 0.0
        %3841 = vmatpush.msra.mxu0 %v3191
        %3842 = vmatpush.msra.mxu0 %v3183
        %3843 = vmatpush.msra.mxu0 %v3667
        %3844 = vmatpush.msra.mxu0 %v3659
        %3845 = vmatpush.msra.mxu0 %v3651
        %3846 = vmatpush.msra.mxu0 %v3643
        %3847 = vmatmul.f32.gmra.mxu0 %v3711
        %v3848 = vpop.f32.mrf.mxu0
        %v3849 = vadd.f32 0.0, %v3848
        %3850 = vmatmul.f32.gmra.mxu0 %v3714
        %v3851 = vpop.f32.mrf.mxu0
        %v3852 = vadd.f32 0.0, %v3851
        %3853 = vdwg.mxu0
        %3854 = vmatpush.msra.mxu0 0.0
        %3855 = vmatpush.msra.mxu0 0.0
        %3856 = vmatpush.msra.mxu0 0.0
        %3857 = vmatpush.msra.mxu0 0.0
        %3858 = vmatpush.msra.mxu0 0.0
        %3859 = vmatpush.msra.mxu0 0.0
        %3860 = vmatpush.msra.mxu0 0.0
        %3861 = vmatpush.msra.mxu0 0.0
        %3862 = vmatpush.msra.mxu0 0.0
        %3863 = vmatpush.msra.mxu0 0.0
        %3864 = vmatpush.msra.mxu0 %v3672
        %3865 = vmatpush.msra.mxu0 %v3670
        %3866 = vmatpush.msra.mxu0 %v3668
        %3867 = vmatpush.msra.mxu0 %v3660
        %3868 = vmatpush.msra.mxu0 %v3652
        %3869 = vmatpush.msra.mxu0 %v3644
        %3870 = vmatmul.f32.gmra.mxu0 %v3711
        %v3871 = vpop.f32.mrf.mxu0
        %v3872 = vadd.f32 0.0, %v3871
        %3873 = vmatmul.f32.gmra.mxu0 %v3714
        %v3874 = vpop.f32.mrf.mxu0
        %v3875 = vadd.f32 0.0, %v3874
        %3876 = vdwg.mxu0
        %3877 = vmatpush.msra.mxu0 0.0
        %3878 = vmatpush.msra.mxu0 0.0
        %3879 = vmatpush.msra.mxu0 0.0
        %3880 = vmatpush.msra.mxu0 0.0
        %3881 = vmatpush.msra.mxu0 0.0
        %3882 = vmatpush.msra.mxu0 0.0
        %3883 = vmatpush.msra.mxu0 0.0
        %3884 = vmatpush.msra.mxu0 0.0
        %3885 = vmatpush.msra.mxu0 0.0
        %3886 = vmatpush.msra.mxu0 0.0
        %3887 = vmatpush.msra.mxu0 %v3673
        %3888 = vmatpush.msra.mxu0 %v3671
        %3889 = vmatpush.msra.mxu0 %v3669
        %3890 = vmatpush.msra.mxu0 %v3661
        %3891 = vmatpush.msra.mxu0 %v3653
        %3892 = vmatpush.msra.mxu0 %v3645
        %3893 = vmatmul.f32.gmra.mxu0 %v3711
        %v3894 = vpop.f32.mrf.mxu0
        %v3895 = vadd.f32 0.0, %v3894
        %3896 = vmatmul.f32.gmra.mxu0 %v3714
        %v3897 = vpop.f32.mrf.mxu0
        %v3898 = vadd.f32 0.0, %v3897
        %3899 = vdwg.mxu0
        %v3900 = vadd.f32 %v3265, %v3734
        %v3901 = vadd.f32 %v3288, %v3757
        %v3902 = vadd.f32 %v3311, %v3780
        %v3903 = vadd.f32 %v3334, %v3803
        %v3904 = vadd.f32 %v3357, %v3826
        %v3905 = vadd.f32 %v3380, %v3849
        %v3906 = vadd.f32 %v3403, %v3872
        %v3907 = vadd.f32 %v3426, %v3895
        %v3908 = vadd.f32 %v3268, %v3737
        %v3909 = vadd.f32 %v3291, %v3760
        %v3910 = vadd.f32 %v3314, %v3783
        %v3911 = vadd.f32 %v3337, %v3806
        %v3912 = vadd.f32 %v3360, %v3829
        %v3913 = vadd.f32 %v3383, %v3852
        %v3914 = vadd.f32 %v3406, %v3875
        %v3915 = vadd.f32 %v3429, %v3898
        %v3916 = vld [vmem:[%s11] sm:$0xff]
        %v3917 = vld [vmem:[%s11 + $0x8] sm:$0x3]
        %3919 = vset.pattern.permute.xlu0 0
        %3920 = vperm.xlu0 %3919, %v3916
        %v3921 = vpop.permute.xlu0 %3920
        %3924 = vset.pattern.permute.xlu0 0
        %3925 = vperm.xlu0 %3924, %v3917
        %v3926 = vpop.permute.xlu0 %3925
        %v3928 = vadd.f32 %v3900, %v3921
        %v3929 = vadd.f32 %v3901, %v3921
        %v3930 = vadd.f32 %v3902, %v3921
        %v3931 = vadd.f32 %v3903, %v3921
        %v3932 = vadd.f32 %v3904, %v3921
        %v3933 = vadd.f32 %v3905, %v3921
        %v3934 = vadd.f32 %v3906, %v3921
        %v3935 = vadd.f32 %v3907, %v3921
        %v3936 = vadd.f32 %v3908, %v3926
        %v3937 = vadd.f32 %v3909, %v3926
        %v3938 = vadd.f32 %v3910, %v3926
        %v3939 = vadd.f32 %v3911, %v3926
        %v3940 = vadd.f32 %v3912, %v3926
        %v3941 = vadd.f32 %v3913, %v3926
        %v3942 = vadd.f32 %v3914, %v3926
        %v3943 = vadd.f32 %v3915, %v3926
        %v3944 = vxor.u32 %v3928, 2147483648
        %v3945 = vxor.u32 %v3929, 2147483648
        %v3946 = vxor.u32 %v3930, 2147483648
        %v3947 = vxor.u32 %v3931, 2147483648
        %v3948 = vxor.u32 %v3932, 2147483648
        %v3949 = vxor.u32 %v3933, 2147483648
        %v3950 = vxor.u32 %v3934, 2147483648
        %v3951 = vxor.u32 %v3935, 2147483648
        %v3952 = vxor.u32 %v3936, 2147483648
        %v3953 = vxor.u32 %v3937, 2147483648
        %v3954 = vxor.u32 %v3938, 2147483648
        %v3955 = vxor.u32 %v3939, 2147483648
        %v3956 = vxor.u32 %v3940, 2147483648
        %v3957 = vxor.u32 %v3941, 2147483648
        %v3958 = vxor.u32 %v3942, 2147483648
        %v3959 = vxor.u32 %v3943, 2147483648
        %v3960 = vmul.f32 %v3944, 1.442695
        %v3961 = vpow.pop %v3960
        %v3962 = vmul.f32 %v3945, 1.442695
        %v3963 = vpow.pop %v3962
        %v3964 = vmul.f32 %v3946, 1.442695
        %v3965 = vpow.pop %v3964
        %v3966 = vmul.f32 %v3947, 1.442695
        %v3967 = vpow.pop %v3966
        %v3968 = vmul.f32 %v3948, 1.442695
        %v3969 = vpow.pop %v3968
        %v3970 = vmul.f32 %v3949, 1.442695
        %v3971 = vpow.pop %v3970
        %v3972 = vmul.f32 %v3950, 1.442695
        %v3973 = vpow.pop %v3972
        %v3974 = vmul.f32 %v3951, 1.442695
        %v3975 = vpow.pop %v3974
        %v3976 = vmul.f32 %v3952, 1.442695
        %v3977 = vpow.pop %v3976
        %v3978 = vmul.f32 %v3953, 1.442695
        %v3979 = vpow.pop %v3978
        %v3980 = vmul.f32 %v3954, 1.442695
        %v3981 = vpow.pop %v3980
        %v3982 = vmul.f32 %v3955, 1.442695
        %v3983 = vpow.pop %v3982
        %v3984 = vmul.f32 %v3956, 1.442695
        %v3985 = vpow.pop %v3984
        %v3986 = vmul.f32 %v3957, 1.442695
        %v3987 = vpow.pop %v3986
        %v3988 = vmul.f32 %v3958, 1.442695
        %v3989 = vpow.pop %v3988
        %v3990 = vmul.f32 %v3959, 1.442695
        %v3991 = vpow.pop %v3990
        %v3992 = vadd.f32 %v3961, 1.0
        %v3993 = vadd.f32 %v3963, 1.0
        %v3994 = vadd.f32 %v3965, 1.0
        %v3995 = vadd.f32 %v3967, 1.0
        %v3996 = vadd.f32 %v3969, 1.0
        %v3997 = vadd.f32 %v3971, 1.0
        %v3998 = vadd.f32 %v3973, 1.0
        %v3999 = vadd.f32 %v3975, 1.0
        %v4000 = vadd.f32 %v3977, 1.0
        %v4001 = vadd.f32 %v3979, 1.0
        %v4002 = vadd.f32 %v3981, 1.0
        %v4003 = vadd.f32 %v3983, 1.0
        %v4004 = vadd.f32 %v3985, 1.0
        %v4005 = vadd.f32 %v3987, 1.0
        %v4006 = vadd.f32 %v3989, 1.0
        %v4007 = vadd.f32 %v3991, 1.0
        %v4008 = vrcp.pop %v3992
        %v4009 = vmul.f32 %v3992, %v4008
        %v4010 = vsub.f32 1.0, %v4009
        %v4011 = vmul.f32 %v4008, %v4010
        %v4012 = vadd.f32 %v4008, %v4011
        %vm4013 = vweird.f32 %v3992
        %vm4014 = vweird.f32 %v4008
        %vm4015 = vmor %vm4013, %vm4014
        %v4016 = vsel %vm4015, %v4008, %v4012
        %v4017 = vand.u32 2147483647, %v3992
        %vm4018 = vcmp.eq.f32.partialorder %v4017, 8.507059e+37
        %v4019 = vand.u32 %v3992, 2147483648
        %v4020 = vor.u32 1.1754944e-38, %v4019
        %v4021 = vsel %vm4018, %v4020, %v4016
        %v4022 = vmul.f32 1.0, %v4021
        %v4023 = vrcp.pop %v3993
        %v4024 = vmul.f32 %v3993, %v4023
        %v4025 = vsub.f32 1.0, %v4024
        %v4026 = vmul.f32 %v4023, %v4025
        %v4027 = vadd.f32 %v4023, %v4026
        %vm4028 = vweird.f32 %v3993
        %vm4029 = vweird.f32 %v4023
        %vm4030 = vmor %vm4028, %vm4029
        %v4031 = vsel %vm4030, %v4023, %v4027
        %v4032 = vand.u32 2147483647, %v3993
        %vm4033 = vcmp.eq.f32.partialorder %v4032, 8.507059e+37
        %v4034 = vand.u32 %v3993, 2147483648
        %v4035 = vor.u32 1.1754944e-38, %v4034
        %v4036 = vsel %vm4033, %v4035, %v4031
        %v4037 = vmul.f32 1.0, %v4036
        %v4038 = vrcp.pop %v3994
        %v4039 = vmul.f32 %v3994, %v4038
        %v4040 = vsub.f32 1.0, %v4039
        %v4041 = vmul.f32 %v4038, %v4040
        %v4042 = vadd.f32 %v4038, %v4041
        %vm4043 = vweird.f32 %v3994
        %vm4044 = vweird.f32 %v4038
        %vm4045 = vmor %vm4043, %vm4044
        %v4046 = vsel %vm4045, %v4038, %v4042
        %v4047 = vand.u32 2147483647, %v3994
        %vm4048 = vcmp.eq.f32.partialorder %v4047, 8.507059e+37
        %v4049 = vand.u32 %v3994, 2147483648
        %v4050 = vor.u32 1.1754944e-38, %v4049
        %v4051 = vsel %vm4048, %v4050, %v4046
        %v4052 = vmul.f32 1.0, %v4051
        %v4053 = vrcp.pop %v3995
        %v4054 = vmul.f32 %v3995, %v4053
        %v4055 = vsub.f32 1.0, %v4054
        %v4056 = vmul.f32 %v4053, %v4055
        %v4057 = vadd.f32 %v4053, %v4056
        %vm4058 = vweird.f32 %v3995
        %vm4059 = vweird.f32 %v4053
        %vm4060 = vmor %vm4058, %vm4059
        %v4061 = vsel %vm4060, %v4053, %v4057
        %v4062 = vand.u32 2147483647, %v3995
        %vm4063 = vcmp.eq.f32.partialorder %v4062, 8.507059e+37
        %v4064 = vand.u32 %v3995, 2147483648
        %v4065 = vor.u32 1.1754944e-38, %v4064
        %v4066 = vsel %vm4063, %v4065, %v4061
        %v4067 = vmul.f32 1.0, %v4066
        %v4068 = vrcp.pop %v3996
        %v4069 = vmul.f32 %v3996, %v4068
        %v4070 = vsub.f32 1.0, %v4069
        %v4071 = vmul.f32 %v4068, %v4070
        %v4072 = vadd.f32 %v4068, %v4071
        %vm4073 = vweird.f32 %v3996
        %vm4074 = vweird.f32 %v4068
        %vm4075 = vmor %vm4073, %vm4074
        %v4076 = vsel %vm4075, %v4068, %v4072
        %v4077 = vand.u32 2147483647, %v3996
        %vm4078 = vcmp.eq.f32.partialorder %v4077, 8.507059e+37
        %v4079 = vand.u32 %v3996, 2147483648
        %v4080 = vor.u32 1.1754944e-38, %v4079
        %v4081 = vsel %vm4078, %v4080, %v4076
        %v4082 = vmul.f32 1.0, %v4081
        %v4083 = vrcp.pop %v3997
        %v4084 = vmul.f32 %v3997, %v4083
        %v4085 = vsub.f32 1.0, %v4084
        %v4086 = vmul.f32 %v4083, %v4085
        %v4087 = vadd.f32 %v4083, %v4086
        %vm4088 = vweird.f32 %v3997
        %vm4089 = vweird.f32 %v4083
        %vm4090 = vmor %vm4088, %vm4089
        %v4091 = vsel %vm4090, %v4083, %v4087
        %v4092 = vand.u32 2147483647, %v3997
        %vm4093 = vcmp.eq.f32.partialorder %v4092, 8.507059e+37
        %v4094 = vand.u32 %v3997, 2147483648
        %v4095 = vor.u32 1.1754944e-38, %v4094
        %v4096 = vsel %vm4093, %v4095, %v4091
        %v4097 = vmul.f32 1.0, %v4096
        %v4098 = vrcp.pop %v3998
        %v4099 = vmul.f32 %v3998, %v4098
        %v4100 = vsub.f32 1.0, %v4099
        %v4101 = vmul.f32 %v4098, %v4100
        %v4102 = vadd.f32 %v4098, %v4101
        %vm4103 = vweird.f32 %v3998
        %vm4104 = vweird.f32 %v4098
        %vm4105 = vmor %vm4103, %vm4104
        %v4106 = vsel %vm4105, %v4098, %v4102
        %v4107 = vand.u32 2147483647, %v3998
        %vm4108 = vcmp.eq.f32.partialorder %v4107, 8.507059e+37
        %v4109 = vand.u32 %v3998, 2147483648
        %v4110 = vor.u32 1.1754944e-38, %v4109
        %v4111 = vsel %vm4108, %v4110, %v4106
        %v4112 = vmul.f32 1.0, %v4111
        %v4113 = vrcp.pop %v3999
        %v4114 = vmul.f32 %v3999, %v4113
        %v4115 = vsub.f32 1.0, %v4114
        %v4116 = vmul.f32 %v4113, %v4115
        %v4117 = vadd.f32 %v4113, %v4116
        %vm4118 = vweird.f32 %v3999
        %vm4119 = vweird.f32 %v4113
        %vm4120 = vmor %vm4118, %vm4119
        %v4121 = vsel %vm4120, %v4113, %v4117
        %v4122 = vand.u32 2147483647, %v3999
        %vm4123 = vcmp.eq.f32.partialorder %v4122, 8.507059e+37
        %v4124 = vand.u32 %v3999, 2147483648
        %v4125 = vor.u32 1.1754944e-38, %v4124
        %v4126 = vsel %vm4123, %v4125, %v4121
        %v4127 = vmul.f32 1.0, %v4126
        %v4128 = vrcp.pop %v4000
        %v4129 = vmul.f32 %v4000, %v4128
        %v4130 = vsub.f32 1.0, %v4129
        %v4131 = vmul.f32 %v4128, %v4130
        %v4132 = vadd.f32 %v4128, %v4131
        %vm4133 = vweird.f32 %v4000
        %vm4134 = vweird.f32 %v4128
        %vm4135 = vmor %vm4133, %vm4134
        %v4136 = vsel %vm4135, %v4128, %v4132
        %v4137 = vand.u32 2147483647, %v4000
        %vm4138 = vcmp.eq.f32.partialorder %v4137, 8.507059e+37
        %v4139 = vand.u32 %v4000, 2147483648
        %v4140 = vor.u32 1.1754944e-38, %v4139
        %v4141 = vsel %vm4138, %v4140, %v4136
        %v4142 = vmul.f32 1.0, %v4141
        %v4143 = vrcp.pop %v4001
        %v4144 = vmul.f32 %v4001, %v4143
        %v4145 = vsub.f32 1.0, %v4144
        %v4146 = vmul.f32 %v4143, %v4145
        %v4147 = vadd.f32 %v4143, %v4146
        %vm4148 = vweird.f32 %v4001
        %vm4149 = vweird.f32 %v4143
        %vm4150 = vmor %vm4148, %vm4149
        %v4151 = vsel %vm4150, %v4143, %v4147
        %v4152 = vand.u32 2147483647, %v4001
        %vm4153 = vcmp.eq.f32.partialorder %v4152, 8.507059e+37
        %v4154 = vand.u32 %v4001, 2147483648
        %v4155 = vor.u32 1.1754944e-38, %v4154
        %v4156 = vsel %vm4153, %v4155, %v4151
        %v4157 = vmul.f32 1.0, %v4156
        %v4158 = vrcp.pop %v4002
        %v4159 = vmul.f32 %v4002, %v4158
        %v4160 = vsub.f32 1.0, %v4159
        %v4161 = vmul.f32 %v4158, %v4160
        %v4162 = vadd.f32 %v4158, %v4161
        %vm4163 = vweird.f32 %v4002
        %vm4164 = vweird.f32 %v4158
        %vm4165 = vmor %vm4163, %vm4164
        %v4166 = vsel %vm4165, %v4158, %v4162
        %v4167 = vand.u32 2147483647, %v4002
        %vm4168 = vcmp.eq.f32.partialorder %v4167, 8.507059e+37
        %v4169 = vand.u32 %v4002, 2147483648
        %v4170 = vor.u32 1.1754944e-38, %v4169
        %v4171 = vsel %vm4168, %v4170, %v4166
        %v4172 = vmul.f32 1.0, %v4171
        %v4173 = vrcp.pop %v4003
        %v4174 = vmul.f32 %v4003, %v4173
        %v4175 = vsub.f32 1.0, %v4174
        %v4176 = vmul.f32 %v4173, %v4175
        %v4177 = vadd.f32 %v4173, %v4176
        %vm4178 = vweird.f32 %v4003
        %vm4179 = vweird.f32 %v4173
        %vm4180 = vmor %vm4178, %vm4179
        %v4181 = vsel %vm4180, %v4173, %v4177
        %v4182 = vand.u32 2147483647, %v4003
        %vm4183 = vcmp.eq.f32.partialorder %v4182, 8.507059e+37
        %v4184 = vand.u32 %v4003, 2147483648
        %v4185 = vor.u32 1.1754944e-38, %v4184
        %v4186 = vsel %vm4183, %v4185, %v4181
        %v4187 = vmul.f32 1.0, %v4186
        %v4188 = vrcp.pop %v4004
        %v4189 = vmul.f32 %v4004, %v4188
        %v4190 = vsub.f32 1.0, %v4189
        %v4191 = vmul.f32 %v4188, %v4190
        %v4192 = vadd.f32 %v4188, %v4191
        %vm4193 = vweird.f32 %v4004
        %vm4194 = vweird.f32 %v4188
        %vm4195 = vmor %vm4193, %vm4194
        %v4196 = vsel %vm4195, %v4188, %v4192
        %v4197 = vand.u32 2147483647, %v4004
        %vm4198 = vcmp.eq.f32.partialorder %v4197, 8.507059e+37
        %v4199 = vand.u32 %v4004, 2147483648
        %v4200 = vor.u32 1.1754944e-38, %v4199
        %v4201 = vsel %vm4198, %v4200, %v4196
        %v4202 = vmul.f32 1.0, %v4201
        %v4203 = vrcp.pop %v4005
        %v4204 = vmul.f32 %v4005, %v4203
        %v4205 = vsub.f32 1.0, %v4204
        %v4206 = vmul.f32 %v4203, %v4205
        %v4207 = vadd.f32 %v4203, %v4206
        %vm4208 = vweird.f32 %v4005
        %vm4209 = vweird.f32 %v4203
        %vm4210 = vmor %vm4208, %vm4209
        %v4211 = vsel %vm4210, %v4203, %v4207
        %v4212 = vand.u32 2147483647, %v4005
        %vm4213 = vcmp.eq.f32.partialorder %v4212, 8.507059e+37
        %v4214 = vand.u32 %v4005, 2147483648
        %v4215 = vor.u32 1.1754944e-38, %v4214
        %v4216 = vsel %vm4213, %v4215, %v4211
        %v4217 = vmul.f32 1.0, %v4216
        %v4218 = vrcp.pop %v4006
        %v4219 = vmul.f32 %v4006, %v4218
        %v4220 = vsub.f32 1.0, %v4219
        %v4221 = vmul.f32 %v4218, %v4220
        %v4222 = vadd.f32 %v4218, %v4221
        %vm4223 = vweird.f32 %v4006
        %vm4224 = vweird.f32 %v4218
        %vm4225 = vmor %vm4223, %vm4224
        %v4226 = vsel %vm4225, %v4218, %v4222
        %v4227 = vand.u32 2147483647, %v4006
        %vm4228 = vcmp.eq.f32.partialorder %v4227, 8.507059e+37
        %v4229 = vand.u32 %v4006, 2147483648
        %v4230 = vor.u32 1.1754944e-38, %v4229
        %v4231 = vsel %vm4228, %v4230, %v4226
        %v4232 = vmul.f32 1.0, %v4231
        %v4233 = vrcp.pop %v4007
        %v4234 = vmul.f32 %v4007, %v4233
        %v4235 = vsub.f32 1.0, %v4234
        %v4236 = vmul.f32 %v4233, %v4235
        %v4237 = vadd.f32 %v4233, %v4236
        %vm4238 = vweird.f32 %v4007
        %vm4239 = vweird.f32 %v4233
        %vm4240 = vmor %vm4238, %vm4239
        %v4241 = vsel %vm4240, %v4233, %v4237
        %v4242 = vand.u32 2147483647, %v4007
        %vm4243 = vcmp.eq.f32.partialorder %v4242, 8.507059e+37
        %v4244 = vand.u32 %v4007, 2147483648
        %v4245 = vor.u32 1.1754944e-38, %v4244
        %v4246 = vsel %vm4243, %v4245, %v4241
        %v4247 = vmul.f32 1.0, %v4246
        %4248 = vst [vmem:[%s509] sm:$0xff] %v4022
        %4249 = vst [vmem:[%s509 + $0x8] sm:$0xff] %v4037
        %4250 = vst [vmem:[%s509 + $0x10] sm:$0xff] %v4052
        %4251 = vst [vmem:[%s509 + $0x18] sm:$0xff] %v4067
        %4252 = vst [vmem:[%s509 + $0x20] sm:$0xff] %v4082
        %4253 = vst [vmem:[%s509 + $0x28] sm:$0xff] %v4097
        %4254 = vst [vmem:[%s509 + $0x30] sm:$0xff] %v4112
        %4255 = vst [vmem:[%s509 + $0x38] sm:$0xff] %v4127
        %4256 = vst [vmem:[%s509 + $0x40] sm:$0x3] %v4142
        %4257 = vst [vmem:[%s509 + $0x48] sm:$0x3] %v4157
        %4258 = vst [vmem:[%s509 + $0x50] sm:$0x3] %v4172
        %4259 = vst [vmem:[%s509 + $0x58] sm:$0x3] %v4187
        %4260 = vst [vmem:[%s509 + $0x60] sm:$0x3] %v4202
        %4261 = vst [vmem:[%s509 + $0x68] sm:$0x3] %v4217
        %4262 = vst [vmem:[%s509 + $0x70] sm:$0x3] %v4232
        %4263 = vst [vmem:[%s509 + $0x78] sm:$0x3] %v4247
        %s4264 = sand.u32 %s330, 1
        %s4265 = sand.u32 %s330, 1
        %s4266 = smul.addr %s4265, 128
        %s4267 = scalar_lea.vmem [#allocation3], %s4266
        // Predicated region
        $region69: #{tpu_custom_call.1} parent=67 // pred_check
          %p4268 = pneg %p340
        $region70: #{tpu_custom_call.1} parent=67 // pred_check_branch
          %4270 = sbr.rel (%p4268) target = $region72
        $region71: #{tpu_custom_call.1} parent=67 // pred_region
          %s4271 = smul.u32 8, %s28
          %s4272 = smul.addr %s27, 64
          %s4273 = sadd.s32 %s4271, %s4272
          %s4274 = smul.addr %s4273, 8
          %s4275 = scalar_lea.vmem %s12, %s4274
          // Predicated region
          $region73: #{tpu_custom_call.1} parent=71 // pred_check
            _
          $region74: #{tpu_custom_call.1} parent=71 // pred_check_branch
            %4277 = sbr.rel (0) target = $region76
          $region75: #{tpu_custom_call.1} parent=71 // pred_region
            // Predicated region
            $region77: #{tpu_custom_call.1} parent=75 // pred_check
              _
            $region78: #{tpu_custom_call.1} parent=75 // pred_check_branch
              %4279 = sbr.rel (0) target = $region80
            $region79: #{tpu_custom_call.1} parent=75 // pred_region
              loop: start=0, step=1, limit=1
              $region81: #{tpu_custom_call.1} parent=79 // loop_pre_header
                _
              $region82: #{tpu_custom_call.1} parent=79 // loop_header
                %s4281 = sphi 0, %s4285
                %p4282 = scmp.ge.s32.totalorder %s4281, 1
                %s4286 = sphi %s4267, %s4267
                %s4287 = sphi %s4275, %s4275
              $region83: #{tpu_custom_call.1} parent=79 // loop_header_branch
                %4284 = sbr.rel (%p4282) target = $region87
              $region84: #{tpu_custom_call.1} parent=79 // loop_body
                %v4288 = vld [vmem:[%s4286] sm:$0xff]
                %4289 = vst [vmem:[%s4287] sm:$0xff] %v4288
                %v4290 = vld [vmem:[%s4286 + $0x8] sm:$0xff]
                %4291 = vst [vmem:[%s4287 + $0x8] sm:$0xff] %v4290
                %v4292 = vld [vmem:[%s4286 + $0x10] sm:$0xff]
                %4293 = vst [vmem:[%s4287 + $0x10] sm:$0xff] %v4292
                %v4294 = vld [vmem:[%s4286 + $0x18] sm:$0xff]
                %4295 = vst [vmem:[%s4287 + $0x18] sm:$0xff] %v4294
                %v4296 = vld [vmem:[%s4286 + $0x20] sm:$0xff]
                %4297 = vst [vmem:[%s4287 + $0x20] sm:$0xff] %v4296
                %v4298 = vld [vmem:[%s4286 + $0x28] sm:$0xff]
                %4299 = vst [vmem:[%s4287 + $0x28] sm:$0xff] %v4298
                %v4300 = vld [vmem:[%s4286 + $0x30] sm:$0xff]
                %4301 = vst [vmem:[%s4287 + $0x30] sm:$0xff] %v4300
                %v4302 = vld [vmem:[%s4286 + $0x38] sm:$0xff]
                %4303 = vst [vmem:[%s4287 + $0x38] sm:$0xff] %v4302
                %v4304 = vld [vmem:[%s4286 + $0x40] sm:$0xff]
                %4305 = vst [vmem:[%s4287 + $0x100] sm:$0xff] %v4304
                %v4306 = vld [vmem:[%s4286 + $0x48] sm:$0xff]
                %4307 = vst [vmem:[%s4287 + $0x108] sm:$0xff] %v4306
                %v4308 = vld [vmem:[%s4286 + $0x50] sm:$0xff]
                %4309 = vst [vmem:[%s4287 + $0x110] sm:$0xff] %v4308
                %v4310 = vld [vmem:[%s4286 + $0x58] sm:$0xff]
                %4311 = vst [vmem:[%s4287 + $0x118] sm:$0xff] %v4310
                %v4312 = vld [vmem:[%s4286 + $0x60] sm:$0xff]
                %4313 = vst [vmem:[%s4287 + $0x120] sm:$0xff] %v4312
                %v4314 = vld [vmem:[%s4286 + $0x68] sm:$0xff]
                %4315 = vst [vmem:[%s4287 + $0x128] sm:$0xff] %v4314
                %v4316 = vld [vmem:[%s4286 + $0x70] sm:$0xff]
                %4317 = vst [vmem:[%s4287 + $0x130] sm:$0xff] %v4316
                %v4318 = vld [vmem:[%s4286 + $0x78] sm:$0xff]
                %4319 = vst [vmem:[%s4287 + $0x138] sm:$0xff] %v4318
              $region85: #{tpu_custom_call.1} parent=79 // loop_footer
                %s4285 = sadd.s32 1, %s4281
              $region86: #{tpu_custom_call.1} parent=79 // loop_footer_branch
                %4280 = sbr.rel target = $region82
              $region87: #{tpu_custom_call.1} parent=79 // loop_exit
                _
            $region80: #{tpu_custom_call.1} parent=75 // pred_fallthru
              _
            // Predicated region
            $region88: #{tpu_custom_call.1} parent=75 // pred_check
              _
            $region89: #{tpu_custom_call.1} parent=75 // pred_check_branch
              %4321 = sbr.rel target = $region91
            $region90: #{tpu_custom_call.1} parent=75 // pred_region
              _
            $region91: #{tpu_custom_call.1} parent=75 // pred_fallthru
              _
          $region76: #{tpu_custom_call.1} parent=71 // pred_fallthru
            _
          %4322 = vnop
        $region72: #{tpu_custom_call.1} parent=67 // pred_fallthru
          _
      $region68: #{tpu_custom_call.1} parent=5 // pred_fallthru
        _
      %p4323 = scmp.le.s32.totalorder 2, %s18
      // Predicated region
      $region92: #{tpu_custom_call.1} parent=5 // pred_check
        %p4324 = pneg %p4323
      $region93: #{tpu_custom_call.1} parent=5 // pred_check_branch
        %4326 = sbr.rel (%p4324) target = $region95
      $region94: #{tpu_custom_call.1} parent=5 // pred_region
        %s4327 = ssub.s32 %s18, 2
        // Predicated region
        $region96: #{tpu_custom_call.1} parent=94 // pred_check
          %p4328 = pneg %p346
        $region97: #{tpu_custom_call.1} parent=94 // pred_check_branch
          %4330 = sbr.rel (%p4328) target = $region99
        $region98: #{tpu_custom_call.1} parent=94 // pred_region
          %s4331 = sand.u32 %s331, 1
          %s4332 = sand.u32 %s331, 1
          %s4333 = smul.addr %s4332, 128
          %s4334 = scalar_lea.vmem [#allocation3], %s4333
        $region99: #{tpu_custom_call.1} parent=94 // pred_fallthru
          _
      $region95: #{tpu_custom_call.1} parent=5 // pred_fallthru
        _
    $region6: #{tpu_custom_call.1} parent=1 // loop_footer
      %s22 = sadd.s32 1, %s18
    $region7: #{tpu_custom_call.1} parent=1 // loop_footer_branch
      %17 = sbr.rel target = $region3
    $region8: #{tpu_custom_call.1} parent=1 // loop_exit
      _

</llo_original>
